<compile_context>
chip_gen: v7x
topology: tpu7x:2x2x1
jax: 0.10.0
libtpu: 0.0.40
codegen_flags: <defaults>
</compile_context>

<pallas_src>
import jax
import jax.numpy as jnp
import numpy as np
from jax import lax
from jax.experimental import pallas as pl
from jax.experimental.pallas import tpu as pltpu

jax.config.update("jax_default_matmul_precision", "highest")


# ----------------------------------------------------------------------------
# Kernel
# ----------------------------------------------------------------------------
def decoder_kernel(tok_ref, gi_tab_ref, h0_ref,
                   w_hh_rz_ref, w_hh_n_ref, b_hh_n_ref,
                   w_out_ref, b_out_ref,
                   logp_ref, hT_ref):
    N = tok_ref.shape[0]            # S * B_pad   (rows grouped by timestep)
    V = gi_tab_ref.shape[1]
    H = gi_tab_ref.shape[2]
    Bp = h0_ref.shape[0]            # padded batch
    S = N // Bp

    # ---- fused embedding + input-projection lookup via one-hot matmul -----
    # gi_table[g] already contains relu(E) @ W_ih_g + b_ih_g (+ b_hh_g for r,z)
    tok = tok_ref[...]                                        # (N, 1) int32
    iota_v = lax.broadcasted_iota(jnp.int32, (N, V), 1)
    onehot = (iota_v == tok).astype(jnp.float32)              # (N, V)

    gi_r = jnp.dot(onehot, gi_tab_ref[0], preferred_element_type=jnp.float32)
    gi_z = jnp.dot(onehot, gi_tab_ref[1], preferred_element_type=jnp.float32)
    gi_n = jnp.dot(onehot, gi_tab_ref[2], preferred_element_type=jnp.float32)

    w_hh_rz = w_hh_rz_ref[...]      # (H, 2H)  fused r|z hidden weights
    w_hh_n = w_hh_n_ref[...]        # (H, H)
    b_hh_n = b_hh_n_ref[...]        # (1, H)

    def step(t, h):
        lo, hi = t * Bp, (t + 1) * Bp        # static, 8-row aligned slices
        gh_rz = jnp.dot(h, w_hh_rz, preferred_element_type=jnp.float32)   # (Bp, 2H)
        gh_n = jnp.dot(h, w_hh_n, preferred_element_type=jnp.float32) + b_hh_n
        r = jax.nn.sigmoid(gi_r[lo:hi] + gh_rz[:, :H])
        z = jax.nn.sigmoid(gi_z[lo:hi] + gh_rz[:, H:])
        n = jnp.tanh(gi_n[lo:hi] + r * gh_n)
        return n + z * (h - n)

    # Fully unrolled recurrence; hidden state lives in registers.
    h = step(0, h0_ref[...])
    out0 = h                         # GRU output[0] feeds the classifier
    for t in range(1, S):
        h = step(t, h)

    # ---- Linear + LogSoftmax(dim=1) on output[0] (lane-dense V_pad) -------
    logits = jnp.dot(out0, w_out_ref[...],
                     preferred_element_type=jnp.float32) + b_out_ref[...]   # (Bp, V_pad)
    m = jnp.max(logits, axis=1, keepdims=True)
    lse = jnp.log(jnp.sum(jnp.exp(logits - m), axis=1, keepdims=True)) + m
    logp_ref[...] = logits - lse
    hT_ref[...] = h


# ----------------------------------------------------------------------------
# One-time parameter preparation (hoisted out of the per-call hot path)
# ----------------------------------------------------------------------------
def prepare_decoder_params(params):
    V, H = params["embedding"].shape
    V_pad = max(128, -(-V // 128) * 128)    # lane-dense classifier output

    emb_relu = jnp.maximum(params["embedding"].astype(jnp.float32), 0.0)
    w_ih, b_ih, b_hh = params["w_ih"], params["b_ih"], params["b_hh"]

    # gi_table[g] = relu(E) @ W_ih_g + b_ih_g, with the hidden biases of the
    # r and z gates folded in (they only ever appear additively next to gi).
    gi_r = emb_relu @ w_ih[:, 0 * H:1 * H] + b_ih[:, 0 * H:1 * H] + b_hh[:, 0 * H:1 * H]
    gi_z = emb_relu @ w_ih[:, 1 * H:2 * H] + b_ih[:, 1 * H:2 * H] + b_hh[:, 1 * H:2 * H]
    gi_n = emb_relu @ w_ih[:, 2 * H:3 * H] + b_ih[:, 2 * H:3 * H]
    gi_table = jnp.stack([gi_r, gi_z, gi_n], axis=0)          # (3, V, H)

    # Padded bias = -1e30 so the padded lanes never influence the log-softmax
    # (safe in f32: max comes from real lanes, exp underflows to 0).
    w_out_p = jnp.zeros((H, V_pad), jnp.float32).at[:, :V].set(params["w_out"])
    b_out_p = jnp.full((1, V_pad), -1e30, jnp.float32).at[:, :V].set(params["b_out"])

    return {
        "gi_table": gi_table,                                  # (3, V, H)
        "w_hh_rz": params["w_hh"][:, :2 * H].astype(jnp.float32),   # (H, 2H)
        "w_hh_n": params["w_hh"][:, 2 * H:].astype(jnp.float32),    # (H, H)
        "b_hh_n": params["b_hh"][:, 2 * H:].astype(jnp.float32),    # (1, H)
        "w_out": w_out_p,                                      # (H, V_pad)
        "b_out": b_out_p,                                      # (1, V_pad)
    }


# ----------------------------------------------------------------------------
# Per-call wrapper (jitted): only pads tokens / hidden and calls the kernel.
# ----------------------------------------------------------------------------
def _decoder_forward(tokens, hidden, prep):
    """tokens: (S, B) int32; hidden: (1, B, H) f32. Returns (logp (B,V), h (1,B,H))."""
    S, B = tokens.shape
    V, H = prep["gi_table"].shape[1], prep["gi_table"].shape[2]
    V_pad = prep["w_out"].shape[1]
    B_pad = max(8, -(-B // 8) * 8)          # sublane-friendly batch

    # Pad batch (token 0 / zero hidden for pad rows; sliced off afterwards).
    tok_p = jnp.zeros((S, B_pad), jnp.int32).at[:, :B].set(tokens)
    tok_p = tok_p.reshape(S * B_pad, 1)
    h0 = jnp.zeros((B_pad, H), jnp.float32).at[:B].set(hidden[0].astype(jnp.float32))

    vmem = pl.BlockSpec(memory_space=pltpu.MemorySpace.VMEM)

    logp_pad, hT = pl.pallas_call(
        decoder_kernel,
        out_shape=(jax.ShapeDtypeStruct((B_pad, V_pad), jnp.float32),
                   jax.ShapeDtypeStruct((B_pad, H), jnp.float32)),
        in_specs=[vmem] * 8,
        out_specs=(vmem, vmem),
    )(tok_p, prep["gi_table"], h0,
      prep["w_hh_rz"], prep["w_hh_n"], prep["b_hh_n"],
      prep["w_out"], prep["b_out"])

    return logp_pad[:B, :V], hT[:B][None]    # hidden back to (1, B, H)


decoder_forward = jax.jit(_decoder_forward)


# ----------------------------------------------------------------------------
# Pure-JAX reference with identical semantics (for verification)
# ----------------------------------------------------------------------------
def decoder_reference(tokens, hidden, params):
    emb = params["embedding"][tokens].astype(jnp.float32)
    x = jnp.maximum(emb, 0.0)
    S, B, H = x.shape
    h = hidden[0]
    out0 = None
    for t in range(S):
        gi = x[t] @ params["w_ih"] + params["b_ih"]
        gh = h @ params["w_hh"] + params["b_hh"]
        r = jax.nn.sigmoid(gi[:, :H] + gh[:, :H])
        z = jax.nn.sigmoid(gi[:, H:2 * H] + gh[:, H:2 * H])
        n = jnp.tanh(gi[:, 2 * H:] + r * gh[:, 2 * H:])
        h = (1.0 - z) * n + z * h
        if t == 0:
            out0 = h
    logits = out0 @ params["w_out"] + params["b_out"]
    logp = jax.nn.log_softmax(logits, axis=1)
    return logp, h[None]


if __name__ == "__main__":
    # Small, module-consistent shapes: seq=4, batch=2, hidden=32, vocab(out)=10.
    S, B, H, V = 4, 2, 32, 10

    key = jax.random.PRNGKey(0)
    ks = jax.random.split(key, 10)
    scale = 0.1
    params = {
        "embedding": scale * jax.random.normal(ks[0], (V, H), jnp.float32),
        "w_ih":      scale * jax.random.normal(ks[1], (H, 3 * H), jnp.float32),
        "w_hh":      scale * jax.random.normal(ks[2], (H, 3 * H), jnp.float32),
        "b_ih":      scale * jax.random.normal(ks[3], (1, 3 * H), jnp.float32),
        "b_hh":      scale * jax.random.normal(ks[4], (1, 3 * H), jnp.float32),
        "w_out":     scale * jax.random.normal(ks[5], (H, V), jnp.float32),
        "b_out":     scale * jax.random.normal(ks[6], (1, V), jnp.float32),
    }
    tokens = jax.random.randint(ks[7], (S, B), 0, V, dtype=jnp.int32)
    hidden0 = scale * jax.random.normal(ks[8], (1, B, H), jnp.float32)

    # One-time parameter preparation (amortized across decode calls).
    prep = jax.tree_util.tree_map(jnp.asarray, prepare_decoder_params(params))

    logp, h_final = decoder_forward(tokens, hidden0, prep)
    jax.block_until_ready((logp, h_final))

    ref_logp, ref_h = decoder_reference(tokens, hidden0, params)
    np.testing.assert_allclose(np.asarray(logp), np.asarray(ref_logp), atol=1e-5, rtol=1e-5)
    np.testing.assert_allclose(np.asarray(h_final), np.asarray(ref_h), atol=1e-5, rtol=1e-5)

    print("KERNEL_OK")
</pallas_src>

<mosaic_0001>
module attributes {stable_mosaic.version = 11 : i64} {
  func.func @decoder_kernel(%arg0: memref<32x1xi32, #tpu.memory_space<vmem>>, %arg1: memref<3x10x32xf32, #tpu.memory_space<vmem>>, %arg2: memref<8x32xf32, #tpu.memory_space<vmem>>, %arg3: memref<32x64xf32, #tpu.memory_space<vmem>>, %arg4: memref<32x32xf32, #tpu.memory_space<vmem>>, %arg5: memref<1x32xf32, #tpu.memory_space<vmem>>, %arg6: memref<32x128xf32, #tpu.memory_space<vmem>>, %arg7: memref<1x128xf32, #tpu.memory_space<vmem>>, %arg8: memref<8x128xf32, #tpu.memory_space<vmem>>, %arg9: memref<8x32xf32, #tpu.memory_space<vmem>>) attributes {dimension_semantics = [], scalar_prefetch = 0 : i64, scratch_operands = 0 : i64, tpu.core_type = #tpu.core_type<tc>} {
    %c0 = arith.constant 0 : index
    %c0_0 = arith.constant 0 : index
    %0 = vector.load %arg0[%c0, %c0_0] : memref<32x1xi32, #tpu.memory_space<vmem>>, vector<32x1xi32>
    %1 = tpu.iota {dimensions = array<i32: 1>} : vector<32x10xi32>
    %2 = vector.broadcast %0 : vector<32x1xi32> to vector<32x10xi32>
    %3 = arith.cmpi eq, %1, %2 : vector<32x10xi32>
    %4 = arith.extui %3 : vector<32x10xi1> to vector<32x10xi32>
    %5 = arith.sitofp %4 : vector<32x10xi32> to vector<32x10xf32>
    %c0_1 = arith.constant 0 : index
    %c0_2 = arith.constant 0 : index
    %c0_3 = arith.constant 0 : index
    %6 = vector.load %arg1[%c0_1, %c0_2, %c0_3] : memref<3x10x32xf32, #tpu.memory_space<vmem>>, vector<1x10x32xf32>
    %7 = vector.shape_cast %6 : vector<1x10x32xf32> to vector<10x32xf32>
    %cst = arith.constant dense<0.000000e+00> : vector<32x32xf32>
    %8 = tpu.matmul %5, %7, %cst {dimension_numbers = #tpu.dot_dimension_numbers<[1], [0], [0], [1], [0, 0, 1, 1], [], []>, precision = #tpu.contract_precision<fp32>} : vector<32x10xf32>, vector<10x32xf32>, vector<32x32xf32> -> vector<32x32xf32>
    %c1 = arith.constant 1 : index
    %c0_4 = arith.constant 0 : index
    %c0_5 = arith.constant 0 : index
    %9 = vector.load %arg1[%c1, %c0_4, %c0_5] : memref<3x10x32xf32, #tpu.memory_space<vmem>>, vector<1x10x32xf32>
    %10 = vector.shape_cast %9 : vector<1x10x32xf32> to vector<10x32xf32>
    %cst_6 = arith.constant dense<0.000000e+00> : vector<32x32xf32>
    %11 = tpu.matmul %5, %10, %cst_6 {dimension_numbers = #tpu.dot_dimension_numbers<[1], [0], [0], [1], [0, 0, 1, 1], [], []>, precision = #tpu.contract_precision<fp32>} : vector<32x10xf32>, vector<10x32xf32>, vector<32x32xf32> -> vector<32x32xf32>
    %c2 = arith.constant 2 : index
    %c0_7 = arith.constant 0 : index
    %c0_8 = arith.constant 0 : index
    %12 = vector.load %arg1[%c2, %c0_7, %c0_8] : memref<3x10x32xf32, #tpu.memory_space<vmem>>, vector<1x10x32xf32>
    %13 = vector.shape_cast %12 : vector<1x10x32xf32> to vector<10x32xf32>
    %cst_9 = arith.constant dense<0.000000e+00> : vector<32x32xf32>
    %14 = tpu.matmul %5, %13, %cst_9 {dimension_numbers = #tpu.dot_dimension_numbers<[1], [0], [0], [1], [0, 0, 1, 1], [], []>, precision = #tpu.contract_precision<fp32>} : vector<32x10xf32>, vector<10x32xf32>, vector<32x32xf32> -> vector<32x32xf32>
    %c0_10 = arith.constant 0 : index
    %c0_11 = arith.constant 0 : index
    %15 = vector.load %arg3[%c0_10, %c0_11] : memref<32x64xf32, #tpu.memory_space<vmem>>, vector<32x64xf32>
    %c0_12 = arith.constant 0 : index
    %c0_13 = arith.constant 0 : index
    %16 = vector.load %arg4[%c0_12, %c0_13] : memref<32x32xf32, #tpu.memory_space<vmem>>, vector<32x32xf32>
    %c0_14 = arith.constant 0 : index
    %c0_15 = arith.constant 0 : index
    %17 = vector.load %arg5[%c0_14, %c0_15] : memref<1x32xf32, #tpu.memory_space<vmem>>, vector<1x32xf32>
    %c0_16 = arith.constant 0 : index
    %c0_17 = arith.constant 0 : index
    %18 = vector.load %arg2[%c0_16, %c0_17] : memref<8x32xf32, #tpu.memory_space<vmem>>, vector<8x32xf32>
    %cst_18 = arith.constant dense<0.000000e+00> : vector<8x64xf32>
    %19 = tpu.matmul %18, %15, %cst_18 {dimension_numbers = #tpu.dot_dimension_numbers<[1], [0], [0], [1], [0, 0, 1, 1], [], []>, precision = #tpu.contract_precision<fp32>} : vector<8x32xf32>, vector<32x64xf32>, vector<8x64xf32> -> vector<8x64xf32>
    %cst_19 = arith.constant dense<0.000000e+00> : vector<8x32xf32>
    %20 = tpu.matmul %18, %16, %cst_19 {dimension_numbers = #tpu.dot_dimension_numbers<[1], [0], [0], [1], [0, 0, 1, 1], [], []>, precision = #tpu.contract_precision<fp32>} : vector<8x32xf32>, vector<32x32xf32>, vector<8x32xf32> -> vector<8x32xf32>
    %21 = vector.broadcast %17 : vector<1x32xf32> to vector<8x32xf32>
    %22 = arith.addf %20, %21 : vector<8x32xf32>
    %23 = vector.extract_strided_slice %8 {offsets = [0, 0], sizes = [8, 32], strides = [1, 1]} : vector<32x32xf32> to vector<8x32xf32>
    %24 = vector.extract_strided_slice %19 {offsets = [0, 0], sizes = [8, 32], strides = [1, 1]} : vector<8x64xf32> to vector<8x32xf32>
    %25 = arith.addf %23, %24 : vector<8x32xf32>
    %26 = arith.negf %25 : vector<8x32xf32>
    %27 = math.exp %26 : vector<8x32xf32>
    %cst_20 = arith.constant 1.000000e+00 : f32
    %28 = vector.broadcast %cst_20 : f32 to vector<8x32xf32>
    %29 = arith.addf %28, %27 : vector<8x32xf32>
    %30 = arith.divf %28, %29 : vector<8x32xf32>
    %31 = vector.extract_strided_slice %11 {offsets = [0, 0], sizes = [8, 32], strides = [1, 1]} : vector<32x32xf32> to vector<8x32xf32>
    %32 = vector.extract_strided_slice %19 {offsets = [0, 32], sizes = [8, 32], strides = [1, 1]} : vector<8x64xf32> to vector<8x32xf32>
    %33 = arith.addf %31, %32 : vector<8x32xf32>
    %34 = arith.negf %33 : vector<8x32xf32>
    %35 = math.exp %34 : vector<8x32xf32>
    %cst_21 = arith.constant 1.000000e+00 : f32
    %36 = vector.broadcast %cst_21 : f32 to vector<8x32xf32>
    %37 = arith.addf %36, %35 : vector<8x32xf32>
    %38 = arith.divf %36, %37 : vector<8x32xf32>
    %39 = vector.extract_strided_slice %14 {offsets = [0, 0], sizes = [8, 32], strides = [1, 1]} : vector<32x32xf32> to vector<8x32xf32>
    %40 = arith.mulf %30, %22 : vector<8x32xf32>
    %41 = arith.addf %39, %40 : vector<8x32xf32>
    %42 = math.tanh %41 : vector<8x32xf32>
    %43 = arith.subf %18, %42 : vector<8x32xf32>
    %44 = arith.mulf %38, %43 : vector<8x32xf32>
    %45 = arith.addf %42, %44 : vector<8x32xf32>
    %cst_22 = arith.constant dense<0.000000e+00> : vector<8x64xf32>
    %46 = tpu.matmul %45, %15, %cst_22 {dimension_numbers = #tpu.dot_dimension_numbers<[1], [0], [0], [1], [0, 0, 1, 1], [], []>, precision = #tpu.contract_precision<fp32>} : vector<8x32xf32>, vector<32x64xf32>, vector<8x64xf32> -> vector<8x64xf32>
    %cst_23 = arith.constant dense<0.000000e+00> : vector<8x32xf32>
    %47 = tpu.matmul %45, %16, %cst_23 {dimension_numbers = #tpu.dot_dimension_numbers<[1], [0], [0], [1], [0, 0, 1, 1], [], []>, precision = #tpu.contract_precision<fp32>} : vector<8x32xf32>, vector<32x32xf32>, vector<8x32xf32> -> vector<8x32xf32>
    %48 = vector.broadcast %17 : vector<1x32xf32> to vector<8x32xf32>
    %49 = arith.addf %47, %48 : vector<8x32xf32>
    %50 = vector.extract_strided_slice %8 {offsets = [8, 0], sizes = [8, 32], strides = [1, 1]} : vector<32x32xf32> to vector<8x32xf32>
    %51 = vector.extract_strided_slice %46 {offsets = [0, 0], sizes = [8, 32], strides = [1, 1]} : vector<8x64xf32> to vector<8x32xf32>
    %52 = arith.addf %50, %51 : vector<8x32xf32>
    %53 = arith.negf %52 : vector<8x32xf32>
    %54 = math.exp %53 : vector<8x32xf32>
    %cst_24 = arith.constant 1.000000e+00 : f32
    %55 = vector.broadcast %cst_24 : f32 to vector<8x32xf32>
    %56 = arith.addf %55, %54 : vector<8x32xf32>
    %57 = arith.divf %55, %56 : vector<8x32xf32>
    %58 = vector.extract_strided_slice %11 {offsets = [8, 0], sizes = [8, 32], strides = [1, 1]} : vector<32x32xf32> to vector<8x32xf32>
    %59 = vector.extract_strided_slice %46 {offsets = [0, 32], sizes = [8, 32], strides = [1, 1]} : vector<8x64xf32> to vector<8x32xf32>
    %60 = arith.addf %58, %59 : vector<8x32xf32>
    %61 = arith.negf %60 : vector<8x32xf32>
    %62 = math.exp %61 : vector<8x32xf32>
    %cst_25 = arith.constant 1.000000e+00 : f32
    %63 = vector.broadcast %cst_25 : f32 to vector<8x32xf32>
    %64 = arith.addf %63, %62 : vector<8x32xf32>
    %65 = arith.divf %63, %64 : vector<8x32xf32>
    %66 = vector.extract_strided_slice %14 {offsets = [8, 0], sizes = [8, 32], strides = [1, 1]} : vector<32x32xf32> to vector<8x32xf32>
    %67 = arith.mulf %57, %49 : vector<8x32xf32>
    %68 = arith.addf %66, %67 : vector<8x32xf32>
    %69 = math.tanh %68 : vector<8x32xf32>
    %70 = arith.subf %45, %69 : vector<8x32xf32>
    %71 = arith.mulf %65, %70 : vector<8x32xf32>
    %72 = arith.addf %69, %71 : vector<8x32xf32>
    %cst_26 = arith.constant dense<0.000000e+00> : vector<8x64xf32>
    %73 = tpu.matmul %72, %15, %cst_26 {dimension_numbers = #tpu.dot_dimension_numbers<[1], [0], [0], [1], [0, 0, 1, 1], [], []>, precision = #tpu.contract_precision<fp32>} : vector<8x32xf32>, vector<32x64xf32>, vector<8x64xf32> -> vector<8x64xf32>
    %cst_27 = arith.constant dense<0.000000e+00> : vector<8x32xf32>
    %74 = tpu.matmul %72, %16, %cst_27 {dimension_numbers = #tpu.dot_dimension_numbers<[1], [0], [0], [1], [0, 0, 1, 1], [], []>, precision = #tpu.contract_precision<fp32>} : vector<8x32xf32>, vector<32x32xf32>, vector<8x32xf32> -> vector<8x32xf32>
    %75 = vector.broadcast %17 : vector<1x32xf32> to vector<8x32xf32>
    %76 = arith.addf %74, %75 : vector<8x32xf32>
    %77 = vector.extract_strided_slice %8 {offsets = [16, 0], sizes = [8, 32], strides = [1, 1]} : vector<32x32xf32> to vector<8x32xf32>
    %78 = vector.extract_strided_slice %73 {offsets = [0, 0], sizes = [8, 32], strides = [1, 1]} : vector<8x64xf32> to vector<8x32xf32>
    %79 = arith.addf %77, %78 : vector<8x32xf32>
    %80 = arith.negf %79 : vector<8x32xf32>
    %81 = math.exp %80 : vector<8x32xf32>
    %cst_28 = arith.constant 1.000000e+00 : f32
    %82 = vector.broadcast %cst_28 : f32 to vector<8x32xf32>
    %83 = arith.addf %82, %81 : vector<8x32xf32>
    %84 = arith.divf %82, %83 : vector<8x32xf32>
    %85 = vector.extract_strided_slice %11 {offsets = [16, 0], sizes = [8, 32], strides = [1, 1]} : vector<32x32xf32> to vector<8x32xf32>
    %86 = vector.extract_strided_slice %73 {offsets = [0, 32], sizes = [8, 32], strides = [1, 1]} : vector<8x64xf32> to vector<8x32xf32>
    %87 = arith.addf %85, %86 : vector<8x32xf32>
    %88 = arith.negf %87 : vector<8x32xf32>
    %89 = math.exp %88 : vector<8x32xf32>
    %cst_29 = arith.constant 1.000000e+00 : f32
    %90 = vector.broadcast %cst_29 : f32 to vector<8x32xf32>
    %91 = arith.addf %90, %89 : vector<8x32xf32>
    %92 = arith.divf %90, %91 : vector<8x32xf32>
    %93 = vector.extract_strided_slice %14 {offsets = [16, 0], sizes = [8, 32], strides = [1, 1]} : vector<32x32xf32> to vector<8x32xf32>
    %94 = arith.mulf %84, %76 : vector<8x32xf32>
    %95 = arith.addf %93, %94 : vector<8x32xf32>
    %96 = math.tanh %95 : vector<8x32xf32>
    %97 = arith.subf %72, %96 : vector<8x32xf32>
    %98 = arith.mulf %92, %97 : vector<8x32xf32>
    %99 = arith.addf %96, %98 : vector<8x32xf32>
    %cst_30 = arith.constant dense<0.000000e+00> : vector<8x64xf32>
    %100 = tpu.matmul %99, %15, %cst_30 {dimension_numbers = #tpu.dot_dimension_numbers<[1], [0], [0], [1], [0, 0, 1, 1], [], []>, precision = #tpu.contract_precision<fp32>} : vector<8x32xf32>, vector<32x64xf32>, vector<8x64xf32> -> vector<8x64xf32>
    %cst_31 = arith.constant dense<0.000000e+00> : vector<8x32xf32>
    %101 = tpu.matmul %99, %16, %cst_31 {dimension_numbers = #tpu.dot_dimension_numbers<[1], [0], [0], [1], [0, 0, 1, 1], [], []>, precision = #tpu.contract_precision<fp32>} : vector<8x32xf32>, vector<32x32xf32>, vector<8x32xf32> -> vector<8x32xf32>
    %102 = vector.broadcast %17 : vector<1x32xf32> to vector<8x32xf32>
    %103 = arith.addf %101, %102 : vector<8x32xf32>
    %104 = vector.extract_strided_slice %8 {offsets = [24, 0], sizes = [8, 32], strides = [1, 1]} : vector<32x32xf32> to vector<8x32xf32>
    %105 = vector.extract_strided_slice %100 {offsets = [0, 0], sizes = [8, 32], strides = [1, 1]} : vector<8x64xf32> to vector<8x32xf32>
    %106 = arith.addf %104, %105 : vector<8x32xf32>
    %107 = arith.negf %106 : vector<8x32xf32>
    %108 = math.exp %107 : vector<8x32xf32>
    %cst_32 = arith.constant 1.000000e+00 : f32
    %109 = vector.broadcast %cst_32 : f32 to vector<8x32xf32>
    %110 = arith.addf %109, %108 : vector<8x32xf32>
    %111 = arith.divf %109, %110 : vector<8x32xf32>
    %112 = vector.extract_strided_slice %11 {offsets = [24, 0], sizes = [8, 32], strides = [1, 1]} : vector<32x32xf32> to vector<8x32xf32>
    %113 = vector.extract_strided_slice %100 {offsets = [0, 32], sizes = [8, 32], strides = [1, 1]} : vector<8x64xf32> to vector<8x32xf32>
    %114 = arith.addf %112, %113 : vector<8x32xf32>
    %115 = arith.negf %114 : vector<8x32xf32>
    %116 = math.exp %115 : vector<8x32xf32>
    %cst_33 = arith.constant 1.000000e+00 : f32
    %117 = vector.broadcast %cst_33 : f32 to vector<8x32xf32>
    %118 = arith.addf %117, %116 : vector<8x32xf32>
    %119 = arith.divf %117, %118 : vector<8x32xf32>
    %120 = vector.extract_strided_slice %14 {offsets = [24, 0], sizes = [8, 32], strides = [1, 1]} : vector<32x32xf32> to vector<8x32xf32>
    %121 = arith.mulf %111, %103 : vector<8x32xf32>
    %122 = arith.addf %120, %121 : vector<8x32xf32>
    %123 = math.tanh %122 : vector<8x32xf32>
    %124 = arith.subf %99, %123 : vector<8x32xf32>
    %125 = arith.mulf %119, %124 : vector<8x32xf32>
    %126 = arith.addf %123, %125 : vector<8x32xf32>
    %c0_34 = arith.constant 0 : index
    %c0_35 = arith.constant 0 : index
    %127 = vector.load %arg6[%c0_34, %c0_35] : memref<32x128xf32, #tpu.memory_space<vmem>>, vector<32x128xf32>
    %cst_36 = arith.constant dense<0.000000e+00> : vector<8x128xf32>
    %128 = tpu.matmul %45, %127, %cst_36 {dimension_numbers = #tpu.dot_dimension_numbers<[1], [0], [0], [1], [0, 0, 1, 1], [], []>, precision = #tpu.contract_precision<fp32>} : vector<8x32xf32>, vector<32x128xf32>, vector<8x128xf32> -> vector<8x128xf32>
    %c0_37 = arith.constant 0 : index
    %c0_38 = arith.constant 0 : index
    %129 = vector.load %arg7[%c0_37, %c0_38] : memref<1x128xf32, #tpu.memory_space<vmem>>, vector<1x128xf32>
    %130 = vector.broadcast %129 : vector<1x128xf32> to vector<8x128xf32>
    %131 = arith.addf %128, %130 : vector<8x128xf32>
    %cst_39 = arith.constant dense<0xFF800000> : vector<8xf32>
    %132 = vector.multi_reduction <maximumf>, %131, %cst_39 [1] : vector<8x128xf32> to vector<8xf32>
    %133 = vector.shape_cast %132 : vector<8xf32> to vector<8x1xf32>
    %134 = vector.broadcast %133 : vector<8x1xf32> to vector<8x128xf32>
    %135 = arith.subf %131, %134 : vector<8x128xf32>
    %136 = math.exp %135 : vector<8x128xf32>
    %cst_40 = arith.constant dense<0.000000e+00> : vector<8xf32>
    %137 = vector.multi_reduction <add>, %136, %cst_40 [1] : vector<8x128xf32> to vector<8xf32>
    %138 = vector.shape_cast %137 : vector<8xf32> to vector<8x1xf32>
    %139 = math.log %138 : vector<8x1xf32>
    %140 = arith.addf %139, %133 : vector<8x1xf32>
    %141 = vector.broadcast %140 : vector<8x1xf32> to vector<8x128xf32>
    %142 = arith.subf %131, %141 : vector<8x128xf32>
    %c0_41 = arith.constant 0 : index
    %c0_42 = arith.constant 0 : index
    %143 = vector.load %arg8[%c0_41, %c0_42] : memref<8x128xf32, #tpu.memory_space<vmem>>, vector<8x128xf32>
    tpu.vector_store %arg8[%c0_41, %c0_42], %142 {strides = array<i32>} : memref<8x128xf32, #tpu.memory_space<vmem>>, vector<8x128xf32>,
    %c0_43 = arith.constant 0 : index
    %c0_44 = arith.constant 0 : index
    %144 = vector.load %arg9[%c0_43, %c0_44] : memref<8x32xf32, #tpu.memory_space<vmem>>, vector<8x32xf32>
    tpu.vector_store %arg9[%c0_43, %c0_44], %126 {strides = array<i32>} : memref<8x32xf32, #tpu.memory_space<vmem>>, vector<8x32xf32>,
    return
  }
}

</mosaic_0001>

<llo_original>
// kernel: _decoder_forward.1
$region0: #{_decoder_forward.1}
  #allocation0 [shape = 'u32[]', space=smem, size = 0x4, offset = 0x4, fixed_abs, tag = 'smem constant byte address 0x4 - core index']
  #allocation1 [shape = 'u32[144,128]{1,0:T(1,128)}', space=vmem, size = 0x12000, scoped, tag = 'internal scratch']
  %s0 = inlined_call_operand.vmem [shape: s32[32,1], index: 0, kind: input, shape index: {}]
  %s1 = inlined_call_operand.vmem [shape: f32[3,10,32], index: 1, kind: input, shape index: {}]
  %s2 = inlined_call_operand.vmem [shape: f32[8,32], index: 2, kind: input, shape index: {}]
  %s3 = inlined_call_operand.vmem [shape: f32[32,64], index: 3, kind: input, shape index: {}]
  %s4 = inlined_call_operand.vmem [shape: f32[32,32], index: 4, kind: input, shape index: {}]
  %s5 = inlined_call_operand.vmem [shape: f32[1,32], index: 5, kind: input, shape index: {}]
  %s6 = inlined_call_operand.vmem [shape: f32[32,128], index: 6, kind: input, shape index: {}]
  %s7 = inlined_call_operand.vmem [shape: f32[1,128], index: 7, kind: input, shape index: {}]
  %s8 = inlined_call_operand.vmem [shape: f32[8,128], index: 8, kind: output, shape index: {0}]
  %s9 = inlined_call_operand.vmem [shape: f32[8,32], index: 9, kind: output, shape index: {1}]
  %10 = xla_tuple %s8, %s9
  %s11 = sld [smem:[#allocation0]]
  $region50: #{_decoder_forward.1} parent=0
    _
  %s13 = ssub.s32 1, %s11
  %s14 = scalar_select 0, %s13, %s11
  // Predicated region
  $region2: #{_decoder_forward.1} parent=0 // pred_check
    _
  $region3: #{_decoder_forward.1} parent=0 // pred_check_branch
    %16 = sbr.rel (0) target = $region5
  $region4: #{_decoder_forward.1} parent=0 // pred_region
    _
  $region5: #{_decoder_forward.1} parent=0 // pred_fallthru
    _
  // Predicated region
  $region6: #{_decoder_forward.1} parent=0 // pred_check
    _
  $region7: #{_decoder_forward.1} parent=0 // pred_check_branch
    %18 = sbr.rel (0) target = $region9
  $region8: #{_decoder_forward.1} parent=0 // pred_region
    _
  $region9: #{_decoder_forward.1} parent=0 // pred_fallthru
    _
  // Predicated region
  $region10: #{_decoder_forward.1} parent=0 // pred_check
    _
  $region11: #{_decoder_forward.1} parent=0 // pred_check_branch
    %20 = sbr.rel (0) target = $region13
  $region12: #{_decoder_forward.1} parent=0 // pred_region
    _
  $region13: #{_decoder_forward.1} parent=0 // pred_fallthru
    _
  // Predicated region
  $region14: #{_decoder_forward.1} parent=0 // pred_check
    _
  $region15: #{_decoder_forward.1} parent=0 // pred_check_branch
    %22 = sbr.rel (0) target = $region17
  $region16: #{_decoder_forward.1} parent=0 // pred_region
    _
  $region17: #{_decoder_forward.1} parent=0 // pred_fallthru
    _
  // Predicated region
  $region18: #{_decoder_forward.1} parent=0 // pred_check
    _
  $region19: #{_decoder_forward.1} parent=0 // pred_check_branch
    %24 = sbr.rel (0) target = $region21
  $region20: #{_decoder_forward.1} parent=0 // pred_region
    _
  $region21: #{_decoder_forward.1} parent=0 // pred_fallthru
    _
  // Predicated region
  $region22: #{_decoder_forward.1} parent=0 // pred_check
    _
  $region23: #{_decoder_forward.1} parent=0 // pred_check_branch
    %26 = sbr.rel (0) target = $region25
  $region24: #{_decoder_forward.1} parent=0 // pred_region
    _
  $region25: #{_decoder_forward.1} parent=0 // pred_fallthru
    _
  // Predicated region
  $region26: #{_decoder_forward.1} parent=0 // pred_check
    _
  $region27: #{_decoder_forward.1} parent=0 // pred_check_branch
    %28 = sbr.rel (0) target = $region29
  $region28: #{_decoder_forward.1} parent=0 // pred_region
    _
  $region29: #{_decoder_forward.1} parent=0 // pred_fallthru
    _
  // Predicated region
  $region30: #{_decoder_forward.1} parent=0 // pred_check
    _
  $region31: #{_decoder_forward.1} parent=0 // pred_check_branch
    %30 = sbr.rel (0) target = $region33
  $region32: #{_decoder_forward.1} parent=0 // pred_region
    _
  $region33: #{_decoder_forward.1} parent=0 // pred_fallthru
    _
  %v31 = vld [vmem:[%s0] sm:$0xff]
  %v32 = vld [vmem:[%s0 + $0x8] sm:$0xff]
  %v33 = vld [vmem:[%s0 + $0x10] sm:$0xff]
  %v34 = vld [vmem:[%s0 + $0x18] sm:$0xff]
  %v35 = vlaneseq
  %v36 = vand.u32 %v35, 127
  %37 = vset.pattern.permute.xlu0 0
  %38 = vperm.xlu0 %37, %v31
  %v39 = vpop.permute.xlu0 %38
  %40 = vset.pattern.permute.xlu0 0
  %41 = vperm.xlu0 %40, %v32
  %v42 = vpop.permute.xlu0 %41
  %43 = vset.pattern.permute.xlu0 0
  %44 = vperm.xlu0 %43, %v33
  %v45 = vpop.permute.xlu0 %44
  %46 = vset.pattern.permute.xlu0 0
  %47 = vperm.xlu0 %46, %v34
  %v48 = vpop.permute.xlu0 %47
  %vm49 = vcmp.eq.s32.totalorder %v36, %v39
  %vm50 = vcmp.eq.s32.totalorder %v36, %v42
  %vm51 = vcmp.eq.s32.totalorder %v36, %v45
  %vm52 = vcmp.eq.s32.totalorder %v36, %v48
  %v53 = vsel %vm49, 1, 0
  %v54 = vsel %vm50, 1, 0
  %v55 = vsel %vm51, 1, 0
  %v56 = vsel %vm52, 1, 0
  %v57 = vcvt.s32.f32 %v53
  %v58 = vcvt.s32.f32 %v54
  %v59 = vcvt.s32.f32 %v55
  %v60 = vcvt.s32.f32 %v56
  %v61 = vld [vmem:[%s1] sm:$0xff]
  %v62 = vld [vmem:[%s1 + $0x8] sm:$0x3]
  %vm63 = vcmask 80896
  %v65 = vsel %vm63, %v57, 0
  %v68 = vsel %vm63, %v58, 0
  %v71 = vsel %vm63, %v59, 0
  %v74 = vsel %vm63, %v60, 0
  %vm76 = vcmask 1041408
  %v78 = vsel %vm76, %v62, 0
  %80 = vmatprep.subr.mxu0 0.0
  %v81 = vand.u32 %v61, 4294901760
  %82 = vmatpush1.msra.mxu0 %v81
  %83 = vmatprep.subr.mxu0 0.0
  %v84 = vand.u32 %v78, 4294901760
  %85 = vmatpush1.msra.mxu0 %v84
  %86 = vmatprep.subr.mxu0 0.0
  %87 = vmatpush1.msra.mxu0 0.0
  %88 = vmatprep.subr.mxu0 0.0
  %89 = vmatpush1.msra.mxu0 0.0
  %90 = vmatprep.subr.mxu0 0.0
  %91 = vmatpush1.msra.mxu0 0.0
  %92 = vmatprep.subr.mxu0 0.0
  %93 = vmatpush1.msra.mxu0 0.0
  %94 = vmatprep.subr.mxu0 0.0
  %95 = vmatpush1.msra.mxu0 0.0
  %96 = vmatprep.subr.mxu0 0.0
  %97 = vmatpush1.msra.mxu0 0.0
  %98 = vmatprep.subr.mxu0 0.0
  %99 = vmatpush1.msra.mxu0 0.0
  %100 = vmatprep.subr.mxu0 0.0
  %101 = vmatpush1.msra.mxu0 0.0
  %102 = vmatprep.subr.mxu0 0.0
  %103 = vmatpush1.msra.mxu0 0.0
  %104 = vmatprep.subr.mxu0 0.0
  %105 = vmatpush1.msra.mxu0 0.0
  %106 = vmatprep.subr.mxu0 0.0
  %107 = vmatpush1.msra.mxu0 0.0
  %108 = vmatprep.subr.mxu0 0.0
  %109 = vmatpush1.msra.mxu0 0.0
  %110 = vmatprep.subr.mxu0 0.0
  %111 = vmatpush1.msra.mxu0 0.0
  %112 = vmatprep.subr.mxu0 0.0
  %113 = vmatpush1.msra.mxu0 0.0
  %114 = vmatprep.subr.mxu0 0.0
  %115 = vmatpush1.msra.mxu0 0.0
  %116 = vmatprep.subr.mxu0 0.0
  %117 = vmatpush1.msra.mxu0 0.0
  %118 = vmatprep.subr.mxu0 0.0
  %119 = vmatpush1.msra.mxu0 0.0
  %120 = vmatprep.subr.mxu0 0.0
  %121 = vmatpush1.msra.mxu0 0.0
  %122 = vmatprep.subr.mxu0 0.0
  %123 = vmatpush1.msra.mxu0 0.0
  %124 = vmatprep.subr.mxu0 0.0
  %125 = vmatpush1.msra.mxu0 0.0
  %126 = vmatprep.subr.mxu0 0.0
  %127 = vmatpush1.msra.mxu0 0.0
  %128 = vmatprep.subr.mxu0 0.0
  %129 = vmatpush1.msra.mxu0 0.0
  %130 = vmatprep.subr.mxu0 0.0
  %131 = vmatpush1.msra.mxu0 0.0
  %132 = vmatprep.subr.mxu0 0.0
  %133 = vmatpush1.msra.mxu0 0.0
  %134 = vmatprep.subr.mxu0 0.0
  %135 = vmatpush1.msra.mxu0 0.0
  %136 = vmatprep.subr.mxu0 0.0
  %137 = vmatpush1.msra.mxu0 0.0
  %138 = vmatprep.subr.mxu0 0.0
  %139 = vmatpush1.msra.mxu0 0.0
  %140 = vmatprep.subr.mxu0 0.0
  %141 = vmatpush1.msra.mxu0 0.0
  %142 = vmatprep.subr.mxu0 0.0
  %143 = vmatpush1.msra.mxu0 0.0
  %144 = vmatprep.subr.mxu0 0.0
  %145 = vmatpush1.msra.mxu0 0.0
  %146 = vmatprep.mubr.f32.mxu0 0.0
  %v147 = vand.u32 %v65, 4294901760
  %v148 = vsub.f32 %v65, %v147
  %v149 = vand.u32 %v148, 4294901760
  %v150 = vsub.f32 %v148, %v149
  %v151 = vand.u32 %v150, 4294901760
  %152 = vmatmul.mubr.f32.gmra.mrb[0].mxu0 %v151
  %v153 = vpop.f32.mrb[0].mxu0
  %v154 = vadd.f32 0.0, %v153
  %v155 = vpop.f32.mrb[0].mxu0
  %156 = vmatprep.mubr.f32.mxu0 0.0
  %v157 = vand.u32 %v68, 4294901760
  %v158 = vsub.f32 %v68, %v157
  %v159 = vand.u32 %v158, 4294901760
  %v160 = vsub.f32 %v158, %v159
  %v161 = vand.u32 %v160, 4294901760
  %162 = vmatmul.mubr.f32.gmra.mrb[0].mxu0 %v161
  %v163 = vpop.f32.mrb[0].mxu0
  %v164 = vadd.f32 0.0, %v163
  %v165 = vpop.f32.mrb[0].mxu0
  %166 = vmatprep.mubr.f32.mxu0 0.0
  %v167 = vand.u32 %v71, 4294901760
  %v168 = vsub.f32 %v71, %v167
  %v169 = vand.u32 %v168, 4294901760
  %v170 = vsub.f32 %v168, %v169
  %v171 = vand.u32 %v170, 4294901760
  %172 = vmatmul.mubr.f32.gmra.mrb[0].mxu0 %v171
  %v173 = vpop.f32.mrb[0].mxu0
  %v174 = vadd.f32 0.0, %v173
  %v175 = vpop.f32.mrb[0].mxu0
  %176 = vmatprep.mubr.f32.mxu0 0.0
  %v177 = vand.u32 %v74, 4294901760
  %v178 = vsub.f32 %v74, %v177
  %v179 = vand.u32 %v178, 4294901760
  %v180 = vsub.f32 %v178, %v179
  %v181 = vand.u32 %v180, 4294901760
  %182 = vmatmul.mubr.f32.gmra.mrb[0].mxu0 %v181
  %v183 = vpop.f32.mrb[0].mxu0
  %v184 = vadd.f32 0.0, %v183
  %v185 = vpop.f32.mrb[0].mxu0
  %186 = vdwg.mxu0
  %187 = vmatprep.subr.mxu0 0.0
  %v188 = vand.u32 %v61, 4294901760
  %v189 = vsub.f32 %v61, %v188
  %v190 = vand.u32 %v189, 4294901760
  %v191 = vsub.f32 %v189, %v190
  %v192 = vand.u32 %v191, 4294901760
  %193 = vmatpush1.msra.mxu0 %v192
  %194 = vmatprep.subr.mxu0 0.0
  %v195 = vand.u32 %v78, 4294901760
  %v196 = vsub.f32 %v78, %v195
  %v197 = vand.u32 %v196, 4294901760
  %v198 = vsub.f32 %v196, %v197
  %v199 = vand.u32 %v198, 4294901760
  %200 = vmatpush1.msra.mxu0 %v199
  %201 = vmatprep.subr.mxu0 0.0
  %202 = vmatpush1.msra.mxu0 0.0
  %203 = vmatprep.subr.mxu0 0.0
  %204 = vmatpush1.msra.mxu0 0.0
  %205 = vmatprep.subr.mxu0 0.0
  %206 = vmatpush1.msra.mxu0 0.0
  %207 = vmatprep.subr.mxu0 0.0
  %208 = vmatpush1.msra.mxu0 0.0
  %209 = vmatprep.subr.mxu0 0.0
  %210 = vmatpush1.msra.mxu0 0.0
  %211 = vmatprep.subr.mxu0 0.0
  %212 = vmatpush1.msra.mxu0 0.0
  %213 = vmatprep.subr.mxu0 0.0
  %214 = vmatpush1.msra.mxu0 0.0
  %215 = vmatprep.subr.mxu0 0.0
  %216 = vmatpush1.msra.mxu0 0.0
  %217 = vmatprep.subr.mxu0 0.0
  %218 = vmatpush1.msra.mxu0 0.0
  %219 = vmatprep.subr.mxu0 0.0
  %220 = vmatpush1.msra.mxu0 0.0
  %221 = vmatprep.subr.mxu0 0.0
  %222 = vmatpush1.msra.mxu0 0.0
  %223 = vmatprep.subr.mxu0 0.0
  %224 = vmatpush1.msra.mxu0 0.0
  %225 = vmatprep.subr.mxu0 0.0
  %226 = vmatpush1.msra.mxu0 0.0
  %227 = vmatprep.subr.mxu0 0.0
  %228 = vmatpush1.msra.mxu0 0.0
  %229 = vmatprep.subr.mxu0 0.0
  %230 = vmatpush1.msra.mxu0 0.0
  %231 = vmatprep.subr.mxu0 0.0
  %232 = vmatpush1.msra.mxu0 0.0
  %233 = vmatprep.subr.mxu0 0.0
  %234 = vmatpush1.msra.mxu0 0.0
  %235 = vmatprep.subr.mxu0 0.0
  %236 = vmatpush1.msra.mxu0 0.0
  %237 = vmatprep.subr.mxu0 0.0
  %238 = vmatpush1.msra.mxu0 0.0
  %239 = vmatprep.subr.mxu0 0.0
  %240 = vmatpush1.msra.mxu0 0.0
  %241 = vmatprep.subr.mxu0 0.0
  %242 = vmatpush1.msra.mxu0 0.0
  %243 = vmatprep.subr.mxu0 0.0
  %244 = vmatpush1.msra.mxu0 0.0
  %245 = vmatprep.subr.mxu0 0.0
  %246 = vmatpush1.msra.mxu0 0.0
  %247 = vmatprep.subr.mxu0 0.0
  %248 = vmatpush1.msra.mxu0 0.0
  %249 = vmatprep.subr.mxu0 0.0
  %250 = vmatpush1.msra.mxu0 0.0
  %251 = vmatprep.subr.mxu0 0.0
  %252 = vmatpush1.msra.mxu0 0.0
  %253 = vmatprep.subr.mxu0 0.0
  %254 = vmatpush1.msra.mxu0 0.0
  %255 = vmatprep.subr.mxu0 0.0
  %256 = vmatpush1.msra.mxu0 0.0
  %257 = vmatprep.subr.mxu0 0.0
  %258 = vmatpush1.msra.mxu0 0.0
  %259 = vmatprep.subr.mxu0 0.0
  %260 = vmatpush1.msra.mxu0 0.0
  %261 = vmatprep.mubr.f32.mxu0 0.0
  %v262 = vand.u32 %v65, 4294901760
  %263 = vmatmul.mubr.f32.gmra.mrb[0].mxu0 %v262
  %v264 = vpop.f32.mrb[0].mxu0
  %v265 = vadd.f32 %v154, %v264
  %v266 = vpop.f32.mrb[0].mxu0
  %267 = vmatprep.mubr.f32.mxu0 0.0
  %v268 = vand.u32 %v68, 4294901760
  %269 = vmatmul.mubr.f32.gmra.mrb[0].mxu0 %v268
  %v270 = vpop.f32.mrb[0].mxu0
  %v271 = vadd.f32 %v164, %v270
  %v272 = vpop.f32.mrb[0].mxu0
  %273 = vmatprep.mubr.f32.mxu0 0.0
  %v274 = vand.u32 %v71, 4294901760
  %275 = vmatmul.mubr.f32.gmra.mrb[0].mxu0 %v274
  %v276 = vpop.f32.mrb[0].mxu0
  %v277 = vadd.f32 %v174, %v276
  %v278 = vpop.f32.mrb[0].mxu0
  %279 = vmatprep.mubr.f32.mxu0 0.0
  %v280 = vand.u32 %v74, 4294901760
  %281 = vmatmul.mubr.f32.gmra.mrb[0].mxu0 %v280
  %v282 = vpop.f32.mrb[0].mxu0
  %v283 = vadd.f32 %v184, %v282
  %v284 = vpop.f32.mrb[0].mxu0
  %285 = vdwg.mxu0
  %286 = vmatprep.subr.mxu0 0.0
  %v287 = vand.u32 %v61, 4294901760
  %v288 = vsub.f32 %v61, %v287
  %289 = vmatpush1.msra.mxu0 %v288
  %290 = vmatprep.subr.mxu0 0.0
  %v291 = vand.u32 %v78, 4294901760
  %v292 = vsub.f32 %v78, %v291
  %293 = vmatpush1.msra.mxu0 %v292
  %294 = vmatprep.subr.mxu0 0.0
  %295 = vmatpush1.msra.mxu0 0.0
  %296 = vmatprep.subr.mxu0 0.0
  %297 = vmatpush1.msra.mxu0 0.0
  %298 = vmatprep.subr.mxu0 0.0
  %299 = vmatpush1.msra.mxu0 0.0
  %300 = vmatprep.subr.mxu0 0.0
  %301 = vmatpush1.msra.mxu0 0.0
  %302 = vmatprep.subr.mxu0 0.0
  %303 = vmatpush1.msra.mxu0 0.0
  %304 = vmatprep.subr.mxu0 0.0
  %305 = vmatpush1.msra.mxu0 0.0
  %306 = vmatprep.subr.mxu0 0.0
  %307 = vmatpush1.msra.mxu0 0.0
  %308 = vmatprep.subr.mxu0 0.0
  %309 = vmatpush1.msra.mxu0 0.0
  %310 = vmatprep.subr.mxu0 0.0
  %311 = vmatpush1.msra.mxu0 0.0
  %312 = vmatprep.subr.mxu0 0.0
  %313 = vmatpush1.msra.mxu0 0.0
  %314 = vmatprep.subr.mxu0 0.0
  %315 = vmatpush1.msra.mxu0 0.0
  %316 = vmatprep.subr.mxu0 0.0
  %317 = vmatpush1.msra.mxu0 0.0
  %318 = vmatprep.subr.mxu0 0.0
  %319 = vmatpush1.msra.mxu0 0.0
  %320 = vmatprep.subr.mxu0 0.0
  %321 = vmatpush1.msra.mxu0 0.0
  %322 = vmatprep.subr.mxu0 0.0
  %323 = vmatpush1.msra.mxu0 0.0
  %324 = vmatprep.subr.mxu0 0.0
  %325 = vmatpush1.msra.mxu0 0.0
  %326 = vmatprep.subr.mxu0 0.0
  %327 = vmatpush1.msra.mxu0 0.0
  %328 = vmatprep.subr.mxu0 0.0
  %329 = vmatpush1.msra.mxu0 0.0
  %330 = vmatprep.subr.mxu0 0.0
  %331 = vmatpush1.msra.mxu0 0.0
  %332 = vmatprep.subr.mxu0 0.0
  %333 = vmatpush1.msra.mxu0 0.0
  %334 = vmatprep.subr.mxu0 0.0
  %335 = vmatpush1.msra.mxu0 0.0
  %336 = vmatprep.subr.mxu0 0.0
  %337 = vmatpush1.msra.mxu0 0.0
  %338 = vmatprep.subr.mxu0 0.0
  %339 = vmatpush1.msra.mxu0 0.0
  %340 = vmatprep.subr.mxu0 0.0
  %341 = vmatpush1.msra.mxu0 0.0
  %342 = vmatprep.subr.mxu0 0.0
  %343 = vmatpush1.msra.mxu0 0.0
  %344 = vmatprep.subr.mxu0 0.0
  %345 = vmatpush1.msra.mxu0 0.0
  %346 = vmatprep.subr.mxu0 0.0
  %347 = vmatpush1.msra.mxu0 0.0
  %348 = vmatprep.subr.mxu0 0.0
  %349 = vmatpush1.msra.mxu0 0.0
  %350 = vmatprep.subr.mxu0 0.0
  %351 = vmatpush1.msra.mxu0 0.0
  %352 = vmatprep.subr.mxu0 0.0
  %353 = vmatpush1.msra.mxu0 0.0
  %354 = vmatprep.mubr.f32.mxu0 0.0
  %v355 = vand.u32 %v65, 4294901760
  %v356 = vsub.f32 %v65, %v355
  %357 = vmatmul.mubr.f32.gmra.mrb[0].mxu0 %v356
  %v358 = vpop.f32.mrb[0].mxu0
  %v359 = vadd.f32 %v265, %v358
  %v360 = vpop.f32.mrb[0].mxu0
  %361 = vmatprep.mubr.f32.mxu0 0.0
  %v362 = vand.u32 %v68, 4294901760
  %v363 = vsub.f32 %v68, %v362
  %364 = vmatmul.mubr.f32.gmra.mrb[0].mxu0 %v363
  %v365 = vpop.f32.mrb[0].mxu0
  %v366 = vadd.f32 %v271, %v365
  %v367 = vpop.f32.mrb[0].mxu0
  %368 = vmatprep.mubr.f32.mxu0 0.0
  %v369 = vand.u32 %v71, 4294901760
  %v370 = vsub.f32 %v71, %v369
  %371 = vmatmul.mubr.f32.gmra.mrb[0].mxu0 %v370
  %v372 = vpop.f32.mrb[0].mxu0
  %v373 = vadd.f32 %v277, %v372
  %v374 = vpop.f32.mrb[0].mxu0
  %375 = vmatprep.mubr.f32.mxu0 0.0
  %v376 = vand.u32 %v74, 4294901760
  %v377 = vsub.f32 %v74, %v376
  %378 = vmatmul.mubr.f32.gmra.mrb[0].mxu0 %v377
  %v379 = vpop.f32.mrb[0].mxu0
  %v380 = vadd.f32 %v283, %v379
  %v381 = vpop.f32.mrb[0].mxu0
  %382 = vdwg.mxu0
  %383 = vmatprep.subr.mxu0 0.0
  %v384 = vand.u32 %v61, 4294901760
  %385 = vmatpush1.msra.mxu0 %v384
  %386 = vmatprep.subr.mxu0 0.0
  %v387 = vand.u32 %v78, 4294901760
  %388 = vmatpush1.msra.mxu0 %v387
  %389 = vmatprep.subr.mxu0 0.0
  %390 = vmatpush1.msra.mxu0 0.0
  %391 = vmatprep.subr.mxu0 0.0
  %392 = vmatpush1.msra.mxu0 0.0
  %393 = vmatprep.subr.mxu0 0.0
  %394 = vmatpush1.msra.mxu0 0.0
  %395 = vmatprep.subr.mxu0 0.0
  %396 = vmatpush1.msra.mxu0 0.0
  %397 = vmatprep.subr.mxu0 0.0
  %398 = vmatpush1.msra.mxu0 0.0
  %399 = vmatprep.subr.mxu0 0.0
  %400 = vmatpush1.msra.mxu0 0.0
  %401 = vmatprep.subr.mxu0 0.0
  %402 = vmatpush1.msra.mxu0 0.0
  %403 = vmatprep.subr.mxu0 0.0
  %404 = vmatpush1.msra.mxu0 0.0
  %405 = vmatprep.subr.mxu0 0.0
  %406 = vmatpush1.msra.mxu0 0.0
  %407 = vmatprep.subr.mxu0 0.0
  %408 = vmatpush1.msra.mxu0 0.0
  %409 = vmatprep.subr.mxu0 0.0
  %410 = vmatpush1.msra.mxu0 0.0
  %411 = vmatprep.subr.mxu0 0.0
  %412 = vmatpush1.msra.mxu0 0.0
  %413 = vmatprep.subr.mxu0 0.0
  %414 = vmatpush1.msra.mxu0 0.0
  %415 = vmatprep.subr.mxu0 0.0
  %416 = vmatpush1.msra.mxu0 0.0
  %417 = vmatprep.subr.mxu0 0.0
  %418 = vmatpush1.msra.mxu0 0.0
  %419 = vmatprep.subr.mxu0 0.0
  %420 = vmatpush1.msra.mxu0 0.0
  %421 = vmatprep.subr.mxu0 0.0
  %422 = vmatpush1.msra.mxu0 0.0
  %423 = vmatprep.subr.mxu0 0.0
  %424 = vmatpush1.msra.mxu0 0.0
  %425 = vmatprep.subr.mxu0 0.0
  %426 = vmatpush1.msra.mxu0 0.0
  %427 = vmatprep.subr.mxu0 0.0
  %428 = vmatpush1.msra.mxu0 0.0
  %429 = vmatprep.subr.mxu0 0.0
  %430 = vmatpush1.msra.mxu0 0.0
  %431 = vmatprep.subr.mxu0 0.0
  %432 = vmatpush1.msra.mxu0 0.0
  %433 = vmatprep.subr.mxu0 0.0
  %434 = vmatpush1.msra.mxu0 0.0
  %435 = vmatprep.subr.mxu0 0.0
  %436 = vmatpush1.msra.mxu0 0.0
  %437 = vmatprep.subr.mxu0 0.0
  %438 = vmatpush1.msra.mxu0 0.0
  %439 = vmatprep.subr.mxu0 0.0
  %440 = vmatpush1.msra.mxu0 0.0
  %441 = vmatprep.subr.mxu0 0.0
  %442 = vmatpush1.msra.mxu0 0.0
  %443 = vmatprep.subr.mxu0 0.0
  %444 = vmatpush1.msra.mxu0 0.0
  %445 = vmatprep.subr.mxu0 0.0
  %446 = vmatpush1.msra.mxu0 0.0
  %447 = vmatprep.subr.mxu0 0.0
  %448 = vmatpush1.msra.mxu0 0.0
  %449 = vmatprep.mubr.f32.mxu0 0.0
  %v450 = vand.u32 %v65, 4294901760
  %v451 = vsub.f32 %v65, %v450
  %v452 = vand.u32 %v451, 4294901760
  %453 = vmatmul.mubr.f32.gmra.mrb[0].mxu0 %v452
  %v454 = vpop.f32.mrb[0].mxu0
  %v455 = vadd.f32 %v359, %v454
  %v456 = vpop.f32.mrb[0].mxu0
  %457 = vmatprep.mubr.f32.mxu0 0.0
  %v458 = vand.u32 %v68, 4294901760
  %v459 = vsub.f32 %v68, %v458
  %v460 = vand.u32 %v459, 4294901760
  %461 = vmatmul.mubr.f32.gmra.mrb[0].mxu0 %v460
  %v462 = vpop.f32.mrb[0].mxu0
  %v463 = vadd.f32 %v366, %v462
  %v464 = vpop.f32.mrb[0].mxu0
  %465 = vmatprep.mubr.f32.mxu0 0.0
  %v466 = vand.u32 %v71, 4294901760
  %v467 = vsub.f32 %v71, %v466
  %v468 = vand.u32 %v467, 4294901760
  %469 = vmatmul.mubr.f32.gmra.mrb[0].mxu0 %v468
  %v470 = vpop.f32.mrb[0].mxu0
  %v471 = vadd.f32 %v373, %v470
  %v472 = vpop.f32.mrb[0].mxu0
  %473 = vmatprep.mubr.f32.mxu0 0.0
  %v474 = vand.u32 %v74, 4294901760
  %v475 = vsub.f32 %v74, %v474
  %v476 = vand.u32 %v475, 4294901760
  %477 = vmatmul.mubr.f32.gmra.mrb[0].mxu0 %v476
  %v478 = vpop.f32.mrb[0].mxu0
  %v479 = vadd.f32 %v380, %v478
  %v480 = vpop.f32.mrb[0].mxu0
  %481 = vdwg.mxu0
  %482 = vmatprep.subr.mxu0 0.0
  %v483 = vand.u32 %v61, 4294901760
  %v484 = vsub.f32 %v61, %v483
  %v485 = vand.u32 %v484, 4294901760
  %486 = vmatpush1.msra.mxu0 %v485
  %487 = vmatprep.subr.mxu0 0.0
  %v488 = vand.u32 %v78, 4294901760
  %v489 = vsub.f32 %v78, %v488
  %v490 = vand.u32 %v489, 4294901760
  %491 = vmatpush1.msra.mxu0 %v490
  %492 = vmatprep.subr.mxu0 0.0
  %493 = vmatpush1.msra.mxu0 0.0
  %494 = vmatprep.subr.mxu0 0.0
  %495 = vmatpush1.msra.mxu0 0.0
  %496 = vmatprep.subr.mxu0 0.0
  %497 = vmatpush1.msra.mxu0 0.0
  %498 = vmatprep.subr.mxu0 0.0
  %499 = vmatpush1.msra.mxu0 0.0
  %500 = vmatprep.subr.mxu0 0.0
  %501 = vmatpush1.msra.mxu0 0.0
  %502 = vmatprep.subr.mxu0 0.0
  %503 = vmatpush1.msra.mxu0 0.0
  %504 = vmatprep.subr.mxu0 0.0
  %505 = vmatpush1.msra.mxu0 0.0
  %506 = vmatprep.subr.mxu0 0.0
  %507 = vmatpush1.msra.mxu0 0.0
  %508 = vmatprep.subr.mxu0 0.0
  %509 = vmatpush1.msra.mxu0 0.0
  %510 = vmatprep.subr.mxu0 0.0
  %511 = vmatpush1.msra.mxu0 0.0
  %512 = vmatprep.subr.mxu0 0.0
  %513 = vmatpush1.msra.mxu0 0.0
  %514 = vmatprep.subr.mxu0 0.0
  %515 = vmatpush1.msra.mxu0 0.0
  %516 = vmatprep.subr.mxu0 0.0
  %517 = vmatpush1.msra.mxu0 0.0
  %518 = vmatprep.subr.mxu0 0.0
  %519 = vmatpush1.msra.mxu0 0.0
  %520 = vmatprep.subr.mxu0 0.0
  %521 = vmatpush1.msra.mxu0 0.0
  %522 = vmatprep.subr.mxu0 0.0
  %523 = vmatpush1.msra.mxu0 0.0
  %524 = vmatprep.subr.mxu0 0.0
  %525 = vmatpush1.msra.mxu0 0.0
  %526 = vmatprep.subr.mxu0 0.0
  %527 = vmatpush1.msra.mxu0 0.0
  %528 = vmatprep.subr.mxu0 0.0
  %529 = vmatpush1.msra.mxu0 0.0
  %530 = vmatprep.subr.mxu0 0.0
  %531 = vmatpush1.msra.mxu0 0.0
  %532 = vmatprep.subr.mxu0 0.0
  %533 = vmatpush1.msra.mxu0 0.0
  %534 = vmatprep.subr.mxu0 0.0
  %535 = vmatpush1.msra.mxu0 0.0
  %536 = vmatprep.subr.mxu0 0.0
  %537 = vmatpush1.msra.mxu0 0.0
  %538 = vmatprep.subr.mxu0 0.0
  %539 = vmatpush1.msra.mxu0 0.0
  %540 = vmatprep.subr.mxu0 0.0
  %541 = vmatpush1.msra.mxu0 0.0
  %542 = vmatprep.subr.mxu0 0.0
  %543 = vmatpush1.msra.mxu0 0.0
  %544 = vmatprep.subr.mxu0 0.0
  %545 = vmatpush1.msra.mxu0 0.0
  %546 = vmatprep.subr.mxu0 0.0
  %547 = vmatpush1.msra.mxu0 0.0
  %548 = vmatprep.subr.mxu0 0.0
  %549 = vmatpush1.msra.mxu0 0.0
  %550 = vmatprep.subr.mxu0 0.0
  %551 = vmatpush1.msra.mxu0 0.0
  %552 = vmatprep.mubr.f32.mxu0 0.0
  %v553 = vand.u32 %v65, 4294901760
  %554 = vmatmul.mubr.f32.gmra.mrb[0].mxu0 %v553
  %v555 = vpop.f32.mrb[0].mxu0
  %v556 = vadd.f32 %v455, %v555
  %v557 = vpop.f32.mrb[0].mxu0
  %558 = vmatprep.mubr.f32.mxu0 0.0
  %v559 = vand.u32 %v68, 4294901760
  %560 = vmatmul.mubr.f32.gmra.mrb[0].mxu0 %v559
  %v561 = vpop.f32.mrb[0].mxu0
  %v562 = vadd.f32 %v463, %v561
  %v563 = vpop.f32.mrb[0].mxu0
  %564 = vmatprep.mubr.f32.mxu0 0.0
  %v565 = vand.u32 %v71, 4294901760
  %566 = vmatmul.mubr.f32.gmra.mrb[0].mxu0 %v565
  %v567 = vpop.f32.mrb[0].mxu0
  %v568 = vadd.f32 %v471, %v567
  %v569 = vpop.f32.mrb[0].mxu0
  %570 = vmatprep.mubr.f32.mxu0 0.0
  %v571 = vand.u32 %v74, 4294901760
  %572 = vmatmul.mubr.f32.gmra.mrb[0].mxu0 %v571
  %v573 = vpop.f32.mrb[0].mxu0
  %v574 = vadd.f32 %v479, %v573
  %v575 = vpop.f32.mrb[0].mxu0
  %576 = vdwg.mxu0
  %577 = vmatprep.subr.mxu0 0.0
  %v578 = vand.u32 %v61, 4294901760
  %579 = vmatpush1.msra.mxu0 %v578
  %580 = vmatprep.subr.mxu0 0.0
  %v581 = vand.u32 %v78, 4294901760
  %582 = vmatpush1.msra.mxu0 %v581
  %583 = vmatprep.subr.mxu0 0.0
  %584 = vmatpush1.msra.mxu0 0.0
  %585 = vmatprep.subr.mxu0 0.0
  %586 = vmatpush1.msra.mxu0 0.0
  %587 = vmatprep.subr.mxu0 0.0
  %588 = vmatpush1.msra.mxu0 0.0
  %589 = vmatprep.subr.mxu0 0.0
  %590 = vmatpush1.msra.mxu0 0.0
  %591 = vmatprep.subr.mxu0 0.0
  %592 = vmatpush1.msra.mxu0 0.0
  %593 = vmatprep.subr.mxu0 0.0
  %594 = vmatpush1.msra.mxu0 0.0
  %595 = vmatprep.subr.mxu0 0.0
  %596 = vmatpush1.msra.mxu0 0.0
  %597 = vmatprep.subr.mxu0 0.0
  %598 = vmatpush1.msra.mxu0 0.0
  %599 = vmatprep.subr.mxu0 0.0
  %600 = vmatpush1.msra.mxu0 0.0
  %601 = vmatprep.subr.mxu0 0.0
  %602 = vmatpush1.msra.mxu0 0.0
  %603 = vmatprep.subr.mxu0 0.0
  %604 = vmatpush1.msra.mxu0 0.0
  %605 = vmatprep.subr.mxu0 0.0
  %606 = vmatpush1.msra.mxu0 0.0
  %607 = vmatprep.subr.mxu0 0.0
  %608 = vmatpush1.msra.mxu0 0.0
  %609 = vmatprep.subr.mxu0 0.0
  %610 = vmatpush1.msra.mxu0 0.0
  %611 = vmatprep.subr.mxu0 0.0
  %612 = vmatpush1.msra.mxu0 0.0
  %613 = vmatprep.subr.mxu0 0.0
  %614 = vmatpush1.msra.mxu0 0.0
  %615 = vmatprep.subr.mxu0 0.0
  %616 = vmatpush1.msra.mxu0 0.0
  %617 = vmatprep.subr.mxu0 0.0
  %618 = vmatpush1.msra.mxu0 0.0
  %619 = vmatprep.subr.mxu0 0.0
  %620 = vmatpush1.msra.mxu0 0.0
  %621 = vmatprep.subr.mxu0 0.0
  %622 = vmatpush1.msra.mxu0 0.0
  %623 = vmatprep.subr.mxu0 0.0
  %624 = vmatpush1.msra.mxu0 0.0
  %625 = vmatprep.subr.mxu0 0.0
  %626 = vmatpush1.msra.mxu0 0.0
  %627 = vmatprep.subr.mxu0 0.0
  %628 = vmatpush1.msra.mxu0 0.0
  %629 = vmatprep.subr.mxu0 0.0
  %630 = vmatpush1.msra.mxu0 0.0
  %631 = vmatprep.subr.mxu0 0.0
  %632 = vmatpush1.msra.mxu0 0.0
  %633 = vmatprep.subr.mxu0 0.0
  %634 = vmatpush1.msra.mxu0 0.0
  %635 = vmatprep.subr.mxu0 0.0
  %636 = vmatpush1.msra.mxu0 0.0
  %637 = vmatprep.subr.mxu0 0.0
  %638 = vmatpush1.msra.mxu0 0.0
  %639 = vmatprep.subr.mxu0 0.0
  %640 = vmatpush1.msra.mxu0 0.0
  %641 = vmatprep.subr.mxu0 0.0
  %642 = vmatpush1.msra.mxu0 0.0
  %643 = vmatprep.mubr.f32.mxu0 0.0
  %v644 = vand.u32 %v65, 4294901760
  %645 = vmatmul.mubr.f32.gmra.mrb[0].mxu0 %v644
  %v646 = vpop.f32.mrb[0].mxu0
  %v647 = vadd.f32 %v556, %v646
  %v648 = vpop.f32.mrb[0].mxu0
  %649 = vmatprep.mubr.f32.mxu0 0.0
  %v650 = vand.u32 %v68, 4294901760
  %651 = vmatmul.mubr.f32.gmra.mrb[0].mxu0 %v650
  %v652 = vpop.f32.mrb[0].mxu0
  %v653 = vadd.f32 %v562, %v652
  %v654 = vpop.f32.mrb[0].mxu0
  %655 = vmatprep.mubr.f32.mxu0 0.0
  %v656 = vand.u32 %v71, 4294901760
  %657 = vmatmul.mubr.f32.gmra.mrb[0].mxu0 %v656
  %v658 = vpop.f32.mrb[0].mxu0
  %v659 = vadd.f32 %v568, %v658
  %v660 = vpop.f32.mrb[0].mxu0
  %661 = vmatprep.mubr.f32.mxu0 0.0
  %v662 = vand.u32 %v74, 4294901760
  %663 = vmatmul.mubr.f32.gmra.mrb[0].mxu0 %v662
  %v664 = vpop.f32.mrb[0].mxu0
  %v665 = vadd.f32 %v574, %v664
  %v666 = vpop.f32.mrb[0].mxu0
  %667 = vdwg.mxu0
  %s668 = scalar_lea.vmem %s1, 16
  %v669 = vld [vmem:[%s668] sm:$0xff]
  %v670 = vld [vmem:[%s668 + $0x8] sm:$0x3]
  %v672 = vsel %vm76, %v670, 0
  %674 = vmatprep.subr.mxu0 0.0
  %v675 = vand.u32 %v669, 4294901760
  %676 = vmatpush1.msra.mxu0 %v675
  %677 = vmatprep.subr.mxu0 0.0
  %v678 = vand.u32 %v672, 4294901760
  %679 = vmatpush1.msra.mxu0 %v678
  %680 = vmatprep.subr.mxu0 0.0
  %681 = vmatpush1.msra.mxu0 0.0
  %682 = vmatprep.subr.mxu0 0.0
  %683 = vmatpush1.msra.mxu0 0.0
  %684 = vmatprep.subr.mxu0 0.0
  %685 = vmatpush1.msra.mxu0 0.0
  %686 = vmatprep.subr.mxu0 0.0
  %687 = vmatpush1.msra.mxu0 0.0
  %688 = vmatprep.subr.mxu0 0.0
  %689 = vmatpush1.msra.mxu0 0.0
  %690 = vmatprep.subr.mxu0 0.0
  %691 = vmatpush1.msra.mxu0 0.0
  %692 = vmatprep.subr.mxu0 0.0
  %693 = vmatpush1.msra.mxu0 0.0
  %694 = vmatprep.subr.mxu0 0.0
  %695 = vmatpush1.msra.mxu0 0.0
  %696 = vmatprep.subr.mxu0 0.0
  %697 = vmatpush1.msra.mxu0 0.0
  %698 = vmatprep.subr.mxu0 0.0
  %699 = vmatpush1.msra.mxu0 0.0
  %700 = vmatprep.subr.mxu0 0.0
  %701 = vmatpush1.msra.mxu0 0.0
  %702 = vmatprep.subr.mxu0 0.0
  %703 = vmatpush1.msra.mxu0 0.0
  %704 = vmatprep.subr.mxu0 0.0
  %705 = vmatpush1.msra.mxu0 0.0
  %706 = vmatprep.subr.mxu0 0.0
  %707 = vmatpush1.msra.mxu0 0.0
  %708 = vmatprep.subr.mxu0 0.0
  %709 = vmatpush1.msra.mxu0 0.0
  %710 = vmatprep.subr.mxu0 0.0
  %711 = vmatpush1.msra.mxu0 0.0
  %712 = vmatprep.subr.mxu0 0.0
  %713 = vmatpush1.msra.mxu0 0.0
  %714 = vmatprep.subr.mxu0 0.0
  %715 = vmatpush1.msra.mxu0 0.0
  %716 = vmatprep.subr.mxu0 0.0
  %717 = vmatpush1.msra.mxu0 0.0
  %718 = vmatprep.subr.mxu0 0.0
  %719 = vmatpush1.msra.mxu0 0.0
  %720 = vmatprep.subr.mxu0 0.0
  %721 = vmatpush1.msra.mxu0 0.0
  %722 = vmatprep.subr.mxu0 0.0
  %723 = vmatpush1.msra.mxu0 0.0
  %724 = vmatprep.subr.mxu0 0.0
  %725 = vmatpush1.msra.mxu0 0.0
  %726 = vmatprep.subr.mxu0 0.0
  %727 = vmatpush1.msra.mxu0 0.0
  %728 = vmatprep.subr.mxu0 0.0
  %729 = vmatpush1.msra.mxu0 0.0
  %730 = vmatprep.subr.mxu0 0.0
  %731 = vmatpush1.msra.mxu0 0.0
  %732 = vmatprep.subr.mxu0 0.0
  %733 = vmatpush1.msra.mxu0 0.0
  %734 = vmatprep.subr.mxu0 0.0
  %735 = vmatpush1.msra.mxu0 0.0
  %736 = vmatprep.subr.mxu0 0.0
  %737 = vmatpush1.msra.mxu0 0.0
  %738 = vmatprep.subr.mxu0 0.0
  %739 = vmatpush1.msra.mxu0 0.0
  %740 = vmatprep.mubr.f32.mxu0 0.0
  %v741 = vand.u32 %v65, 4294901760
  %v742 = vsub.f32 %v65, %v741
  %v743 = vand.u32 %v742, 4294901760
  %v744 = vsub.f32 %v742, %v743
  %v745 = vand.u32 %v744, 4294901760
  %746 = vmatmul.mubr.f32.gmra.mrb[0].mxu0 %v745
  %v747 = vpop.f32.mrb[0].mxu0
  %v748 = vadd.f32 0.0, %v747
  %v749 = vpop.f32.mrb[0].mxu0
  %750 = vmatprep.mubr.f32.mxu0 0.0
  %v751 = vand.u32 %v68, 4294901760
  %v752 = vsub.f32 %v68, %v751
  %v753 = vand.u32 %v752, 4294901760
  %v754 = vsub.f32 %v752, %v753
  %v755 = vand.u32 %v754, 4294901760
  %756 = vmatmul.mubr.f32.gmra.mrb[0].mxu0 %v755
  %v757 = vpop.f32.mrb[0].mxu0
  %v758 = vadd.f32 0.0, %v757
  %v759 = vpop.f32.mrb[0].mxu0
  %760 = vmatprep.mubr.f32.mxu0 0.0
  %v761 = vand.u32 %v71, 4294901760
  %v762 = vsub.f32 %v71, %v761
  %v763 = vand.u32 %v762, 4294901760
  %v764 = vsub.f32 %v762, %v763
  %v765 = vand.u32 %v764, 4294901760
  %766 = vmatmul.mubr.f32.gmra.mrb[0].mxu0 %v765
  %v767 = vpop.f32.mrb[0].mxu0
  %v768 = vadd.f32 0.0, %v767
  %v769 = vpop.f32.mrb[0].mxu0
  %770 = vmatprep.mubr.f32.mxu0 0.0
  %v771 = vand.u32 %v74, 4294901760
  %v772 = vsub.f32 %v74, %v771
  %v773 = vand.u32 %v772, 4294901760
  %v774 = vsub.f32 %v772, %v773
  %v775 = vand.u32 %v774, 4294901760
  %776 = vmatmul.mubr.f32.gmra.mrb[0].mxu0 %v775
  %v777 = vpop.f32.mrb[0].mxu0
  %v778 = vadd.f32 0.0, %v777
  %v779 = vpop.f32.mrb[0].mxu0
  %780 = vdwg.mxu0
  %781 = vmatprep.subr.mxu0 0.0
  %v782 = vand.u32 %v669, 4294901760
  %v783 = vsub.f32 %v669, %v782
  %v784 = vand.u32 %v783, 4294901760
  %v785 = vsub.f32 %v783, %v784
  %v786 = vand.u32 %v785, 4294901760
  %787 = vmatpush1.msra.mxu0 %v786
  %788 = vmatprep.subr.mxu0 0.0
  %v789 = vand.u32 %v672, 4294901760
  %v790 = vsub.f32 %v672, %v789
  %v791 = vand.u32 %v790, 4294901760
  %v792 = vsub.f32 %v790, %v791
  %v793 = vand.u32 %v792, 4294901760
  %794 = vmatpush1.msra.mxu0 %v793
  %795 = vmatprep.subr.mxu0 0.0
  %796 = vmatpush1.msra.mxu0 0.0
  %797 = vmatprep.subr.mxu0 0.0
  %798 = vmatpush1.msra.mxu0 0.0
  %799 = vmatprep.subr.mxu0 0.0
  %800 = vmatpush1.msra.mxu0 0.0
  %801 = vmatprep.subr.mxu0 0.0
  %802 = vmatpush1.msra.mxu0 0.0
  %803 = vmatprep.subr.mxu0 0.0
  %804 = vmatpush1.msra.mxu0 0.0
  %805 = vmatprep.subr.mxu0 0.0
  %806 = vmatpush1.msra.mxu0 0.0
  %807 = vmatprep.subr.mxu0 0.0
  %808 = vmatpush1.msra.mxu0 0.0
  %809 = vmatprep.subr.mxu0 0.0
  %810 = vmatpush1.msra.mxu0 0.0
  %811 = vmatprep.subr.mxu0 0.0
  %812 = vmatpush1.msra.mxu0 0.0
  %813 = vmatprep.subr.mxu0 0.0
  %814 = vmatpush1.msra.mxu0 0.0
  %815 = vmatprep.subr.mxu0 0.0
  %816 = vmatpush1.msra.mxu0 0.0
  %817 = vmatprep.subr.mxu0 0.0
  %818 = vmatpush1.msra.mxu0 0.0
  %819 = vmatprep.subr.mxu0 0.0
  %820 = vmatpush1.msra.mxu0 0.0
  %821 = vmatprep.subr.mxu0 0.0
  %822 = vmatpush1.msra.mxu0 0.0
  %823 = vmatprep.subr.mxu0 0.0
  %824 = vmatpush1.msra.mxu0 0.0
  %825 = vmatprep.subr.mxu0 0.0
  %826 = vmatpush1.msra.mxu0 0.0
  %827 = vmatprep.subr.mxu0 0.0
  %828 = vmatpush1.msra.mxu0 0.0
  %829 = vmatprep.subr.mxu0 0.0
  %830 = vmatpush1.msra.mxu0 0.0
  %831 = vmatprep.subr.mxu0 0.0
  %832 = vmatpush1.msra.mxu0 0.0
  %833 = vmatprep.subr.mxu0 0.0
  %834 = vmatpush1.msra.mxu0 0.0
  %835 = vmatprep.subr.mxu0 0.0
  %836 = vmatpush1.msra.mxu0 0.0
  %837 = vmatprep.subr.mxu0 0.0
  %838 = vmatpush1.msra.mxu0 0.0
  %839 = vmatprep.subr.mxu0 0.0
  %840 = vmatpush1.msra.mxu0 0.0
  %841 = vmatprep.subr.mxu0 0.0
  %842 = vmatpush1.msra.mxu0 0.0
  %843 = vmatprep.subr.mxu0 0.0
  %844 = vmatpush1.msra.mxu0 0.0
  %845 = vmatprep.subr.mxu0 0.0
  %846 = vmatpush1.msra.mxu0 0.0
  %847 = vmatprep.subr.mxu0 0.0
  %848 = vmatpush1.msra.mxu0 0.0
  %849 = vmatprep.subr.mxu0 0.0
  %850 = vmatpush1.msra.mxu0 0.0
  %851 = vmatprep.subr.mxu0 0.0
  %852 = vmatpush1.msra.mxu0 0.0
  %853 = vmatprep.subr.mxu0 0.0
  %854 = vmatpush1.msra.mxu0 0.0
  %855 = vmatprep.mubr.f32.mxu0 0.0
  %v856 = vand.u32 %v65, 4294901760
  %857 = vmatmul.mubr.f32.gmra.mrb[0].mxu0 %v856
  %v858 = vpop.f32.mrb[0].mxu0
  %v859 = vadd.f32 %v748, %v858
  %v860 = vpop.f32.mrb[0].mxu0
  %861 = vmatprep.mubr.f32.mxu0 0.0
  %v862 = vand.u32 %v68, 4294901760
  %863 = vmatmul.mubr.f32.gmra.mrb[0].mxu0 %v862
  %v864 = vpop.f32.mrb[0].mxu0
  %v865 = vadd.f32 %v758, %v864
  %v866 = vpop.f32.mrb[0].mxu0
  %867 = vmatprep.mubr.f32.mxu0 0.0
  %v868 = vand.u32 %v71, 4294901760
  %869 = vmatmul.mubr.f32.gmra.mrb[0].mxu0 %v868
  %v870 = vpop.f32.mrb[0].mxu0
  %v871 = vadd.f32 %v768, %v870
  %v872 = vpop.f32.mrb[0].mxu0
  %873 = vmatprep.mubr.f32.mxu0 0.0
  %v874 = vand.u32 %v74, 4294901760
  %875 = vmatmul.mubr.f32.gmra.mrb[0].mxu0 %v874
  %v876 = vpop.f32.mrb[0].mxu0
  %v877 = vadd.f32 %v778, %v876
  %v878 = vpop.f32.mrb[0].mxu0
  %879 = vdwg.mxu0
  %880 = vmatprep.subr.mxu0 0.0
  %v881 = vand.u32 %v669, 4294901760
  %v882 = vsub.f32 %v669, %v881
  %883 = vmatpush1.msra.mxu0 %v882
  %884 = vmatprep.subr.mxu0 0.0
  %v885 = vand.u32 %v672, 4294901760
  %v886 = vsub.f32 %v672, %v885
  %887 = vmatpush1.msra.mxu0 %v886
  %888 = vmatprep.subr.mxu0 0.0
  %889 = vmatpush1.msra.mxu0 0.0
  %890 = vmatprep.subr.mxu0 0.0
  %891 = vmatpush1.msra.mxu0 0.0
  %892 = vmatprep.subr.mxu0 0.0
  %893 = vmatpush1.msra.mxu0 0.0
  %894 = vmatprep.subr.mxu0 0.0
  %895 = vmatpush1.msra.mxu0 0.0
  %896 = vmatprep.subr.mxu0 0.0
  %897 = vmatpush1.msra.mxu0 0.0
  %898 = vmatprep.subr.mxu0 0.0
  %899 = vmatpush1.msra.mxu0 0.0
  %900 = vmatprep.subr.mxu0 0.0
  %901 = vmatpush1.msra.mxu0 0.0
  %902 = vmatprep.subr.mxu0 0.0
  %903 = vmatpush1.msra.mxu0 0.0
  %904 = vmatprep.subr.mxu0 0.0
  %905 = vmatpush1.msra.mxu0 0.0
  %906 = vmatprep.subr.mxu0 0.0
  %907 = vmatpush1.msra.mxu0 0.0
  %908 = vmatprep.subr.mxu0 0.0
  %909 = vmatpush1.msra.mxu0 0.0
  %910 = vmatprep.subr.mxu0 0.0
  %911 = vmatpush1.msra.mxu0 0.0
  %912 = vmatprep.subr.mxu0 0.0
  %913 = vmatpush1.msra.mxu0 0.0
  %914 = vmatprep.subr.mxu0 0.0
  %915 = vmatpush1.msra.mxu0 0.0
  %916 = vmatprep.subr.mxu0 0.0
  %917 = vmatpush1.msra.mxu0 0.0
  %918 = vmatprep.subr.mxu0 0.0
  %919 = vmatpush1.msra.mxu0 0.0
  %920 = vmatprep.subr.mxu0 0.0
  %921 = vmatpush1.msra.mxu0 0.0
  %922 = vmatprep.subr.mxu0 0.0
  %923 = vmatpush1.msra.mxu0 0.0
  %924 = vmatprep.subr.mxu0 0.0
  %925 = vmatpush1.msra.mxu0 0.0
  %926 = vmatprep.subr.mxu0 0.0
  %927 = vmatpush1.msra.mxu0 0.0
  %928 = vmatprep.subr.mxu0 0.0
  %929 = vmatpush1.msra.mxu0 0.0
  %930 = vmatprep.subr.mxu0 0.0
  %931 = vmatpush1.msra.mxu0 0.0
  %932 = vmatprep.subr.mxu0 0.0
  %933 = vmatpush1.msra.mxu0 0.0
  %934 = vmatprep.subr.mxu0 0.0
  %935 = vmatpush1.msra.mxu0 0.0
  %936 = vmatprep.subr.mxu0 0.0
  %937 = vmatpush1.msra.mxu0 0.0
  %938 = vmatprep.subr.mxu0 0.0
  %939 = vmatpush1.msra.mxu0 0.0
  %940 = vmatprep.subr.mxu0 0.0
  %941 = vmatpush1.msra.mxu0 0.0
  %942 = vmatprep.subr.mxu0 0.0
  %943 = vmatpush1.msra.mxu0 0.0
  %944 = vmatprep.subr.mxu0 0.0
  %945 = vmatpush1.msra.mxu0 0.0
  %946 = vmatprep.subr.mxu0 0.0
  %947 = vmatpush1.msra.mxu0 0.0
  %948 = vmatprep.mubr.f32.mxu0 0.0
  %v949 = vand.u32 %v65, 4294901760
  %v950 = vsub.f32 %v65, %v949
  %951 = vmatmul.mubr.f32.gmra.mrb[0].mxu0 %v950
  %v952 = vpop.f32.mrb[0].mxu0
  %v953 = vadd.f32 %v859, %v952
  %v954 = vpop.f32.mrb[0].mxu0
  %955 = vmatprep.mubr.f32.mxu0 0.0
  %v956 = vand.u32 %v68, 4294901760
  %v957 = vsub.f32 %v68, %v956
  %958 = vmatmul.mubr.f32.gmra.mrb[0].mxu0 %v957
  %v959 = vpop.f32.mrb[0].mxu0
  %v960 = vadd.f32 %v865, %v959
  %v961 = vpop.f32.mrb[0].mxu0
  %962 = vmatprep.mubr.f32.mxu0 0.0
  %v963 = vand.u32 %v71, 4294901760
  %v964 = vsub.f32 %v71, %v963
  %965 = vmatmul.mubr.f32.gmra.mrb[0].mxu0 %v964
  %v966 = vpop.f32.mrb[0].mxu0
  %v967 = vadd.f32 %v871, %v966
  %v968 = vpop.f32.mrb[0].mxu0
  %969 = vmatprep.mubr.f32.mxu0 0.0
  %v970 = vand.u32 %v74, 4294901760
  %v971 = vsub.f32 %v74, %v970
  %972 = vmatmul.mubr.f32.gmra.mrb[0].mxu0 %v971
  %v973 = vpop.f32.mrb[0].mxu0
  %v974 = vadd.f32 %v877, %v973
  %v975 = vpop.f32.mrb[0].mxu0
  %976 = vdwg.mxu0
  %977 = vmatprep.subr.mxu0 0.0
  %v978 = vand.u32 %v669, 4294901760
  %979 = vmatpush1.msra.mxu0 %v978
  %980 = vmatprep.subr.mxu0 0.0
  %v981 = vand.u32 %v672, 4294901760
  %982 = vmatpush1.msra.mxu0 %v981
  %983 = vmatprep.subr.mxu0 0.0
  %984 = vmatpush1.msra.mxu0 0.0
  %985 = vmatprep.subr.mxu0 0.0
  %986 = vmatpush1.msra.mxu0 0.0
  %987 = vmatprep.subr.mxu0 0.0
  %988 = vmatpush1.msra.mxu0 0.0
  %989 = vmatprep.subr.mxu0 0.0
  %990 = vmatpush1.msra.mxu0 0.0
  %991 = vmatprep.subr.mxu0 0.0
  %992 = vmatpush1.msra.mxu0 0.0
  %993 = vmatprep.subr.mxu0 0.0
  %994 = vmatpush1.msra.mxu0 0.0
  %995 = vmatprep.subr.mxu0 0.0
  %996 = vmatpush1.msra.mxu0 0.0
  %997 = vmatprep.subr.mxu0 0.0
  %998 = vmatpush1.msra.mxu0 0.0
  %999 = vmatprep.subr.mxu0 0.0
  %1000 = vmatpush1.msra.mxu0 0.0
  %1001 = vmatprep.subr.mxu0 0.0
  %1002 = vmatpush1.msra.mxu0 0.0
  %1003 = vmatprep.subr.mxu0 0.0
  %1004 = vmatpush1.msra.mxu0 0.0
  %1005 = vmatprep.subr.mxu0 0.0
  %1006 = vmatpush1.msra.mxu0 0.0
  %1007 = vmatprep.subr.mxu0 0.0
  %1008 = vmatpush1.msra.mxu0 0.0
  %1009 = vmatprep.subr.mxu0 0.0
  %1010 = vmatpush1.msra.mxu0 0.0
  %1011 = vmatprep.subr.mxu0 0.0
  %1012 = vmatpush1.msra.mxu0 0.0
  %1013 = vmatprep.subr.mxu0 0.0
  %1014 = vmatpush1.msra.mxu0 0.0
  %1015 = vmatprep.subr.mxu0 0.0
  %1016 = vmatpush1.msra.mxu0 0.0
  %1017 = vmatprep.subr.mxu0 0.0
  %1018 = vmatpush1.msra.mxu0 0.0
  %1019 = vmatprep.subr.mxu0 0.0
  %1020 = vmatpush1.msra.mxu0 0.0
  %1021 = vmatprep.subr.mxu0 0.0
  %1022 = vmatpush1.msra.mxu0 0.0
  %1023 = vmatprep.subr.mxu0 0.0
  %1024 = vmatpush1.msra.mxu0 0.0
  %1025 = vmatprep.subr.mxu0 0.0
  %1026 = vmatpush1.msra.mxu0 0.0
  %1027 = vmatprep.subr.mxu0 0.0
  %1028 = vmatpush1.msra.mxu0 0.0
  %1029 = vmatprep.subr.mxu0 0.0
  %1030 = vmatpush1.msra.mxu0 0.0
  %1031 = vmatprep.subr.mxu0 0.0
  %1032 = vmatpush1.msra.mxu0 0.0
  %1033 = vmatprep.subr.mxu0 0.0
  %1034 = vmatpush1.msra.mxu0 0.0
  %1035 = vmatprep.subr.mxu0 0.0
  %1036 = vmatpush1.msra.mxu0 0.0
  %1037 = vmatprep.subr.mxu0 0.0
  %1038 = vmatpush1.msra.mxu0 0.0
  %1039 = vmatprep.subr.mxu0 0.0
  %1040 = vmatpush1.msra.mxu0 0.0
  %1041 = vmatprep.subr.mxu0 0.0
  %1042 = vmatpush1.msra.mxu0 0.0
  %1043 = vmatprep.mubr.f32.mxu0 0.0
  %v1044 = vand.u32 %v65, 4294901760
  %v1045 = vsub.f32 %v65, %v1044
  %v1046 = vand.u32 %v1045, 4294901760
  %1047 = vmatmul.mubr.f32.gmra.mrb[0].mxu0 %v1046
  %v1048 = vpop.f32.mrb[0].mxu0
  %v1049 = vadd.f32 %v953, %v1048
  %v1050 = vpop.f32.mrb[0].mxu0
  %1051 = vmatprep.mubr.f32.mxu0 0.0
  %v1052 = vand.u32 %v68, 4294901760
  %v1053 = vsub.f32 %v68, %v1052
  %v1054 = vand.u32 %v1053, 4294901760
  %1055 = vmatmul.mubr.f32.gmra.mrb[0].mxu0 %v1054
  %v1056 = vpop.f32.mrb[0].mxu0
  %v1057 = vadd.f32 %v960, %v1056
  %v1058 = vpop.f32.mrb[0].mxu0
  %1059 = vmatprep.mubr.f32.mxu0 0.0
  %v1060 = vand.u32 %v71, 4294901760
  %v1061 = vsub.f32 %v71, %v1060
  %v1062 = vand.u32 %v1061, 4294901760
  %1063 = vmatmul.mubr.f32.gmra.mrb[0].mxu0 %v1062
  %v1064 = vpop.f32.mrb[0].mxu0
  %v1065 = vadd.f32 %v967, %v1064
  %v1066 = vpop.f32.mrb[0].mxu0
  %1067 = vmatprep.mubr.f32.mxu0 0.0
  %v1068 = vand.u32 %v74, 4294901760
  %v1069 = vsub.f32 %v74, %v1068
  %v1070 = vand.u32 %v1069, 4294901760
  %1071 = vmatmul.mubr.f32.gmra.mrb[0].mxu0 %v1070
  %v1072 = vpop.f32.mrb[0].mxu0
  %v1073 = vadd.f32 %v974, %v1072
  %v1074 = vpop.f32.mrb[0].mxu0
  %1075 = vdwg.mxu0
  %1076 = vmatprep.subr.mxu0 0.0
  %v1077 = vand.u32 %v669, 4294901760
  %v1078 = vsub.f32 %v669, %v1077
  %v1079 = vand.u32 %v1078, 4294901760
  %1080 = vmatpush1.msra.mxu0 %v1079
  %1081 = vmatprep.subr.mxu0 0.0
  %v1082 = vand.u32 %v672, 4294901760
  %v1083 = vsub.f32 %v672, %v1082
  %v1084 = vand.u32 %v1083, 4294901760
  %1085 = vmatpush1.msra.mxu0 %v1084
  %1086 = vmatprep.subr.mxu0 0.0
  %1087 = vmatpush1.msra.mxu0 0.0
  %1088 = vmatprep.subr.mxu0 0.0
  %1089 = vmatpush1.msra.mxu0 0.0
  %1090 = vmatprep.subr.mxu0 0.0
  %1091 = vmatpush1.msra.mxu0 0.0
  %1092 = vmatprep.subr.mxu0 0.0
  %1093 = vmatpush1.msra.mxu0 0.0
  %1094 = vmatprep.subr.mxu0 0.0
  %1095 = vmatpush1.msra.mxu0 0.0
  %1096 = vmatprep.subr.mxu0 0.0
  %1097 = vmatpush1.msra.mxu0 0.0
  %1098 = vmatprep.subr.mxu0 0.0
  %1099 = vmatpush1.msra.mxu0 0.0
  %1100 = vmatprep.subr.mxu0 0.0
  %1101 = vmatpush1.msra.mxu0 0.0
  %1102 = vmatprep.subr.mxu0 0.0
  %1103 = vmatpush1.msra.mxu0 0.0
  %1104 = vmatprep.subr.mxu0 0.0
  %1105 = vmatpush1.msra.mxu0 0.0
  %1106 = vmatprep.subr.mxu0 0.0
  %1107 = vmatpush1.msra.mxu0 0.0
  %1108 = vmatprep.subr.mxu0 0.0
  %1109 = vmatpush1.msra.mxu0 0.0
  %1110 = vmatprep.subr.mxu0 0.0
  %1111 = vmatpush1.msra.mxu0 0.0
  %1112 = vmatprep.subr.mxu0 0.0
  %1113 = vmatpush1.msra.mxu0 0.0
  %1114 = vmatprep.subr.mxu0 0.0
  %1115 = vmatpush1.msra.mxu0 0.0
  %1116 = vmatprep.subr.mxu0 0.0
  %1117 = vmatpush1.msra.mxu0 0.0
  %1118 = vmatprep.subr.mxu0 0.0
  %1119 = vmatpush1.msra.mxu0 0.0
  %1120 = vmatprep.subr.mxu0 0.0
  %1121 = vmatpush1.msra.mxu0 0.0
  %1122 = vmatprep.subr.mxu0 0.0
  %1123 = vmatpush1.msra.mxu0 0.0
  %1124 = vmatprep.subr.mxu0 0.0
  %1125 = vmatpush1.msra.mxu0 0.0
  %1126 = vmatprep.subr.mxu0 0.0
  %1127 = vmatpush1.msra.mxu0 0.0
  %1128 = vmatprep.subr.mxu0 0.0
  %1129 = vmatpush1.msra.mxu0 0.0
  %1130 = vmatprep.subr.mxu0 0.0
  %1131 = vmatpush1.msra.mxu0 0.0
  %1132 = vmatprep.subr.mxu0 0.0
  %1133 = vmatpush1.msra.mxu0 0.0
  %1134 = vmatprep.subr.mxu0 0.0
  %1135 = vmatpush1.msra.mxu0 0.0
  %1136 = vmatprep.subr.mxu0 0.0
  %1137 = vmatpush1.msra.mxu0 0.0
  %1138 = vmatprep.subr.mxu0 0.0
  %1139 = vmatpush1.msra.mxu0 0.0
  %1140 = vmatprep.subr.mxu0 0.0
  %1141 = vmatpush1.msra.mxu0 0.0
  %1142 = vmatprep.subr.mxu0 0.0
  %1143 = vmatpush1.msra.mxu0 0.0
  %1144 = vmatprep.subr.mxu0 0.0
  %1145 = vmatpush1.msra.mxu0 0.0
  %1146 = vmatprep.mubr.f32.mxu0 0.0
  %v1147 = vand.u32 %v65, 4294901760
  %1148 = vmatmul.mubr.f32.gmra.mrb[0].mxu0 %v1147
  %v1149 = vpop.f32.mrb[0].mxu0
  %v1150 = vadd.f32 %v1049, %v1149
  %v1151 = vpop.f32.mrb[0].mxu0
  %1152 = vmatprep.mubr.f32.mxu0 0.0
  %v1153 = vand.u32 %v68, 4294901760
  %1154 = vmatmul.mubr.f32.gmra.mrb[0].mxu0 %v1153
  %v1155 = vpop.f32.mrb[0].mxu0
  %v1156 = vadd.f32 %v1057, %v1155
  %v1157 = vpop.f32.mrb[0].mxu0
  %1158 = vmatprep.mubr.f32.mxu0 0.0
  %v1159 = vand.u32 %v71, 4294901760
  %1160 = vmatmul.mubr.f32.gmra.mrb[0].mxu0 %v1159
  %v1161 = vpop.f32.mrb[0].mxu0
  %v1162 = vadd.f32 %v1065, %v1161
  %v1163 = vpop.f32.mrb[0].mxu0
  %1164 = vmatprep.mubr.f32.mxu0 0.0
  %v1165 = vand.u32 %v74, 4294901760
  %1166 = vmatmul.mubr.f32.gmra.mrb[0].mxu0 %v1165
  %v1167 = vpop.f32.mrb[0].mxu0
  %v1168 = vadd.f32 %v1073, %v1167
  %v1169 = vpop.f32.mrb[0].mxu0
  %1170 = vdwg.mxu0
  %1171 = vmatprep.subr.mxu0 0.0
  %v1172 = vand.u32 %v669, 4294901760
  %1173 = vmatpush1.msra.mxu0 %v1172
  %1174 = vmatprep.subr.mxu0 0.0
  %v1175 = vand.u32 %v672, 4294901760
  %1176 = vmatpush1.msra.mxu0 %v1175
  %1177 = vmatprep.subr.mxu0 0.0
  %1178 = vmatpush1.msra.mxu0 0.0
  %1179 = vmatprep.subr.mxu0 0.0
  %1180 = vmatpush1.msra.mxu0 0.0
  %1181 = vmatprep.subr.mxu0 0.0
  %1182 = vmatpush1.msra.mxu0 0.0
  %1183 = vmatprep.subr.mxu0 0.0
  %1184 = vmatpush1.msra.mxu0 0.0
  %1185 = vmatprep.subr.mxu0 0.0
  %1186 = vmatpush1.msra.mxu0 0.0
  %1187 = vmatprep.subr.mxu0 0.0
  %1188 = vmatpush1.msra.mxu0 0.0
  %1189 = vmatprep.subr.mxu0 0.0
  %1190 = vmatpush1.msra.mxu0 0.0
  %1191 = vmatprep.subr.mxu0 0.0
  %1192 = vmatpush1.msra.mxu0 0.0
  %1193 = vmatprep.subr.mxu0 0.0
  %1194 = vmatpush1.msra.mxu0 0.0
  %1195 = vmatprep.subr.mxu0 0.0
  %1196 = vmatpush1.msra.mxu0 0.0
  %1197 = vmatprep.subr.mxu0 0.0
  %1198 = vmatpush1.msra.mxu0 0.0
  %1199 = vmatprep.subr.mxu0 0.0
  %1200 = vmatpush1.msra.mxu0 0.0
  %1201 = vmatprep.subr.mxu0 0.0
  %1202 = vmatpush1.msra.mxu0 0.0
  %1203 = vmatprep.subr.mxu0 0.0
  %1204 = vmatpush1.msra.mxu0 0.0
  %1205 = vmatprep.subr.mxu0 0.0
  %1206 = vmatpush1.msra.mxu0 0.0
  %1207 = vmatprep.subr.mxu0 0.0
  %1208 = vmatpush1.msra.mxu0 0.0
  %1209 = vmatprep.subr.mxu0 0.0
  %1210 = vmatpush1.msra.mxu0 0.0
  %1211 = vmatprep.subr.mxu0 0.0
  %1212 = vmatpush1.msra.mxu0 0.0
  %1213 = vmatprep.subr.mxu0 0.0
  %1214 = vmatpush1.msra.mxu0 0.0
  %1215 = vmatprep.subr.mxu0 0.0
  %1216 = vmatpush1.msra.mxu0 0.0
  %1217 = vmatprep.subr.mxu0 0.0
  %1218 = vmatpush1.msra.mxu0 0.0
  %1219 = vmatprep.subr.mxu0 0.0
  %1220 = vmatpush1.msra.mxu0 0.0
  %1221 = vmatprep.subr.mxu0 0.0
  %1222 = vmatpush1.msra.mxu0 0.0
  %1223 = vmatprep.subr.mxu0 0.0
  %1224 = vmatpush1.msra.mxu0 0.0
  %1225 = vmatprep.subr.mxu0 0.0
  %1226 = vmatpush1.msra.mxu0 0.0
  %1227 = vmatprep.subr.mxu0 0.0
  %1228 = vmatpush1.msra.mxu0 0.0
  %1229 = vmatprep.subr.mxu0 0.0
  %1230 = vmatpush1.msra.mxu0 0.0
  %1231 = vmatprep.subr.mxu0 0.0
  %1232 = vmatpush1.msra.mxu0 0.0
  %1233 = vmatprep.subr.mxu0 0.0
  %1234 = vmatpush1.msra.mxu0 0.0
  %1235 = vmatprep.subr.mxu0 0.0
  %1236 = vmatpush1.msra.mxu0 0.0
  %1237 = vmatprep.mubr.f32.mxu0 0.0
  %v1238 = vand.u32 %v65, 4294901760
  %1239 = vmatmul.mubr.f32.gmra.mrb[0].mxu0 %v1238
  %v1240 = vpop.f32.mrb[0].mxu0
  %v1241 = vadd.f32 %v1150, %v1240
  %v1242 = vpop.f32.mrb[0].mxu0
  %1243 = vmatprep.mubr.f32.mxu0 0.0
  %v1244 = vand.u32 %v68, 4294901760
  %1245 = vmatmul.mubr.f32.gmra.mrb[0].mxu0 %v1244
  %v1246 = vpop.f32.mrb[0].mxu0
  %v1247 = vadd.f32 %v1156, %v1246
  %v1248 = vpop.f32.mrb[0].mxu0
  %1249 = vmatprep.mubr.f32.mxu0 0.0
  %v1250 = vand.u32 %v71, 4294901760
  %1251 = vmatmul.mubr.f32.gmra.mrb[0].mxu0 %v1250
  %v1252 = vpop.f32.mrb[0].mxu0
  %v1253 = vadd.f32 %v1162, %v1252
  %v1254 = vpop.f32.mrb[0].mxu0
  %1255 = vmatprep.mubr.f32.mxu0 0.0
  %v1256 = vand.u32 %v74, 4294901760
  %1257 = vmatmul.mubr.f32.gmra.mrb[0].mxu0 %v1256
  %v1258 = vpop.f32.mrb[0].mxu0
  %v1259 = vadd.f32 %v1168, %v1258
  %v1260 = vpop.f32.mrb[0].mxu0
  %1261 = vdwg.mxu0
  %s1262 = scalar_lea.vmem %s1, 32
  %v1263 = vld [vmem:[%s1262] sm:$0xff]
  %v1264 = vld [vmem:[%s1262 + $0x8] sm:$0x3]
  %v1266 = vsel %vm76, %v1264, 0
  %1268 = vmatprep.subr.mxu0 0.0
  %v1269 = vand.u32 %v1263, 4294901760
  %1270 = vmatpush1.msra.mxu0 %v1269
  %1271 = vmatprep.subr.mxu0 0.0
  %v1272 = vand.u32 %v1266, 4294901760
  %1273 = vmatpush1.msra.mxu0 %v1272
  %1274 = vmatprep.subr.mxu0 0.0
  %1275 = vmatpush1.msra.mxu0 0.0
  %1276 = vmatprep.subr.mxu0 0.0
  %1277 = vmatpush1.msra.mxu0 0.0
  %1278 = vmatprep.subr.mxu0 0.0
  %1279 = vmatpush1.msra.mxu0 0.0
  %1280 = vmatprep.subr.mxu0 0.0
  %1281 = vmatpush1.msra.mxu0 0.0
  %1282 = vmatprep.subr.mxu0 0.0
  %1283 = vmatpush1.msra.mxu0 0.0
  %1284 = vmatprep.subr.mxu0 0.0
  %1285 = vmatpush1.msra.mxu0 0.0
  %1286 = vmatprep.subr.mxu0 0.0
  %1287 = vmatpush1.msra.mxu0 0.0
  %1288 = vmatprep.subr.mxu0 0.0
  %1289 = vmatpush1.msra.mxu0 0.0
  %1290 = vmatprep.subr.mxu0 0.0
  %1291 = vmatpush1.msra.mxu0 0.0
  %1292 = vmatprep.subr.mxu0 0.0
  %1293 = vmatpush1.msra.mxu0 0.0
  %1294 = vmatprep.subr.mxu0 0.0
  %1295 = vmatpush1.msra.mxu0 0.0
  %1296 = vmatprep.subr.mxu0 0.0
  %1297 = vmatpush1.msra.mxu0 0.0
  %1298 = vmatprep.subr.mxu0 0.0
  %1299 = vmatpush1.msra.mxu0 0.0
  %1300 = vmatprep.subr.mxu0 0.0
  %1301 = vmatpush1.msra.mxu0 0.0
  %1302 = vmatprep.subr.mxu0 0.0
  %1303 = vmatpush1.msra.mxu0 0.0
  %1304 = vmatprep.subr.mxu0 0.0
  %1305 = vmatpush1.msra.mxu0 0.0
  %1306 = vmatprep.subr.mxu0 0.0
  %1307 = vmatpush1.msra.mxu0 0.0
  %1308 = vmatprep.subr.mxu0 0.0
  %1309 = vmatpush1.msra.mxu0 0.0
  %1310 = vmatprep.subr.mxu0 0.0
  %1311 = vmatpush1.msra.mxu0 0.0
  %1312 = vmatprep.subr.mxu0 0.0
  %1313 = vmatpush1.msra.mxu0 0.0
  %1314 = vmatprep.subr.mxu0 0.0
  %1315 = vmatpush1.msra.mxu0 0.0
  %1316 = vmatprep.subr.mxu0 0.0
  %1317 = vmatpush1.msra.mxu0 0.0
  %1318 = vmatprep.subr.mxu0 0.0
  %1319 = vmatpush1.msra.mxu0 0.0
  %1320 = vmatprep.subr.mxu0 0.0
  %1321 = vmatpush1.msra.mxu0 0.0
  %1322 = vmatprep.subr.mxu0 0.0
  %1323 = vmatpush1.msra.mxu0 0.0
  %1324 = vmatprep.subr.mxu0 0.0
  %1325 = vmatpush1.msra.mxu0 0.0
  %1326 = vmatprep.subr.mxu0 0.0
  %1327 = vmatpush1.msra.mxu0 0.0
  %1328 = vmatprep.subr.mxu0 0.0
  %1329 = vmatpush1.msra.mxu0 0.0
  %1330 = vmatprep.subr.mxu0 0.0
  %1331 = vmatpush1.msra.mxu0 0.0
  %1332 = vmatprep.subr.mxu0 0.0
  %1333 = vmatpush1.msra.mxu0 0.0
  %1334 = vmatprep.mubr.f32.mxu0 0.0
  %v1335 = vand.u32 %v65, 4294901760
  %v1336 = vsub.f32 %v65, %v1335
  %v1337 = vand.u32 %v1336, 4294901760
  %v1338 = vsub.f32 %v1336, %v1337
  %v1339 = vand.u32 %v1338, 4294901760
  %1340 = vmatmul.mubr.f32.gmra.mrb[0].mxu0 %v1339
  %v1341 = vpop.f32.mrb[0].mxu0
  %v1342 = vadd.f32 0.0, %v1341
  %v1343 = vpop.f32.mrb[0].mxu0
  %1344 = vmatprep.mubr.f32.mxu0 0.0
  %v1345 = vand.u32 %v68, 4294901760
  %v1346 = vsub.f32 %v68, %v1345
  %v1347 = vand.u32 %v1346, 4294901760
  %v1348 = vsub.f32 %v1346, %v1347
  %v1349 = vand.u32 %v1348, 4294901760
  %1350 = vmatmul.mubr.f32.gmra.mrb[0].mxu0 %v1349
  %v1351 = vpop.f32.mrb[0].mxu0
  %v1352 = vadd.f32 0.0, %v1351
  %v1353 = vpop.f32.mrb[0].mxu0
  %1354 = vmatprep.mubr.f32.mxu0 0.0
  %v1355 = vand.u32 %v71, 4294901760
  %v1356 = vsub.f32 %v71, %v1355
  %v1357 = vand.u32 %v1356, 4294901760
  %v1358 = vsub.f32 %v1356, %v1357
  %v1359 = vand.u32 %v1358, 4294901760
  %1360 = vmatmul.mubr.f32.gmra.mrb[0].mxu0 %v1359
  %v1361 = vpop.f32.mrb[0].mxu0
  %v1362 = vadd.f32 0.0, %v1361
  %v1363 = vpop.f32.mrb[0].mxu0
  %1364 = vmatprep.mubr.f32.mxu0 0.0
  %v1365 = vand.u32 %v74, 4294901760
  %v1366 = vsub.f32 %v74, %v1365
  %v1367 = vand.u32 %v1366, 4294901760
  %v1368 = vsub.f32 %v1366, %v1367
  %v1369 = vand.u32 %v1368, 4294901760
  %1370 = vmatmul.mubr.f32.gmra.mrb[0].mxu0 %v1369
  %v1371 = vpop.f32.mrb[0].mxu0
  %v1372 = vadd.f32 0.0, %v1371
  %v1373 = vpop.f32.mrb[0].mxu0
  %1374 = vdwg.mxu0
  %1375 = vmatprep.subr.mxu0 0.0
  %v1376 = vand.u32 %v1263, 4294901760
  %v1377 = vsub.f32 %v1263, %v1376
  %v1378 = vand.u32 %v1377, 4294901760
  %v1379 = vsub.f32 %v1377, %v1378
  %v1380 = vand.u32 %v1379, 4294901760
  %1381 = vmatpush1.msra.mxu0 %v1380
  %1382 = vmatprep.subr.mxu0 0.0
  %v1383 = vand.u32 %v1266, 4294901760
  %v1384 = vsub.f32 %v1266, %v1383
  %v1385 = vand.u32 %v1384, 4294901760
  %v1386 = vsub.f32 %v1384, %v1385
  %v1387 = vand.u32 %v1386, 4294901760
  %1388 = vmatpush1.msra.mxu0 %v1387
  %1389 = vmatprep.subr.mxu0 0.0
  %1390 = vmatpush1.msra.mxu0 0.0
  %1391 = vmatprep.subr.mxu0 0.0
  %1392 = vmatpush1.msra.mxu0 0.0
  %1393 = vmatprep.subr.mxu0 0.0
  %1394 = vmatpush1.msra.mxu0 0.0
  %1395 = vmatprep.subr.mxu0 0.0
  %1396 = vmatpush1.msra.mxu0 0.0
  %1397 = vmatprep.subr.mxu0 0.0
  %1398 = vmatpush1.msra.mxu0 0.0
  %1399 = vmatprep.subr.mxu0 0.0
  %1400 = vmatpush1.msra.mxu0 0.0
  %1401 = vmatprep.subr.mxu0 0.0
  %1402 = vmatpush1.msra.mxu0 0.0
  %1403 = vmatprep.subr.mxu0 0.0
  %1404 = vmatpush1.msra.mxu0 0.0
  %1405 = vmatprep.subr.mxu0 0.0
  %1406 = vmatpush1.msra.mxu0 0.0
  %1407 = vmatprep.subr.mxu0 0.0
  %1408 = vmatpush1.msra.mxu0 0.0
  %1409 = vmatprep.subr.mxu0 0.0
  %1410 = vmatpush1.msra.mxu0 0.0
  %1411 = vmatprep.subr.mxu0 0.0
  %1412 = vmatpush1.msra.mxu0 0.0
  %1413 = vmatprep.subr.mxu0 0.0
  %1414 = vmatpush1.msra.mxu0 0.0
  %1415 = vmatprep.subr.mxu0 0.0
  %1416 = vmatpush1.msra.mxu0 0.0
  %1417 = vmatprep.subr.mxu0 0.0
  %1418 = vmatpush1.msra.mxu0 0.0
  %1419 = vmatprep.subr.mxu0 0.0
  %1420 = vmatpush1.msra.mxu0 0.0
  %1421 = vmatprep.subr.mxu0 0.0
  %1422 = vmatpush1.msra.mxu0 0.0
  %1423 = vmatprep.subr.mxu0 0.0
  %1424 = vmatpush1.msra.mxu0 0.0
  %1425 = vmatprep.subr.mxu0 0.0
  %1426 = vmatpush1.msra.mxu0 0.0
  %1427 = vmatprep.subr.mxu0 0.0
  %1428 = vmatpush1.msra.mxu0 0.0
  %1429 = vmatprep.subr.mxu0 0.0
  %1430 = vmatpush1.msra.mxu0 0.0
  %1431 = vmatprep.subr.mxu0 0.0
  %1432 = vmatpush1.msra.mxu0 0.0
  %1433 = vmatprep.subr.mxu0 0.0
  %1434 = vmatpush1.msra.mxu0 0.0
  %1435 = vmatprep.subr.mxu0 0.0
  %1436 = vmatpush1.msra.mxu0 0.0
  %1437 = vmatprep.subr.mxu0 0.0
  %1438 = vmatpush1.msra.mxu0 0.0
  %1439 = vmatprep.subr.mxu0 0.0
  %1440 = vmatpush1.msra.mxu0 0.0
  %1441 = vmatprep.subr.mxu0 0.0
  %1442 = vmatpush1.msra.mxu0 0.0
  %1443 = vmatprep.subr.mxu0 0.0
  %1444 = vmatpush1.msra.mxu0 0.0
  %1445 = vmatprep.subr.mxu0 0.0
  %1446 = vmatpush1.msra.mxu0 0.0
  %1447 = vmatprep.subr.mxu0 0.0
  %1448 = vmatpush1.msra.mxu0 0.0
  %1449 = vmatprep.mubr.f32.mxu0 0.0
  %v1450 = vand.u32 %v65, 4294901760
  %1451 = vmatmul.mubr.f32.gmra.mrb[0].mxu0 %v1450
  %v1452 = vpop.f32.mrb[0].mxu0
  %v1453 = vadd.f32 %v1342, %v1452
  %v1454 = vpop.f32.mrb[0].mxu0
  %1455 = vmatprep.mubr.f32.mxu0 0.0
  %v1456 = vand.u32 %v68, 4294901760
  %1457 = vmatmul.mubr.f32.gmra.mrb[0].mxu0 %v1456
  %v1458 = vpop.f32.mrb[0].mxu0
  %v1459 = vadd.f32 %v1352, %v1458
  %v1460 = vpop.f32.mrb[0].mxu0
  %1461 = vmatprep.mubr.f32.mxu0 0.0
  %v1462 = vand.u32 %v71, 4294901760
  %1463 = vmatmul.mubr.f32.gmra.mrb[0].mxu0 %v1462
  %v1464 = vpop.f32.mrb[0].mxu0
  %v1465 = vadd.f32 %v1362, %v1464
  %v1466 = vpop.f32.mrb[0].mxu0
  %1467 = vmatprep.mubr.f32.mxu0 0.0
  %v1468 = vand.u32 %v74, 4294901760
  %1469 = vmatmul.mubr.f32.gmra.mrb[0].mxu0 %v1468
  %v1470 = vpop.f32.mrb[0].mxu0
  %v1471 = vadd.f32 %v1372, %v1470
  %v1472 = vpop.f32.mrb[0].mxu0
  %1473 = vdwg.mxu0
  %1474 = vmatprep.subr.mxu0 0.0
  %v1475 = vand.u32 %v1263, 4294901760
  %v1476 = vsub.f32 %v1263, %v1475
  %1477 = vmatpush1.msra.mxu0 %v1476
  %1478 = vmatprep.subr.mxu0 0.0
  %v1479 = vand.u32 %v1266, 4294901760
  %v1480 = vsub.f32 %v1266, %v1479
  %1481 = vmatpush1.msra.mxu0 %v1480
  %1482 = vmatprep.subr.mxu0 0.0
  %1483 = vmatpush1.msra.mxu0 0.0
  %1484 = vmatprep.subr.mxu0 0.0
  %1485 = vmatpush1.msra.mxu0 0.0
  %1486 = vmatprep.subr.mxu0 0.0
  %1487 = vmatpush1.msra.mxu0 0.0
  %1488 = vmatprep.subr.mxu0 0.0
  %1489 = vmatpush1.msra.mxu0 0.0
  %1490 = vmatprep.subr.mxu0 0.0
  %1491 = vmatpush1.msra.mxu0 0.0
  %1492 = vmatprep.subr.mxu0 0.0
  %1493 = vmatpush1.msra.mxu0 0.0
  %1494 = vmatprep.subr.mxu0 0.0
  %1495 = vmatpush1.msra.mxu0 0.0
  %1496 = vmatprep.subr.mxu0 0.0
  %1497 = vmatpush1.msra.mxu0 0.0
  %1498 = vmatprep.subr.mxu0 0.0
  %1499 = vmatpush1.msra.mxu0 0.0
  %1500 = vmatprep.subr.mxu0 0.0
  %1501 = vmatpush1.msra.mxu0 0.0
  %1502 = vmatprep.subr.mxu0 0.0
  %1503 = vmatpush1.msra.mxu0 0.0
  %1504 = vmatprep.subr.mxu0 0.0
  %1505 = vmatpush1.msra.mxu0 0.0
  %1506 = vmatprep.subr.mxu0 0.0
  %1507 = vmatpush1.msra.mxu0 0.0
  %1508 = vmatprep.subr.mxu0 0.0
  %1509 = vmatpush1.msra.mxu0 0.0
  %1510 = vmatprep.subr.mxu0 0.0
  %1511 = vmatpush1.msra.mxu0 0.0
  %1512 = vmatprep.subr.mxu0 0.0
  %1513 = vmatpush1.msra.mxu0 0.0
  %1514 = vmatprep.subr.mxu0 0.0
  %1515 = vmatpush1.msra.mxu0 0.0
  %1516 = vmatprep.subr.mxu0 0.0
  %1517 = vmatpush1.msra.mxu0 0.0
  %1518 = vmatprep.subr.mxu0 0.0
  %1519 = vmatpush1.msra.mxu0 0.0
  %1520 = vmatprep.subr.mxu0 0.0
  %1521 = vmatpush1.msra.mxu0 0.0
  %1522 = vmatprep.subr.mxu0 0.0
  %1523 = vmatpush1.msra.mxu0 0.0
  %1524 = vmatprep.subr.mxu0 0.0
  %1525 = vmatpush1.msra.mxu0 0.0
  %1526 = vmatprep.subr.mxu0 0.0
  %1527 = vmatpush1.msra.mxu0 0.0
  %1528 = vmatprep.subr.mxu0 0.0
  %1529 = vmatpush1.msra.mxu0 0.0
  %1530 = vmatprep.subr.mxu0 0.0
  %1531 = vmatpush1.msra.mxu0 0.0
  %1532 = vmatprep.subr.mxu0 0.0
  %1533 = vmatpush1.msra.mxu0 0.0
  %1534 = vmatprep.subr.mxu0 0.0
  %1535 = vmatpush1.msra.mxu0 0.0
  %1536 = vmatprep.subr.mxu0 0.0
  %1537 = vmatpush1.msra.mxu0 0.0
  %1538 = vmatprep.subr.mxu0 0.0
  %1539 = vmatpush1.msra.mxu0 0.0
  %1540 = vmatprep.subr.mxu0 0.0
  %1541 = vmatpush1.msra.mxu0 0.0
  %1542 = vmatprep.mubr.f32.mxu0 0.0
  %v1543 = vand.u32 %v65, 4294901760
  %v1544 = vsub.f32 %v65, %v1543
  %1545 = vmatmul.mubr.f32.gmra.mrb[0].mxu0 %v1544
  %v1546 = vpop.f32.mrb[0].mxu0
  %v1547 = vadd.f32 %v1453, %v1546
  %v1548 = vpop.f32.mrb[0].mxu0
  %1549 = vmatprep.mubr.f32.mxu0 0.0
  %v1550 = vand.u32 %v68, 4294901760
  %v1551 = vsub.f32 %v68, %v1550
  %1552 = vmatmul.mubr.f32.gmra.mrb[0].mxu0 %v1551
  %v1553 = vpop.f32.mrb[0].mxu0
  %v1554 = vadd.f32 %v1459, %v1553
  %v1555 = vpop.f32.mrb[0].mxu0
  %1556 = vmatprep.mubr.f32.mxu0 0.0
  %v1557 = vand.u32 %v71, 4294901760
  %v1558 = vsub.f32 %v71, %v1557
  %1559 = vmatmul.mubr.f32.gmra.mrb[0].mxu0 %v1558
  %v1560 = vpop.f32.mrb[0].mxu0
  %v1561 = vadd.f32 %v1465, %v1560
  %v1562 = vpop.f32.mrb[0].mxu0
  %1563 = vmatprep.mubr.f32.mxu0 0.0
  %v1564 = vand.u32 %v74, 4294901760
  %v1565 = vsub.f32 %v74, %v1564
  %1566 = vmatmul.mubr.f32.gmra.mrb[0].mxu0 %v1565
  %v1567 = vpop.f32.mrb[0].mxu0
  %v1568 = vadd.f32 %v1471, %v1567
  %v1569 = vpop.f32.mrb[0].mxu0
  %1570 = vdwg.mxu0
  %1571 = vmatprep.subr.mxu0 0.0
  %v1572 = vand.u32 %v1263, 4294901760
  %1573 = vmatpush1.msra.mxu0 %v1572
  %1574 = vmatprep.subr.mxu0 0.0
  %v1575 = vand.u32 %v1266, 4294901760
  %1576 = vmatpush1.msra.mxu0 %v1575
  %1577 = vmatprep.subr.mxu0 0.0
  %1578 = vmatpush1.msra.mxu0 0.0
  %1579 = vmatprep.subr.mxu0 0.0
  %1580 = vmatpush1.msra.mxu0 0.0
  %1581 = vmatprep.subr.mxu0 0.0
  %1582 = vmatpush1.msra.mxu0 0.0
  %1583 = vmatprep.subr.mxu0 0.0
  %1584 = vmatpush1.msra.mxu0 0.0
  %1585 = vmatprep.subr.mxu0 0.0
  %1586 = vmatpush1.msra.mxu0 0.0
  %1587 = vmatprep.subr.mxu0 0.0
  %1588 = vmatpush1.msra.mxu0 0.0
  %1589 = vmatprep.subr.mxu0 0.0
  %1590 = vmatpush1.msra.mxu0 0.0
  %1591 = vmatprep.subr.mxu0 0.0
  %1592 = vmatpush1.msra.mxu0 0.0
  %1593 = vmatprep.subr.mxu0 0.0
  %1594 = vmatpush1.msra.mxu0 0.0
  %1595 = vmatprep.subr.mxu0 0.0
  %1596 = vmatpush1.msra.mxu0 0.0
  %1597 = vmatprep.subr.mxu0 0.0
  %1598 = vmatpush1.msra.mxu0 0.0
  %1599 = vmatprep.subr.mxu0 0.0
  %1600 = vmatpush1.msra.mxu0 0.0
  %1601 = vmatprep.subr.mxu0 0.0
  %1602 = vmatpush1.msra.mxu0 0.0
  %1603 = vmatprep.subr.mxu0 0.0
  %1604 = vmatpush1.msra.mxu0 0.0
  %1605 = vmatprep.subr.mxu0 0.0
  %1606 = vmatpush1.msra.mxu0 0.0
  %1607 = vmatprep.subr.mxu0 0.0
  %1608 = vmatpush1.msra.mxu0 0.0
  %1609 = vmatprep.subr.mxu0 0.0
  %1610 = vmatpush1.msra.mxu0 0.0
  %1611 = vmatprep.subr.mxu0 0.0
  %1612 = vmatpush1.msra.mxu0 0.0
  %1613 = vmatprep.subr.mxu0 0.0
  %1614 = vmatpush1.msra.mxu0 0.0
  %1615 = vmatprep.subr.mxu0 0.0
  %1616 = vmatpush1.msra.mxu0 0.0
  %1617 = vmatprep.subr.mxu0 0.0
  %1618 = vmatpush1.msra.mxu0 0.0
  %1619 = vmatprep.subr.mxu0 0.0
  %1620 = vmatpush1.msra.mxu0 0.0
  %1621 = vmatprep.subr.mxu0 0.0
  %1622 = vmatpush1.msra.mxu0 0.0
  %1623 = vmatprep.subr.mxu0 0.0
  %1624 = vmatpush1.msra.mxu0 0.0
  %1625 = vmatprep.subr.mxu0 0.0
  %1626 = vmatpush1.msra.mxu0 0.0
  %1627 = vmatprep.subr.mxu0 0.0
  %1628 = vmatpush1.msra.mxu0 0.0
  %1629 = vmatprep.subr.mxu0 0.0
  %1630 = vmatpush1.msra.mxu0 0.0
  %1631 = vmatprep.subr.mxu0 0.0
  %1632 = vmatpush1.msra.mxu0 0.0
  %1633 = vmatprep.subr.mxu0 0.0
  %1634 = vmatpush1.msra.mxu0 0.0
  %1635 = vmatprep.subr.mxu0 0.0
  %1636 = vmatpush1.msra.mxu0 0.0
  %1637 = vmatprep.mubr.f32.mxu0 0.0
  %v1638 = vand.u32 %v65, 4294901760
  %v1639 = vsub.f32 %v65, %v1638
  %v1640 = vand.u32 %v1639, 4294901760
  %1641 = vmatmul.mubr.f32.gmra.mrb[0].mxu0 %v1640
  %v1642 = vpop.f32.mrb[0].mxu0
  %v1643 = vadd.f32 %v1547, %v1642
  %v1644 = vpop.f32.mrb[0].mxu0
  %1645 = vmatprep.mubr.f32.mxu0 0.0
  %v1646 = vand.u32 %v68, 4294901760
  %v1647 = vsub.f32 %v68, %v1646
  %v1648 = vand.u32 %v1647, 4294901760
  %1649 = vmatmul.mubr.f32.gmra.mrb[0].mxu0 %v1648
  %v1650 = vpop.f32.mrb[0].mxu0
  %v1651 = vadd.f32 %v1554, %v1650
  %v1652 = vpop.f32.mrb[0].mxu0
  %1653 = vmatprep.mubr.f32.mxu0 0.0
  %v1654 = vand.u32 %v71, 4294901760
  %v1655 = vsub.f32 %v71, %v1654
  %v1656 = vand.u32 %v1655, 4294901760
  %1657 = vmatmul.mubr.f32.gmra.mrb[0].mxu0 %v1656
  %v1658 = vpop.f32.mrb[0].mxu0
  %v1659 = vadd.f32 %v1561, %v1658
  %v1660 = vpop.f32.mrb[0].mxu0
  %1661 = vmatprep.mubr.f32.mxu0 0.0
  %v1662 = vand.u32 %v74, 4294901760
  %v1663 = vsub.f32 %v74, %v1662
  %v1664 = vand.u32 %v1663, 4294901760
  %1665 = vmatmul.mubr.f32.gmra.mrb[0].mxu0 %v1664
  %v1666 = vpop.f32.mrb[0].mxu0
  %v1667 = vadd.f32 %v1568, %v1666
  %v1668 = vpop.f32.mrb[0].mxu0
  %1669 = vdwg.mxu0
  %1670 = vmatprep.subr.mxu0 0.0
  %v1671 = vand.u32 %v1263, 4294901760
  %v1672 = vsub.f32 %v1263, %v1671
  %v1673 = vand.u32 %v1672, 4294901760
  %1674 = vmatpush1.msra.mxu0 %v1673
  %1675 = vmatprep.subr.mxu0 0.0
  %v1676 = vand.u32 %v1266, 4294901760
  %v1677 = vsub.f32 %v1266, %v1676
  %v1678 = vand.u32 %v1677, 4294901760
  %1679 = vmatpush1.msra.mxu0 %v1678
  %1680 = vmatprep.subr.mxu0 0.0
  %1681 = vmatpush1.msra.mxu0 0.0
  %1682 = vmatprep.subr.mxu0 0.0
  %1683 = vmatpush1.msra.mxu0 0.0
  %1684 = vmatprep.subr.mxu0 0.0
  %1685 = vmatpush1.msra.mxu0 0.0
  %1686 = vmatprep.subr.mxu0 0.0
  %1687 = vmatpush1.msra.mxu0 0.0
  %1688 = vmatprep.subr.mxu0 0.0
  %1689 = vmatpush1.msra.mxu0 0.0
  %1690 = vmatprep.subr.mxu0 0.0
  %1691 = vmatpush1.msra.mxu0 0.0
  %1692 = vmatprep.subr.mxu0 0.0
  %1693 = vmatpush1.msra.mxu0 0.0
  %1694 = vmatprep.subr.mxu0 0.0
  %1695 = vmatpush1.msra.mxu0 0.0
  %1696 = vmatprep.subr.mxu0 0.0
  %1697 = vmatpush1.msra.mxu0 0.0
  %1698 = vmatprep.subr.mxu0 0.0
  %1699 = vmatpush1.msra.mxu0 0.0
  %1700 = vmatprep.subr.mxu0 0.0
  %1701 = vmatpush1.msra.mxu0 0.0
  %1702 = vmatprep.subr.mxu0 0.0
  %1703 = vmatpush1.msra.mxu0 0.0
  %1704 = vmatprep.subr.mxu0 0.0
  %1705 = vmatpush1.msra.mxu0 0.0
  %1706 = vmatprep.subr.mxu0 0.0
  %1707 = vmatpush1.msra.mxu0 0.0
  %1708 = vmatprep.subr.mxu0 0.0
  %1709 = vmatpush1.msra.mxu0 0.0
  %1710 = vmatprep.subr.mxu0 0.0
  %1711 = vmatpush1.msra.mxu0 0.0
  %1712 = vmatprep.subr.mxu0 0.0
  %1713 = vmatpush1.msra.mxu0 0.0
  %1714 = vmatprep.subr.mxu0 0.0
  %1715 = vmatpush1.msra.mxu0 0.0
  %1716 = vmatprep.subr.mxu0 0.0
  %1717 = vmatpush1.msra.mxu0 0.0
  %1718 = vmatprep.subr.mxu0 0.0
  %1719 = vmatpush1.msra.mxu0 0.0
  %1720 = vmatprep.subr.mxu0 0.0
  %1721 = vmatpush1.msra.mxu0 0.0
  %1722 = vmatprep.subr.mxu0 0.0
  %1723 = vmatpush1.msra.mxu0 0.0
  %1724 = vmatprep.subr.mxu0 0.0
  %1725 = vmatpush1.msra.mxu0 0.0
  %1726 = vmatprep.subr.mxu0 0.0
  %1727 = vmatpush1.msra.mxu0 0.0
  %1728 = vmatprep.subr.mxu0 0.0
  %1729 = vmatpush1.msra.mxu0 0.0
  %1730 = vmatprep.subr.mxu0 0.0
  %1731 = vmatpush1.msra.mxu0 0.0
  %1732 = vmatprep.subr.mxu0 0.0
  %1733 = vmatpush1.msra.mxu0 0.0
  %1734 = vmatprep.subr.mxu0 0.0
  %1735 = vmatpush1.msra.mxu0 0.0
  %1736 = vmatprep.subr.mxu0 0.0
  %1737 = vmatpush1.msra.mxu0 0.0
  %1738 = vmatprep.subr.mxu0 0.0
  %1739 = vmatpush1.msra.mxu0 0.0
  %1740 = vmatprep.mubr.f32.mxu0 0.0
  %v1741 = vand.u32 %v65, 4294901760
  %1742 = vmatmul.mubr.f32.gmra.mrb[0].mxu0 %v1741
  %v1743 = vpop.f32.mrb[0].mxu0
  %v1744 = vadd.f32 %v1643, %v1743
  %v1745 = vpop.f32.mrb[0].mxu0
  %1746 = vmatprep.mubr.f32.mxu0 0.0
  %v1747 = vand.u32 %v68, 4294901760
  %1748 = vmatmul.mubr.f32.gmra.mrb[0].mxu0 %v1747
  %v1749 = vpop.f32.mrb[0].mxu0
  %v1750 = vadd.f32 %v1651, %v1749
  %v1751 = vpop.f32.mrb[0].mxu0
  %1752 = vmatprep.mubr.f32.mxu0 0.0
  %v1753 = vand.u32 %v71, 4294901760
  %1754 = vmatmul.mubr.f32.gmra.mrb[0].mxu0 %v1753
  %v1755 = vpop.f32.mrb[0].mxu0
  %v1756 = vadd.f32 %v1659, %v1755
  %v1757 = vpop.f32.mrb[0].mxu0
  %1758 = vmatprep.mubr.f32.mxu0 0.0
  %v1759 = vand.u32 %v74, 4294901760
  %1760 = vmatmul.mubr.f32.gmra.mrb[0].mxu0 %v1759
  %v1761 = vpop.f32.mrb[0].mxu0
  %v1762 = vadd.f32 %v1667, %v1761
  %v1763 = vpop.f32.mrb[0].mxu0
  %1764 = vdwg.mxu0
  %1765 = vmatprep.subr.mxu0 0.0
  %v1766 = vand.u32 %v1263, 4294901760
  %1767 = vmatpush1.msra.mxu0 %v1766
  %1768 = vmatprep.subr.mxu0 0.0
  %v1769 = vand.u32 %v1266, 4294901760
  %1770 = vmatpush1.msra.mxu0 %v1769
  %1771 = vmatprep.subr.mxu0 0.0
  %1772 = vmatpush1.msra.mxu0 0.0
  %1773 = vmatprep.subr.mxu0 0.0
  %1774 = vmatpush1.msra.mxu0 0.0
  %1775 = vmatprep.subr.mxu0 0.0
  %1776 = vmatpush1.msra.mxu0 0.0
  %1777 = vmatprep.subr.mxu0 0.0
  %1778 = vmatpush1.msra.mxu0 0.0
  %1779 = vmatprep.subr.mxu0 0.0
  %1780 = vmatpush1.msra.mxu0 0.0
  %1781 = vmatprep.subr.mxu0 0.0
  %1782 = vmatpush1.msra.mxu0 0.0
  %1783 = vmatprep.subr.mxu0 0.0
  %1784 = vmatpush1.msra.mxu0 0.0
  %1785 = vmatprep.subr.mxu0 0.0
  %1786 = vmatpush1.msra.mxu0 0.0
  %1787 = vmatprep.subr.mxu0 0.0
  %1788 = vmatpush1.msra.mxu0 0.0
  %1789 = vmatprep.subr.mxu0 0.0
  %1790 = vmatpush1.msra.mxu0 0.0
  %1791 = vmatprep.subr.mxu0 0.0
  %1792 = vmatpush1.msra.mxu0 0.0
  %1793 = vmatprep.subr.mxu0 0.0
  %1794 = vmatpush1.msra.mxu0 0.0
  %1795 = vmatprep.subr.mxu0 0.0
  %1796 = vmatpush1.msra.mxu0 0.0
  %1797 = vmatprep.subr.mxu0 0.0
  %1798 = vmatpush1.msra.mxu0 0.0
  %1799 = vmatprep.subr.mxu0 0.0
  %1800 = vmatpush1.msra.mxu0 0.0
  %1801 = vmatprep.subr.mxu0 0.0
  %1802 = vmatpush1.msra.mxu0 0.0
  %1803 = vmatprep.subr.mxu0 0.0
  %1804 = vmatpush1.msra.mxu0 0.0
  %1805 = vmatprep.subr.mxu0 0.0
  %1806 = vmatpush1.msra.mxu0 0.0
  %1807 = vmatprep.subr.mxu0 0.0
  %1808 = vmatpush1.msra.mxu0 0.0
  %1809 = vmatprep.subr.mxu0 0.0
  %1810 = vmatpush1.msra.mxu0 0.0
  %1811 = vmatprep.subr.mxu0 0.0
  %1812 = vmatpush1.msra.mxu0 0.0
  %1813 = vmatprep.subr.mxu0 0.0
  %1814 = vmatpush1.msra.mxu0 0.0
  %1815 = vmatprep.subr.mxu0 0.0
  %1816 = vmatpush1.msra.mxu0 0.0
  %1817 = vmatprep.subr.mxu0 0.0
  %1818 = vmatpush1.msra.mxu0 0.0
  %1819 = vmatprep.subr.mxu0 0.0
  %1820 = vmatpush1.msra.mxu0 0.0
  %1821 = vmatprep.subr.mxu0 0.0
  %1822 = vmatpush1.msra.mxu0 0.0
  %1823 = vmatprep.subr.mxu0 0.0
  %1824 = vmatpush1.msra.mxu0 0.0
  %1825 = vmatprep.subr.mxu0 0.0
  %1826 = vmatpush1.msra.mxu0 0.0
  %1827 = vmatprep.subr.mxu0 0.0
  %1828 = vmatpush1.msra.mxu0 0.0
  %1829 = vmatprep.subr.mxu0 0.0
  %1830 = vmatpush1.msra.mxu0 0.0
  %1831 = vmatprep.mubr.f32.mxu0 0.0
  %v1832 = vand.u32 %v65, 4294901760
  %1833 = vmatmul.mubr.f32.gmra.mrb[0].mxu0 %v1832
  %v1834 = vpop.f32.mrb[0].mxu0
  %v1835 = vadd.f32 %v1744, %v1834
  %v1836 = vpop.f32.mrb[0].mxu0
  %1837 = vmatprep.mubr.f32.mxu0 0.0
  %v1838 = vand.u32 %v68, 4294901760
  %1839 = vmatmul.mubr.f32.gmra.mrb[0].mxu0 %v1838
  %v1840 = vpop.f32.mrb[0].mxu0
  %v1841 = vadd.f32 %v1750, %v1840
  %v1842 = vpop.f32.mrb[0].mxu0
  %1843 = vmatprep.mubr.f32.mxu0 0.0
  %v1844 = vand.u32 %v71, 4294901760
  %1845 = vmatmul.mubr.f32.gmra.mrb[0].mxu0 %v1844
  %v1846 = vpop.f32.mrb[0].mxu0
  %v1847 = vadd.f32 %v1756, %v1846
  %v1848 = vpop.f32.mrb[0].mxu0
  %1849 = vmatprep.mubr.f32.mxu0 0.0
  %v1850 = vand.u32 %v74, 4294901760
  %1851 = vmatmul.mubr.f32.gmra.mrb[0].mxu0 %v1850
  %v1852 = vpop.f32.mrb[0].mxu0
  %v1853 = vadd.f32 %v1762, %v1852
  %v1854 = vpop.f32.mrb[0].mxu0
  %1855 = vdwg.mxu0
  %v1856 = vld [vmem:[%s3] sm:$0xff]
  %v1857 = vld [vmem:[%s3 + $0x8] sm:$0xff]
  %v1858 = vld [vmem:[%s3 + $0x10] sm:$0xff]
  %v1859 = vld [vmem:[%s3 + $0x18] sm:$0xff]
  %v1860 = vld [vmem:[%s4] sm:$0xff]
  %v1861 = vld [vmem:[%s4 + $0x8] sm:$0xff]
  %v1862 = vld [vmem:[%s4 + $0x10] sm:$0xff]
  %v1863 = vld [vmem:[%s4 + $0x18] sm:$0xff]
  %v1864 = vld [vmem:[%s5] sm:$0x1]
  %v1865 = vld [vmem:[%s2] sm:$0xff]
  %vm1866 = vcmask 261120
  %v1868 = vsel %vm1866, %v1865, 0
  %1870 = vmatprep.subr.mxu0 0.0
  %v1871 = vand.u32 %v1856, 4294901760
  %1872 = vmatpush1.msra.mxu0 %v1871
  %1873 = vmatprep.subr.mxu0 0.0
  %v1874 = vand.u32 %v1857, 4294901760
  %1875 = vmatpush1.msra.mxu0 %v1874
  %1876 = vmatprep.subr.mxu0 0.0
  %v1877 = vand.u32 %v1858, 4294901760
  %1878 = vmatpush1.msra.mxu0 %v1877
  %1879 = vmatprep.subr.mxu0 0.0
  %v1880 = vand.u32 %v1859, 4294901760
  %1881 = vmatpush1.msra.mxu0 %v1880
  %1882 = vmatprep.subr.mxu0 0.0
  %1883 = vmatpush1.msra.mxu0 0.0
  %1884 = vmatprep.subr.mxu0 0.0
  %1885 = vmatpush1.msra.mxu0 0.0
  %1886 = vmatprep.subr.mxu0 0.0
  %1887 = vmatpush1.msra.mxu0 0.0
  %1888 = vmatprep.subr.mxu0 0.0
  %1889 = vmatpush1.msra.mxu0 0.0
  %1890 = vmatprep.subr.mxu0 0.0
  %1891 = vmatpush1.msra.mxu0 0.0
  %1892 = vmatprep.subr.mxu0 0.0
  %1893 = vmatpush1.msra.mxu0 0.0
  %1894 = vmatprep.subr.mxu0 0.0
  %1895 = vmatpush1.msra.mxu0 0.0
  %1896 = vmatprep.subr.mxu0 0.0
  %1897 = vmatpush1.msra.mxu0 0.0
  %1898 = vmatprep.subr.mxu0 0.0
  %1899 = vmatpush1.msra.mxu0 0.0
  %1900 = vmatprep.subr.mxu0 0.0
  %1901 = vmatpush1.msra.mxu0 0.0
  %1902 = vmatprep.subr.mxu0 0.0
  %1903 = vmatpush1.msra.mxu0 0.0
  %1904 = vmatprep.subr.mxu0 0.0
  %1905 = vmatpush1.msra.mxu0 0.0
  %1906 = vmatprep.subr.mxu0 0.0
  %1907 = vmatpush1.msra.mxu0 0.0
  %1908 = vmatprep.subr.mxu0 0.0
  %1909 = vmatpush1.msra.mxu0 0.0
  %1910 = vmatprep.subr.mxu0 0.0
  %1911 = vmatpush1.msra.mxu0 0.0
  %1912 = vmatprep.subr.mxu0 0.0
  %1913 = vmatpush1.msra.mxu0 0.0
  %1914 = vmatprep.subr.mxu0 0.0
  %1915 = vmatpush1.msra.mxu0 0.0
  %1916 = vmatprep.subr.mxu0 0.0
  %1917 = vmatpush1.msra.mxu0 0.0
  %1918 = vmatprep.subr.mxu0 0.0
  %1919 = vmatpush1.msra.mxu0 0.0
  %1920 = vmatprep.subr.mxu0 0.0
  %1921 = vmatpush1.msra.mxu0 0.0
  %1922 = vmatprep.subr.mxu0 0.0
  %1923 = vmatpush1.msra.mxu0 0.0
  %1924 = vmatprep.subr.mxu0 0.0
  %1925 = vmatpush1.msra.mxu0 0.0
  %1926 = vmatprep.subr.mxu0 0.0
  %1927 = vmatpush1.msra.mxu0 0.0
  %1928 = vmatprep.subr.mxu0 0.0
  %1929 = vmatpush1.msra.mxu0 0.0
  %1930 = vmatprep.subr.mxu0 0.0
  %1931 = vmatpush1.msra.mxu0 0.0
  %1932 = vmatprep.subr.mxu0 0.0
  %1933 = vmatpush1.msra.mxu0 0.0
  %1934 = vmatprep.subr.mxu0 0.0
  %1935 = vmatpush1.msra.mxu0 0.0
  %1936 = vmatprep.subr.mxu0 0.0
  %1937 = vmatpush1.msra.mxu0 0.0
  %1938 = vmatprep.mubr.f32.mxu0 0.0
  %v1939 = vand.u32 %v1868, 4294901760
  %v1940 = vsub.f32 %v1868, %v1939
  %v1941 = vand.u32 %v1940, 4294901760
  %v1942 = vsub.f32 %v1940, %v1941
  %v1943 = vand.u32 %v1942, 4294901760
  %1944 = vmatmul.mubr.f32.gmra.mrb[0].mxu0 %v1943
  %v1945 = vpop.f32.mrb[0].mxu0
  %v1946 = vadd.f32 0.0, %v1945
  %v1947 = vpop.f32.mrb[0].mxu0
  %1948 = vdwg.mxu0
  %1949 = vmatprep.subr.mxu0 0.0
  %v1950 = vand.u32 %v1856, 4294901760
  %v1951 = vsub.f32 %v1856, %v1950
  %v1952 = vand.u32 %v1951, 4294901760
  %v1953 = vsub.f32 %v1951, %v1952
  %v1954 = vand.u32 %v1953, 4294901760
  %1955 = vmatpush1.msra.mxu0 %v1954
  %1956 = vmatprep.subr.mxu0 0.0
  %v1957 = vand.u32 %v1857, 4294901760
  %v1958 = vsub.f32 %v1857, %v1957
  %v1959 = vand.u32 %v1958, 4294901760
  %v1960 = vsub.f32 %v1958, %v1959
  %v1961 = vand.u32 %v1960, 4294901760
  %1962 = vmatpush1.msra.mxu0 %v1961
  %1963 = vmatprep.subr.mxu0 0.0
  %v1964 = vand.u32 %v1858, 4294901760
  %v1965 = vsub.f32 %v1858, %v1964
  %v1966 = vand.u32 %v1965, 4294901760
  %v1967 = vsub.f32 %v1965, %v1966
  %v1968 = vand.u32 %v1967, 4294901760
  %1969 = vmatpush1.msra.mxu0 %v1968
  %1970 = vmatprep.subr.mxu0 0.0
  %v1971 = vand.u32 %v1859, 4294901760
  %v1972 = vsub.f32 %v1859, %v1971
  %v1973 = vand.u32 %v1972, 4294901760
  %v1974 = vsub.f32 %v1972, %v1973
  %v1975 = vand.u32 %v1974, 4294901760
  %1976 = vmatpush1.msra.mxu0 %v1975
  %1977 = vmatprep.subr.mxu0 0.0
  %1978 = vmatpush1.msra.mxu0 0.0
  %1979 = vmatprep.subr.mxu0 0.0
  %1980 = vmatpush1.msra.mxu0 0.0
  %1981 = vmatprep.subr.mxu0 0.0
  %1982 = vmatpush1.msra.mxu0 0.0
  %1983 = vmatprep.subr.mxu0 0.0
  %1984 = vmatpush1.msra.mxu0 0.0
  %1985 = vmatprep.subr.mxu0 0.0
  %1986 = vmatpush1.msra.mxu0 0.0
  %1987 = vmatprep.subr.mxu0 0.0
  %1988 = vmatpush1.msra.mxu0 0.0
  %1989 = vmatprep.subr.mxu0 0.0
  %1990 = vmatpush1.msra.mxu0 0.0
  %1991 = vmatprep.subr.mxu0 0.0
  %1992 = vmatpush1.msra.mxu0 0.0
  %1993 = vmatprep.subr.mxu0 0.0
  %1994 = vmatpush1.msra.mxu0 0.0
  %1995 = vmatprep.subr.mxu0 0.0
  %1996 = vmatpush1.msra.mxu0 0.0
  %1997 = vmatprep.subr.mxu0 0.0
  %1998 = vmatpush1.msra.mxu0 0.0
  %1999 = vmatprep.subr.mxu0 0.0
  %2000 = vmatpush1.msra.mxu0 0.0
  %2001 = vmatprep.subr.mxu0 0.0
  %2002 = vmatpush1.msra.mxu0 0.0
  %2003 = vmatprep.subr.mxu0 0.0
  %2004 = vmatpush1.msra.mxu0 0.0
  %2005 = vmatprep.subr.mxu0 0.0
  %2006 = vmatpush1.msra.mxu0 0.0
  %2007 = vmatprep.subr.mxu0 0.0
  %2008 = vmatpush1.msra.mxu0 0.0
  %2009 = vmatprep.subr.mxu0 0.0
  %2010 = vmatpush1.msra.mxu0 0.0
  %2011 = vmatprep.subr.mxu0 0.0
  %2012 = vmatpush1.msra.mxu0 0.0
  %2013 = vmatprep.subr.mxu0 0.0
  %2014 = vmatpush1.msra.mxu0 0.0
  %2015 = vmatprep.subr.mxu0 0.0
  %2016 = vmatpush1.msra.mxu0 0.0
  %2017 = vmatprep.subr.mxu0 0.0
  %2018 = vmatpush1.msra.mxu0 0.0
  %2019 = vmatprep.subr.mxu0 0.0
  %2020 = vmatpush1.msra.mxu0 0.0
  %2021 = vmatprep.subr.mxu0 0.0
  %2022 = vmatpush1.msra.mxu0 0.0
  %2023 = vmatprep.subr.mxu0 0.0
  %2024 = vmatpush1.msra.mxu0 0.0
  %2025 = vmatprep.subr.mxu0 0.0
  %2026 = vmatpush1.msra.mxu0 0.0
  %2027 = vmatprep.subr.mxu0 0.0
  %2028 = vmatpush1.msra.mxu0 0.0
  %2029 = vmatprep.subr.mxu0 0.0
  %2030 = vmatpush1.msra.mxu0 0.0
  %2031 = vmatprep.subr.mxu0 0.0
  %2032 = vmatpush1.msra.mxu0 0.0
  %2033 = vmatprep.mubr.f32.mxu0 0.0
  %v2034 = vand.u32 %v1868, 4294901760
  %2035 = vmatmul.mubr.f32.gmra.mrb[0].mxu0 %v2034
  %v2036 = vpop.f32.mrb[0].mxu0
  %v2037 = vadd.f32 %v1946, %v2036
  %v2038 = vpop.f32.mrb[0].mxu0
  %2039 = vdwg.mxu0
  %2040 = vmatprep.subr.mxu0 0.0
  %v2041 = vand.u32 %v1856, 4294901760
  %v2042 = vsub.f32 %v1856, %v2041
  %2043 = vmatpush1.msra.mxu0 %v2042
  %2044 = vmatprep.subr.mxu0 0.0
  %v2045 = vand.u32 %v1857, 4294901760
  %v2046 = vsub.f32 %v1857, %v2045
  %2047 = vmatpush1.msra.mxu0 %v2046
  %2048 = vmatprep.subr.mxu0 0.0
  %v2049 = vand.u32 %v1858, 4294901760
  %v2050 = vsub.f32 %v1858, %v2049
  %2051 = vmatpush1.msra.mxu0 %v2050
  %2052 = vmatprep.subr.mxu0 0.0
  %v2053 = vand.u32 %v1859, 4294901760
  %v2054 = vsub.f32 %v1859, %v2053
  %2055 = vmatpush1.msra.mxu0 %v2054
  %2056 = vmatprep.subr.mxu0 0.0
  %2057 = vmatpush1.msra.mxu0 0.0
  %2058 = vmatprep.subr.mxu0 0.0
  %2059 = vmatpush1.msra.mxu0 0.0
  %2060 = vmatprep.subr.mxu0 0.0
  %2061 = vmatpush1.msra.mxu0 0.0
  %2062 = vmatprep.subr.mxu0 0.0
  %2063 = vmatpush1.msra.mxu0 0.0
  %2064 = vmatprep.subr.mxu0 0.0
  %2065 = vmatpush1.msra.mxu0 0.0
  %2066 = vmatprep.subr.mxu0 0.0
  %2067 = vmatpush1.msra.mxu0 0.0
  %2068 = vmatprep.subr.mxu0 0.0
  %2069 = vmatpush1.msra.mxu0 0.0
  %2070 = vmatprep.subr.mxu0 0.0
  %2071 = vmatpush1.msra.mxu0 0.0
  %2072 = vmatprep.subr.mxu0 0.0
  %2073 = vmatpush1.msra.mxu0 0.0
  %2074 = vmatprep.subr.mxu0 0.0
  %2075 = vmatpush1.msra.mxu0 0.0
  %2076 = vmatprep.subr.mxu0 0.0
  %2077 = vmatpush1.msra.mxu0 0.0
  %2078 = vmatprep.subr.mxu0 0.0
  %2079 = vmatpush1.msra.mxu0 0.0
  %2080 = vmatprep.subr.mxu0 0.0
  %2081 = vmatpush1.msra.mxu0 0.0
  %2082 = vmatprep.subr.mxu0 0.0
  %2083 = vmatpush1.msra.mxu0 0.0
  %2084 = vmatprep.subr.mxu0 0.0
  %2085 = vmatpush1.msra.mxu0 0.0
  %2086 = vmatprep.subr.mxu0 0.0
  %2087 = vmatpush1.msra.mxu0 0.0
  %2088 = vmatprep.subr.mxu0 0.0
  %2089 = vmatpush1.msra.mxu0 0.0
  %2090 = vmatprep.subr.mxu0 0.0
  %2091 = vmatpush1.msra.mxu0 0.0
  %2092 = vmatprep.subr.mxu0 0.0
  %2093 = vmatpush1.msra.mxu0 0.0
  %2094 = vmatprep.subr.mxu0 0.0
  %2095 = vmatpush1.msra.mxu0 0.0
  %2096 = vmatprep.subr.mxu0 0.0
  %2097 = vmatpush1.msra.mxu0 0.0
  %2098 = vmatprep.subr.mxu0 0.0
  %2099 = vmatpush1.msra.mxu0 0.0
  %2100 = vmatprep.subr.mxu0 0.0
  %2101 = vmatpush1.msra.mxu0 0.0
  %2102 = vmatprep.subr.mxu0 0.0
  %2103 = vmatpush1.msra.mxu0 0.0
  %2104 = vmatprep.subr.mxu0 0.0
  %2105 = vmatpush1.msra.mxu0 0.0
  %2106 = vmatprep.subr.mxu0 0.0
  %2107 = vmatpush1.msra.mxu0 0.0
  %2108 = vmatprep.subr.mxu0 0.0
  %2109 = vmatpush1.msra.mxu0 0.0
  %2110 = vmatprep.subr.mxu0 0.0
  %2111 = vmatpush1.msra.mxu0 0.0
  %2112 = vmatprep.mubr.f32.mxu0 0.0
  %v2113 = vand.u32 %v1868, 4294901760
  %v2114 = vsub.f32 %v1868, %v2113
  %2115 = vmatmul.mubr.f32.gmra.mrb[0].mxu0 %v2114
  %v2116 = vpop.f32.mrb[0].mxu0
  %v2117 = vadd.f32 %v2037, %v2116
  %v2118 = vpop.f32.mrb[0].mxu0
  %2119 = vdwg.mxu0
  %2120 = vmatprep.subr.mxu0 0.0
  %v2121 = vand.u32 %v1856, 4294901760
  %2122 = vmatpush1.msra.mxu0 %v2121
  %2123 = vmatprep.subr.mxu0 0.0
  %v2124 = vand.u32 %v1857, 4294901760
  %2125 = vmatpush1.msra.mxu0 %v2124
  %2126 = vmatprep.subr.mxu0 0.0
  %v2127 = vand.u32 %v1858, 4294901760
  %2128 = vmatpush1.msra.mxu0 %v2127
  %2129 = vmatprep.subr.mxu0 0.0
  %v2130 = vand.u32 %v1859, 4294901760
  %2131 = vmatpush1.msra.mxu0 %v2130
  %2132 = vmatprep.subr.mxu0 0.0
  %2133 = vmatpush1.msra.mxu0 0.0
  %2134 = vmatprep.subr.mxu0 0.0
  %2135 = vmatpush1.msra.mxu0 0.0
  %2136 = vmatprep.subr.mxu0 0.0
  %2137 = vmatpush1.msra.mxu0 0.0
  %2138 = vmatprep.subr.mxu0 0.0
  %2139 = vmatpush1.msra.mxu0 0.0
  %2140 = vmatprep.subr.mxu0 0.0
  %2141 = vmatpush1.msra.mxu0 0.0
  %2142 = vmatprep.subr.mxu0 0.0
  %2143 = vmatpush1.msra.mxu0 0.0
  %2144 = vmatprep.subr.mxu0 0.0
  %2145 = vmatpush1.msra.mxu0 0.0
  %2146 = vmatprep.subr.mxu0 0.0
  %2147 = vmatpush1.msra.mxu0 0.0
  %2148 = vmatprep.subr.mxu0 0.0
  %2149 = vmatpush1.msra.mxu0 0.0
  %2150 = vmatprep.subr.mxu0 0.0
  %2151 = vmatpush1.msra.mxu0 0.0
  %2152 = vmatprep.subr.mxu0 0.0
  %2153 = vmatpush1.msra.mxu0 0.0
  %2154 = vmatprep.subr.mxu0 0.0
  %2155 = vmatpush1.msra.mxu0 0.0
  %2156 = vmatprep.subr.mxu0 0.0
  %2157 = vmatpush1.msra.mxu0 0.0
  %2158 = vmatprep.subr.mxu0 0.0
  %2159 = vmatpush1.msra.mxu0 0.0
  %2160 = vmatprep.subr.mxu0 0.0
  %2161 = vmatpush1.msra.mxu0 0.0
  %2162 = vmatprep.subr.mxu0 0.0
  %2163 = vmatpush1.msra.mxu0 0.0
  %2164 = vmatprep.subr.mxu0 0.0
  %2165 = vmatpush1.msra.mxu0 0.0
  %2166 = vmatprep.subr.mxu0 0.0
  %2167 = vmatpush1.msra.mxu0 0.0
  %2168 = vmatprep.subr.mxu0 0.0
  %2169 = vmatpush1.msra.mxu0 0.0
  %2170 = vmatprep.subr.mxu0 0.0
  %2171 = vmatpush1.msra.mxu0 0.0
  %2172 = vmatprep.subr.mxu0 0.0
  %2173 = vmatpush1.msra.mxu0 0.0
  %2174 = vmatprep.subr.mxu0 0.0
  %2175 = vmatpush1.msra.mxu0 0.0
  %2176 = vmatprep.subr.mxu0 0.0
  %2177 = vmatpush1.msra.mxu0 0.0
  %2178 = vmatprep.subr.mxu0 0.0
  %2179 = vmatpush1.msra.mxu0 0.0
  %2180 = vmatprep.subr.mxu0 0.0
  %2181 = vmatpush1.msra.mxu0 0.0
  %2182 = vmatprep.subr.mxu0 0.0
  %2183 = vmatpush1.msra.mxu0 0.0
  %2184 = vmatprep.subr.mxu0 0.0
  %2185 = vmatpush1.msra.mxu0 0.0
  %2186 = vmatprep.subr.mxu0 0.0
  %2187 = vmatpush1.msra.mxu0 0.0
  %2188 = vmatprep.mubr.f32.mxu0 0.0
  %v2189 = vand.u32 %v1868, 4294901760
  %v2190 = vsub.f32 %v1868, %v2189
  %v2191 = vand.u32 %v2190, 4294901760
  %2192 = vmatmul.mubr.f32.gmra.mrb[0].mxu0 %v2191
  %v2193 = vpop.f32.mrb[0].mxu0
  %v2194 = vadd.f32 %v2117, %v2193
  %v2195 = vpop.f32.mrb[0].mxu0
  %2196 = vdwg.mxu0
  %2197 = vmatprep.subr.mxu0 0.0
  %v2198 = vand.u32 %v1856, 4294901760
  %v2199 = vsub.f32 %v1856, %v2198
  %v2200 = vand.u32 %v2199, 4294901760
  %2201 = vmatpush1.msra.mxu0 %v2200
  %2202 = vmatprep.subr.mxu0 0.0
  %v2203 = vand.u32 %v1857, 4294901760
  %v2204 = vsub.f32 %v1857, %v2203
  %v2205 = vand.u32 %v2204, 4294901760
  %2206 = vmatpush1.msra.mxu0 %v2205
  %2207 = vmatprep.subr.mxu0 0.0
  %v2208 = vand.u32 %v1858, 4294901760
  %v2209 = vsub.f32 %v1858, %v2208
  %v2210 = vand.u32 %v2209, 4294901760
  %2211 = vmatpush1.msra.mxu0 %v2210
  %2212 = vmatprep.subr.mxu0 0.0
  %v2213 = vand.u32 %v1859, 4294901760
  %v2214 = vsub.f32 %v1859, %v2213
  %v2215 = vand.u32 %v2214, 4294901760
  %2216 = vmatpush1.msra.mxu0 %v2215
  %2217 = vmatprep.subr.mxu0 0.0
  %2218 = vmatpush1.msra.mxu0 0.0
  %2219 = vmatprep.subr.mxu0 0.0
  %2220 = vmatpush1.msra.mxu0 0.0
  %2221 = vmatprep.subr.mxu0 0.0
  %2222 = vmatpush1.msra.mxu0 0.0
  %2223 = vmatprep.subr.mxu0 0.0
  %2224 = vmatpush1.msra.mxu0 0.0
  %2225 = vmatprep.subr.mxu0 0.0
  %2226 = vmatpush1.msra.mxu0 0.0
  %2227 = vmatprep.subr.mxu0 0.0
  %2228 = vmatpush1.msra.mxu0 0.0
  %2229 = vmatprep.subr.mxu0 0.0
  %2230 = vmatpush1.msra.mxu0 0.0
  %2231 = vmatprep.subr.mxu0 0.0
  %2232 = vmatpush1.msra.mxu0 0.0
  %2233 = vmatprep.subr.mxu0 0.0
  %2234 = vmatpush1.msra.mxu0 0.0
  %2235 = vmatprep.subr.mxu0 0.0
  %2236 = vmatpush1.msra.mxu0 0.0
  %2237 = vmatprep.subr.mxu0 0.0
  %2238 = vmatpush1.msra.mxu0 0.0
  %2239 = vmatprep.subr.mxu0 0.0
  %2240 = vmatpush1.msra.mxu0 0.0
  %2241 = vmatprep.subr.mxu0 0.0
  %2242 = vmatpush1.msra.mxu0 0.0
  %2243 = vmatprep.subr.mxu0 0.0
  %2244 = vmatpush1.msra.mxu0 0.0
  %2245 = vmatprep.subr.mxu0 0.0
  %2246 = vmatpush1.msra.mxu0 0.0
  %2247 = vmatprep.subr.mxu0 0.0
  %2248 = vmatpush1.msra.mxu0 0.0
  %2249 = vmatprep.subr.mxu0 0.0
  %2250 = vmatpush1.msra.mxu0 0.0
  %2251 = vmatprep.subr.mxu0 0.0
  %2252 = vmatpush1.msra.mxu0 0.0
  %2253 = vmatprep.subr.mxu0 0.0
  %2254 = vmatpush1.msra.mxu0 0.0
  %2255 = vmatprep.subr.mxu0 0.0
  %2256 = vmatpush1.msra.mxu0 0.0
  %2257 = vmatprep.subr.mxu0 0.0
  %2258 = vmatpush1.msra.mxu0 0.0
  %2259 = vmatprep.subr.mxu0 0.0
  %2260 = vmatpush1.msra.mxu0 0.0
  %2261 = vmatprep.subr.mxu0 0.0
  %2262 = vmatpush1.msra.mxu0 0.0
  %2263 = vmatprep.subr.mxu0 0.0
  %2264 = vmatpush1.msra.mxu0 0.0
  %2265 = vmatprep.subr.mxu0 0.0
  %2266 = vmatpush1.msra.mxu0 0.0
  %2267 = vmatprep.subr.mxu0 0.0
  %2268 = vmatpush1.msra.mxu0 0.0
  %2269 = vmatprep.subr.mxu0 0.0
  %2270 = vmatpush1.msra.mxu0 0.0
  %2271 = vmatprep.subr.mxu0 0.0
  %2272 = vmatpush1.msra.mxu0 0.0
  %2273 = vmatprep.mubr.f32.mxu0 0.0
  %v2274 = vand.u32 %v1868, 4294901760
  %2275 = vmatmul.mubr.f32.gmra.mrb[0].mxu0 %v2274
  %v2276 = vpop.f32.mrb[0].mxu0
  %v2277 = vadd.f32 %v2194, %v2276
  %v2278 = vpop.f32.mrb[0].mxu0
  %2279 = vdwg.mxu0
  %2280 = vmatprep.subr.mxu0 0.0
  %v2281 = vand.u32 %v1856, 4294901760
  %2282 = vmatpush1.msra.mxu0 %v2281
  %2283 = vmatprep.subr.mxu0 0.0
  %v2284 = vand.u32 %v1857, 4294901760
  %2285 = vmatpush1.msra.mxu0 %v2284
  %2286 = vmatprep.subr.mxu0 0.0
  %v2287 = vand.u32 %v1858, 4294901760
  %2288 = vmatpush1.msra.mxu0 %v2287
  %2289 = vmatprep.subr.mxu0 0.0
  %v2290 = vand.u32 %v1859, 4294901760
  %2291 = vmatpush1.msra.mxu0 %v2290
  %2292 = vmatprep.subr.mxu0 0.0
  %2293 = vmatpush1.msra.mxu0 0.0
  %2294 = vmatprep.subr.mxu0 0.0
  %2295 = vmatpush1.msra.mxu0 0.0
  %2296 = vmatprep.subr.mxu0 0.0
  %2297 = vmatpush1.msra.mxu0 0.0
  %2298 = vmatprep.subr.mxu0 0.0
  %2299 = vmatpush1.msra.mxu0 0.0
  %2300 = vmatprep.subr.mxu0 0.0
  %2301 = vmatpush1.msra.mxu0 0.0
  %2302 = vmatprep.subr.mxu0 0.0
  %2303 = vmatpush1.msra.mxu0 0.0
  %2304 = vmatprep.subr.mxu0 0.0
  %2305 = vmatpush1.msra.mxu0 0.0
  %2306 = vmatprep.subr.mxu0 0.0
  %2307 = vmatpush1.msra.mxu0 0.0
  %2308 = vmatprep.subr.mxu0 0.0
  %2309 = vmatpush1.msra.mxu0 0.0
  %2310 = vmatprep.subr.mxu0 0.0
  %2311 = vmatpush1.msra.mxu0 0.0
  %2312 = vmatprep.subr.mxu0 0.0
  %2313 = vmatpush1.msra.mxu0 0.0
  %2314 = vmatprep.subr.mxu0 0.0
  %2315 = vmatpush1.msra.mxu0 0.0
  %2316 = vmatprep.subr.mxu0 0.0
  %2317 = vmatpush1.msra.mxu0 0.0
  %2318 = vmatprep.subr.mxu0 0.0
  %2319 = vmatpush1.msra.mxu0 0.0
  %2320 = vmatprep.subr.mxu0 0.0
  %2321 = vmatpush1.msra.mxu0 0.0
  %2322 = vmatprep.subr.mxu0 0.0
  %2323 = vmatpush1.msra.mxu0 0.0
  %2324 = vmatprep.subr.mxu0 0.0
  %2325 = vmatpush1.msra.mxu0 0.0
  %2326 = vmatprep.subr.mxu0 0.0
  %2327 = vmatpush1.msra.mxu0 0.0
  %2328 = vmatprep.subr.mxu0 0.0
  %2329 = vmatpush1.msra.mxu0 0.0
  %2330 = vmatprep.subr.mxu0 0.0
  %2331 = vmatpush1.msra.mxu0 0.0
  %2332 = vmatprep.subr.mxu0 0.0
  %2333 = vmatpush1.msra.mxu0 0.0
  %2334 = vmatprep.subr.mxu0 0.0
  %2335 = vmatpush1.msra.mxu0 0.0
  %2336 = vmatprep.subr.mxu0 0.0
  %2337 = vmatpush1.msra.mxu0 0.0
  %2338 = vmatprep.subr.mxu0 0.0
  %2339 = vmatpush1.msra.mxu0 0.0
  %2340 = vmatprep.subr.mxu0 0.0
  %2341 = vmatpush1.msra.mxu0 0.0
  %2342 = vmatprep.subr.mxu0 0.0
  %2343 = vmatpush1.msra.mxu0 0.0
  %2344 = vmatprep.subr.mxu0 0.0
  %2345 = vmatpush1.msra.mxu0 0.0
  %2346 = vmatprep.subr.mxu0 0.0
  %2347 = vmatpush1.msra.mxu0 0.0
  %2348 = vmatprep.mubr.f32.mxu0 0.0
  %v2349 = vand.u32 %v1868, 4294901760
  %2350 = vmatmul.mubr.f32.gmra.mrb[0].mxu0 %v2349
  %v2351 = vpop.f32.mrb[0].mxu0
  %v2352 = vadd.f32 %v2277, %v2351
  %v2353 = vpop.f32.mrb[0].mxu0
  %2354 = vdwg.mxu0
  %v2356 = vlaneseq
  %v2357 = vshrl.u32 %v2356, 7
  %v2358 = vsub.s32 0, %v2357
  %v2359 = vrot.slane %v1864, %v2358
  %2361 = vmatprep.subr.mxu0 0.0
  %v2362 = vand.u32 %v1860, 4294901760
  %2363 = vmatpush1.msra.mxu0 %v2362
  %2364 = vmatprep.subr.mxu0 0.0
  %v2365 = vand.u32 %v1861, 4294901760
  %2366 = vmatpush1.msra.mxu0 %v2365
  %2367 = vmatprep.subr.mxu0 0.0
  %v2368 = vand.u32 %v1862, 4294901760
  %2369 = vmatpush1.msra.mxu0 %v2368
  %2370 = vmatprep.subr.mxu0 0.0
  %v2371 = vand.u32 %v1863, 4294901760
  %2372 = vmatpush1.msra.mxu0 %v2371
  %2373 = vmatprep.subr.mxu0 0.0
  %2374 = vmatpush1.msra.mxu0 0.0
  %2375 = vmatprep.subr.mxu0 0.0
  %2376 = vmatpush1.msra.mxu0 0.0
  %2377 = vmatprep.subr.mxu0 0.0
  %2378 = vmatpush1.msra.mxu0 0.0
  %2379 = vmatprep.subr.mxu0 0.0
  %2380 = vmatpush1.msra.mxu0 0.0
  %2381 = vmatprep.subr.mxu0 0.0
  %2382 = vmatpush1.msra.mxu0 0.0
  %2383 = vmatprep.subr.mxu0 0.0
  %2384 = vmatpush1.msra.mxu0 0.0
  %2385 = vmatprep.subr.mxu0 0.0
  %2386 = vmatpush1.msra.mxu0 0.0
  %2387 = vmatprep.subr.mxu0 0.0
  %2388 = vmatpush1.msra.mxu0 0.0
  %2389 = vmatprep.subr.mxu0 0.0
  %2390 = vmatpush1.msra.mxu0 0.0
  %2391 = vmatprep.subr.mxu0 0.0
  %2392 = vmatpush1.msra.mxu0 0.0
  %2393 = vmatprep.subr.mxu0 0.0
  %2394 = vmatpush1.msra.mxu0 0.0
  %2395 = vmatprep.subr.mxu0 0.0
  %2396 = vmatpush1.msra.mxu0 0.0
  %2397 = vmatprep.subr.mxu0 0.0
  %2398 = vmatpush1.msra.mxu0 0.0
  %2399 = vmatprep.subr.mxu0 0.0
  %2400 = vmatpush1.msra.mxu0 0.0
  %2401 = vmatprep.subr.mxu0 0.0
  %2402 = vmatpush1.msra.mxu0 0.0
  %2403 = vmatprep.subr.mxu0 0.0
  %2404 = vmatpush1.msra.mxu0 0.0
  %2405 = vmatprep.subr.mxu0 0.0
  %2406 = vmatpush1.msra.mxu0 0.0
  %2407 = vmatprep.subr.mxu0 0.0
  %2408 = vmatpush1.msra.mxu0 0.0
  %2409 = vmatprep.subr.mxu0 0.0
  %2410 = vmatpush1.msra.mxu0 0.0
  %2411 = vmatprep.subr.mxu0 0.0
  %2412 = vmatpush1.msra.mxu0 0.0
  %2413 = vmatprep.subr.mxu0 0.0
  %2414 = vmatpush1.msra.mxu0 0.0
  %2415 = vmatprep.subr.mxu0 0.0
  %2416 = vmatpush1.msra.mxu0 0.0
  %2417 = vmatprep.subr.mxu0 0.0
  %2418 = vmatpush1.msra.mxu0 0.0
  %2419 = vmatprep.subr.mxu0 0.0
  %2420 = vmatpush1.msra.mxu0 0.0
  %2421 = vmatprep.subr.mxu0 0.0
  %2422 = vmatpush1.msra.mxu0 0.0
  %2423 = vmatprep.subr.mxu0 0.0
  %2424 = vmatpush1.msra.mxu0 0.0
  %2425 = vmatprep.subr.mxu0 0.0
  %2426 = vmatpush1.msra.mxu0 0.0
  %2427 = vmatprep.subr.mxu0 0.0
  %2428 = vmatpush1.msra.mxu0 0.0
  %2429 = vmatprep.mubr.f32.mxu0 0.0
  %v2430 = vand.u32 %v1868, 4294901760
  %v2431 = vsub.f32 %v1868, %v2430
  %v2432 = vand.u32 %v2431, 4294901760
  %v2433 = vsub.f32 %v2431, %v2432
  %v2434 = vand.u32 %v2433, 4294901760
  %2435 = vmatmul.mubr.f32.gmra.mrb[0].mxu0 %v2434
  %v2436 = vpop.f32.mrb[0].mxu0
  %v2437 = vadd.f32 %v2359, %v2436
  %v2438 = vpop.f32.mrb[0].mxu0
  %2439 = vdwg.mxu0
  %2440 = vmatprep.subr.mxu0 0.0
  %v2441 = vand.u32 %v1860, 4294901760
  %v2442 = vsub.f32 %v1860, %v2441
  %v2443 = vand.u32 %v2442, 4294901760
  %v2444 = vsub.f32 %v2442, %v2443
  %v2445 = vand.u32 %v2444, 4294901760
  %2446 = vmatpush1.msra.mxu0 %v2445
  %2447 = vmatprep.subr.mxu0 0.0
  %v2448 = vand.u32 %v1861, 4294901760
  %v2449 = vsub.f32 %v1861, %v2448
  %v2450 = vand.u32 %v2449, 4294901760
  %v2451 = vsub.f32 %v2449, %v2450
  %v2452 = vand.u32 %v2451, 4294901760
  %2453 = vmatpush1.msra.mxu0 %v2452
  %2454 = vmatprep.subr.mxu0 0.0
  %v2455 = vand.u32 %v1862, 4294901760
  %v2456 = vsub.f32 %v1862, %v2455
  %v2457 = vand.u32 %v2456, 4294901760
  %v2458 = vsub.f32 %v2456, %v2457
  %v2459 = vand.u32 %v2458, 4294901760
  %2460 = vmatpush1.msra.mxu0 %v2459
  %2461 = vmatprep.subr.mxu0 0.0
  %v2462 = vand.u32 %v1863, 4294901760
  %v2463 = vsub.f32 %v1863, %v2462
  %v2464 = vand.u32 %v2463, 4294901760
  %v2465 = vsub.f32 %v2463, %v2464
  %v2466 = vand.u32 %v2465, 4294901760
  %2467 = vmatpush1.msra.mxu0 %v2466
  %2468 = vmatprep.subr.mxu0 0.0
  %2469 = vmatpush1.msra.mxu0 0.0
  %2470 = vmatprep.subr.mxu0 0.0
  %2471 = vmatpush1.msra.mxu0 0.0
  %2472 = vmatprep.subr.mxu0 0.0
  %2473 = vmatpush1.msra.mxu0 0.0
  %2474 = vmatprep.subr.mxu0 0.0
  %2475 = vmatpush1.msra.mxu0 0.0
  %2476 = vmatprep.subr.mxu0 0.0
  %2477 = vmatpush1.msra.mxu0 0.0
  %2478 = vmatprep.subr.mxu0 0.0
  %2479 = vmatpush1.msra.mxu0 0.0
  %2480 = vmatprep.subr.mxu0 0.0
  %2481 = vmatpush1.msra.mxu0 0.0
  %2482 = vmatprep.subr.mxu0 0.0
  %2483 = vmatpush1.msra.mxu0 0.0
  %2484 = vmatprep.subr.mxu0 0.0
  %2485 = vmatpush1.msra.mxu0 0.0
  %2486 = vmatprep.subr.mxu0 0.0
  %2487 = vmatpush1.msra.mxu0 0.0
  %2488 = vmatprep.subr.mxu0 0.0
  %2489 = vmatpush1.msra.mxu0 0.0
  %2490 = vmatprep.subr.mxu0 0.0
  %2491 = vmatpush1.msra.mxu0 0.0
  %2492 = vmatprep.subr.mxu0 0.0
  %2493 = vmatpush1.msra.mxu0 0.0
  %2494 = vmatprep.subr.mxu0 0.0
  %2495 = vmatpush1.msra.mxu0 0.0
  %2496 = vmatprep.subr.mxu0 0.0
  %2497 = vmatpush1.msra.mxu0 0.0
  %2498 = vmatprep.subr.mxu0 0.0
  %2499 = vmatpush1.msra.mxu0 0.0
  %2500 = vmatprep.subr.mxu0 0.0
  %2501 = vmatpush1.msra.mxu0 0.0
  %2502 = vmatprep.subr.mxu0 0.0
  %2503 = vmatpush1.msra.mxu0 0.0
  %2504 = vmatprep.subr.mxu0 0.0
  %2505 = vmatpush1.msra.mxu0 0.0
  %2506 = vmatprep.subr.mxu0 0.0
  %2507 = vmatpush1.msra.mxu0 0.0
  %2508 = vmatprep.subr.mxu0 0.0
  %2509 = vmatpush1.msra.mxu0 0.0
  %2510 = vmatprep.subr.mxu0 0.0
  %2511 = vmatpush1.msra.mxu0 0.0
  %2512 = vmatprep.subr.mxu0 0.0
  %2513 = vmatpush1.msra.mxu0 0.0
  %2514 = vmatprep.subr.mxu0 0.0
  %2515 = vmatpush1.msra.mxu0 0.0
  %2516 = vmatprep.subr.mxu0 0.0
  %2517 = vmatpush1.msra.mxu0 0.0
  %2518 = vmatprep.subr.mxu0 0.0
  %2519 = vmatpush1.msra.mxu0 0.0
  %2520 = vmatprep.subr.mxu0 0.0
  %2521 = vmatpush1.msra.mxu0 0.0
  %2522 = vmatprep.subr.mxu0 0.0
  %2523 = vmatpush1.msra.mxu0 0.0
  %2524 = vmatprep.mubr.f32.mxu0 0.0
  %v2525 = vand.u32 %v1868, 4294901760
  %2526 = vmatmul.mubr.f32.gmra.mrb[0].mxu0 %v2525
  %v2527 = vpop.f32.mrb[0].mxu0
  %v2528 = vadd.f32 %v2437, %v2527
  %v2529 = vpop.f32.mrb[0].mxu0
  %2530 = vdwg.mxu0
  %2531 = vmatprep.subr.mxu0 0.0
  %v2532 = vand.u32 %v1860, 4294901760
  %v2533 = vsub.f32 %v1860, %v2532
  %2534 = vmatpush1.msra.mxu0 %v2533
  %2535 = vmatprep.subr.mxu0 0.0
  %v2536 = vand.u32 %v1861, 4294901760
  %v2537 = vsub.f32 %v1861, %v2536
  %2538 = vmatpush1.msra.mxu0 %v2537
  %2539 = vmatprep.subr.mxu0 0.0
  %v2540 = vand.u32 %v1862, 4294901760
  %v2541 = vsub.f32 %v1862, %v2540
  %2542 = vmatpush1.msra.mxu0 %v2541
  %2543 = vmatprep.subr.mxu0 0.0
  %v2544 = vand.u32 %v1863, 4294901760
  %v2545 = vsub.f32 %v1863, %v2544
  %2546 = vmatpush1.msra.mxu0 %v2545
  %2547 = vmatprep.subr.mxu0 0.0
  %2548 = vmatpush1.msra.mxu0 0.0
  %2549 = vmatprep.subr.mxu0 0.0
  %2550 = vmatpush1.msra.mxu0 0.0
  %2551 = vmatprep.subr.mxu0 0.0
  %2552 = vmatpush1.msra.mxu0 0.0
  %2553 = vmatprep.subr.mxu0 0.0
  %2554 = vmatpush1.msra.mxu0 0.0
  %2555 = vmatprep.subr.mxu0 0.0
  %2556 = vmatpush1.msra.mxu0 0.0
  %2557 = vmatprep.subr.mxu0 0.0
  %2558 = vmatpush1.msra.mxu0 0.0
  %2559 = vmatprep.subr.mxu0 0.0
  %2560 = vmatpush1.msra.mxu0 0.0
  %2561 = vmatprep.subr.mxu0 0.0
  %2562 = vmatpush1.msra.mxu0 0.0
  %2563 = vmatprep.subr.mxu0 0.0
  %2564 = vmatpush1.msra.mxu0 0.0
  %2565 = vmatprep.subr.mxu0 0.0
  %2566 = vmatpush1.msra.mxu0 0.0
  %2567 = vmatprep.subr.mxu0 0.0
  %2568 = vmatpush1.msra.mxu0 0.0
  %2569 = vmatprep.subr.mxu0 0.0
  %2570 = vmatpush1.msra.mxu0 0.0
  %2571 = vmatprep.subr.mxu0 0.0
  %2572 = vmatpush1.msra.mxu0 0.0
  %2573 = vmatprep.subr.mxu0 0.0
  %2574 = vmatpush1.msra.mxu0 0.0
  %2575 = vmatprep.subr.mxu0 0.0
  %2576 = vmatpush1.msra.mxu0 0.0
  %2577 = vmatprep.subr.mxu0 0.0
  %2578 = vmatpush1.msra.mxu0 0.0
  %2579 = vmatprep.subr.mxu0 0.0
  %2580 = vmatpush1.msra.mxu0 0.0
  %2581 = vmatprep.subr.mxu0 0.0
  %2582 = vmatpush1.msra.mxu0 0.0
  %2583 = vmatprep.subr.mxu0 0.0
  %2584 = vmatpush1.msra.mxu0 0.0
  %2585 = vmatprep.subr.mxu0 0.0
  %2586 = vmatpush1.msra.mxu0 0.0
  %2587 = vmatprep.subr.mxu0 0.0
  %2588 = vmatpush1.msra.mxu0 0.0
  %2589 = vmatprep.subr.mxu0 0.0
  %2590 = vmatpush1.msra.mxu0 0.0
  %2591 = vmatprep.subr.mxu0 0.0
  %2592 = vmatpush1.msra.mxu0 0.0
  %2593 = vmatprep.subr.mxu0 0.0
  %2594 = vmatpush1.msra.mxu0 0.0
  %2595 = vmatprep.subr.mxu0 0.0
  %2596 = vmatpush1.msra.mxu0 0.0
  %2597 = vmatprep.subr.mxu0 0.0
  %2598 = vmatpush1.msra.mxu0 0.0
  %2599 = vmatprep.subr.mxu0 0.0
  %2600 = vmatpush1.msra.mxu0 0.0
  %2601 = vmatprep.subr.mxu0 0.0
  %2602 = vmatpush1.msra.mxu0 0.0
  %2603 = vmatprep.mubr.f32.mxu0 0.0
  %v2604 = vand.u32 %v1868, 4294901760
  %v2605 = vsub.f32 %v1868, %v2604
  %2606 = vmatmul.mubr.f32.gmra.mrb[0].mxu0 %v2605
  %v2607 = vpop.f32.mrb[0].mxu0
  %v2608 = vadd.f32 %v2528, %v2607
  %v2609 = vpop.f32.mrb[0].mxu0
  %2610 = vdwg.mxu0
  %2611 = vmatprep.subr.mxu0 0.0
  %v2612 = vand.u32 %v1860, 4294901760
  %2613 = vmatpush1.msra.mxu0 %v2612
  %2614 = vmatprep.subr.mxu0 0.0
  %v2615 = vand.u32 %v1861, 4294901760
  %2616 = vmatpush1.msra.mxu0 %v2615
  %2617 = vmatprep.subr.mxu0 0.0
  %v2618 = vand.u32 %v1862, 4294901760
  %2619 = vmatpush1.msra.mxu0 %v2618
  %2620 = vmatprep.subr.mxu0 0.0
  %v2621 = vand.u32 %v1863, 4294901760
  %2622 = vmatpush1.msra.mxu0 %v2621
  %2623 = vmatprep.subr.mxu0 0.0
  %2624 = vmatpush1.msra.mxu0 0.0
  %2625 = vmatprep.subr.mxu0 0.0
  %2626 = vmatpush1.msra.mxu0 0.0
  %2627 = vmatprep.subr.mxu0 0.0
  %2628 = vmatpush1.msra.mxu0 0.0
  %2629 = vmatprep.subr.mxu0 0.0
  %2630 = vmatpush1.msra.mxu0 0.0
  %2631 = vmatprep.subr.mxu0 0.0
  %2632 = vmatpush1.msra.mxu0 0.0
  %2633 = vmatprep.subr.mxu0 0.0
  %2634 = vmatpush1.msra.mxu0 0.0
  %2635 = vmatprep.subr.mxu0 0.0
  %2636 = vmatpush1.msra.mxu0 0.0
  %2637 = vmatprep.subr.mxu0 0.0
  %2638 = vmatpush1.msra.mxu0 0.0
  %2639 = vmatprep.subr.mxu0 0.0
  %2640 = vmatpush1.msra.mxu0 0.0
  %2641 = vmatprep.subr.mxu0 0.0
  %2642 = vmatpush1.msra.mxu0 0.0
  %2643 = vmatprep.subr.mxu0 0.0
  %2644 = vmatpush1.msra.mxu0 0.0
  %2645 = vmatprep.subr.mxu0 0.0
  %2646 = vmatpush1.msra.mxu0 0.0
  %2647 = vmatprep.subr.mxu0 0.0
  %2648 = vmatpush1.msra.mxu0 0.0
  %2649 = vmatprep.subr.mxu0 0.0
  %2650 = vmatpush1.msra.mxu0 0.0
  %2651 = vmatprep.subr.mxu0 0.0
  %2652 = vmatpush1.msra.mxu0 0.0
  %2653 = vmatprep.subr.mxu0 0.0
  %2654 = vmatpush1.msra.mxu0 0.0
  %2655 = vmatprep.subr.mxu0 0.0
  %2656 = vmatpush1.msra.mxu0 0.0
  %2657 = vmatprep.subr.mxu0 0.0
  %2658 = vmatpush1.msra.mxu0 0.0
  %2659 = vmatprep.subr.mxu0 0.0
  %2660 = vmatpush1.msra.mxu0 0.0
  %2661 = vmatprep.subr.mxu0 0.0
  %2662 = vmatpush1.msra.mxu0 0.0
  %2663 = vmatprep.subr.mxu0 0.0
  %2664 = vmatpush1.msra.mxu0 0.0
  %2665 = vmatprep.subr.mxu0 0.0
  %2666 = vmatpush1.msra.mxu0 0.0
  %2667 = vmatprep.subr.mxu0 0.0
  %2668 = vmatpush1.msra.mxu0 0.0
  %2669 = vmatprep.subr.mxu0 0.0
  %2670 = vmatpush1.msra.mxu0 0.0
  %2671 = vmatprep.subr.mxu0 0.0
  %2672 = vmatpush1.msra.mxu0 0.0
  %2673 = vmatprep.subr.mxu0 0.0
  %2674 = vmatpush1.msra.mxu0 0.0
  %2675 = vmatprep.subr.mxu0 0.0
  %2676 = vmatpush1.msra.mxu0 0.0
  %2677 = vmatprep.subr.mxu0 0.0
  %2678 = vmatpush1.msra.mxu0 0.0
  %2679 = vmatprep.mubr.f32.mxu0 0.0
  %v2680 = vand.u32 %v1868, 4294901760
  %v2681 = vsub.f32 %v1868, %v2680
  %v2682 = vand.u32 %v2681, 4294901760
  %2683 = vmatmul.mubr.f32.gmra.mrb[0].mxu0 %v2682
  %v2684 = vpop.f32.mrb[0].mxu0
  %v2685 = vadd.f32 %v2608, %v2684
  %v2686 = vpop.f32.mrb[0].mxu0
  %2687 = vdwg.mxu0
  %2688 = vmatprep.subr.mxu0 0.0
  %v2689 = vand.u32 %v1860, 4294901760
  %v2690 = vsub.f32 %v1860, %v2689
  %v2691 = vand.u32 %v2690, 4294901760
  %2692 = vmatpush1.msra.mxu0 %v2691
  %2693 = vmatprep.subr.mxu0 0.0
  %v2694 = vand.u32 %v1861, 4294901760
  %v2695 = vsub.f32 %v1861, %v2694
  %v2696 = vand.u32 %v2695, 4294901760
  %2697 = vmatpush1.msra.mxu0 %v2696
  %2698 = vmatprep.subr.mxu0 0.0
  %v2699 = vand.u32 %v1862, 4294901760
  %v2700 = vsub.f32 %v1862, %v2699
  %v2701 = vand.u32 %v2700, 4294901760
  %2702 = vmatpush1.msra.mxu0 %v2701
  %2703 = vmatprep.subr.mxu0 0.0
  %v2704 = vand.u32 %v1863, 4294901760
  %v2705 = vsub.f32 %v1863, %v2704
  %v2706 = vand.u32 %v2705, 4294901760
  %2707 = vmatpush1.msra.mxu0 %v2706
  %2708 = vmatprep.subr.mxu0 0.0
  %2709 = vmatpush1.msra.mxu0 0.0
  %2710 = vmatprep.subr.mxu0 0.0
  %2711 = vmatpush1.msra.mxu0 0.0
  %2712 = vmatprep.subr.mxu0 0.0
  %2713 = vmatpush1.msra.mxu0 0.0
  %2714 = vmatprep.subr.mxu0 0.0
  %2715 = vmatpush1.msra.mxu0 0.0
  %2716 = vmatprep.subr.mxu0 0.0
  %2717 = vmatpush1.msra.mxu0 0.0
  %2718 = vmatprep.subr.mxu0 0.0
  %2719 = vmatpush1.msra.mxu0 0.0
  %2720 = vmatprep.subr.mxu0 0.0
  %2721 = vmatpush1.msra.mxu0 0.0
  %2722 = vmatprep.subr.mxu0 0.0
  %2723 = vmatpush1.msra.mxu0 0.0
  %2724 = vmatprep.subr.mxu0 0.0
  %2725 = vmatpush1.msra.mxu0 0.0
  %2726 = vmatprep.subr.mxu0 0.0
  %2727 = vmatpush1.msra.mxu0 0.0
  %2728 = vmatprep.subr.mxu0 0.0
  %2729 = vmatpush1.msra.mxu0 0.0
  %2730 = vmatprep.subr.mxu0 0.0
  %2731 = vmatpush1.msra.mxu0 0.0
  %2732 = vmatprep.subr.mxu0 0.0
  %2733 = vmatpush1.msra.mxu0 0.0
  %2734 = vmatprep.subr.mxu0 0.0
  %2735 = vmatpush1.msra.mxu0 0.0
  %2736 = vmatprep.subr.mxu0 0.0
  %2737 = vmatpush1.msra.mxu0 0.0
  %2738 = vmatprep.subr.mxu0 0.0
  %2739 = vmatpush1.msra.mxu0 0.0
  %2740 = vmatprep.subr.mxu0 0.0
  %2741 = vmatpush1.msra.mxu0 0.0
  %2742 = vmatprep.subr.mxu0 0.0
  %2743 = vmatpush1.msra.mxu0 0.0
  %2744 = vmatprep.subr.mxu0 0.0
  %2745 = vmatpush1.msra.mxu0 0.0
  %2746 = vmatprep.subr.mxu0 0.0
  %2747 = vmatpush1.msra.mxu0 0.0
  %2748 = vmatprep.subr.mxu0 0.0
  %2749 = vmatpush1.msra.mxu0 0.0
  %2750 = vmatprep.subr.mxu0 0.0
  %2751 = vmatpush1.msra.mxu0 0.0
  %2752 = vmatprep.subr.mxu0 0.0
  %2753 = vmatpush1.msra.mxu0 0.0
  %2754 = vmatprep.subr.mxu0 0.0
  %2755 = vmatpush1.msra.mxu0 0.0
  %2756 = vmatprep.subr.mxu0 0.0
  %2757 = vmatpush1.msra.mxu0 0.0
  %2758 = vmatprep.subr.mxu0 0.0
  %2759 = vmatpush1.msra.mxu0 0.0
  %2760 = vmatprep.subr.mxu0 0.0
  %2761 = vmatpush1.msra.mxu0 0.0
  %2762 = vmatprep.subr.mxu0 0.0
  %2763 = vmatpush1.msra.mxu0 0.0
  %2764 = vmatprep.mubr.f32.mxu0 0.0
  %v2765 = vand.u32 %v1868, 4294901760
  %2766 = vmatmul.mubr.f32.gmra.mrb[0].mxu0 %v2765
  %v2767 = vpop.f32.mrb[0].mxu0
  %v2768 = vadd.f32 %v2685, %v2767
  %v2769 = vpop.f32.mrb[0].mxu0
  %2770 = vdwg.mxu0
  %2771 = vmatprep.subr.mxu0 0.0
  %v2772 = vand.u32 %v1860, 4294901760
  %2773 = vmatpush1.msra.mxu0 %v2772
  %2774 = vmatprep.subr.mxu0 0.0
  %v2775 = vand.u32 %v1861, 4294901760
  %2776 = vmatpush1.msra.mxu0 %v2775
  %2777 = vmatprep.subr.mxu0 0.0
  %v2778 = vand.u32 %v1862, 4294901760
  %2779 = vmatpush1.msra.mxu0 %v2778
  %2780 = vmatprep.subr.mxu0 0.0
  %v2781 = vand.u32 %v1863, 4294901760
  %2782 = vmatpush1.msra.mxu0 %v2781
  %2783 = vmatprep.subr.mxu0 0.0
  %2784 = vmatpush1.msra.mxu0 0.0
  %2785 = vmatprep.subr.mxu0 0.0
  %2786 = vmatpush1.msra.mxu0 0.0
  %2787 = vmatprep.subr.mxu0 0.0
  %2788 = vmatpush1.msra.mxu0 0.0
  %2789 = vmatprep.subr.mxu0 0.0
  %2790 = vmatpush1.msra.mxu0 0.0
  %2791 = vmatprep.subr.mxu0 0.0
  %2792 = vmatpush1.msra.mxu0 0.0
  %2793 = vmatprep.subr.mxu0 0.0
  %2794 = vmatpush1.msra.mxu0 0.0
  %2795 = vmatprep.subr.mxu0 0.0
  %2796 = vmatpush1.msra.mxu0 0.0
  %2797 = vmatprep.subr.mxu0 0.0
  %2798 = vmatpush1.msra.mxu0 0.0
  %2799 = vmatprep.subr.mxu0 0.0
  %2800 = vmatpush1.msra.mxu0 0.0
  %2801 = vmatprep.subr.mxu0 0.0
  %2802 = vmatpush1.msra.mxu0 0.0
  %2803 = vmatprep.subr.mxu0 0.0
  %2804 = vmatpush1.msra.mxu0 0.0
  %2805 = vmatprep.subr.mxu0 0.0
  %2806 = vmatpush1.msra.mxu0 0.0
  %2807 = vmatprep.subr.mxu0 0.0
  %2808 = vmatpush1.msra.mxu0 0.0
  %2809 = vmatprep.subr.mxu0 0.0
  %2810 = vmatpush1.msra.mxu0 0.0
  %2811 = vmatprep.subr.mxu0 0.0
  %2812 = vmatpush1.msra.mxu0 0.0
  %2813 = vmatprep.subr.mxu0 0.0
  %2814 = vmatpush1.msra.mxu0 0.0
  %2815 = vmatprep.subr.mxu0 0.0
  %2816 = vmatpush1.msra.mxu0 0.0
  %2817 = vmatprep.subr.mxu0 0.0
  %2818 = vmatpush1.msra.mxu0 0.0
  %2819 = vmatprep.subr.mxu0 0.0
  %2820 = vmatpush1.msra.mxu0 0.0
  %2821 = vmatprep.subr.mxu0 0.0
  %2822 = vmatpush1.msra.mxu0 0.0
  %2823 = vmatprep.subr.mxu0 0.0
  %2824 = vmatpush1.msra.mxu0 0.0
  %2825 = vmatprep.subr.mxu0 0.0
  %2826 = vmatpush1.msra.mxu0 0.0
  %2827 = vmatprep.subr.mxu0 0.0
  %2828 = vmatpush1.msra.mxu0 0.0
  %2829 = vmatprep.subr.mxu0 0.0
  %2830 = vmatpush1.msra.mxu0 0.0
  %2831 = vmatprep.subr.mxu0 0.0
  %2832 = vmatpush1.msra.mxu0 0.0
  %2833 = vmatprep.subr.mxu0 0.0
  %2834 = vmatpush1.msra.mxu0 0.0
  %2835 = vmatprep.subr.mxu0 0.0
  %2836 = vmatpush1.msra.mxu0 0.0
  %2837 = vmatprep.subr.mxu0 0.0
  %2838 = vmatpush1.msra.mxu0 0.0
  %2839 = vmatprep.mubr.f32.mxu0 0.0
  %v2840 = vand.u32 %v1868, 4294901760
  %2841 = vmatmul.mubr.f32.gmra.mrb[0].mxu0 %v2840
  %v2842 = vpop.f32.mrb[0].mxu0
  %v2843 = vadd.f32 %v2768, %v2842
  %v2844 = vpop.f32.mrb[0].mxu0
  %2845 = vdwg.mxu0
  %v2846 = vadd.f32 %v647, %v2352
  %v2847 = vxor.u32 %v2846, 2147483648
  %v2848 = vmul.f32 %v2847, 1.442695
  %v2849 = vpow.pop %v2848
  %v2850 = vadd.f32 %v2849, 1.0
  %v2851 = vrcp.pop %v2850
  %v2852 = vmul.f32 1.0, %v2851
  %2854 = vrot.lane.b32.xlu0 %v2352, 96
  %v2855 = vpop.permute.xlu0 %2854
  %v2857 = vadd.f32 %v1241, %v2855
  %v2858 = vxor.u32 %v2857, 2147483648
  %v2859 = vmul.f32 %v2858, 1.442695
  %v2860 = vpow.pop %v2859
  %v2861 = vadd.f32 %v2860, 1.0
  %v2862 = vrcp.pop %v2861
  %v2863 = vmul.f32 1.0, %v2862
  %v2864 = vmul.f32 %v2852, %v2843
  %v2865 = vadd.f32 %v1835, %v2864
  %v2866 = vtanh.pop %v2865
  %v2867 = vsub.f32 %v1865, %v2866
  %v2868 = vmul.f32 %v2863, %v2867
  %v2869 = vadd.f32 %v2866, %v2868
  %v2871 = vsel %vm1866, %v2869, 0
  %2873 = vmatprep.subr.mxu0 0.0
  %v2874 = vand.u32 %v1856, 4294901760
  %2875 = vmatpush1.msra.mxu0 %v2874
  %2876 = vmatprep.subr.mxu0 0.0
  %v2877 = vand.u32 %v1857, 4294901760
  %2878 = vmatpush1.msra.mxu0 %v2877
  %2879 = vmatprep.subr.mxu0 0.0
  %v2880 = vand.u32 %v1858, 4294901760
  %2881 = vmatpush1.msra.mxu0 %v2880
  %2882 = vmatprep.subr.mxu0 0.0
  %v2883 = vand.u32 %v1859, 4294901760
  %2884 = vmatpush1.msra.mxu0 %v2883
  %2885 = vmatprep.subr.mxu0 0.0
  %2886 = vmatpush1.msra.mxu0 0.0
  %2887 = vmatprep.subr.mxu0 0.0
  %2888 = vmatpush1.msra.mxu0 0.0
  %2889 = vmatprep.subr.mxu0 0.0
  %2890 = vmatpush1.msra.mxu0 0.0
  %2891 = vmatprep.subr.mxu0 0.0
  %2892 = vmatpush1.msra.mxu0 0.0
  %2893 = vmatprep.subr.mxu0 0.0
  %2894 = vmatpush1.msra.mxu0 0.0
  %2895 = vmatprep.subr.mxu0 0.0
  %2896 = vmatpush1.msra.mxu0 0.0
  %2897 = vmatprep.subr.mxu0 0.0
  %2898 = vmatpush1.msra.mxu0 0.0
  %2899 = vmatprep.subr.mxu0 0.0
  %2900 = vmatpush1.msra.mxu0 0.0
  %2901 = vmatprep.subr.mxu0 0.0
  %2902 = vmatpush1.msra.mxu0 0.0
  %2903 = vmatprep.subr.mxu0 0.0
  %2904 = vmatpush1.msra.mxu0 0.0
  %2905 = vmatprep.subr.mxu0 0.0
  %2906 = vmatpush1.msra.mxu0 0.0
  %2907 = vmatprep.subr.mxu0 0.0
  %2908 = vmatpush1.msra.mxu0 0.0
  %2909 = vmatprep.subr.mxu0 0.0
  %2910 = vmatpush1.msra.mxu0 0.0
  %2911 = vmatprep.subr.mxu0 0.0
  %2912 = vmatpush1.msra.mxu0 0.0
  %2913 = vmatprep.subr.mxu0 0.0
  %2914 = vmatpush1.msra.mxu0 0.0
  %2915 = vmatprep.subr.mxu0 0.0
  %2916 = vmatpush1.msra.mxu0 0.0
  %2917 = vmatprep.subr.mxu0 0.0
  %2918 = vmatpush1.msra.mxu0 0.0
  %2919 = vmatprep.subr.mxu0 0.0
  %2920 = vmatpush1.msra.mxu0 0.0
  %2921 = vmatprep.subr.mxu0 0.0
  %2922 = vmatpush1.msra.mxu0 0.0
  %2923 = vmatprep.subr.mxu0 0.0
  %2924 = vmatpush1.msra.mxu0 0.0
  %2925 = vmatprep.subr.mxu0 0.0
  %2926 = vmatpush1.msra.mxu0 0.0
  %2927 = vmatprep.subr.mxu0 0.0
  %2928 = vmatpush1.msra.mxu0 0.0
  %2929 = vmatprep.subr.mxu0 0.0
  %2930 = vmatpush1.msra.mxu0 0.0
  %2931 = vmatprep.subr.mxu0 0.0
  %2932 = vmatpush1.msra.mxu0 0.0
  %2933 = vmatprep.subr.mxu0 0.0
  %2934 = vmatpush1.msra.mxu0 0.0
  %2935 = vmatprep.subr.mxu0 0.0
  %2936 = vmatpush1.msra.mxu0 0.0
  %2937 = vmatprep.subr.mxu0 0.0
  %2938 = vmatpush1.msra.mxu0 0.0
  %2939 = vmatprep.subr.mxu0 0.0
  %2940 = vmatpush1.msra.mxu0 0.0
  %2941 = vmatprep.mubr.f32.mxu0 0.0
  %v2942 = vand.u32 %v2871, 4294901760
  %v2943 = vsub.f32 %v2871, %v2942
  %v2944 = vand.u32 %v2943, 4294901760
  %v2945 = vsub.f32 %v2943, %v2944
  %v2946 = vand.u32 %v2945, 4294901760
  %2947 = vmatmul.mubr.f32.gmra.mrb[0].mxu0 %v2946
  %v2948 = vpop.f32.mrb[0].mxu0
  %v2949 = vadd.f32 0.0, %v2948
  %v2950 = vpop.f32.mrb[0].mxu0
  %2951 = vdwg.mxu0
  %2952 = vmatprep.subr.mxu0 0.0
  %v2953 = vand.u32 %v1856, 4294901760
  %v2954 = vsub.f32 %v1856, %v2953
  %v2955 = vand.u32 %v2954, 4294901760
  %v2956 = vsub.f32 %v2954, %v2955
  %v2957 = vand.u32 %v2956, 4294901760
  %2958 = vmatpush1.msra.mxu0 %v2957
  %2959 = vmatprep.subr.mxu0 0.0
  %v2960 = vand.u32 %v1857, 4294901760
  %v2961 = vsub.f32 %v1857, %v2960
  %v2962 = vand.u32 %v2961, 4294901760
  %v2963 = vsub.f32 %v2961, %v2962
  %v2964 = vand.u32 %v2963, 4294901760
  %2965 = vmatpush1.msra.mxu0 %v2964
  %2966 = vmatprep.subr.mxu0 0.0
  %v2967 = vand.u32 %v1858, 4294901760
  %v2968 = vsub.f32 %v1858, %v2967
  %v2969 = vand.u32 %v2968, 4294901760
  %v2970 = vsub.f32 %v2968, %v2969
  %v2971 = vand.u32 %v2970, 4294901760
  %2972 = vmatpush1.msra.mxu0 %v2971
  %2973 = vmatprep.subr.mxu0 0.0
  %v2974 = vand.u32 %v1859, 4294901760
  %v2975 = vsub.f32 %v1859, %v2974
  %v2976 = vand.u32 %v2975, 4294901760
  %v2977 = vsub.f32 %v2975, %v2976
  %v2978 = vand.u32 %v2977, 4294901760
  %2979 = vmatpush1.msra.mxu0 %v2978
  %2980 = vmatprep.subr.mxu0 0.0
  %2981 = vmatpush1.msra.mxu0 0.0
  %2982 = vmatprep.subr.mxu0 0.0
  %2983 = vmatpush1.msra.mxu0 0.0
  %2984 = vmatprep.subr.mxu0 0.0
  %2985 = vmatpush1.msra.mxu0 0.0
  %2986 = vmatprep.subr.mxu0 0.0
  %2987 = vmatpush1.msra.mxu0 0.0
  %2988 = vmatprep.subr.mxu0 0.0
  %2989 = vmatpush1.msra.mxu0 0.0
  %2990 = vmatprep.subr.mxu0 0.0
  %2991 = vmatpush1.msra.mxu0 0.0
  %2992 = vmatprep.subr.mxu0 0.0
  %2993 = vmatpush1.msra.mxu0 0.0
  %2994 = vmatprep.subr.mxu0 0.0
  %2995 = vmatpush1.msra.mxu0 0.0
  %2996 = vmatprep.subr.mxu0 0.0
  %2997 = vmatpush1.msra.mxu0 0.0
  %2998 = vmatprep.subr.mxu0 0.0
  %2999 = vmatpush1.msra.mxu0 0.0
  %3000 = vmatprep.subr.mxu0 0.0
  %3001 = vmatpush1.msra.mxu0 0.0
  %3002 = vmatprep.subr.mxu0 0.0
  %3003 = vmatpush1.msra.mxu0 0.0
  %3004 = vmatprep.subr.mxu0 0.0
  %3005 = vmatpush1.msra.mxu0 0.0
  %3006 = vmatprep.subr.mxu0 0.0
  %3007 = vmatpush1.msra.mxu0 0.0
  %3008 = vmatprep.subr.mxu0 0.0
  %3009 = vmatpush1.msra.mxu0 0.0
  %3010 = vmatprep.subr.mxu0 0.0
  %3011 = vmatpush1.msra.mxu0 0.0
  %3012 = vmatprep.subr.mxu0 0.0
  %3013 = vmatpush1.msra.mxu0 0.0
  %3014 = vmatprep.subr.mxu0 0.0
  %3015 = vmatpush1.msra.mxu0 0.0
  %3016 = vmatprep.subr.mxu0 0.0
  %3017 = vmatpush1.msra.mxu0 0.0
  %3018 = vmatprep.subr.mxu0 0.0
  %3019 = vmatpush1.msra.mxu0 0.0
  %3020 = vmatprep.subr.mxu0 0.0
  %3021 = vmatpush1.msra.mxu0 0.0
  %3022 = vmatprep.subr.mxu0 0.0
  %3023 = vmatpush1.msra.mxu0 0.0
  %3024 = vmatprep.subr.mxu0 0.0
  %3025 = vmatpush1.msra.mxu0 0.0
  %3026 = vmatprep.subr.mxu0 0.0
  %3027 = vmatpush1.msra.mxu0 0.0
  %3028 = vmatprep.subr.mxu0 0.0
  %3029 = vmatpush1.msra.mxu0 0.0
  %3030 = vmatprep.subr.mxu0 0.0
  %3031 = vmatpush1.msra.mxu0 0.0
  %3032 = vmatprep.subr.mxu0 0.0
  %3033 = vmatpush1.msra.mxu0 0.0
  %3034 = vmatprep.subr.mxu0 0.0
  %3035 = vmatpush1.msra.mxu0 0.0
  %3036 = vmatprep.mubr.f32.mxu0 0.0
  %v3037 = vand.u32 %v2871, 4294901760
  %3038 = vmatmul.mubr.f32.gmra.mrb[0].mxu0 %v3037
  %v3039 = vpop.f32.mrb[0].mxu0
  %v3040 = vadd.f32 %v2949, %v3039
  %v3041 = vpop.f32.mrb[0].mxu0
  %3042 = vdwg.mxu0
  %3043 = vmatprep.subr.mxu0 0.0
  %v3044 = vand.u32 %v1856, 4294901760
  %v3045 = vsub.f32 %v1856, %v3044
  %3046 = vmatpush1.msra.mxu0 %v3045
  %3047 = vmatprep.subr.mxu0 0.0
  %v3048 = vand.u32 %v1857, 4294901760
  %v3049 = vsub.f32 %v1857, %v3048
  %3050 = vmatpush1.msra.mxu0 %v3049
  %3051 = vmatprep.subr.mxu0 0.0
  %v3052 = vand.u32 %v1858, 4294901760
  %v3053 = vsub.f32 %v1858, %v3052
  %3054 = vmatpush1.msra.mxu0 %v3053
  %3055 = vmatprep.subr.mxu0 0.0
  %v3056 = vand.u32 %v1859, 4294901760
  %v3057 = vsub.f32 %v1859, %v3056
  %3058 = vmatpush1.msra.mxu0 %v3057
  %3059 = vmatprep.subr.mxu0 0.0
  %3060 = vmatpush1.msra.mxu0 0.0
  %3061 = vmatprep.subr.mxu0 0.0
  %3062 = vmatpush1.msra.mxu0 0.0
  %3063 = vmatprep.subr.mxu0 0.0
  %3064 = vmatpush1.msra.mxu0 0.0
  %3065 = vmatprep.subr.mxu0 0.0
  %3066 = vmatpush1.msra.mxu0 0.0
  %3067 = vmatprep.subr.mxu0 0.0
  %3068 = vmatpush1.msra.mxu0 0.0
  %3069 = vmatprep.subr.mxu0 0.0
  %3070 = vmatpush1.msra.mxu0 0.0
  %3071 = vmatprep.subr.mxu0 0.0
  %3072 = vmatpush1.msra.mxu0 0.0
  %3073 = vmatprep.subr.mxu0 0.0
  %3074 = vmatpush1.msra.mxu0 0.0
  %3075 = vmatprep.subr.mxu0 0.0
  %3076 = vmatpush1.msra.mxu0 0.0
  %3077 = vmatprep.subr.mxu0 0.0
  %3078 = vmatpush1.msra.mxu0 0.0
  %3079 = vmatprep.subr.mxu0 0.0
  %3080 = vmatpush1.msra.mxu0 0.0
  %3081 = vmatprep.subr.mxu0 0.0
  %3082 = vmatpush1.msra.mxu0 0.0
  %3083 = vmatprep.subr.mxu0 0.0
  %3084 = vmatpush1.msra.mxu0 0.0
  %3085 = vmatprep.subr.mxu0 0.0
  %3086 = vmatpush1.msra.mxu0 0.0
  %3087 = vmatprep.subr.mxu0 0.0
  %3088 = vmatpush1.msra.mxu0 0.0
  %3089 = vmatprep.subr.mxu0 0.0
  %3090 = vmatpush1.msra.mxu0 0.0
  %3091 = vmatprep.subr.mxu0 0.0
  %3092 = vmatpush1.msra.mxu0 0.0
  %3093 = vmatprep.subr.mxu0 0.0
  %3094 = vmatpush1.msra.mxu0 0.0
  %3095 = vmatprep.subr.mxu0 0.0
  %3096 = vmatpush1.msra.mxu0 0.0
  %3097 = vmatprep.subr.mxu0 0.0
  %3098 = vmatpush1.msra.mxu0 0.0
  %3099 = vmatprep.subr.mxu0 0.0
  %3100 = vmatpush1.msra.mxu0 0.0
  %3101 = vmatprep.subr.mxu0 0.0
  %3102 = vmatpush1.msra.mxu0 0.0
  %3103 = vmatprep.subr.mxu0 0.0
  %3104 = vmatpush1.msra.mxu0 0.0
  %3105 = vmatprep.subr.mxu0 0.0
  %3106 = vmatpush1.msra.mxu0 0.0
  %3107 = vmatprep.subr.mxu0 0.0
  %3108 = vmatpush1.msra.mxu0 0.0
  %3109 = vmatprep.subr.mxu0 0.0
  %3110 = vmatpush1.msra.mxu0 0.0
  %3111 = vmatprep.subr.mxu0 0.0
  %3112 = vmatpush1.msra.mxu0 0.0
  %3113 = vmatprep.subr.mxu0 0.0
  %3114 = vmatpush1.msra.mxu0 0.0
  %3115 = vmatprep.mubr.f32.mxu0 0.0
  %v3116 = vand.u32 %v2871, 4294901760
  %v3117 = vsub.f32 %v2871, %v3116
  %3118 = vmatmul.mubr.f32.gmra.mrb[0].mxu0 %v3117
  %v3119 = vpop.f32.mrb[0].mxu0
  %v3120 = vadd.f32 %v3040, %v3119
  %v3121 = vpop.f32.mrb[0].mxu0
  %3122 = vdwg.mxu0
  %3123 = vmatprep.subr.mxu0 0.0
  %v3124 = vand.u32 %v1856, 4294901760
  %3125 = vmatpush1.msra.mxu0 %v3124
  %3126 = vmatprep.subr.mxu0 0.0
  %v3127 = vand.u32 %v1857, 4294901760
  %3128 = vmatpush1.msra.mxu0 %v3127
  %3129 = vmatprep.subr.mxu0 0.0
  %v3130 = vand.u32 %v1858, 4294901760
  %3131 = vmatpush1.msra.mxu0 %v3130
  %3132 = vmatprep.subr.mxu0 0.0
  %v3133 = vand.u32 %v1859, 4294901760
  %3134 = vmatpush1.msra.mxu0 %v3133
  %3135 = vmatprep.subr.mxu0 0.0
  %3136 = vmatpush1.msra.mxu0 0.0
  %3137 = vmatprep.subr.mxu0 0.0
  %3138 = vmatpush1.msra.mxu0 0.0
  %3139 = vmatprep.subr.mxu0 0.0
  %3140 = vmatpush1.msra.mxu0 0.0
  %3141 = vmatprep.subr.mxu0 0.0
  %3142 = vmatpush1.msra.mxu0 0.0
  %3143 = vmatprep.subr.mxu0 0.0
  %3144 = vmatpush1.msra.mxu0 0.0
  %3145 = vmatprep.subr.mxu0 0.0
  %3146 = vmatpush1.msra.mxu0 0.0
  %3147 = vmatprep.subr.mxu0 0.0
  %3148 = vmatpush1.msra.mxu0 0.0
  %3149 = vmatprep.subr.mxu0 0.0
  %3150 = vmatpush1.msra.mxu0 0.0
  %3151 = vmatprep.subr.mxu0 0.0
  %3152 = vmatpush1.msra.mxu0 0.0
  %3153 = vmatprep.subr.mxu0 0.0
  %3154 = vmatpush1.msra.mxu0 0.0
  %3155 = vmatprep.subr.mxu0 0.0
  %3156 = vmatpush1.msra.mxu0 0.0
  %3157 = vmatprep.subr.mxu0 0.0
  %3158 = vmatpush1.msra.mxu0 0.0
  %3159 = vmatprep.subr.mxu0 0.0
  %3160 = vmatpush1.msra.mxu0 0.0
  %3161 = vmatprep.subr.mxu0 0.0
  %3162 = vmatpush1.msra.mxu0 0.0
  %3163 = vmatprep.subr.mxu0 0.0
  %3164 = vmatpush1.msra.mxu0 0.0
  %3165 = vmatprep.subr.mxu0 0.0
  %3166 = vmatpush1.msra.mxu0 0.0
  %3167 = vmatprep.subr.mxu0 0.0
  %3168 = vmatpush1.msra.mxu0 0.0
  %3169 = vmatprep.subr.mxu0 0.0
  %3170 = vmatpush1.msra.mxu0 0.0
  %3171 = vmatprep.subr.mxu0 0.0
  %3172 = vmatpush1.msra.mxu0 0.0
  %3173 = vmatprep.subr.mxu0 0.0
  %3174 = vmatpush1.msra.mxu0 0.0
  %3175 = vmatprep.subr.mxu0 0.0
  %3176 = vmatpush1.msra.mxu0 0.0
  %3177 = vmatprep.subr.mxu0 0.0
  %3178 = vmatpush1.msra.mxu0 0.0
  %3179 = vmatprep.subr.mxu0 0.0
  %3180 = vmatpush1.msra.mxu0 0.0
  %3181 = vmatprep.subr.mxu0 0.0
  %3182 = vmatpush1.msra.mxu0 0.0
  %3183 = vmatprep.subr.mxu0 0.0
  %3184 = vmatpush1.msra.mxu0 0.0
  %3185 = vmatprep.subr.mxu0 0.0
  %3186 = vmatpush1.msra.mxu0 0.0
  %3187 = vmatprep.subr.mxu0 0.0
  %3188 = vmatpush1.msra.mxu0 0.0
  %3189 = vmatprep.subr.mxu0 0.0
  %3190 = vmatpush1.msra.mxu0 0.0
  %3191 = vmatprep.mubr.f32.mxu0 0.0
  %v3192 = vand.u32 %v2871, 4294901760
  %v3193 = vsub.f32 %v2871, %v3192
  %v3194 = vand.u32 %v3193, 4294901760
  %3195 = vmatmul.mubr.f32.gmra.mrb[0].mxu0 %v3194
  %v3196 = vpop.f32.mrb[0].mxu0
  %v3197 = vadd.f32 %v3120, %v3196
  %v3198 = vpop.f32.mrb[0].mxu0
  %3199 = vdwg.mxu0
  %3200 = vmatprep.subr.mxu0 0.0
  %v3201 = vand.u32 %v1856, 4294901760
  %v3202 = vsub.f32 %v1856, %v3201
  %v3203 = vand.u32 %v3202, 4294901760
  %3204 = vmatpush1.msra.mxu0 %v3203
  %3205 = vmatprep.subr.mxu0 0.0
  %v3206 = vand.u32 %v1857, 4294901760
  %v3207 = vsub.f32 %v1857, %v3206
  %v3208 = vand.u32 %v3207, 4294901760
  %3209 = vmatpush1.msra.mxu0 %v3208
  %3210 = vmatprep.subr.mxu0 0.0
  %v3211 = vand.u32 %v1858, 4294901760
  %v3212 = vsub.f32 %v1858, %v3211
  %v3213 = vand.u32 %v3212, 4294901760
  %3214 = vmatpush1.msra.mxu0 %v3213
  %3215 = vmatprep.subr.mxu0 0.0
  %v3216 = vand.u32 %v1859, 4294901760
  %v3217 = vsub.f32 %v1859, %v3216
  %v3218 = vand.u32 %v3217, 4294901760
  %3219 = vmatpush1.msra.mxu0 %v3218
  %3220 = vmatprep.subr.mxu0 0.0
  %3221 = vmatpush1.msra.mxu0 0.0
  %3222 = vmatprep.subr.mxu0 0.0
  %3223 = vmatpush1.msra.mxu0 0.0
  %3224 = vmatprep.subr.mxu0 0.0
  %3225 = vmatpush1.msra.mxu0 0.0
  %3226 = vmatprep.subr.mxu0 0.0
  %3227 = vmatpush1.msra.mxu0 0.0
  %3228 = vmatprep.subr.mxu0 0.0
  %3229 = vmatpush1.msra.mxu0 0.0
  %3230 = vmatprep.subr.mxu0 0.0
  %3231 = vmatpush1.msra.mxu0 0.0
  %3232 = vmatprep.subr.mxu0 0.0
  %3233 = vmatpush1.msra.mxu0 0.0
  %3234 = vmatprep.subr.mxu0 0.0
  %3235 = vmatpush1.msra.mxu0 0.0
  %3236 = vmatprep.subr.mxu0 0.0
  %3237 = vmatpush1.msra.mxu0 0.0
  %3238 = vmatprep.subr.mxu0 0.0
  %3239 = vmatpush1.msra.mxu0 0.0
  %3240 = vmatprep.subr.mxu0 0.0
  %3241 = vmatpush1.msra.mxu0 0.0
  %3242 = vmatprep.subr.mxu0 0.0
  %3243 = vmatpush1.msra.mxu0 0.0
  %3244 = vmatprep.subr.mxu0 0.0
  %3245 = vmatpush1.msra.mxu0 0.0
  %3246 = vmatprep.subr.mxu0 0.0
  %3247 = vmatpush1.msra.mxu0 0.0
  %3248 = vmatprep.subr.mxu0 0.0
  %3249 = vmatpush1.msra.mxu0 0.0
  %3250 = vmatprep.subr.mxu0 0.0
  %3251 = vmatpush1.msra.mxu0 0.0
  %3252 = vmatprep.subr.mxu0 0.0
  %3253 = vmatpush1.msra.mxu0 0.0
  %3254 = vmatprep.subr.mxu0 0.0
  %3255 = vmatpush1.msra.mxu0 0.0
  %3256 = vmatprep.subr.mxu0 0.0
  %3257 = vmatpush1.msra.mxu0 0.0
  %3258 = vmatprep.subr.mxu0 0.0
  %3259 = vmatpush1.msra.mxu0 0.0
  %3260 = vmatprep.subr.mxu0 0.0
  %3261 = vmatpush1.msra.mxu0 0.0
  %3262 = vmatprep.subr.mxu0 0.0
  %3263 = vmatpush1.msra.mxu0 0.0
  %3264 = vmatprep.subr.mxu0 0.0
  %3265 = vmatpush1.msra.mxu0 0.0
  %3266 = vmatprep.subr.mxu0 0.0
  %3267 = vmatpush1.msra.mxu0 0.0
  %3268 = vmatprep.subr.mxu0 0.0
  %3269 = vmatpush1.msra.mxu0 0.0
  %3270 = vmatprep.subr.mxu0 0.0
  %3271 = vmatpush1.msra.mxu0 0.0
  %3272 = vmatprep.subr.mxu0 0.0
  %3273 = vmatpush1.msra.mxu0 0.0
  %3274 = vmatprep.subr.mxu0 0.0
  %3275 = vmatpush1.msra.mxu0 0.0
  %3276 = vmatprep.mubr.f32.mxu0 0.0
  %v3277 = vand.u32 %v2871, 4294901760
  %3278 = vmatmul.mubr.f32.gmra.mrb[0].mxu0 %v3277
  %v3279 = vpop.f32.mrb[0].mxu0
  %v3280 = vadd.f32 %v3197, %v3279
  %v3281 = vpop.f32.mrb[0].mxu0
  %3282 = vdwg.mxu0
  %3283 = vmatprep.subr.mxu0 0.0
  %v3284 = vand.u32 %v1856, 4294901760
  %3285 = vmatpush1.msra.mxu0 %v3284
  %3286 = vmatprep.subr.mxu0 0.0
  %v3287 = vand.u32 %v1857, 4294901760
  %3288 = vmatpush1.msra.mxu0 %v3287
  %3289 = vmatprep.subr.mxu0 0.0
  %v3290 = vand.u32 %v1858, 4294901760
  %3291 = vmatpush1.msra.mxu0 %v3290
  %3292 = vmatprep.subr.mxu0 0.0
  %v3293 = vand.u32 %v1859, 4294901760
  %3294 = vmatpush1.msra.mxu0 %v3293
  %3295 = vmatprep.subr.mxu0 0.0
  %3296 = vmatpush1.msra.mxu0 0.0
  %3297 = vmatprep.subr.mxu0 0.0
  %3298 = vmatpush1.msra.mxu0 0.0
  %3299 = vmatprep.subr.mxu0 0.0
  %3300 = vmatpush1.msra.mxu0 0.0
  %3301 = vmatprep.subr.mxu0 0.0
  %3302 = vmatpush1.msra.mxu0 0.0
  %3303 = vmatprep.subr.mxu0 0.0
  %3304 = vmatpush1.msra.mxu0 0.0
  %3305 = vmatprep.subr.mxu0 0.0
  %3306 = vmatpush1.msra.mxu0 0.0
  %3307 = vmatprep.subr.mxu0 0.0
  %3308 = vmatpush1.msra.mxu0 0.0
  %3309 = vmatprep.subr.mxu0 0.0
  %3310 = vmatpush1.msra.mxu0 0.0
  %3311 = vmatprep.subr.mxu0 0.0
  %3312 = vmatpush1.msra.mxu0 0.0
  %3313 = vmatprep.subr.mxu0 0.0
  %3314 = vmatpush1.msra.mxu0 0.0
  %3315 = vmatprep.subr.mxu0 0.0
  %3316 = vmatpush1.msra.mxu0 0.0
  %3317 = vmatprep.subr.mxu0 0.0
  %3318 = vmatpush1.msra.mxu0 0.0
  %3319 = vmatprep.subr.mxu0 0.0
  %3320 = vmatpush1.msra.mxu0 0.0
  %3321 = vmatprep.subr.mxu0 0.0
  %3322 = vmatpush1.msra.mxu0 0.0
  %3323 = vmatprep.subr.mxu0 0.0
  %3324 = vmatpush1.msra.mxu0 0.0
  %3325 = vmatprep.subr.mxu0 0.0
  %3326 = vmatpush1.msra.mxu0 0.0
  %3327 = vmatprep.subr.mxu0 0.0
  %3328 = vmatpush1.msra.mxu0 0.0
  %3329 = vmatprep.subr.mxu0 0.0
  %3330 = vmatpush1.msra.mxu0 0.0
  %3331 = vmatprep.subr.mxu0 0.0
  %3332 = vmatpush1.msra.mxu0 0.0
  %3333 = vmatprep.subr.mxu0 0.0
  %3334 = vmatpush1.msra.mxu0 0.0
  %3335 = vmatprep.subr.mxu0 0.0
  %3336 = vmatpush1.msra.mxu0 0.0
  %3337 = vmatprep.subr.mxu0 0.0
  %3338 = vmatpush1.msra.mxu0 0.0
  %3339 = vmatprep.subr.mxu0 0.0
  %3340 = vmatpush1.msra.mxu0 0.0
  %3341 = vmatprep.subr.mxu0 0.0
  %3342 = vmatpush1.msra.mxu0 0.0
  %3343 = vmatprep.subr.mxu0 0.0
  %3344 = vmatpush1.msra.mxu0 0.0
  %3345 = vmatprep.subr.mxu0 0.0
  %3346 = vmatpush1.msra.mxu0 0.0
  %3347 = vmatprep.subr.mxu0 0.0
  %3348 = vmatpush1.msra.mxu0 0.0
  %3349 = vmatprep.subr.mxu0 0.0
  %3350 = vmatpush1.msra.mxu0 0.0
  %3351 = vmatprep.mubr.f32.mxu0 0.0
  %v3352 = vand.u32 %v2871, 4294901760
  %3353 = vmatmul.mubr.f32.gmra.mrb[0].mxu0 %v3352
  %v3354 = vpop.f32.mrb[0].mxu0
  %v3355 = vadd.f32 %v3280, %v3354
  %v3356 = vpop.f32.mrb[0].mxu0
  %3357 = vdwg.mxu0
  %3358 = vmatprep.subr.mxu0 0.0
  %v3359 = vand.u32 %v1860, 4294901760
  %3360 = vmatpush1.msra.mxu0 %v3359
  %3361 = vmatprep.subr.mxu0 0.0
  %v3362 = vand.u32 %v1861, 4294901760
  %3363 = vmatpush1.msra.mxu0 %v3362
  %3364 = vmatprep.subr.mxu0 0.0
  %v3365 = vand.u32 %v1862, 4294901760
  %3366 = vmatpush1.msra.mxu0 %v3365
  %3367 = vmatprep.subr.mxu0 0.0
  %v3368 = vand.u32 %v1863, 4294901760
  %3369 = vmatpush1.msra.mxu0 %v3368
  %3370 = vmatprep.subr.mxu0 0.0
  %3371 = vmatpush1.msra.mxu0 0.0
  %3372 = vmatprep.subr.mxu0 0.0
  %3373 = vmatpush1.msra.mxu0 0.0
  %3374 = vmatprep.subr.mxu0 0.0
  %3375 = vmatpush1.msra.mxu0 0.0
  %3376 = vmatprep.subr.mxu0 0.0
  %3377 = vmatpush1.msra.mxu0 0.0
  %3378 = vmatprep.subr.mxu0 0.0
  %3379 = vmatpush1.msra.mxu0 0.0
  %3380 = vmatprep.subr.mxu0 0.0
  %3381 = vmatpush1.msra.mxu0 0.0
  %3382 = vmatprep.subr.mxu0 0.0
  %3383 = vmatpush1.msra.mxu0 0.0
  %3384 = vmatprep.subr.mxu0 0.0
  %3385 = vmatpush1.msra.mxu0 0.0
  %3386 = vmatprep.subr.mxu0 0.0
  %3387 = vmatpush1.msra.mxu0 0.0
  %3388 = vmatprep.subr.mxu0 0.0
  %3389 = vmatpush1.msra.mxu0 0.0
  %3390 = vmatprep.subr.mxu0 0.0
  %3391 = vmatpush1.msra.mxu0 0.0
  %3392 = vmatprep.subr.mxu0 0.0
  %3393 = vmatpush1.msra.mxu0 0.0
  %3394 = vmatprep.subr.mxu0 0.0
  %3395 = vmatpush1.msra.mxu0 0.0
  %3396 = vmatprep.subr.mxu0 0.0
  %3397 = vmatpush1.msra.mxu0 0.0
  %3398 = vmatprep.subr.mxu0 0.0
  %3399 = vmatpush1.msra.mxu0 0.0
  %3400 = vmatprep.subr.mxu0 0.0
  %3401 = vmatpush1.msra.mxu0 0.0
  %3402 = vmatprep.subr.mxu0 0.0
  %3403 = vmatpush1.msra.mxu0 0.0
  %3404 = vmatprep.subr.mxu0 0.0
  %3405 = vmatpush1.msra.mxu0 0.0
  %3406 = vmatprep.subr.mxu0 0.0
  %3407 = vmatpush1.msra.mxu0 0.0
  %3408 = vmatprep.subr.mxu0 0.0
  %3409 = vmatpush1.msra.mxu0 0.0
  %3410 = vmatprep.subr.mxu0 0.0
  %3411 = vmatpush1.msra.mxu0 0.0
  %3412 = vmatprep.subr.mxu0 0.0
  %3413 = vmatpush1.msra.mxu0 0.0
  %3414 = vmatprep.subr.mxu0 0.0
  %3415 = vmatpush1.msra.mxu0 0.0
  %3416 = vmatprep.subr.mxu0 0.0
  %3417 = vmatpush1.msra.mxu0 0.0
  %3418 = vmatprep.subr.mxu0 0.0
  %3419 = vmatpush1.msra.mxu0 0.0
  %3420 = vmatprep.subr.mxu0 0.0
  %3421 = vmatpush1.msra.mxu0 0.0
  %3422 = vmatprep.subr.mxu0 0.0
  %3423 = vmatpush1.msra.mxu0 0.0
  %3424 = vmatprep.subr.mxu0 0.0
  %3425 = vmatpush1.msra.mxu0 0.0
  %3426 = vmatprep.mubr.f32.mxu0 0.0
  %v3427 = vand.u32 %v2871, 4294901760
  %v3428 = vsub.f32 %v2871, %v3427
  %v3429 = vand.u32 %v3428, 4294901760
  %v3430 = vsub.f32 %v3428, %v3429
  %v3431 = vand.u32 %v3430, 4294901760
  %3432 = vmatmul.mubr.f32.gmra.mrb[0].mxu0 %v3431
  %v3433 = vpop.f32.mrb[0].mxu0
  %v3434 = vadd.f32 %v2359, %v3433
  %v3435 = vpop.f32.mrb[0].mxu0
  %3436 = vdwg.mxu0
  %3437 = vmatprep.subr.mxu0 0.0
  %v3438 = vand.u32 %v1860, 4294901760
  %v3439 = vsub.f32 %v1860, %v3438
  %v3440 = vand.u32 %v3439, 4294901760
  %v3441 = vsub.f32 %v3439, %v3440
  %v3442 = vand.u32 %v3441, 4294901760
  %3443 = vmatpush1.msra.mxu0 %v3442
  %3444 = vmatprep.subr.mxu0 0.0
  %v3445 = vand.u32 %v1861, 4294901760
  %v3446 = vsub.f32 %v1861, %v3445
  %v3447 = vand.u32 %v3446, 4294901760
  %v3448 = vsub.f32 %v3446, %v3447
  %v3449 = vand.u32 %v3448, 4294901760
  %3450 = vmatpush1.msra.mxu0 %v3449
  %3451 = vmatprep.subr.mxu0 0.0
  %v3452 = vand.u32 %v1862, 4294901760
  %v3453 = vsub.f32 %v1862, %v3452
  %v3454 = vand.u32 %v3453, 4294901760
  %v3455 = vsub.f32 %v3453, %v3454
  %v3456 = vand.u32 %v3455, 4294901760
  %3457 = vmatpush1.msra.mxu0 %v3456
  %3458 = vmatprep.subr.mxu0 0.0
  %v3459 = vand.u32 %v1863, 4294901760
  %v3460 = vsub.f32 %v1863, %v3459
  %v3461 = vand.u32 %v3460, 4294901760
  %v3462 = vsub.f32 %v3460, %v3461
  %v3463 = vand.u32 %v3462, 4294901760
  %3464 = vmatpush1.msra.mxu0 %v3463
  %3465 = vmatprep.subr.mxu0 0.0
  %3466 = vmatpush1.msra.mxu0 0.0
  %3467 = vmatprep.subr.mxu0 0.0
  %3468 = vmatpush1.msra.mxu0 0.0
  %3469 = vmatprep.subr.mxu0 0.0
  %3470 = vmatpush1.msra.mxu0 0.0
  %3471 = vmatprep.subr.mxu0 0.0
  %3472 = vmatpush1.msra.mxu0 0.0
  %3473 = vmatprep.subr.mxu0 0.0
  %3474 = vmatpush1.msra.mxu0 0.0
  %3475 = vmatprep.subr.mxu0 0.0
  %3476 = vmatpush1.msra.mxu0 0.0
  %3477 = vmatprep.subr.mxu0 0.0
  %3478 = vmatpush1.msra.mxu0 0.0
  %3479 = vmatprep.subr.mxu0 0.0
  %3480 = vmatpush1.msra.mxu0 0.0
  %3481 = vmatprep.subr.mxu0 0.0
  %3482 = vmatpush1.msra.mxu0 0.0
  %3483 = vmatprep.subr.mxu0 0.0
  %3484 = vmatpush1.msra.mxu0 0.0
  %3485 = vmatprep.subr.mxu0 0.0
  %3486 = vmatpush1.msra.mxu0 0.0
  %3487 = vmatprep.subr.mxu0 0.0
  %3488 = vmatpush1.msra.mxu0 0.0
  %3489 = vmatprep.subr.mxu0 0.0
  %3490 = vmatpush1.msra.mxu0 0.0
  %3491 = vmatprep.subr.mxu0 0.0
  %3492 = vmatpush1.msra.mxu0 0.0
  %3493 = vmatprep.subr.mxu0 0.0
  %3494 = vmatpush1.msra.mxu0 0.0
  %3495 = vmatprep.subr.mxu0 0.0
  %3496 = vmatpush1.msra.mxu0 0.0
  %3497 = vmatprep.subr.mxu0 0.0
  %3498 = vmatpush1.msra.mxu0 0.0
  %3499 = vmatprep.subr.mxu0 0.0
  %3500 = vmatpush1.msra.mxu0 0.0
  %3501 = vmatprep.subr.mxu0 0.0
  %3502 = vmatpush1.msra.mxu0 0.0
  %3503 = vmatprep.subr.mxu0 0.0
  %3504 = vmatpush1.msra.mxu0 0.0
  %3505 = vmatprep.subr.mxu0 0.0
  %3506 = vmatpush1.msra.mxu0 0.0
  %3507 = vmatprep.subr.mxu0 0.0
  %3508 = vmatpush1.msra.mxu0 0.0
  %3509 = vmatprep.subr.mxu0 0.0
  %3510 = vmatpush1.msra.mxu0 0.0
  %3511 = vmatprep.subr.mxu0 0.0
  %3512 = vmatpush1.msra.mxu0 0.0
  %3513 = vmatprep.subr.mxu0 0.0
  %3514 = vmatpush1.msra.mxu0 0.0
  %3515 = vmatprep.subr.mxu0 0.0
  %3516 = vmatpush1.msra.mxu0 0.0
  %3517 = vmatprep.subr.mxu0 0.0
  %3518 = vmatpush1.msra.mxu0 0.0
  %3519 = vmatprep.subr.mxu0 0.0
  %3520 = vmatpush1.msra.mxu0 0.0
  %3521 = vmatprep.mubr.f32.mxu0 0.0
  %v3522 = vand.u32 %v2871, 4294901760
  %3523 = vmatmul.mubr.f32.gmra.mrb[0].mxu0 %v3522
  %v3524 = vpop.f32.mrb[0].mxu0
  %v3525 = vadd.f32 %v3434, %v3524
  %v3526 = vpop.f32.mrb[0].mxu0
  %3527 = vdwg.mxu0
  %3528 = vmatprep.subr.mxu0 0.0
  %v3529 = vand.u32 %v1860, 4294901760
  %v3530 = vsub.f32 %v1860, %v3529
  %3531 = vmatpush1.msra.mxu0 %v3530
  %3532 = vmatprep.subr.mxu0 0.0
  %v3533 = vand.u32 %v1861, 4294901760
  %v3534 = vsub.f32 %v1861, %v3533
  %3535 = vmatpush1.msra.mxu0 %v3534
  %3536 = vmatprep.subr.mxu0 0.0
  %v3537 = vand.u32 %v1862, 4294901760
  %v3538 = vsub.f32 %v1862, %v3537
  %3539 = vmatpush1.msra.mxu0 %v3538
  %3540 = vmatprep.subr.mxu0 0.0
  %v3541 = vand.u32 %v1863, 4294901760
  %v3542 = vsub.f32 %v1863, %v3541
  %3543 = vmatpush1.msra.mxu0 %v3542
  %3544 = vmatprep.subr.mxu0 0.0
  %3545 = vmatpush1.msra.mxu0 0.0
  %3546 = vmatprep.subr.mxu0 0.0
  %3547 = vmatpush1.msra.mxu0 0.0
  %3548 = vmatprep.subr.mxu0 0.0
  %3549 = vmatpush1.msra.mxu0 0.0
  %3550 = vmatprep.subr.mxu0 0.0
  %3551 = vmatpush1.msra.mxu0 0.0
  %3552 = vmatprep.subr.mxu0 0.0
  %3553 = vmatpush1.msra.mxu0 0.0
  %3554 = vmatprep.subr.mxu0 0.0
  %3555 = vmatpush1.msra.mxu0 0.0
  %3556 = vmatprep.subr.mxu0 0.0
  %3557 = vmatpush1.msra.mxu0 0.0
  %3558 = vmatprep.subr.mxu0 0.0
  %3559 = vmatpush1.msra.mxu0 0.0
  %3560 = vmatprep.subr.mxu0 0.0
  %3561 = vmatpush1.msra.mxu0 0.0
  %3562 = vmatprep.subr.mxu0 0.0
  %3563 = vmatpush1.msra.mxu0 0.0
  %3564 = vmatprep.subr.mxu0 0.0
  %3565 = vmatpush1.msra.mxu0 0.0
  %3566 = vmatprep.subr.mxu0 0.0
  %3567 = vmatpush1.msra.mxu0 0.0
  %3568 = vmatprep.subr.mxu0 0.0
  %3569 = vmatpush1.msra.mxu0 0.0
  %3570 = vmatprep.subr.mxu0 0.0
  %3571 = vmatpush1.msra.mxu0 0.0
  %3572 = vmatprep.subr.mxu0 0.0
  %3573 = vmatpush1.msra.mxu0 0.0
  %3574 = vmatprep.subr.mxu0 0.0
  %3575 = vmatpush1.msra.mxu0 0.0
  %3576 = vmatprep.subr.mxu0 0.0
  %3577 = vmatpush1.msra.mxu0 0.0
  %3578 = vmatprep.subr.mxu0 0.0
  %3579 = vmatpush1.msra.mxu0 0.0
  %3580 = vmatprep.subr.mxu0 0.0
  %3581 = vmatpush1.msra.mxu0 0.0
  %3582 = vmatprep.subr.mxu0 0.0
  %3583 = vmatpush1.msra.mxu0 0.0
  %3584 = vmatprep.subr.mxu0 0.0
  %3585 = vmatpush1.msra.mxu0 0.0
  %3586 = vmatprep.subr.mxu0 0.0
  %3587 = vmatpush1.msra.mxu0 0.0
  %3588 = vmatprep.subr.mxu0 0.0
  %3589 = vmatpush1.msra.mxu0 0.0
  %3590 = vmatprep.subr.mxu0 0.0
  %3591 = vmatpush1.msra.mxu0 0.0
  %3592 = vmatprep.subr.mxu0 0.0
  %3593 = vmatpush1.msra.mxu0 0.0
  %3594 = vmatprep.subr.mxu0 0.0
  %3595 = vmatpush1.msra.mxu0 0.0
  %3596 = vmatprep.subr.mxu0 0.0
  %3597 = vmatpush1.msra.mxu0 0.0
  %3598 = vmatprep.subr.mxu0 0.0
  %3599 = vmatpush1.msra.mxu0 0.0
  %3600 = vmatprep.mubr.f32.mxu0 0.0
  %v3601 = vand.u32 %v2871, 4294901760
  %v3602 = vsub.f32 %v2871, %v3601
  %3603 = vmatmul.mubr.f32.gmra.mrb[0].mxu0 %v3602
  %v3604 = vpop.f32.mrb[0].mxu0
  %v3605 = vadd.f32 %v3525, %v3604
  %v3606 = vpop.f32.mrb[0].mxu0
  %3607 = vdwg.mxu0
  %3608 = vmatprep.subr.mxu0 0.0
  %v3609 = vand.u32 %v1860, 4294901760
  %3610 = vmatpush1.msra.mxu0 %v3609
  %3611 = vmatprep.subr.mxu0 0.0
  %v3612 = vand.u32 %v1861, 4294901760
  %3613 = vmatpush1.msra.mxu0 %v3612
  %3614 = vmatprep.subr.mxu0 0.0
  %v3615 = vand.u32 %v1862, 4294901760
  %3616 = vmatpush1.msra.mxu0 %v3615
  %3617 = vmatprep.subr.mxu0 0.0
  %v3618 = vand.u32 %v1863, 4294901760
  %3619 = vmatpush1.msra.mxu0 %v3618
  %3620 = vmatprep.subr.mxu0 0.0
  %3621 = vmatpush1.msra.mxu0 0.0
  %3622 = vmatprep.subr.mxu0 0.0
  %3623 = vmatpush1.msra.mxu0 0.0
  %3624 = vmatprep.subr.mxu0 0.0
  %3625 = vmatpush1.msra.mxu0 0.0
  %3626 = vmatprep.subr.mxu0 0.0
  %3627 = vmatpush1.msra.mxu0 0.0
  %3628 = vmatprep.subr.mxu0 0.0
  %3629 = vmatpush1.msra.mxu0 0.0
  %3630 = vmatprep.subr.mxu0 0.0
  %3631 = vmatpush1.msra.mxu0 0.0
  %3632 = vmatprep.subr.mxu0 0.0
  %3633 = vmatpush1.msra.mxu0 0.0
  %3634 = vmatprep.subr.mxu0 0.0
  %3635 = vmatpush1.msra.mxu0 0.0
  %3636 = vmatprep.subr.mxu0 0.0
  %3637 = vmatpush1.msra.mxu0 0.0
  %3638 = vmatprep.subr.mxu0 0.0
  %3639 = vmatpush1.msra.mxu0 0.0
  %3640 = vmatprep.subr.mxu0 0.0
  %3641 = vmatpush1.msra.mxu0 0.0
  %3642 = vmatprep.subr.mxu0 0.0
  %3643 = vmatpush1.msra.mxu0 0.0
  %3644 = vmatprep.subr.mxu0 0.0
  %3645 = vmatpush1.msra.mxu0 0.0
  %3646 = vmatprep.subr.mxu0 0.0
  %3647 = vmatpush1.msra.mxu0 0.0
  %3648 = vmatprep.subr.mxu0 0.0
  %3649 = vmatpush1.msra.mxu0 0.0
  %3650 = vmatprep.subr.mxu0 0.0
  %3651 = vmatpush1.msra.mxu0 0.0
  %3652 = vmatprep.subr.mxu0 0.0
  %3653 = vmatpush1.msra.mxu0 0.0
  %3654 = vmatprep.subr.mxu0 0.0
  %3655 = vmatpush1.msra.mxu0 0.0
  %3656 = vmatprep.subr.mxu0 0.0
  %3657 = vmatpush1.msra.mxu0 0.0
  %3658 = vmatprep.subr.mxu0 0.0
  %3659 = vmatpush1.msra.mxu0 0.0
  %3660 = vmatprep.subr.mxu0 0.0
  %3661 = vmatpush1.msra.mxu0 0.0
  %3662 = vmatprep.subr.mxu0 0.0
  %3663 = vmatpush1.msra.mxu0 0.0
  %3664 = vmatprep.subr.mxu0 0.0
  %3665 = vmatpush1.msra.mxu0 0.0
  %3666 = vmatprep.subr.mxu0 0.0
  %3667 = vmatpush1.msra.mxu0 0.0
  %3668 = vmatprep.subr.mxu0 0.0
  %3669 = vmatpush1.msra.mxu0 0.0
  %3670 = vmatprep.subr.mxu0 0.0
  %3671 = vmatpush1.msra.mxu0 0.0
  %3672 = vmatprep.subr.mxu0 0.0
  %3673 = vmatpush1.msra.mxu0 0.0
  %3674 = vmatprep.subr.mxu0 0.0
  %3675 = vmatpush1.msra.mxu0 0.0
  %3676 = vmatprep.mubr.f32.mxu0 0.0
  %v3677 = vand.u32 %v2871, 4294901760
  %v3678 = vsub.f32 %v2871, %v3677
  %v3679 = vand.u32 %v3678, 4294901760
  %3680 = vmatmul.mubr.f32.gmra.mrb[0].mxu0 %v3679
  %v3681 = vpop.f32.mrb[0].mxu0
  %v3682 = vadd.f32 %v3605, %v3681
  %v3683 = vpop.f32.mrb[0].mxu0
  %3684 = vdwg.mxu0
  %3685 = vmatprep.subr.mxu0 0.0
  %v3686 = vand.u32 %v1860, 4294901760
  %v3687 = vsub.f32 %v1860, %v3686
  %v3688 = vand.u32 %v3687, 4294901760
  %3689 = vmatpush1.msra.mxu0 %v3688
  %3690 = vmatprep.subr.mxu0 0.0
  %v3691 = vand.u32 %v1861, 4294901760
  %v3692 = vsub.f32 %v1861, %v3691
  %v3693 = vand.u32 %v3692, 4294901760
  %3694 = vmatpush1.msra.mxu0 %v3693
  %3695 = vmatprep.subr.mxu0 0.0
  %v3696 = vand.u32 %v1862, 4294901760
  %v3697 = vsub.f32 %v1862, %v3696
  %v3698 = vand.u32 %v3697, 4294901760
  %3699 = vmatpush1.msra.mxu0 %v3698
  %3700 = vmatprep.subr.mxu0 0.0
  %v3701 = vand.u32 %v1863, 4294901760
  %v3702 = vsub.f32 %v1863, %v3701
  %v3703 = vand.u32 %v3702, 4294901760
  %3704 = vmatpush1.msra.mxu0 %v3703
  %3705 = vmatprep.subr.mxu0 0.0
  %3706 = vmatpush1.msra.mxu0 0.0
  %3707 = vmatprep.subr.mxu0 0.0
  %3708 = vmatpush1.msra.mxu0 0.0
  %3709 = vmatprep.subr.mxu0 0.0
  %3710 = vmatpush1.msra.mxu0 0.0
  %3711 = vmatprep.subr.mxu0 0.0
  %3712 = vmatpush1.msra.mxu0 0.0
  %3713 = vmatprep.subr.mxu0 0.0
  %3714 = vmatpush1.msra.mxu0 0.0
  %3715 = vmatprep.subr.mxu0 0.0
  %3716 = vmatpush1.msra.mxu0 0.0
  %3717 = vmatprep.subr.mxu0 0.0
  %3718 = vmatpush1.msra.mxu0 0.0
  %3719 = vmatprep.subr.mxu0 0.0
  %3720 = vmatpush1.msra.mxu0 0.0
  %3721 = vmatprep.subr.mxu0 0.0
  %3722 = vmatpush1.msra.mxu0 0.0
  %3723 = vmatprep.subr.mxu0 0.0
  %3724 = vmatpush1.msra.mxu0 0.0
  %3725 = vmatprep.subr.mxu0 0.0
  %3726 = vmatpush1.msra.mxu0 0.0
  %3727 = vmatprep.subr.mxu0 0.0
  %3728 = vmatpush1.msra.mxu0 0.0
  %3729 = vmatprep.subr.mxu0 0.0
  %3730 = vmatpush1.msra.mxu0 0.0
  %3731 = vmatprep.subr.mxu0 0.0
  %3732 = vmatpush1.msra.mxu0 0.0
  %3733 = vmatprep.subr.mxu0 0.0
  %3734 = vmatpush1.msra.mxu0 0.0
  %3735 = vmatprep.subr.mxu0 0.0
  %3736 = vmatpush1.msra.mxu0 0.0
  %3737 = vmatprep.subr.mxu0 0.0
  %3738 = vmatpush1.msra.mxu0 0.0
  %3739 = vmatprep.subr.mxu0 0.0
  %3740 = vmatpush1.msra.mxu0 0.0
  %3741 = vmatprep.subr.mxu0 0.0
  %3742 = vmatpush1.msra.mxu0 0.0
  %3743 = vmatprep.subr.mxu0 0.0
  %3744 = vmatpush1.msra.mxu0 0.0
  %3745 = vmatprep.subr.mxu0 0.0
  %3746 = vmatpush1.msra.mxu0 0.0
  %3747 = vmatprep.subr.mxu0 0.0
  %3748 = vmatpush1.msra.mxu0 0.0
  %3749 = vmatprep.subr.mxu0 0.0
  %3750 = vmatpush1.msra.mxu0 0.0
  %3751 = vmatprep.subr.mxu0 0.0
  %3752 = vmatpush1.msra.mxu0 0.0
  %3753 = vmatprep.subr.mxu0 0.0
  %3754 = vmatpush1.msra.mxu0 0.0
  %3755 = vmatprep.subr.mxu0 0.0
  %3756 = vmatpush1.msra.mxu0 0.0
  %3757 = vmatprep.subr.mxu0 0.0
  %3758 = vmatpush1.msra.mxu0 0.0
  %3759 = vmatprep.subr.mxu0 0.0
  %3760 = vmatpush1.msra.mxu0 0.0
  %3761 = vmatprep.mubr.f32.mxu0 0.0
  %v3762 = vand.u32 %v2871, 4294901760
  %3763 = vmatmul.mubr.f32.gmra.mrb[0].mxu0 %v3762
  %v3764 = vpop.f32.mrb[0].mxu0
  %v3765 = vadd.f32 %v3682, %v3764
  %v3766 = vpop.f32.mrb[0].mxu0
  %3767 = vdwg.mxu0
  %3768 = vmatprep.subr.mxu0 0.0
  %v3769 = vand.u32 %v1860, 4294901760
  %3770 = vmatpush1.msra.mxu0 %v3769
  %3771 = vmatprep.subr.mxu0 0.0
  %v3772 = vand.u32 %v1861, 4294901760
  %3773 = vmatpush1.msra.mxu0 %v3772
  %3774 = vmatprep.subr.mxu0 0.0
  %v3775 = vand.u32 %v1862, 4294901760
  %3776 = vmatpush1.msra.mxu0 %v3775
  %3777 = vmatprep.subr.mxu0 0.0
  %v3778 = vand.u32 %v1863, 4294901760
  %3779 = vmatpush1.msra.mxu0 %v3778
  %3780 = vmatprep.subr.mxu0 0.0
  %3781 = vmatpush1.msra.mxu0 0.0
  %3782 = vmatprep.subr.mxu0 0.0
  %3783 = vmatpush1.msra.mxu0 0.0
  %3784 = vmatprep.subr.mxu0 0.0
  %3785 = vmatpush1.msra.mxu0 0.0
  %3786 = vmatprep.subr.mxu0 0.0
  %3787 = vmatpush1.msra.mxu0 0.0
  %3788 = vmatprep.subr.mxu0 0.0
  %3789 = vmatpush1.msra.mxu0 0.0
  %3790 = vmatprep.subr.mxu0 0.0
  %3791 = vmatpush1.msra.mxu0 0.0
  %3792 = vmatprep.subr.mxu0 0.0
  %3793 = vmatpush1.msra.mxu0 0.0
  %3794 = vmatprep.subr.mxu0 0.0
  %3795 = vmatpush1.msra.mxu0 0.0
  %3796 = vmatprep.subr.mxu0 0.0
  %3797 = vmatpush1.msra.mxu0 0.0
  %3798 = vmatprep.subr.mxu0 0.0
  %3799 = vmatpush1.msra.mxu0 0.0
  %3800 = vmatprep.subr.mxu0 0.0
  %3801 = vmatpush1.msra.mxu0 0.0
  %3802 = vmatprep.subr.mxu0 0.0
  %3803 = vmatpush1.msra.mxu0 0.0
  %3804 = vmatprep.subr.mxu0 0.0
  %3805 = vmatpush1.msra.mxu0 0.0
  %3806 = vmatprep.subr.mxu0 0.0
  %3807 = vmatpush1.msra.mxu0 0.0
  %3808 = vmatprep.subr.mxu0 0.0
  %3809 = vmatpush1.msra.mxu0 0.0
  %3810 = vmatprep.subr.mxu0 0.0
  %3811 = vmatpush1.msra.mxu0 0.0
  %3812 = vmatprep.subr.mxu0 0.0
  %3813 = vmatpush1.msra.mxu0 0.0
  %3814 = vmatprep.subr.mxu0 0.0
  %3815 = vmatpush1.msra.mxu0 0.0
  %3816 = vmatprep.subr.mxu0 0.0
  %3817 = vmatpush1.msra.mxu0 0.0
  %3818 = vmatprep.subr.mxu0 0.0
  %3819 = vmatpush1.msra.mxu0 0.0
  %3820 = vmatprep.subr.mxu0 0.0
  %3821 = vmatpush1.msra.mxu0 0.0
  %3822 = vmatprep.subr.mxu0 0.0
  %3823 = vmatpush1.msra.mxu0 0.0
  %3824 = vmatprep.subr.mxu0 0.0
  %3825 = vmatpush1.msra.mxu0 0.0
  %3826 = vmatprep.subr.mxu0 0.0
  %3827 = vmatpush1.msra.mxu0 0.0
  %3828 = vmatprep.subr.mxu0 0.0
  %3829 = vmatpush1.msra.mxu0 0.0
  %3830 = vmatprep.subr.mxu0 0.0
  %3831 = vmatpush1.msra.mxu0 0.0
  %3832 = vmatprep.subr.mxu0 0.0
  %3833 = vmatpush1.msra.mxu0 0.0
  %3834 = vmatprep.subr.mxu0 0.0
  %3835 = vmatpush1.msra.mxu0 0.0
  %3836 = vmatprep.mubr.f32.mxu0 0.0
  %v3837 = vand.u32 %v2871, 4294901760
  %3838 = vmatmul.mubr.f32.gmra.mrb[0].mxu0 %v3837
  %v3839 = vpop.f32.mrb[0].mxu0
  %v3840 = vadd.f32 %v3765, %v3839
  %v3841 = vpop.f32.mrb[0].mxu0
  %3842 = vdwg.mxu0
  %v3843 = vadd.f32 %v653, %v3355
  %v3844 = vxor.u32 %v3843, 2147483648
  %v3845 = vmul.f32 %v3844, 1.442695
  %v3846 = vpow.pop %v3845
  %v3847 = vadd.f32 %v3846, 1.0
  %v3848 = vrcp.pop %v3847
  %v3849 = vmul.f32 1.0, %v3848
  %3851 = vrot.lane.b32.xlu0 %v3355, 96
  %v3852 = vpop.permute.xlu0 %3851
  %v3854 = vadd.f32 %v1247, %v3852
  %v3855 = vxor.u32 %v3854, 2147483648
  %v3856 = vmul.f32 %v3855, 1.442695
  %v3857 = vpow.pop %v3856
  %v3858 = vadd.f32 %v3857, 1.0
  %v3859 = vrcp.pop %v3858
  %v3860 = vmul.f32 1.0, %v3859
  %v3861 = vmul.f32 %v3849, %v3840
  %v3862 = vadd.f32 %v1841, %v3861
  %v3863 = vtanh.pop %v3862
  %v3864 = vsub.f32 %v2869, %v3863
  %v3865 = vmul.f32 %v3860, %v3864
  %v3866 = vadd.f32 %v3863, %v3865
  %v3868 = vsel %vm1866, %v3866, 0
  %3870 = vmatprep.subr.mxu0 0.0
  %v3871 = vand.u32 %v1856, 4294901760
  %3872 = vmatpush1.msra.mxu0 %v3871
  %3873 = vmatprep.subr.mxu0 0.0
  %v3874 = vand.u32 %v1857, 4294901760
  %3875 = vmatpush1.msra.mxu0 %v3874
  %3876 = vmatprep.subr.mxu0 0.0
  %v3877 = vand.u32 %v1858, 4294901760
  %3878 = vmatpush1.msra.mxu0 %v3877
  %3879 = vmatprep.subr.mxu0 0.0
  %v3880 = vand.u32 %v1859, 4294901760
  %3881 = vmatpush1.msra.mxu0 %v3880
  %3882 = vmatprep.subr.mxu0 0.0
  %3883 = vmatpush1.msra.mxu0 0.0
  %3884 = vmatprep.subr.mxu0 0.0
  %3885 = vmatpush1.msra.mxu0 0.0
  %3886 = vmatprep.subr.mxu0 0.0
  %3887 = vmatpush1.msra.mxu0 0.0
  %3888 = vmatprep.subr.mxu0 0.0
  %3889 = vmatpush1.msra.mxu0 0.0
  %3890 = vmatprep.subr.mxu0 0.0
  %3891 = vmatpush1.msra.mxu0 0.0
  %3892 = vmatprep.subr.mxu0 0.0
  %3893 = vmatpush1.msra.mxu0 0.0
  %3894 = vmatprep.subr.mxu0 0.0
  %3895 = vmatpush1.msra.mxu0 0.0
  %3896 = vmatprep.subr.mxu0 0.0
  %3897 = vmatpush1.msra.mxu0 0.0
  %3898 = vmatprep.subr.mxu0 0.0
  %3899 = vmatpush1.msra.mxu0 0.0
  %3900 = vmatprep.subr.mxu0 0.0
  %3901 = vmatpush1.msra.mxu0 0.0
  %3902 = vmatprep.subr.mxu0 0.0
  %3903 = vmatpush1.msra.mxu0 0.0
  %3904 = vmatprep.subr.mxu0 0.0
  %3905 = vmatpush1.msra.mxu0 0.0
  %3906 = vmatprep.subr.mxu0 0.0
  %3907 = vmatpush1.msra.mxu0 0.0
  %3908 = vmatprep.subr.mxu0 0.0
  %3909 = vmatpush1.msra.mxu0 0.0
  %3910 = vmatprep.subr.mxu0 0.0
  %3911 = vmatpush1.msra.mxu0 0.0
  %3912 = vmatprep.subr.mxu0 0.0
  %3913 = vmatpush1.msra.mxu0 0.0
  %3914 = vmatprep.subr.mxu0 0.0
  %3915 = vmatpush1.msra.mxu0 0.0
  %3916 = vmatprep.subr.mxu0 0.0
  %3917 = vmatpush1.msra.mxu0 0.0
  %3918 = vmatprep.subr.mxu0 0.0
  %3919 = vmatpush1.msra.mxu0 0.0
  %3920 = vmatprep.subr.mxu0 0.0
  %3921 = vmatpush1.msra.mxu0 0.0
  %3922 = vmatprep.subr.mxu0 0.0
  %3923 = vmatpush1.msra.mxu0 0.0
  %3924 = vmatprep.subr.mxu0 0.0
  %3925 = vmatpush1.msra.mxu0 0.0
  %3926 = vmatprep.subr.mxu0 0.0
  %3927 = vmatpush1.msra.mxu0 0.0
  %3928 = vmatprep.subr.mxu0 0.0
  %3929 = vmatpush1.msra.mxu0 0.0
  %3930 = vmatprep.subr.mxu0 0.0
  %3931 = vmatpush1.msra.mxu0 0.0
  %3932 = vmatprep.subr.mxu0 0.0
  %3933 = vmatpush1.msra.mxu0 0.0
  %3934 = vmatprep.subr.mxu0 0.0
  %3935 = vmatpush1.msra.mxu0 0.0
  %3936 = vmatprep.subr.mxu0 0.0
  %3937 = vmatpush1.msra.mxu0 0.0
  %3938 = vmatprep.mubr.f32.mxu0 0.0
  %v3939 = vand.u32 %v3868, 4294901760
  %v3940 = vsub.f32 %v3868, %v3939
  %v3941 = vand.u32 %v3940, 4294901760
  %v3942 = vsub.f32 %v3940, %v3941
  %v3943 = vand.u32 %v3942, 4294901760
  %3944 = vmatmul.mubr.f32.gmra.mrb[0].mxu0 %v3943
  %v3945 = vpop.f32.mrb[0].mxu0
  %v3946 = vadd.f32 0.0, %v3945
  %v3947 = vpop.f32.mrb[0].mxu0
  %3948 = vdwg.mxu0
  %3949 = vmatprep.subr.mxu0 0.0
  %v3950 = vand.u32 %v1856, 4294901760
  %v3951 = vsub.f32 %v1856, %v3950
  %v3952 = vand.u32 %v3951, 4294901760
  %v3953 = vsub.f32 %v3951, %v3952
  %v3954 = vand.u32 %v3953, 4294901760
  %3955 = vmatpush1.msra.mxu0 %v3954
  %3956 = vmatprep.subr.mxu0 0.0
  %v3957 = vand.u32 %v1857, 4294901760
  %v3958 = vsub.f32 %v1857, %v3957
  %v3959 = vand.u32 %v3958, 4294901760
  %v3960 = vsub.f32 %v3958, %v3959
  %v3961 = vand.u32 %v3960, 4294901760
  %3962 = vmatpush1.msra.mxu0 %v3961
  %3963 = vmatprep.subr.mxu0 0.0
  %v3964 = vand.u32 %v1858, 4294901760
  %v3965 = vsub.f32 %v1858, %v3964
  %v3966 = vand.u32 %v3965, 4294901760
  %v3967 = vsub.f32 %v3965, %v3966
  %v3968 = vand.u32 %v3967, 4294901760
  %3969 = vmatpush1.msra.mxu0 %v3968
  %3970 = vmatprep.subr.mxu0 0.0
  %v3971 = vand.u32 %v1859, 4294901760
  %v3972 = vsub.f32 %v1859, %v3971
  %v3973 = vand.u32 %v3972, 4294901760
  %v3974 = vsub.f32 %v3972, %v3973
  %v3975 = vand.u32 %v3974, 4294901760
  %3976 = vmatpush1.msra.mxu0 %v3975
  %3977 = vmatprep.subr.mxu0 0.0
  %3978 = vmatpush1.msra.mxu0 0.0
  %3979 = vmatprep.subr.mxu0 0.0
  %3980 = vmatpush1.msra.mxu0 0.0
  %3981 = vmatprep.subr.mxu0 0.0
  %3982 = vmatpush1.msra.mxu0 0.0
  %3983 = vmatprep.subr.mxu0 0.0
  %3984 = vmatpush1.msra.mxu0 0.0
  %3985 = vmatprep.subr.mxu0 0.0
  %3986 = vmatpush1.msra.mxu0 0.0
  %3987 = vmatprep.subr.mxu0 0.0
  %3988 = vmatpush1.msra.mxu0 0.0
  %3989 = vmatprep.subr.mxu0 0.0
  %3990 = vmatpush1.msra.mxu0 0.0
  %3991 = vmatprep.subr.mxu0 0.0
  %3992 = vmatpush1.msra.mxu0 0.0
  %3993 = vmatprep.subr.mxu0 0.0
  %3994 = vmatpush1.msra.mxu0 0.0
  %3995 = vmatprep.subr.mxu0 0.0
  %3996 = vmatpush1.msra.mxu0 0.0
  %3997 = vmatprep.subr.mxu0 0.0
  %3998 = vmatpush1.msra.mxu0 0.0
  %3999 = vmatprep.subr.mxu0 0.0
  %4000 = vmatpush1.msra.mxu0 0.0
  %4001 = vmatprep.subr.mxu0 0.0
  %4002 = vmatpush1.msra.mxu0 0.0
  %4003 = vmatprep.subr.mxu0 0.0
  %4004 = vmatpush1.msra.mxu0 0.0
  %4005 = vmatprep.subr.mxu0 0.0
  %4006 = vmatpush1.msra.mxu0 0.0
  %4007 = vmatprep.subr.mxu0 0.0
  %4008 = vmatpush1.msra.mxu0 0.0
  %4009 = vmatprep.subr.mxu0 0.0
  %4010 = vmatpush1.msra.mxu0 0.0
  %4011 = vmatprep.subr.mxu0 0.0
  %4012 = vmatpush1.msra.mxu0 0.0
  %4013 = vmatprep.subr.mxu0 0.0
  %4014 = vmatpush1.msra.mxu0 0.0
  %4015 = vmatprep.subr.mxu0 0.0
  %4016 = vmatpush1.msra.mxu0 0.0
  %4017 = vmatprep.subr.mxu0 0.0
  %4018 = vmatpush1.msra.mxu0 0.0
  %4019 = vmatprep.subr.mxu0 0.0
  %4020 = vmatpush1.msra.mxu0 0.0
  %4021 = vmatprep.subr.mxu0 0.0
  %4022 = vmatpush1.msra.mxu0 0.0
  %4023 = vmatprep.subr.mxu0 0.0
  %4024 = vmatpush1.msra.mxu0 0.0
  %4025 = vmatprep.subr.mxu0 0.0
  %4026 = vmatpush1.msra.mxu0 0.0
  %4027 = vmatprep.subr.mxu0 0.0
  %4028 = vmatpush1.msra.mxu0 0.0
  %4029 = vmatprep.subr.mxu0 0.0
  %4030 = vmatpush1.msra.mxu0 0.0
  %4031 = vmatprep.subr.mxu0 0.0
  %4032 = vmatpush1.msra.mxu0 0.0
  %4033 = vmatprep.mubr.f32.mxu0 0.0
  %v4034 = vand.u32 %v3868, 4294901760
  %4035 = vmatmul.mubr.f32.gmra.mrb[0].mxu0 %v4034
  %v4036 = vpop.f32.mrb[0].mxu0
  %v4037 = vadd.f32 %v3946, %v4036
  %v4038 = vpop.f32.mrb[0].mxu0
  %4039 = vdwg.mxu0
  %4040 = vmatprep.subr.mxu0 0.0
  %v4041 = vand.u32 %v1856, 4294901760
  %v4042 = vsub.f32 %v1856, %v4041
  %4043 = vmatpush1.msra.mxu0 %v4042
  %4044 = vmatprep.subr.mxu0 0.0
  %v4045 = vand.u32 %v1857, 4294901760
  %v4046 = vsub.f32 %v1857, %v4045
  %4047 = vmatpush1.msra.mxu0 %v4046
  %4048 = vmatprep.subr.mxu0 0.0
  %v4049 = vand.u32 %v1858, 4294901760
  %v4050 = vsub.f32 %v1858, %v4049
  %4051 = vmatpush1.msra.mxu0 %v4050
  %4052 = vmatprep.subr.mxu0 0.0
  %v4053 = vand.u32 %v1859, 4294901760
  %v4054 = vsub.f32 %v1859, %v4053
  %4055 = vmatpush1.msra.mxu0 %v4054
  %4056 = vmatprep.subr.mxu0 0.0
  %4057 = vmatpush1.msra.mxu0 0.0
  %4058 = vmatprep.subr.mxu0 0.0
  %4059 = vmatpush1.msra.mxu0 0.0
  %4060 = vmatprep.subr.mxu0 0.0
  %4061 = vmatpush1.msra.mxu0 0.0
  %4062 = vmatprep.subr.mxu0 0.0
  %4063 = vmatpush1.msra.mxu0 0.0
  %4064 = vmatprep.subr.mxu0 0.0
  %4065 = vmatpush1.msra.mxu0 0.0
  %4066 = vmatprep.subr.mxu0 0.0
  %4067 = vmatpush1.msra.mxu0 0.0
  %4068 = vmatprep.subr.mxu0 0.0
  %4069 = vmatpush1.msra.mxu0 0.0
  %4070 = vmatprep.subr.mxu0 0.0
  %4071 = vmatpush1.msra.mxu0 0.0
  %4072 = vmatprep.subr.mxu0 0.0
  %4073 = vmatpush1.msra.mxu0 0.0
  %4074 = vmatprep.subr.mxu0 0.0
  %4075 = vmatpush1.msra.mxu0 0.0
  %4076 = vmatprep.subr.mxu0 0.0
  %4077 = vmatpush1.msra.mxu0 0.0
  %4078 = vmatprep.subr.mxu0 0.0
  %4079 = vmatpush1.msra.mxu0 0.0
  %4080 = vmatprep.subr.mxu0 0.0
  %4081 = vmatpush1.msra.mxu0 0.0
  %4082 = vmatprep.subr.mxu0 0.0
  %4083 = vmatpush1.msra.mxu0 0.0
  %4084 = vmatprep.subr.mxu0 0.0
  %4085 = vmatpush1.msra.mxu0 0.0
  %4086 = vmatprep.subr.mxu0 0.0
  %4087 = vmatpush1.msra.mxu0 0.0
  %4088 = vmatprep.subr.mxu0 0.0
  %4089 = vmatpush1.msra.mxu0 0.0
  %4090 = vmatprep.subr.mxu0 0.0
  %4091 = vmatpush1.msra.mxu0 0.0
  %4092 = vmatprep.subr.mxu0 0.0
  %4093 = vmatpush1.msra.mxu0 0.0
  %4094 = vmatprep.subr.mxu0 0.0
  %4095 = vmatpush1.msra.mxu0 0.0
  %4096 = vmatprep.subr.mxu0 0.0
  %4097 = vmatpush1.msra.mxu0 0.0
  %4098 = vmatprep.subr.mxu0 0.0
  %4099 = vmatpush1.msra.mxu0 0.0
  %4100 = vmatprep.subr.mxu0 0.0
  %4101 = vmatpush1.msra.mxu0 0.0
  %4102 = vmatprep.subr.mxu0 0.0
  %4103 = vmatpush1.msra.mxu0 0.0
  %4104 = vmatprep.subr.mxu0 0.0
  %4105 = vmatpush1.msra.mxu0 0.0
  %4106 = vmatprep.subr.mxu0 0.0
  %4107 = vmatpush1.msra.mxu0 0.0
  %4108 = vmatprep.subr.mxu0 0.0
  %4109 = vmatpush1.msra.mxu0 0.0
  %4110 = vmatprep.subr.mxu0 0.0
  %4111 = vmatpush1.msra.mxu0 0.0
  %4112 = vmatprep.mubr.f32.mxu0 0.0
  %v4113 = vand.u32 %v3868, 4294901760
  %v4114 = vsub.f32 %v3868, %v4113
  %4115 = vmatmul.mubr.f32.gmra.mrb[0].mxu0 %v4114
  %v4116 = vpop.f32.mrb[0].mxu0
  %v4117 = vadd.f32 %v4037, %v4116
  %v4118 = vpop.f32.mrb[0].mxu0
  %4119 = vdwg.mxu0
  %4120 = vmatprep.subr.mxu0 0.0
  %v4121 = vand.u32 %v1856, 4294901760
  %4122 = vmatpush1.msra.mxu0 %v4121
  %4123 = vmatprep.subr.mxu0 0.0
  %v4124 = vand.u32 %v1857, 4294901760
  %4125 = vmatpush1.msra.mxu0 %v4124
  %4126 = vmatprep.subr.mxu0 0.0
  %v4127 = vand.u32 %v1858, 4294901760
  %4128 = vmatpush1.msra.mxu0 %v4127
  %4129 = vmatprep.subr.mxu0 0.0
  %v4130 = vand.u32 %v1859, 4294901760
  %4131 = vmatpush1.msra.mxu0 %v4130
  %4132 = vmatprep.subr.mxu0 0.0
  %4133 = vmatpush1.msra.mxu0 0.0
  %4134 = vmatprep.subr.mxu0 0.0
  %4135 = vmatpush1.msra.mxu0 0.0
  %4136 = vmatprep.subr.mxu0 0.0
  %4137 = vmatpush1.msra.mxu0 0.0
  %4138 = vmatprep.subr.mxu0 0.0
  %4139 = vmatpush1.msra.mxu0 0.0
  %4140 = vmatprep.subr.mxu0 0.0
  %4141 = vmatpush1.msra.mxu0 0.0
  %4142 = vmatprep.subr.mxu0 0.0
  %4143 = vmatpush1.msra.mxu0 0.0
  %4144 = vmatprep.subr.mxu0 0.0
  %4145 = vmatpush1.msra.mxu0 0.0
  %4146 = vmatprep.subr.mxu0 0.0
  %4147 = vmatpush1.msra.mxu0 0.0
  %4148 = vmatprep.subr.mxu0 0.0
  %4149 = vmatpush1.msra.mxu0 0.0
  %4150 = vmatprep.subr.mxu0 0.0
  %4151 = vmatpush1.msra.mxu0 0.0
  %4152 = vmatprep.subr.mxu0 0.0
  %4153 = vmatpush1.msra.mxu0 0.0
  %4154 = vmatprep.subr.mxu0 0.0
  %4155 = vmatpush1.msra.mxu0 0.0
  %4156 = vmatprep.subr.mxu0 0.0
  %4157 = vmatpush1.msra.mxu0 0.0
  %4158 = vmatprep.subr.mxu0 0.0
  %4159 = vmatpush1.msra.mxu0 0.0
  %4160 = vmatprep.subr.mxu0 0.0
  %4161 = vmatpush1.msra.mxu0 0.0
  %4162 = vmatprep.subr.mxu0 0.0
  %4163 = vmatpush1.msra.mxu0 0.0
  %4164 = vmatprep.subr.mxu0 0.0
  %4165 = vmatpush1.msra.mxu0 0.0
  %4166 = vmatprep.subr.mxu0 0.0
  %4167 = vmatpush1.msra.mxu0 0.0
  %4168 = vmatprep.subr.mxu0 0.0
  %4169 = vmatpush1.msra.mxu0 0.0
  %4170 = vmatprep.subr.mxu0 0.0
  %4171 = vmatpush1.msra.mxu0 0.0
  %4172 = vmatprep.subr.mxu0 0.0
  %4173 = vmatpush1.msra.mxu0 0.0
  %4174 = vmatprep.subr.mxu0 0.0
  %4175 = vmatpush1.msra.mxu0 0.0
  %4176 = vmatprep.subr.mxu0 0.0
  %4177 = vmatpush1.msra.mxu0 0.0
  %4178 = vmatprep.subr.mxu0 0.0
  %4179 = vmatpush1.msra.mxu0 0.0
  %4180 = vmatprep.subr.mxu0 0.0
  %4181 = vmatpush1.msra.mxu0 0.0
  %4182 = vmatprep.subr.mxu0 0.0
  %4183 = vmatpush1.msra.mxu0 0.0
  %4184 = vmatprep.subr.mxu0 0.0
  %4185 = vmatpush1.msra.mxu0 0.0
  %4186 = vmatprep.subr.mxu0 0.0
  %4187 = vmatpush1.msra.mxu0 0.0
  %4188 = vmatprep.mubr.f32.mxu0 0.0
  %v4189 = vand.u32 %v3868, 4294901760
  %v4190 = vsub.f32 %v3868, %v4189
  %v4191 = vand.u32 %v4190, 4294901760
  %4192 = vmatmul.mubr.f32.gmra.mrb[0].mxu0 %v4191
  %v4193 = vpop.f32.mrb[0].mxu0
  %v4194 = vadd.f32 %v4117, %v4193
  %v4195 = vpop.f32.mrb[0].mxu0
  %4196 = vdwg.mxu0
  %4197 = vmatprep.subr.mxu0 0.0
  %v4198 = vand.u32 %v1856, 4294901760
  %v4199 = vsub.f32 %v1856, %v4198
  %v4200 = vand.u32 %v4199, 4294901760
  %4201 = vmatpush1.msra.mxu0 %v4200
  %4202 = vmatprep.subr.mxu0 0.0
  %v4203 = vand.u32 %v1857, 4294901760
  %v4204 = vsub.f32 %v1857, %v4203
  %v4205 = vand.u32 %v4204, 4294901760
  %4206 = vmatpush1.msra.mxu0 %v4205
  %4207 = vmatprep.subr.mxu0 0.0
  %v4208 = vand.u32 %v1858, 4294901760
  %v4209 = vsub.f32 %v1858, %v4208
  %v4210 = vand.u32 %v4209, 4294901760
  %4211 = vmatpush1.msra.mxu0 %v4210
  %4212 = vmatprep.subr.mxu0 0.0
  %v4213 = vand.u32 %v1859, 4294901760
  %v4214 = vsub.f32 %v1859, %v4213
  %v4215 = vand.u32 %v4214, 4294901760
  %4216 = vmatpush1.msra.mxu0 %v4215
  %4217 = vmatprep.subr.mxu0 0.0
  %4218 = vmatpush1.msra.mxu0 0.0
  %4219 = vmatprep.subr.mxu0 0.0
  %4220 = vmatpush1.msra.mxu0 0.0
  %4221 = vmatprep.subr.mxu0 0.0
  %4222 = vmatpush1.msra.mxu0 0.0
  %4223 = vmatprep.subr.mxu0 0.0
  %4224 = vmatpush1.msra.mxu0 0.0
  %4225 = vmatprep.subr.mxu0 0.0
  %4226 = vmatpush1.msra.mxu0 0.0
  %4227 = vmatprep.subr.mxu0 0.0
  %4228 = vmatpush1.msra.mxu0 0.0
  %4229 = vmatprep.subr.mxu0 0.0
  %4230 = vmatpush1.msra.mxu0 0.0
  %4231 = vmatprep.subr.mxu0 0.0
  %4232 = vmatpush1.msra.mxu0 0.0
  %4233 = vmatprep.subr.mxu0 0.0
  %4234 = vmatpush1.msra.mxu0 0.0
  %4235 = vmatprep.subr.mxu0 0.0
  %4236 = vmatpush1.msra.mxu0 0.0
  %4237 = vmatprep.subr.mxu0 0.0
  %4238 = vmatpush1.msra.mxu0 0.0
  %4239 = vmatprep.subr.mxu0 0.0
  %4240 = vmatpush1.msra.mxu0 0.0
  %4241 = vmatprep.subr.mxu0 0.0
  %4242 = vmatpush1.msra.mxu0 0.0
  %4243 = vmatprep.subr.mxu0 0.0
  %4244 = vmatpush1.msra.mxu0 0.0
  %4245 = vmatprep.subr.mxu0 0.0
  %4246 = vmatpush1.msra.mxu0 0.0
  %4247 = vmatprep.subr.mxu0 0.0
  %4248 = vmatpush1.msra.mxu0 0.0
  %4249 = vmatprep.subr.mxu0 0.0
  %4250 = vmatpush1.msra.mxu0 0.0
  %4251 = vmatprep.subr.mxu0 0.0
  %4252 = vmatpush1.msra.mxu0 0.0
  %4253 = vmatprep.subr.mxu0 0.0
  %4254 = vmatpush1.msra.mxu0 0.0
  %4255 = vmatprep.subr.mxu0 0.0
  %4256 = vmatpush1.msra.mxu0 0.0
  %4257 = vmatprep.subr.mxu0 0.0
  %4258 = vmatpush1.msra.mxu0 0.0
  %4259 = vmatprep.subr.mxu0 0.0
  %4260 = vmatpush1.msra.mxu0 0.0
  %4261 = vmatprep.subr.mxu0 0.0
  %4262 = vmatpush1.msra.mxu0 0.0
  %4263 = vmatprep.subr.mxu0 0.0
  %4264 = vmatpush1.msra.mxu0 0.0
  %4265 = vmatprep.subr.mxu0 0.0
  %4266 = vmatpush1.msra.mxu0 0.0
  %4267 = vmatprep.subr.mxu0 0.0
  %4268 = vmatpush1.msra.mxu0 0.0
  %4269 = vmatprep.subr.mxu0 0.0
  %4270 = vmatpush1.msra.mxu0 0.0
  %4271 = vmatprep.subr.mxu0 0.0
  %4272 = vmatpush1.msra.mxu0 0.0
  %4273 = vmatprep.mubr.f32.mxu0 0.0
  %v4274 = vand.u32 %v3868, 4294901760
  %4275 = vmatmul.mubr.f32.gmra.mrb[0].mxu0 %v4274
  %v4276 = vpop.f32.mrb[0].mxu0
  %v4277 = vadd.f32 %v4194, %v4276
  %v4278 = vpop.f32.mrb[0].mxu0
  %4279 = vdwg.mxu0
  %4280 = vmatprep.subr.mxu0 0.0
  %v4281 = vand.u32 %v1856, 4294901760
  %4282 = vmatpush1.msra.mxu0 %v4281
  %4283 = vmatprep.subr.mxu0 0.0
  %v4284 = vand.u32 %v1857, 4294901760
  %4285 = vmatpush1.msra.mxu0 %v4284
  %4286 = vmatprep.subr.mxu0 0.0
  %v4287 = vand.u32 %v1858, 4294901760
  %4288 = vmatpush1.msra.mxu0 %v4287
  %4289 = vmatprep.subr.mxu0 0.0
  %v4290 = vand.u32 %v1859, 4294901760
  %4291 = vmatpush1.msra.mxu0 %v4290
  %4292 = vmatprep.subr.mxu0 0.0
  %4293 = vmatpush1.msra.mxu0 0.0
  %4294 = vmatprep.subr.mxu0 0.0
  %4295 = vmatpush1.msra.mxu0 0.0
  %4296 = vmatprep.subr.mxu0 0.0
  %4297 = vmatpush1.msra.mxu0 0.0
  %4298 = vmatprep.subr.mxu0 0.0
  %4299 = vmatpush1.msra.mxu0 0.0
  %4300 = vmatprep.subr.mxu0 0.0
  %4301 = vmatpush1.msra.mxu0 0.0
  %4302 = vmatprep.subr.mxu0 0.0
  %4303 = vmatpush1.msra.mxu0 0.0
  %4304 = vmatprep.subr.mxu0 0.0
  %4305 = vmatpush1.msra.mxu0 0.0
  %4306 = vmatprep.subr.mxu0 0.0
  %4307 = vmatpush1.msra.mxu0 0.0
  %4308 = vmatprep.subr.mxu0 0.0
  %4309 = vmatpush1.msra.mxu0 0.0
  %4310 = vmatprep.subr.mxu0 0.0
  %4311 = vmatpush1.msra.mxu0 0.0
  %4312 = vmatprep.subr.mxu0 0.0
  %4313 = vmatpush1.msra.mxu0 0.0
  %4314 = vmatprep.subr.mxu0 0.0
  %4315 = vmatpush1.msra.mxu0 0.0
  %4316 = vmatprep.subr.mxu0 0.0
  %4317 = vmatpush1.msra.mxu0 0.0
  %4318 = vmatprep.subr.mxu0 0.0
  %4319 = vmatpush1.msra.mxu0 0.0
  %4320 = vmatprep.subr.mxu0 0.0
  %4321 = vmatpush1.msra.mxu0 0.0
  %4322 = vmatprep.subr.mxu0 0.0
  %4323 = vmatpush1.msra.mxu0 0.0
  %4324 = vmatprep.subr.mxu0 0.0
  %4325 = vmatpush1.msra.mxu0 0.0
  %4326 = vmatprep.subr.mxu0 0.0
  %4327 = vmatpush1.msra.mxu0 0.0
  %4328 = vmatprep.subr.mxu0 0.0
  %4329 = vmatpush1.msra.mxu0 0.0
  %4330 = vmatprep.subr.mxu0 0.0
  %4331 = vmatpush1.msra.mxu0 0.0
  %4332 = vmatprep.subr.mxu0 0.0
  %4333 = vmatpush1.msra.mxu0 0.0
  %4334 = vmatprep.subr.mxu0 0.0
  %4335 = vmatpush1.msra.mxu0 0.0
  %4336 = vmatprep.subr.mxu0 0.0
  %4337 = vmatpush1.msra.mxu0 0.0
  %4338 = vmatprep.subr.mxu0 0.0
  %4339 = vmatpush1.msra.mxu0 0.0
  %4340 = vmatprep.subr.mxu0 0.0
  %4341 = vmatpush1.msra.mxu0 0.0
  %4342 = vmatprep.subr.mxu0 0.0
  %4343 = vmatpush1.msra.mxu0 0.0
  %4344 = vmatprep.subr.mxu0 0.0
  %4345 = vmatpush1.msra.mxu0 0.0
  %4346 = vmatprep.subr.mxu0 0.0
  %4347 = vmatpush1.msra.mxu0 0.0
  %4348 = vmatprep.mubr.f32.mxu0 0.0
  %v4349 = vand.u32 %v3868, 4294901760
  %4350 = vmatmul.mubr.f32.gmra.mrb[0].mxu0 %v4349
  %v4351 = vpop.f32.mrb[0].mxu0
  %v4352 = vadd.f32 %v4277, %v4351
  %v4353 = vpop.f32.mrb[0].mxu0
  %4354 = vdwg.mxu0
  %4355 = vmatprep.subr.mxu0 0.0
  %v4356 = vand.u32 %v1860, 4294901760
  %4357 = vmatpush1.msra.mxu0 %v4356
  %4358 = vmatprep.subr.mxu0 0.0
  %v4359 = vand.u32 %v1861, 4294901760
  %4360 = vmatpush1.msra.mxu0 %v4359
  %4361 = vmatprep.subr.mxu0 0.0
  %v4362 = vand.u32 %v1862, 4294901760
  %4363 = vmatpush1.msra.mxu0 %v4362
  %4364 = vmatprep.subr.mxu0 0.0
  %v4365 = vand.u32 %v1863, 4294901760
  %4366 = vmatpush1.msra.mxu0 %v4365
  %4367 = vmatprep.subr.mxu0 0.0
  %4368 = vmatpush1.msra.mxu0 0.0
  %4369 = vmatprep.subr.mxu0 0.0
  %4370 = vmatpush1.msra.mxu0 0.0
  %4371 = vmatprep.subr.mxu0 0.0
  %4372 = vmatpush1.msra.mxu0 0.0
  %4373 = vmatprep.subr.mxu0 0.0
  %4374 = vmatpush1.msra.mxu0 0.0
  %4375 = vmatprep.subr.mxu0 0.0
  %4376 = vmatpush1.msra.mxu0 0.0
  %4377 = vmatprep.subr.mxu0 0.0
  %4378 = vmatpush1.msra.mxu0 0.0
  %4379 = vmatprep.subr.mxu0 0.0
  %4380 = vmatpush1.msra.mxu0 0.0
  %4381 = vmatprep.subr.mxu0 0.0
  %4382 = vmatpush1.msra.mxu0 0.0
  %4383 = vmatprep.subr.mxu0 0.0
  %4384 = vmatpush1.msra.mxu0 0.0
  %4385 = vmatprep.subr.mxu0 0.0
  %4386 = vmatpush1.msra.mxu0 0.0
  %4387 = vmatprep.subr.mxu0 0.0
  %4388 = vmatpush1.msra.mxu0 0.0
  %4389 = vmatprep.subr.mxu0 0.0
  %4390 = vmatpush1.msra.mxu0 0.0
  %4391 = vmatprep.subr.mxu0 0.0
  %4392 = vmatpush1.msra.mxu0 0.0
  %4393 = vmatprep.subr.mxu0 0.0
  %4394 = vmatpush1.msra.mxu0 0.0
  %4395 = vmatprep.subr.mxu0 0.0
  %4396 = vmatpush1.msra.mxu0 0.0
  %4397 = vmatprep.subr.mxu0 0.0
  %4398 = vmatpush1.msra.mxu0 0.0
  %4399 = vmatprep.subr.mxu0 0.0
  %4400 = vmatpush1.msra.mxu0 0.0
  %4401 = vmatprep.subr.mxu0 0.0
  %4402 = vmatpush1.msra.mxu0 0.0
  %4403 = vmatprep.subr.mxu0 0.0
  %4404 = vmatpush1.msra.mxu0 0.0
  %4405 = vmatprep.subr.mxu0 0.0
  %4406 = vmatpush1.msra.mxu0 0.0
  %4407 = vmatprep.subr.mxu0 0.0
  %4408 = vmatpush1.msra.mxu0 0.0
  %4409 = vmatprep.subr.mxu0 0.0
  %4410 = vmatpush1.msra.mxu0 0.0
  %4411 = vmatprep.subr.mxu0 0.0
  %4412 = vmatpush1.msra.mxu0 0.0
  %4413 = vmatprep.subr.mxu0 0.0
  %4414 = vmatpush1.msra.mxu0 0.0
  %4415 = vmatprep.subr.mxu0 0.0
  %4416 = vmatpush1.msra.mxu0 0.0
  %4417 = vmatprep.subr.mxu0 0.0
  %4418 = vmatpush1.msra.mxu0 0.0
  %4419 = vmatprep.subr.mxu0 0.0
  %4420 = vmatpush1.msra.mxu0 0.0
  %4421 = vmatprep.subr.mxu0 0.0
  %4422 = vmatpush1.msra.mxu0 0.0
  %4423 = vmatprep.mubr.f32.mxu0 0.0
  %v4424 = vand.u32 %v3868, 4294901760
  %v4425 = vsub.f32 %v3868, %v4424
  %v4426 = vand.u32 %v4425, 4294901760
  %v4427 = vsub.f32 %v4425, %v4426
  %v4428 = vand.u32 %v4427, 4294901760
  %4429 = vmatmul.mubr.f32.gmra.mrb[0].mxu0 %v4428
  %v4430 = vpop.f32.mrb[0].mxu0
  %v4431 = vadd.f32 %v2359, %v4430
  %v4432 = vpop.f32.mrb[0].mxu0
  %4433 = vdwg.mxu0
  %4434 = vmatprep.subr.mxu0 0.0
  %v4435 = vand.u32 %v1860, 4294901760
  %v4436 = vsub.f32 %v1860, %v4435
  %v4437 = vand.u32 %v4436, 4294901760
  %v4438 = vsub.f32 %v4436, %v4437
  %v4439 = vand.u32 %v4438, 4294901760
  %4440 = vmatpush1.msra.mxu0 %v4439
  %4441 = vmatprep.subr.mxu0 0.0
  %v4442 = vand.u32 %v1861, 4294901760
  %v4443 = vsub.f32 %v1861, %v4442
  %v4444 = vand.u32 %v4443, 4294901760
  %v4445 = vsub.f32 %v4443, %v4444
  %v4446 = vand.u32 %v4445, 4294901760
  %4447 = vmatpush1.msra.mxu0 %v4446
  %4448 = vmatprep.subr.mxu0 0.0
  %v4449 = vand.u32 %v1862, 4294901760
  %v4450 = vsub.f32 %v1862, %v4449
  %v4451 = vand.u32 %v4450, 4294901760
  %v4452 = vsub.f32 %v4450, %v4451
  %v4453 = vand.u32 %v4452, 4294901760
  %4454 = vmatpush1.msra.mxu0 %v4453
  %4455 = vmatprep.subr.mxu0 0.0
  %v4456 = vand.u32 %v1863, 4294901760
  %v4457 = vsub.f32 %v1863, %v4456
  %v4458 = vand.u32 %v4457, 4294901760
  %v4459 = vsub.f32 %v4457, %v4458
  %v4460 = vand.u32 %v4459, 4294901760
  %4461 = vmatpush1.msra.mxu0 %v4460
  %4462 = vmatprep.subr.mxu0 0.0
  %4463 = vmatpush1.msra.mxu0 0.0
  %4464 = vmatprep.subr.mxu0 0.0
  %4465 = vmatpush1.msra.mxu0 0.0
  %4466 = vmatprep.subr.mxu0 0.0
  %4467 = vmatpush1.msra.mxu0 0.0
  %4468 = vmatprep.subr.mxu0 0.0
  %4469 = vmatpush1.msra.mxu0 0.0
  %4470 = vmatprep.subr.mxu0 0.0
  %4471 = vmatpush1.msra.mxu0 0.0
  %4472 = vmatprep.subr.mxu0 0.0
  %4473 = vmatpush1.msra.mxu0 0.0
  %4474 = vmatprep.subr.mxu0 0.0
  %4475 = vmatpush1.msra.mxu0 0.0
  %4476 = vmatprep.subr.mxu0 0.0
  %4477 = vmatpush1.msra.mxu0 0.0
  %4478 = vmatprep.subr.mxu0 0.0
  %4479 = vmatpush1.msra.mxu0 0.0
  %4480 = vmatprep.subr.mxu0 0.0
  %4481 = vmatpush1.msra.mxu0 0.0
  %4482 = vmatprep.subr.mxu0 0.0
  %4483 = vmatpush1.msra.mxu0 0.0
  %4484 = vmatprep.subr.mxu0 0.0
  %4485 = vmatpush1.msra.mxu0 0.0
  %4486 = vmatprep.subr.mxu0 0.0
  %4487 = vmatpush1.msra.mxu0 0.0
  %4488 = vmatprep.subr.mxu0 0.0
  %4489 = vmatpush1.msra.mxu0 0.0
  %4490 = vmatprep.subr.mxu0 0.0
  %4491 = vmatpush1.msra.mxu0 0.0
  %4492 = vmatprep.subr.mxu0 0.0
  %4493 = vmatpush1.msra.mxu0 0.0
  %4494 = vmatprep.subr.mxu0 0.0
  %4495 = vmatpush1.msra.mxu0 0.0
  %4496 = vmatprep.subr.mxu0 0.0
  %4497 = vmatpush1.msra.mxu0 0.0
  %4498 = vmatprep.subr.mxu0 0.0
  %4499 = vmatpush1.msra.mxu0 0.0
  %4500 = vmatprep.subr.mxu0 0.0
  %4501 = vmatpush1.msra.mxu0 0.0
  %4502 = vmatprep.subr.mxu0 0.0
  %4503 = vmatpush1.msra.mxu0 0.0
  %4504 = vmatprep.subr.mxu0 0.0
  %4505 = vmatpush1.msra.mxu0 0.0
  %4506 = vmatprep.subr.mxu0 0.0
  %4507 = vmatpush1.msra.mxu0 0.0
  %4508 = vmatprep.subr.mxu0 0.0
  %4509 = vmatpush1.msra.mxu0 0.0
  %4510 = vmatprep.subr.mxu0 0.0
  %4511 = vmatpush1.msra.mxu0 0.0
  %4512 = vmatprep.subr.mxu0 0.0
  %4513 = vmatpush1.msra.mxu0 0.0
  %4514 = vmatprep.subr.mxu0 0.0
  %4515 = vmatpush1.msra.mxu0 0.0
  %4516 = vmatprep.subr.mxu0 0.0
  %4517 = vmatpush1.msra.mxu0 0.0
  %4518 = vmatprep.mubr.f32.mxu0 0.0
  %v4519 = vand.u32 %v3868, 4294901760
  %4520 = vmatmul.mubr.f32.gmra.mrb[0].mxu0 %v4519
  %v4521 = vpop.f32.mrb[0].mxu0
  %v4522 = vadd.f32 %v4431, %v4521
  %v4523 = vpop.f32.mrb[0].mxu0
  %4524 = vdwg.mxu0
  %4525 = vmatprep.subr.mxu0 0.0
  %v4526 = vand.u32 %v1860, 4294901760
  %v4527 = vsub.f32 %v1860, %v4526
  %4528 = vmatpush1.msra.mxu0 %v4527
  %4529 = vmatprep.subr.mxu0 0.0
  %v4530 = vand.u32 %v1861, 4294901760
  %v4531 = vsub.f32 %v1861, %v4530
  %4532 = vmatpush1.msra.mxu0 %v4531
  %4533 = vmatprep.subr.mxu0 0.0
  %v4534 = vand.u32 %v1862, 4294901760
  %v4535 = vsub.f32 %v1862, %v4534
  %4536 = vmatpush1.msra.mxu0 %v4535
  %4537 = vmatprep.subr.mxu0 0.0
  %v4538 = vand.u32 %v1863, 4294901760
  %v4539 = vsub.f32 %v1863, %v4538
  %4540 = vmatpush1.msra.mxu0 %v4539
  %4541 = vmatprep.subr.mxu0 0.0
  %4542 = vmatpush1.msra.mxu0 0.0
  %4543 = vmatprep.subr.mxu0 0.0
  %4544 = vmatpush1.msra.mxu0 0.0
  %4545 = vmatprep.subr.mxu0 0.0
  %4546 = vmatpush1.msra.mxu0 0.0
  %4547 = vmatprep.subr.mxu0 0.0
  %4548 = vmatpush1.msra.mxu0 0.0
  %4549 = vmatprep.subr.mxu0 0.0
  %4550 = vmatpush1.msra.mxu0 0.0
  %4551 = vmatprep.subr.mxu0 0.0
  %4552 = vmatpush1.msra.mxu0 0.0
  %4553 = vmatprep.subr.mxu0 0.0
  %4554 = vmatpush1.msra.mxu0 0.0
  %4555 = vmatprep.subr.mxu0 0.0
  %4556 = vmatpush1.msra.mxu0 0.0
  %4557 = vmatprep.subr.mxu0 0.0
  %4558 = vmatpush1.msra.mxu0 0.0
  %4559 = vmatprep.subr.mxu0 0.0
  %4560 = vmatpush1.msra.mxu0 0.0
  %4561 = vmatprep.subr.mxu0 0.0
  %4562 = vmatpush1.msra.mxu0 0.0
  %4563 = vmatprep.subr.mxu0 0.0
  %4564 = vmatpush1.msra.mxu0 0.0
  %4565 = vmatprep.subr.mxu0 0.0
  %4566 = vmatpush1.msra.mxu0 0.0
  %4567 = vmatprep.subr.mxu0 0.0
  %4568 = vmatpush1.msra.mxu0 0.0
  %4569 = vmatprep.subr.mxu0 0.0
  %4570 = vmatpush1.msra.mxu0 0.0
  %4571 = vmatprep.subr.mxu0 0.0
  %4572 = vmatpush1.msra.mxu0 0.0
  %4573 = vmatprep.subr.mxu0 0.0
  %4574 = vmatpush1.msra.mxu0 0.0
  %4575 = vmatprep.subr.mxu0 0.0
  %4576 = vmatpush1.msra.mxu0 0.0
  %4577 = vmatprep.subr.mxu0 0.0
  %4578 = vmatpush1.msra.mxu0 0.0
  %4579 = vmatprep.subr.mxu0 0.0
  %4580 = vmatpush1.msra.mxu0 0.0
  %4581 = vmatprep.subr.mxu0 0.0
  %4582 = vmatpush1.msra.mxu0 0.0
  %4583 = vmatprep.subr.mxu0 0.0
  %4584 = vmatpush1.msra.mxu0 0.0
  %4585 = vmatprep.subr.mxu0 0.0
  %4586 = vmatpush1.msra.mxu0 0.0
  %4587 = vmatprep.subr.mxu0 0.0
  %4588 = vmatpush1.msra.mxu0 0.0
  %4589 = vmatprep.subr.mxu0 0.0
  %4590 = vmatpush1.msra.mxu0 0.0
  %4591 = vmatprep.subr.mxu0 0.0
  %4592 = vmatpush1.msra.mxu0 0.0
  %4593 = vmatprep.subr.mxu0 0.0
  %4594 = vmatpush1.msra.mxu0 0.0
  %4595 = vmatprep.subr.mxu0 0.0
  %4596 = vmatpush1.msra.mxu0 0.0
  %4597 = vmatprep.mubr.f32.mxu0 0.0
  %v4598 = vand.u32 %v3868, 4294901760
  %v4599 = vsub.f32 %v3868, %v4598
  %4600 = vmatmul.mubr.f32.gmra.mrb[0].mxu0 %v4599
  %v4601 = vpop.f32.mrb[0].mxu0
  %v4602 = vadd.f32 %v4522, %v4601
  %v4603 = vpop.f32.mrb[0].mxu0
  %4604 = vdwg.mxu0
  %4605 = vmatprep.subr.mxu0 0.0
  %v4606 = vand.u32 %v1860, 4294901760
  %4607 = vmatpush1.msra.mxu0 %v4606
  %4608 = vmatprep.subr.mxu0 0.0
  %v4609 = vand.u32 %v1861, 4294901760
  %4610 = vmatpush1.msra.mxu0 %v4609
  %4611 = vmatprep.subr.mxu0 0.0
  %v4612 = vand.u32 %v1862, 4294901760
  %4613 = vmatpush1.msra.mxu0 %v4612
  %4614 = vmatprep.subr.mxu0 0.0
  %v4615 = vand.u32 %v1863, 4294901760
  %4616 = vmatpush1.msra.mxu0 %v4615
  %4617 = vmatprep.subr.mxu0 0.0
  %4618 = vmatpush1.msra.mxu0 0.0
  %4619 = vmatprep.subr.mxu0 0.0
  %4620 = vmatpush1.msra.mxu0 0.0
  %4621 = vmatprep.subr.mxu0 0.0
  %4622 = vmatpush1.msra.mxu0 0.0
  %4623 = vmatprep.subr.mxu0 0.0
  %4624 = vmatpush1.msra.mxu0 0.0
  %4625 = vmatprep.subr.mxu0 0.0
  %4626 = vmatpush1.msra.mxu0 0.0
  %4627 = vmatprep.subr.mxu0 0.0
  %4628 = vmatpush1.msra.mxu0 0.0
  %4629 = vmatprep.subr.mxu0 0.0
  %4630 = vmatpush1.msra.mxu0 0.0
  %4631 = vmatprep.subr.mxu0 0.0
  %4632 = vmatpush1.msra.mxu0 0.0
  %4633 = vmatprep.subr.mxu0 0.0
  %4634 = vmatpush1.msra.mxu0 0.0
  %4635 = vmatprep.subr.mxu0 0.0
  %4636 = vmatpush1.msra.mxu0 0.0
  %4637 = vmatprep.subr.mxu0 0.0
  %4638 = vmatpush1.msra.mxu0 0.0
  %4639 = vmatprep.subr.mxu0 0.0
  %4640 = vmatpush1.msra.mxu0 0.0
  %4641 = vmatprep.subr.mxu0 0.0
  %4642 = vmatpush1.msra.mxu0 0.0
  %4643 = vmatprep.subr.mxu0 0.0
  %4644 = vmatpush1.msra.mxu0 0.0
  %4645 = vmatprep.subr.mxu0 0.0
  %4646 = vmatpush1.msra.mxu0 0.0
  %4647 = vmatprep.subr.mxu0 0.0
  %4648 = vmatpush1.msra.mxu0 0.0
  %4649 = vmatprep.subr.mxu0 0.0
  %4650 = vmatpush1.msra.mxu0 0.0
  %4651 = vmatprep.subr.mxu0 0.0
  %4652 = vmatpush1.msra.mxu0 0.0
  %4653 = vmatprep.subr.mxu0 0.0
  %4654 = vmatpush1.msra.mxu0 0.0
  %4655 = vmatprep.subr.mxu0 0.0
  %4656 = vmatpush1.msra.mxu0 0.0
  %4657 = vmatprep.subr.mxu0 0.0
  %4658 = vmatpush1.msra.mxu0 0.0
  %4659 = vmatprep.subr.mxu0 0.0
  %4660 = vmatpush1.msra.mxu0 0.0
  %4661 = vmatprep.subr.mxu0 0.0
  %4662 = vmatpush1.msra.mxu0 0.0
  %4663 = vmatprep.subr.mxu0 0.0
  %4664 = vmatpush1.msra.mxu0 0.0
  %4665 = vmatprep.subr.mxu0 0.0
  %4666 = vmatpush1.msra.mxu0 0.0
  %4667 = vmatprep.subr.mxu0 0.0
  %4668 = vmatpush1.msra.mxu0 0.0
  %4669 = vmatprep.subr.mxu0 0.0
  %4670 = vmatpush1.msra.mxu0 0.0
  %4671 = vmatprep.subr.mxu0 0.0
  %4672 = vmatpush1.msra.mxu0 0.0
  %4673 = vmatprep.mubr.f32.mxu0 0.0
  %v4674 = vand.u32 %v3868, 4294901760
  %v4675 = vsub.f32 %v3868, %v4674
  %v4676 = vand.u32 %v4675, 4294901760
  %4677 = vmatmul.mubr.f32.gmra.mrb[0].mxu0 %v4676
  %v4678 = vpop.f32.mrb[0].mxu0
  %v4679 = vadd.f32 %v4602, %v4678
  %v4680 = vpop.f32.mrb[0].mxu0
  %4681 = vdwg.mxu0
  %4682 = vmatprep.subr.mxu0 0.0
  %v4683 = vand.u32 %v1860, 4294901760
  %v4684 = vsub.f32 %v1860, %v4683
  %v4685 = vand.u32 %v4684, 4294901760
  %4686 = vmatpush1.msra.mxu0 %v4685
  %4687 = vmatprep.subr.mxu0 0.0
  %v4688 = vand.u32 %v1861, 4294901760
  %v4689 = vsub.f32 %v1861, %v4688
  %v4690 = vand.u32 %v4689, 4294901760
  %4691 = vmatpush1.msra.mxu0 %v4690
  %4692 = vmatprep.subr.mxu0 0.0
  %v4693 = vand.u32 %v1862, 4294901760
  %v4694 = vsub.f32 %v1862, %v4693
  %v4695 = vand.u32 %v4694, 4294901760
  %4696 = vmatpush1.msra.mxu0 %v4695
  %4697 = vmatprep.subr.mxu0 0.0
  %v4698 = vand.u32 %v1863, 4294901760
  %v4699 = vsub.f32 %v1863, %v4698
  %v4700 = vand.u32 %v4699, 4294901760
  %4701 = vmatpush1.msra.mxu0 %v4700
  %4702 = vmatprep.subr.mxu0 0.0
  %4703 = vmatpush1.msra.mxu0 0.0
  %4704 = vmatprep.subr.mxu0 0.0
  %4705 = vmatpush1.msra.mxu0 0.0
  %4706 = vmatprep.subr.mxu0 0.0
  %4707 = vmatpush1.msra.mxu0 0.0
  %4708 = vmatprep.subr.mxu0 0.0
  %4709 = vmatpush1.msra.mxu0 0.0
  %4710 = vmatprep.subr.mxu0 0.0
  %4711 = vmatpush1.msra.mxu0 0.0
  %4712 = vmatprep.subr.mxu0 0.0
  %4713 = vmatpush1.msra.mxu0 0.0
  %4714 = vmatprep.subr.mxu0 0.0
  %4715 = vmatpush1.msra.mxu0 0.0
  %4716 = vmatprep.subr.mxu0 0.0
  %4717 = vmatpush1.msra.mxu0 0.0
  %4718 = vmatprep.subr.mxu0 0.0
  %4719 = vmatpush1.msra.mxu0 0.0
  %4720 = vmatprep.subr.mxu0 0.0
  %4721 = vmatpush1.msra.mxu0 0.0
  %4722 = vmatprep.subr.mxu0 0.0
  %4723 = vmatpush1.msra.mxu0 0.0
  %4724 = vmatprep.subr.mxu0 0.0
  %4725 = vmatpush1.msra.mxu0 0.0
  %4726 = vmatprep.subr.mxu0 0.0
  %4727 = vmatpush1.msra.mxu0 0.0
  %4728 = vmatprep.subr.mxu0 0.0
  %4729 = vmatpush1.msra.mxu0 0.0
  %4730 = vmatprep.subr.mxu0 0.0
  %4731 = vmatpush1.msra.mxu0 0.0
  %4732 = vmatprep.subr.mxu0 0.0
  %4733 = vmatpush1.msra.mxu0 0.0
  %4734 = vmatprep.subr.mxu0 0.0
  %4735 = vmatpush1.msra.mxu0 0.0
  %4736 = vmatprep.subr.mxu0 0.0
  %4737 = vmatpush1.msra.mxu0 0.0
  %4738 = vmatprep.subr.mxu0 0.0
  %4739 = vmatpush1.msra.mxu0 0.0
  %4740 = vmatprep.subr.mxu0 0.0
  %4741 = vmatpush1.msra.mxu0 0.0
  %4742 = vmatprep.subr.mxu0 0.0
  %4743 = vmatpush1.msra.mxu0 0.0
  %4744 = vmatprep.subr.mxu0 0.0
  %4745 = vmatpush1.msra.mxu0 0.0
  %4746 = vmatprep.subr.mxu0 0.0
  %4747 = vmatpush1.msra.mxu0 0.0
  %4748 = vmatprep.subr.mxu0 0.0
  %4749 = vmatpush1.msra.mxu0 0.0
  %4750 = vmatprep.subr.mxu0 0.0
  %4751 = vmatpush1.msra.mxu0 0.0
  %4752 = vmatprep.subr.mxu0 0.0
  %4753 = vmatpush1.msra.mxu0 0.0
  %4754 = vmatprep.subr.mxu0 0.0
  %4755 = vmatpush1.msra.mxu0 0.0
  %4756 = vmatprep.subr.mxu0 0.0
  %4757 = vmatpush1.msra.mxu0 0.0
  %4758 = vmatprep.mubr.f32.mxu0 0.0
  %v4759 = vand.u32 %v3868, 4294901760
  %4760 = vmatmul.mubr.f32.gmra.mrb[0].mxu0 %v4759
  %v4761 = vpop.f32.mrb[0].mxu0
  %v4762 = vadd.f32 %v4679, %v4761
  %v4763 = vpop.f32.mrb[0].mxu0
  %4764 = vdwg.mxu0
  %4765 = vmatprep.subr.mxu0 0.0
  %v4766 = vand.u32 %v1860, 4294901760
  %4767 = vmatpush1.msra.mxu0 %v4766
  %4768 = vmatprep.subr.mxu0 0.0
  %v4769 = vand.u32 %v1861, 4294901760
  %4770 = vmatpush1.msra.mxu0 %v4769
  %4771 = vmatprep.subr.mxu0 0.0
  %v4772 = vand.u32 %v1862, 4294901760
  %4773 = vmatpush1.msra.mxu0 %v4772
  %4774 = vmatprep.subr.mxu0 0.0
  %v4775 = vand.u32 %v1863, 4294901760
  %4776 = vmatpush1.msra.mxu0 %v4775
  %4777 = vmatprep.subr.mxu0 0.0
  %4778 = vmatpush1.msra.mxu0 0.0
  %4779 = vmatprep.subr.mxu0 0.0
  %4780 = vmatpush1.msra.mxu0 0.0
  %4781 = vmatprep.subr.mxu0 0.0
  %4782 = vmatpush1.msra.mxu0 0.0
  %4783 = vmatprep.subr.mxu0 0.0
  %4784 = vmatpush1.msra.mxu0 0.0
  %4785 = vmatprep.subr.mxu0 0.0
  %4786 = vmatpush1.msra.mxu0 0.0
  %4787 = vmatprep.subr.mxu0 0.0
  %4788 = vmatpush1.msra.mxu0 0.0
  %4789 = vmatprep.subr.mxu0 0.0
  %4790 = vmatpush1.msra.mxu0 0.0
  %4791 = vmatprep.subr.mxu0 0.0
  %4792 = vmatpush1.msra.mxu0 0.0
  %4793 = vmatprep.subr.mxu0 0.0
  %4794 = vmatpush1.msra.mxu0 0.0
  %4795 = vmatprep.subr.mxu0 0.0
  %4796 = vmatpush1.msra.mxu0 0.0
  %4797 = vmatprep.subr.mxu0 0.0
  %4798 = vmatpush1.msra.mxu0 0.0
  %4799 = vmatprep.subr.mxu0 0.0
  %4800 = vmatpush1.msra.mxu0 0.0
  %4801 = vmatprep.subr.mxu0 0.0
  %4802 = vmatpush1.msra.mxu0 0.0
  %4803 = vmatprep.subr.mxu0 0.0
  %4804 = vmatpush1.msra.mxu0 0.0
  %4805 = vmatprep.subr.mxu0 0.0
  %4806 = vmatpush1.msra.mxu0 0.0
  %4807 = vmatprep.subr.mxu0 0.0
  %4808 = vmatpush1.msra.mxu0 0.0
  %4809 = vmatprep.subr.mxu0 0.0
  %4810 = vmatpush1.msra.mxu0 0.0
  %4811 = vmatprep.subr.mxu0 0.0
  %4812 = vmatpush1.msra.mxu0 0.0
  %4813 = vmatprep.subr.mxu0 0.0
  %4814 = vmatpush1.msra.mxu0 0.0
  %4815 = vmatprep.subr.mxu0 0.0
  %4816 = vmatpush1.msra.mxu0 0.0
  %4817 = vmatprep.subr.mxu0 0.0
  %4818 = vmatpush1.msra.mxu0 0.0
  %4819 = vmatprep.subr.mxu0 0.0
  %4820 = vmatpush1.msra.mxu0 0.0
  %4821 = vmatprep.subr.mxu0 0.0
  %4822 = vmatpush1.msra.mxu0 0.0
  %4823 = vmatprep.subr.mxu0 0.0
  %4824 = vmatpush1.msra.mxu0 0.0
  %4825 = vmatprep.subr.mxu0 0.0
  %4826 = vmatpush1.msra.mxu0 0.0
  %4827 = vmatprep.subr.mxu0 0.0
  %4828 = vmatpush1.msra.mxu0 0.0
  %4829 = vmatprep.subr.mxu0 0.0
  %4830 = vmatpush1.msra.mxu0 0.0
  %4831 = vmatprep.subr.mxu0 0.0
  %4832 = vmatpush1.msra.mxu0 0.0
  %4833 = vmatprep.mubr.f32.mxu0 0.0
  %v4834 = vand.u32 %v3868, 4294901760
  %4835 = vmatmul.mubr.f32.gmra.mrb[0].mxu0 %v4834
  %v4836 = vpop.f32.mrb[0].mxu0
  %v4837 = vadd.f32 %v4762, %v4836
  %v4838 = vpop.f32.mrb[0].mxu0
  %4839 = vdwg.mxu0
  %v4840 = vadd.f32 %v659, %v4352
  %v4841 = vxor.u32 %v4840, 2147483648
  %v4842 = vmul.f32 %v4841, 1.442695
  %v4843 = vpow.pop %v4842
  %v4844 = vadd.f32 %v4843, 1.0
  %v4845 = vrcp.pop %v4844
  %v4846 = vmul.f32 1.0, %v4845
  %4848 = vrot.lane.b32.xlu0 %v4352, 96
  %v4849 = vpop.permute.xlu0 %4848
  %v4851 = vadd.f32 %v1253, %v4849
  %v4852 = vxor.u32 %v4851, 2147483648
  %v4853 = vmul.f32 %v4852, 1.442695
  %v4854 = vpow.pop %v4853
  %v4855 = vadd.f32 %v4854, 1.0
  %v4856 = vrcp.pop %v4855
  %v4857 = vmul.f32 1.0, %v4856
  %v4858 = vmul.f32 %v4846, %v4837
  %v4859 = vadd.f32 %v1847, %v4858
  %v4860 = vtanh.pop %v4859
  %v4861 = vsub.f32 %v3866, %v4860
  %v4862 = vmul.f32 %v4857, %v4861
  %v4863 = vadd.f32 %v4860, %v4862
  %v4865 = vsel %vm1866, %v4863, 0
  %4867 = vmatprep.subr.mxu0 0.0
  %v4868 = vand.u32 %v1856, 4294901760
  %4869 = vmatpush1.msra.mxu0 %v4868
  %4870 = vmatprep.subr.mxu0 0.0
  %v4871 = vand.u32 %v1857, 4294901760
  %4872 = vmatpush1.msra.mxu0 %v4871
  %4873 = vmatprep.subr.mxu0 0.0
  %v4874 = vand.u32 %v1858, 4294901760
  %4875 = vmatpush1.msra.mxu0 %v4874
  %4876 = vmatprep.subr.mxu0 0.0
  %v4877 = vand.u32 %v1859, 4294901760
  %4878 = vmatpush1.msra.mxu0 %v4877
  %4879 = vmatprep.subr.mxu0 0.0
  %4880 = vmatpush1.msra.mxu0 0.0
  %4881 = vmatprep.subr.mxu0 0.0
  %4882 = vmatpush1.msra.mxu0 0.0
  %4883 = vmatprep.subr.mxu0 0.0
  %4884 = vmatpush1.msra.mxu0 0.0
  %4885 = vmatprep.subr.mxu0 0.0
  %4886 = vmatpush1.msra.mxu0 0.0
  %4887 = vmatprep.subr.mxu0 0.0
  %4888 = vmatpush1.msra.mxu0 0.0
  %4889 = vmatprep.subr.mxu0 0.0
  %4890 = vmatpush1.msra.mxu0 0.0
  %4891 = vmatprep.subr.mxu0 0.0
  %4892 = vmatpush1.msra.mxu0 0.0
  %4893 = vmatprep.subr.mxu0 0.0
  %4894 = vmatpush1.msra.mxu0 0.0
  %4895 = vmatprep.subr.mxu0 0.0
  %4896 = vmatpush1.msra.mxu0 0.0
  %4897 = vmatprep.subr.mxu0 0.0
  %4898 = vmatpush1.msra.mxu0 0.0
  %4899 = vmatprep.subr.mxu0 0.0
  %4900 = vmatpush1.msra.mxu0 0.0
  %4901 = vmatprep.subr.mxu0 0.0
  %4902 = vmatpush1.msra.mxu0 0.0
  %4903 = vmatprep.subr.mxu0 0.0
  %4904 = vmatpush1.msra.mxu0 0.0
  %4905 = vmatprep.subr.mxu0 0.0
  %4906 = vmatpush1.msra.mxu0 0.0
  %4907 = vmatprep.subr.mxu0 0.0
  %4908 = vmatpush1.msra.mxu0 0.0
  %4909 = vmatprep.subr.mxu0 0.0
  %4910 = vmatpush1.msra.mxu0 0.0
  %4911 = vmatprep.subr.mxu0 0.0
  %4912 = vmatpush1.msra.mxu0 0.0
  %4913 = vmatprep.subr.mxu0 0.0
  %4914 = vmatpush1.msra.mxu0 0.0
  %4915 = vmatprep.subr.mxu0 0.0
  %4916 = vmatpush1.msra.mxu0 0.0
  %4917 = vmatprep.subr.mxu0 0.0
  %4918 = vmatpush1.msra.mxu0 0.0
  %4919 = vmatprep.subr.mxu0 0.0
  %4920 = vmatpush1.msra.mxu0 0.0
  %4921 = vmatprep.subr.mxu0 0.0
  %4922 = vmatpush1.msra.mxu0 0.0
  %4923 = vmatprep.subr.mxu0 0.0
  %4924 = vmatpush1.msra.mxu0 0.0
  %4925 = vmatprep.subr.mxu0 0.0
  %4926 = vmatpush1.msra.mxu0 0.0
  %4927 = vmatprep.subr.mxu0 0.0
  %4928 = vmatpush1.msra.mxu0 0.0
  %4929 = vmatprep.subr.mxu0 0.0
  %4930 = vmatpush1.msra.mxu0 0.0
  %4931 = vmatprep.subr.mxu0 0.0
  %4932 = vmatpush1.msra.mxu0 0.0
  %4933 = vmatprep.subr.mxu0 0.0
  %4934 = vmatpush1.msra.mxu0 0.0
  %4935 = vmatprep.mubr.f32.mxu0 0.0
  %v4936 = vand.u32 %v4865, 4294901760
  %v4937 = vsub.f32 %v4865, %v4936
  %v4938 = vand.u32 %v4937, 4294901760
  %v4939 = vsub.f32 %v4937, %v4938
  %v4940 = vand.u32 %v4939, 4294901760
  %4941 = vmatmul.mubr.f32.gmra.mrb[0].mxu0 %v4940
  %v4942 = vpop.f32.mrb[0].mxu0
  %v4943 = vadd.f32 0.0, %v4942
  %v4944 = vpop.f32.mrb[0].mxu0
  %4945 = vdwg.mxu0
  %4946 = vmatprep.subr.mxu0 0.0
  %v4947 = vand.u32 %v1856, 4294901760
  %v4948 = vsub.f32 %v1856, %v4947
  %v4949 = vand.u32 %v4948, 4294901760
  %v4950 = vsub.f32 %v4948, %v4949
  %v4951 = vand.u32 %v4950, 4294901760
  %4952 = vmatpush1.msra.mxu0 %v4951
  %4953 = vmatprep.subr.mxu0 0.0
  %v4954 = vand.u32 %v1857, 4294901760
  %v4955 = vsub.f32 %v1857, %v4954
  %v4956 = vand.u32 %v4955, 4294901760
  %v4957 = vsub.f32 %v4955, %v4956
  %v4958 = vand.u32 %v4957, 4294901760
  %4959 = vmatpush1.msra.mxu0 %v4958
  %4960 = vmatprep.subr.mxu0 0.0
  %v4961 = vand.u32 %v1858, 4294901760
  %v4962 = vsub.f32 %v1858, %v4961
  %v4963 = vand.u32 %v4962, 4294901760
  %v4964 = vsub.f32 %v4962, %v4963
  %v4965 = vand.u32 %v4964, 4294901760
  %4966 = vmatpush1.msra.mxu0 %v4965
  %4967 = vmatprep.subr.mxu0 0.0
  %v4968 = vand.u32 %v1859, 4294901760
  %v4969 = vsub.f32 %v1859, %v4968
  %v4970 = vand.u32 %v4969, 4294901760
  %v4971 = vsub.f32 %v4969, %v4970
  %v4972 = vand.u32 %v4971, 4294901760
  %4973 = vmatpush1.msra.mxu0 %v4972
  %4974 = vmatprep.subr.mxu0 0.0
  %4975 = vmatpush1.msra.mxu0 0.0
  %4976 = vmatprep.subr.mxu0 0.0
  %4977 = vmatpush1.msra.mxu0 0.0
  %4978 = vmatprep.subr.mxu0 0.0
  %4979 = vmatpush1.msra.mxu0 0.0
  %4980 = vmatprep.subr.mxu0 0.0
  %4981 = vmatpush1.msra.mxu0 0.0
  %4982 = vmatprep.subr.mxu0 0.0
  %4983 = vmatpush1.msra.mxu0 0.0
  %4984 = vmatprep.subr.mxu0 0.0
  %4985 = vmatpush1.msra.mxu0 0.0
  %4986 = vmatprep.subr.mxu0 0.0
  %4987 = vmatpush1.msra.mxu0 0.0
  %4988 = vmatprep.subr.mxu0 0.0
  %4989 = vmatpush1.msra.mxu0 0.0
  %4990 = vmatprep.subr.mxu0 0.0
  %4991 = vmatpush1.msra.mxu0 0.0
  %4992 = vmatprep.subr.mxu0 0.0
  %4993 = vmatpush1.msra.mxu0 0.0
  %4994 = vmatprep.subr.mxu0 0.0
  %4995 = vmatpush1.msra.mxu0 0.0
  %4996 = vmatprep.subr.mxu0 0.0
  %4997 = vmatpush1.msra.mxu0 0.0
  %4998 = vmatprep.subr.mxu0 0.0
  %4999 = vmatpush1.msra.mxu0 0.0
  %5000 = vmatprep.subr.mxu0 0.0
  %5001 = vmatpush1.msra.mxu0 0.0
  %5002 = vmatprep.subr.mxu0 0.0
  %5003 = vmatpush1.msra.mxu0 0.0
  %5004 = vmatprep.subr.mxu0 0.0
  %5005 = vmatpush1.msra.mxu0 0.0
  %5006 = vmatprep.subr.mxu0 0.0
  %5007 = vmatpush1.msra.mxu0 0.0
  %5008 = vmatprep.subr.mxu0 0.0
  %5009 = vmatpush1.msra.mxu0 0.0
  %5010 = vmatprep.subr.mxu0 0.0
  %5011 = vmatpush1.msra.mxu0 0.0
  %5012 = vmatprep.subr.mxu0 0.0
  %5013 = vmatpush1.msra.mxu0 0.0
  %5014 = vmatprep.subr.mxu0 0.0
  %5015 = vmatpush1.msra.mxu0 0.0
  %5016 = vmatprep.subr.mxu0 0.0
  %5017 = vmatpush1.msra.mxu0 0.0
  %5018 = vmatprep.subr.mxu0 0.0
  %5019 = vmatpush1.msra.mxu0 0.0
  %5020 = vmatprep.subr.mxu0 0.0
  %5021 = vmatpush1.msra.mxu0 0.0
  %5022 = vmatprep.subr.mxu0 0.0
  %5023 = vmatpush1.msra.mxu0 0.0
  %5024 = vmatprep.subr.mxu0 0.0
  %5025 = vmatpush1.msra.mxu0 0.0
  %5026 = vmatprep.subr.mxu0 0.0
  %5027 = vmatpush1.msra.mxu0 0.0
  %5028 = vmatprep.subr.mxu0 0.0
  %5029 = vmatpush1.msra.mxu0 0.0
  %5030 = vmatprep.mubr.f32.mxu0 0.0
  %v5031 = vand.u32 %v4865, 4294901760
  %5032 = vmatmul.mubr.f32.gmra.mrb[0].mxu0 %v5031
  %v5033 = vpop.f32.mrb[0].mxu0
  %v5034 = vadd.f32 %v4943, %v5033
  %v5035 = vpop.f32.mrb[0].mxu0
  %5036 = vdwg.mxu0
  %5037 = vmatprep.subr.mxu0 0.0
  %v5038 = vand.u32 %v1856, 4294901760
  %v5039 = vsub.f32 %v1856, %v5038
  %5040 = vmatpush1.msra.mxu0 %v5039
  %5041 = vmatprep.subr.mxu0 0.0
  %v5042 = vand.u32 %v1857, 4294901760
  %v5043 = vsub.f32 %v1857, %v5042
  %5044 = vmatpush1.msra.mxu0 %v5043
  %5045 = vmatprep.subr.mxu0 0.0
  %v5046 = vand.u32 %v1858, 4294901760
  %v5047 = vsub.f32 %v1858, %v5046
  %5048 = vmatpush1.msra.mxu0 %v5047
  %5049 = vmatprep.subr.mxu0 0.0
  %v5050 = vand.u32 %v1859, 4294901760
  %v5051 = vsub.f32 %v1859, %v5050
  %5052 = vmatpush1.msra.mxu0 %v5051
  %5053 = vmatprep.subr.mxu0 0.0
  %5054 = vmatpush1.msra.mxu0 0.0
  %5055 = vmatprep.subr.mxu0 0.0
  %5056 = vmatpush1.msra.mxu0 0.0
  %5057 = vmatprep.subr.mxu0 0.0
  %5058 = vmatpush1.msra.mxu0 0.0
  %5059 = vmatprep.subr.mxu0 0.0
  %5060 = vmatpush1.msra.mxu0 0.0
  %5061 = vmatprep.subr.mxu0 0.0
  %5062 = vmatpush1.msra.mxu0 0.0
  %5063 = vmatprep.subr.mxu0 0.0
  %5064 = vmatpush1.msra.mxu0 0.0
  %5065 = vmatprep.subr.mxu0 0.0
  %5066 = vmatpush1.msra.mxu0 0.0
  %5067 = vmatprep.subr.mxu0 0.0
  %5068 = vmatpush1.msra.mxu0 0.0
  %5069 = vmatprep.subr.mxu0 0.0
  %5070 = vmatpush1.msra.mxu0 0.0
  %5071 = vmatprep.subr.mxu0 0.0
  %5072 = vmatpush1.msra.mxu0 0.0
  %5073 = vmatprep.subr.mxu0 0.0
  %5074 = vmatpush1.msra.mxu0 0.0
  %5075 = vmatprep.subr.mxu0 0.0
  %5076 = vmatpush1.msra.mxu0 0.0
  %5077 = vmatprep.subr.mxu0 0.0
  %5078 = vmatpush1.msra.mxu0 0.0
  %5079 = vmatprep.subr.mxu0 0.0
  %5080 = vmatpush1.msra.mxu0 0.0
  %5081 = vmatprep.subr.mxu0 0.0
  %5082 = vmatpush1.msra.mxu0 0.0
  %5083 = vmatprep.subr.mxu0 0.0
  %5084 = vmatpush1.msra.mxu0 0.0
  %5085 = vmatprep.subr.mxu0 0.0
  %5086 = vmatpush1.msra.mxu0 0.0
  %5087 = vmatprep.subr.mxu0 0.0
  %5088 = vmatpush1.msra.mxu0 0.0
  %5089 = vmatprep.subr.mxu0 0.0
  %5090 = vmatpush1.msra.mxu0 0.0
  %5091 = vmatprep.subr.mxu0 0.0
  %5092 = vmatpush1.msra.mxu0 0.0
  %5093 = vmatprep.subr.mxu0 0.0
  %5094 = vmatpush1.msra.mxu0 0.0
  %5095 = vmatprep.subr.mxu0 0.0
  %5096 = vmatpush1.msra.mxu0 0.0
  %5097 = vmatprep.subr.mxu0 0.0
  %5098 = vmatpush1.msra.mxu0 0.0
  %5099 = vmatprep.subr.mxu0 0.0
  %5100 = vmatpush1.msra.mxu0 0.0
  %5101 = vmatprep.subr.mxu0 0.0
  %5102 = vmatpush1.msra.mxu0 0.0
  %5103 = vmatprep.subr.mxu0 0.0
  %5104 = vmatpush1.msra.mxu0 0.0
  %5105 = vmatprep.subr.mxu0 0.0
  %5106 = vmatpush1.msra.mxu0 0.0
  %5107 = vmatprep.subr.mxu0 0.0
  %5108 = vmatpush1.msra.mxu0 0.0
  %5109 = vmatprep.mubr.f32.mxu0 0.0
  %v5110 = vand.u32 %v4865, 4294901760
  %v5111 = vsub.f32 %v4865, %v5110
  %5112 = vmatmul.mubr.f32.gmra.mrb[0].mxu0 %v5111
  %v5113 = vpop.f32.mrb[0].mxu0
  %v5114 = vadd.f32 %v5034, %v5113
  %v5115 = vpop.f32.mrb[0].mxu0
  %5116 = vdwg.mxu0
  %5117 = vmatprep.subr.mxu0 0.0
  %v5118 = vand.u32 %v1856, 4294901760
  %5119 = vmatpush1.msra.mxu0 %v5118
  %5120 = vmatprep.subr.mxu0 0.0
  %v5121 = vand.u32 %v1857, 4294901760
  %5122 = vmatpush1.msra.mxu0 %v5121
  %5123 = vmatprep.subr.mxu0 0.0
  %v5124 = vand.u32 %v1858, 4294901760
  %5125 = vmatpush1.msra.mxu0 %v5124
  %5126 = vmatprep.subr.mxu0 0.0
  %v5127 = vand.u32 %v1859, 4294901760
  %5128 = vmatpush1.msra.mxu0 %v5127
  %5129 = vmatprep.subr.mxu0 0.0
  %5130 = vmatpush1.msra.mxu0 0.0
  %5131 = vmatprep.subr.mxu0 0.0
  %5132 = vmatpush1.msra.mxu0 0.0
  %5133 = vmatprep.subr.mxu0 0.0
  %5134 = vmatpush1.msra.mxu0 0.0
  %5135 = vmatprep.subr.mxu0 0.0
  %5136 = vmatpush1.msra.mxu0 0.0
  %5137 = vmatprep.subr.mxu0 0.0
  %5138 = vmatpush1.msra.mxu0 0.0
  %5139 = vmatprep.subr.mxu0 0.0
  %5140 = vmatpush1.msra.mxu0 0.0
  %5141 = vmatprep.subr.mxu0 0.0
  %5142 = vmatpush1.msra.mxu0 0.0
  %5143 = vmatprep.subr.mxu0 0.0
  %5144 = vmatpush1.msra.mxu0 0.0
  %5145 = vmatprep.subr.mxu0 0.0
  %5146 = vmatpush1.msra.mxu0 0.0
  %5147 = vmatprep.subr.mxu0 0.0
  %5148 = vmatpush1.msra.mxu0 0.0
  %5149 = vmatprep.subr.mxu0 0.0
  %5150 = vmatpush1.msra.mxu0 0.0
  %5151 = vmatprep.subr.mxu0 0.0
  %5152 = vmatpush1.msra.mxu0 0.0
  %5153 = vmatprep.subr.mxu0 0.0
  %5154 = vmatpush1.msra.mxu0 0.0
  %5155 = vmatprep.subr.mxu0 0.0
  %5156 = vmatpush1.msra.mxu0 0.0
  %5157 = vmatprep.subr.mxu0 0.0
  %5158 = vmatpush1.msra.mxu0 0.0
  %5159 = vmatprep.subr.mxu0 0.0
  %5160 = vmatpush1.msra.mxu0 0.0
  %5161 = vmatprep.subr.mxu0 0.0
  %5162 = vmatpush1.msra.mxu0 0.0
  %5163 = vmatprep.subr.mxu0 0.0
  %5164 = vmatpush1.msra.mxu0 0.0
  %5165 = vmatprep.subr.mxu0 0.0
  %5166 = vmatpush1.msra.mxu0 0.0
  %5167 = vmatprep.subr.mxu0 0.0
  %5168 = vmatpush1.msra.mxu0 0.0
  %5169 = vmatprep.subr.mxu0 0.0
  %5170 = vmatpush1.msra.mxu0 0.0
  %5171 = vmatprep.subr.mxu0 0.0
  %5172 = vmatpush1.msra.mxu0 0.0
  %5173 = vmatprep.subr.mxu0 0.0
  %5174 = vmatpush1.msra.mxu0 0.0
  %5175 = vmatprep.subr.mxu0 0.0
  %5176 = vmatpush1.msra.mxu0 0.0
  %5177 = vmatprep.subr.mxu0 0.0
  %5178 = vmatpush1.msra.mxu0 0.0
  %5179 = vmatprep.subr.mxu0 0.0
  %5180 = vmatpush1.msra.mxu0 0.0
  %5181 = vmatprep.subr.mxu0 0.0
  %5182 = vmatpush1.msra.mxu0 0.0
  %5183 = vmatprep.subr.mxu0 0.0
  %5184 = vmatpush1.msra.mxu0 0.0
  %5185 = vmatprep.mubr.f32.mxu0 0.0
  %v5186 = vand.u32 %v4865, 4294901760
  %v5187 = vsub.f32 %v4865, %v5186
  %v5188 = vand.u32 %v5187, 4294901760
  %5189 = vmatmul.mubr.f32.gmra.mrb[0].mxu0 %v5188
  %v5190 = vpop.f32.mrb[0].mxu0
  %v5191 = vadd.f32 %v5114, %v5190
  %v5192 = vpop.f32.mrb[0].mxu0
  %5193 = vdwg.mxu0
  %5194 = vmatprep.subr.mxu0 0.0
  %v5195 = vand.u32 %v1856, 4294901760
  %v5196 = vsub.f32 %v1856, %v5195
  %v5197 = vand.u32 %v5196, 4294901760
  %5198 = vmatpush1.msra.mxu0 %v5197
  %5199 = vmatprep.subr.mxu0 0.0
  %v5200 = vand.u32 %v1857, 4294901760
  %v5201 = vsub.f32 %v1857, %v5200
  %v5202 = vand.u32 %v5201, 4294901760
  %5203 = vmatpush1.msra.mxu0 %v5202
  %5204 = vmatprep.subr.mxu0 0.0
  %v5205 = vand.u32 %v1858, 4294901760
  %v5206 = vsub.f32 %v1858, %v5205
  %v5207 = vand.u32 %v5206, 4294901760
  %5208 = vmatpush1.msra.mxu0 %v5207
  %5209 = vmatprep.subr.mxu0 0.0
  %v5210 = vand.u32 %v1859, 4294901760
  %v5211 = vsub.f32 %v1859, %v5210
  %v5212 = vand.u32 %v5211, 4294901760
  %5213 = vmatpush1.msra.mxu0 %v5212
  %5214 = vmatprep.subr.mxu0 0.0
  %5215 = vmatpush1.msra.mxu0 0.0
  %5216 = vmatprep.subr.mxu0 0.0
  %5217 = vmatpush1.msra.mxu0 0.0
  %5218 = vmatprep.subr.mxu0 0.0
  %5219 = vmatpush1.msra.mxu0 0.0
  %5220 = vmatprep.subr.mxu0 0.0
  %5221 = vmatpush1.msra.mxu0 0.0
  %5222 = vmatprep.subr.mxu0 0.0
  %5223 = vmatpush1.msra.mxu0 0.0
  %5224 = vmatprep.subr.mxu0 0.0
  %5225 = vmatpush1.msra.mxu0 0.0
  %5226 = vmatprep.subr.mxu0 0.0
  %5227 = vmatpush1.msra.mxu0 0.0
  %5228 = vmatprep.subr.mxu0 0.0
  %5229 = vmatpush1.msra.mxu0 0.0
  %5230 = vmatprep.subr.mxu0 0.0
  %5231 = vmatpush1.msra.mxu0 0.0
  %5232 = vmatprep.subr.mxu0 0.0
  %5233 = vmatpush1.msra.mxu0 0.0
  %5234 = vmatprep.subr.mxu0 0.0
  %5235 = vmatpush1.msra.mxu0 0.0
  %5236 = vmatprep.subr.mxu0 0.0
  %5237 = vmatpush1.msra.mxu0 0.0
  %5238 = vmatprep.subr.mxu0 0.0
  %5239 = vmatpush1.msra.mxu0 0.0
  %5240 = vmatprep.subr.mxu0 0.0
  %5241 = vmatpush1.msra.mxu0 0.0
  %5242 = vmatprep.subr.mxu0 0.0
  %5243 = vmatpush1.msra.mxu0 0.0
  %5244 = vmatprep.subr.mxu0 0.0
  %5245 = vmatpush1.msra.mxu0 0.0
  %5246 = vmatprep.subr.mxu0 0.0
  %5247 = vmatpush1.msra.mxu0 0.0
  %5248 = vmatprep.subr.mxu0 0.0
  %5249 = vmatpush1.msra.mxu0 0.0
  %5250 = vmatprep.subr.mxu0 0.0
  %5251 = vmatpush1.msra.mxu0 0.0
  %5252 = vmatprep.subr.mxu0 0.0
  %5253 = vmatpush1.msra.mxu0 0.0
  %5254 = vmatprep.subr.mxu0 0.0
  %5255 = vmatpush1.msra.mxu0 0.0
  %5256 = vmatprep.subr.mxu0 0.0
  %5257 = vmatpush1.msra.mxu0 0.0
  %5258 = vmatprep.subr.mxu0 0.0
  %5259 = vmatpush1.msra.mxu0 0.0
  %5260 = vmatprep.subr.mxu0 0.0
  %5261 = vmatpush1.msra.mxu0 0.0
  %5262 = vmatprep.subr.mxu0 0.0
  %5263 = vmatpush1.msra.mxu0 0.0
  %5264 = vmatprep.subr.mxu0 0.0
  %5265 = vmatpush1.msra.mxu0 0.0
  %5266 = vmatprep.subr.mxu0 0.0
  %5267 = vmatpush1.msra.mxu0 0.0
  %5268 = vmatprep.subr.mxu0 0.0
  %5269 = vmatpush1.msra.mxu0 0.0
  %5270 = vmatprep.mubr.f32.mxu0 0.0
  %v5271 = vand.u32 %v4865, 4294901760
  %5272 = vmatmul.mubr.f32.gmra.mrb[0].mxu0 %v5271
  %v5273 = vpop.f32.mrb[0].mxu0
  %v5274 = vadd.f32 %v5191, %v5273
  %v5275 = vpop.f32.mrb[0].mxu0
  %5276 = vdwg.mxu0
  %5277 = vmatprep.subr.mxu0 0.0
  %v5278 = vand.u32 %v1856, 4294901760
  %5279 = vmatpush1.msra.mxu0 %v5278
  %5280 = vmatprep.subr.mxu0 0.0
  %v5281 = vand.u32 %v1857, 4294901760
  %5282 = vmatpush1.msra.mxu0 %v5281
  %5283 = vmatprep.subr.mxu0 0.0
  %v5284 = vand.u32 %v1858, 4294901760
  %5285 = vmatpush1.msra.mxu0 %v5284
  %5286 = vmatprep.subr.mxu0 0.0
  %v5287 = vand.u32 %v1859, 4294901760
  %5288 = vmatpush1.msra.mxu0 %v5287
  %5289 = vmatprep.subr.mxu0 0.0
  %5290 = vmatpush1.msra.mxu0 0.0
  %5291 = vmatprep.subr.mxu0 0.0
  %5292 = vmatpush1.msra.mxu0 0.0
  %5293 = vmatprep.subr.mxu0 0.0
  %5294 = vmatpush1.msra.mxu0 0.0
  %5295 = vmatprep.subr.mxu0 0.0
  %5296 = vmatpush1.msra.mxu0 0.0
  %5297 = vmatprep.subr.mxu0 0.0
  %5298 = vmatpush1.msra.mxu0 0.0
  %5299 = vmatprep.subr.mxu0 0.0
  %5300 = vmatpush1.msra.mxu0 0.0
  %5301 = vmatprep.subr.mxu0 0.0
  %5302 = vmatpush1.msra.mxu0 0.0
  %5303 = vmatprep.subr.mxu0 0.0
  %5304 = vmatpush1.msra.mxu0 0.0
  %5305 = vmatprep.subr.mxu0 0.0
  %5306 = vmatpush1.msra.mxu0 0.0
  %5307 = vmatprep.subr.mxu0 0.0
  %5308 = vmatpush1.msra.mxu0 0.0
  %5309 = vmatprep.subr.mxu0 0.0
  %5310 = vmatpush1.msra.mxu0 0.0
  %5311 = vmatprep.subr.mxu0 0.0
  %5312 = vmatpush1.msra.mxu0 0.0
  %5313 = vmatprep.subr.mxu0 0.0
  %5314 = vmatpush1.msra.mxu0 0.0
  %5315 = vmatprep.subr.mxu0 0.0
  %5316 = vmatpush1.msra.mxu0 0.0
  %5317 = vmatprep.subr.mxu0 0.0
  %5318 = vmatpush1.msra.mxu0 0.0
  %5319 = vmatprep.subr.mxu0 0.0
  %5320 = vmatpush1.msra.mxu0 0.0
  %5321 = vmatprep.subr.mxu0 0.0
  %5322 = vmatpush1.msra.mxu0 0.0
  %5323 = vmatprep.subr.mxu0 0.0
  %5324 = vmatpush1.msra.mxu0 0.0
  %5325 = vmatprep.subr.mxu0 0.0
  %5326 = vmatpush1.msra.mxu0 0.0
  %5327 = vmatprep.subr.mxu0 0.0
  %5328 = vmatpush1.msra.mxu0 0.0
  %5329 = vmatprep.subr.mxu0 0.0
  %5330 = vmatpush1.msra.mxu0 0.0
  %5331 = vmatprep.subr.mxu0 0.0
  %5332 = vmatpush1.msra.mxu0 0.0
  %5333 = vmatprep.subr.mxu0 0.0
  %5334 = vmatpush1.msra.mxu0 0.0
  %5335 = vmatprep.subr.mxu0 0.0
  %5336 = vmatpush1.msra.mxu0 0.0
  %5337 = vmatprep.subr.mxu0 0.0
  %5338 = vmatpush1.msra.mxu0 0.0
  %5339 = vmatprep.subr.mxu0 0.0
  %5340 = vmatpush1.msra.mxu0 0.0
  %5341 = vmatprep.subr.mxu0 0.0
  %5342 = vmatpush1.msra.mxu0 0.0
  %5343 = vmatprep.subr.mxu0 0.0
  %5344 = vmatpush1.msra.mxu0 0.0
  %5345 = vmatprep.mubr.f32.mxu0 0.0
  %v5346 = vand.u32 %v4865, 4294901760
  %5347 = vmatmul.mubr.f32.gmra.mrb[0].mxu0 %v5346
  %v5348 = vpop.f32.mrb[0].mxu0
  %v5349 = vadd.f32 %v5274, %v5348
  %v5350 = vpop.f32.mrb[0].mxu0
  %5351 = vdwg.mxu0
  %5352 = vmatprep.subr.mxu0 0.0
  %v5353 = vand.u32 %v1860, 4294901760
  %5354 = vmatpush1.msra.mxu0 %v5353
  %5355 = vmatprep.subr.mxu0 0.0
  %v5356 = vand.u32 %v1861, 4294901760
  %5357 = vmatpush1.msra.mxu0 %v5356
  %5358 = vmatprep.subr.mxu0 0.0
  %v5359 = vand.u32 %v1862, 4294901760
  %5360 = vmatpush1.msra.mxu0 %v5359
  %5361 = vmatprep.subr.mxu0 0.0
  %v5362 = vand.u32 %v1863, 4294901760
  %5363 = vmatpush1.msra.mxu0 %v5362
  %5364 = vmatprep.subr.mxu0 0.0
  %5365 = vmatpush1.msra.mxu0 0.0
  %5366 = vmatprep.subr.mxu0 0.0
  %5367 = vmatpush1.msra.mxu0 0.0
  %5368 = vmatprep.subr.mxu0 0.0
  %5369 = vmatpush1.msra.mxu0 0.0
  %5370 = vmatprep.subr.mxu0 0.0
  %5371 = vmatpush1.msra.mxu0 0.0
  %5372 = vmatprep.subr.mxu0 0.0
  %5373 = vmatpush1.msra.mxu0 0.0
  %5374 = vmatprep.subr.mxu0 0.0
  %5375 = vmatpush1.msra.mxu0 0.0
  %5376 = vmatprep.subr.mxu0 0.0
  %5377 = vmatpush1.msra.mxu0 0.0
  %5378 = vmatprep.subr.mxu0 0.0
  %5379 = vmatpush1.msra.mxu0 0.0
  %5380 = vmatprep.subr.mxu0 0.0
  %5381 = vmatpush1.msra.mxu0 0.0
  %5382 = vmatprep.subr.mxu0 0.0
  %5383 = vmatpush1.msra.mxu0 0.0
  %5384 = vmatprep.subr.mxu0 0.0
  %5385 = vmatpush1.msra.mxu0 0.0
  %5386 = vmatprep.subr.mxu0 0.0
  %5387 = vmatpush1.msra.mxu0 0.0
  %5388 = vmatprep.subr.mxu0 0.0
  %5389 = vmatpush1.msra.mxu0 0.0
  %5390 = vmatprep.subr.mxu0 0.0
  %5391 = vmatpush1.msra.mxu0 0.0
  %5392 = vmatprep.subr.mxu0 0.0
  %5393 = vmatpush1.msra.mxu0 0.0
  %5394 = vmatprep.subr.mxu0 0.0
  %5395 = vmatpush1.msra.mxu0 0.0
  %5396 = vmatprep.subr.mxu0 0.0
  %5397 = vmatpush1.msra.mxu0 0.0
  %5398 = vmatprep.subr.mxu0 0.0
  %5399 = vmatpush1.msra.mxu0 0.0
  %5400 = vmatprep.subr.mxu0 0.0
  %5401 = vmatpush1.msra.mxu0 0.0
  %5402 = vmatprep.subr.mxu0 0.0
  %5403 = vmatpush1.msra.mxu0 0.0
  %5404 = vmatprep.subr.mxu0 0.0
  %5405 = vmatpush1.msra.mxu0 0.0
  %5406 = vmatprep.subr.mxu0 0.0
  %5407 = vmatpush1.msra.mxu0 0.0
  %5408 = vmatprep.subr.mxu0 0.0
  %5409 = vmatpush1.msra.mxu0 0.0
  %5410 = vmatprep.subr.mxu0 0.0
  %5411 = vmatpush1.msra.mxu0 0.0
  %5412 = vmatprep.subr.mxu0 0.0
  %5413 = vmatpush1.msra.mxu0 0.0
  %5414 = vmatprep.subr.mxu0 0.0
  %5415 = vmatpush1.msra.mxu0 0.0
  %5416 = vmatprep.subr.mxu0 0.0
  %5417 = vmatpush1.msra.mxu0 0.0
  %5418 = vmatprep.subr.mxu0 0.0
  %5419 = vmatpush1.msra.mxu0 0.0
  %5420 = vmatprep.mubr.f32.mxu0 0.0
  %v5421 = vand.u32 %v4865, 4294901760
  %v5422 = vsub.f32 %v4865, %v5421
  %v5423 = vand.u32 %v5422, 4294901760
  %v5424 = vsub.f32 %v5422, %v5423
  %v5425 = vand.u32 %v5424, 4294901760
  %5426 = vmatmul.mubr.f32.gmra.mrb[0].mxu0 %v5425
  %v5427 = vpop.f32.mrb[0].mxu0
  %v5428 = vadd.f32 %v2359, %v5427
  %v5429 = vpop.f32.mrb[0].mxu0
  %5430 = vdwg.mxu0
  %5431 = vmatprep.subr.mxu0 0.0
  %v5432 = vand.u32 %v1860, 4294901760
  %v5433 = vsub.f32 %v1860, %v5432
  %v5434 = vand.u32 %v5433, 4294901760
  %v5435 = vsub.f32 %v5433, %v5434
  %v5436 = vand.u32 %v5435, 4294901760
  %5437 = vmatpush1.msra.mxu0 %v5436
  %5438 = vmatprep.subr.mxu0 0.0
  %v5439 = vand.u32 %v1861, 4294901760
  %v5440 = vsub.f32 %v1861, %v5439
  %v5441 = vand.u32 %v5440, 4294901760
  %v5442 = vsub.f32 %v5440, %v5441
  %v5443 = vand.u32 %v5442, 4294901760
  %5444 = vmatpush1.msra.mxu0 %v5443
  %5445 = vmatprep.subr.mxu0 0.0
  %v5446 = vand.u32 %v1862, 4294901760
  %v5447 = vsub.f32 %v1862, %v5446
  %v5448 = vand.u32 %v5447, 4294901760
  %v5449 = vsub.f32 %v5447, %v5448
  %v5450 = vand.u32 %v5449, 4294901760
  %5451 = vmatpush1.msra.mxu0 %v5450
  %5452 = vmatprep.subr.mxu0 0.0
  %v5453 = vand.u32 %v1863, 4294901760
  %v5454 = vsub.f32 %v1863, %v5453
  %v5455 = vand.u32 %v5454, 4294901760
  %v5456 = vsub.f32 %v5454, %v5455
  %v5457 = vand.u32 %v5456, 4294901760
  %5458 = vmatpush1.msra.mxu0 %v5457
  %5459 = vmatprep.subr.mxu0 0.0
  %5460 = vmatpush1.msra.mxu0 0.0
  %5461 = vmatprep.subr.mxu0 0.0
  %5462 = vmatpush1.msra.mxu0 0.0
  %5463 = vmatprep.subr.mxu0 0.0
  %5464 = vmatpush1.msra.mxu0 0.0
  %5465 = vmatprep.subr.mxu0 0.0
  %5466 = vmatpush1.msra.mxu0 0.0
  %5467 = vmatprep.subr.mxu0 0.0
  %5468 = vmatpush1.msra.mxu0 0.0
  %5469 = vmatprep.subr.mxu0 0.0
  %5470 = vmatpush1.msra.mxu0 0.0
  %5471 = vmatprep.subr.mxu0 0.0
  %5472 = vmatpush1.msra.mxu0 0.0
  %5473 = vmatprep.subr.mxu0 0.0
  %5474 = vmatpush1.msra.mxu0 0.0
  %5475 = vmatprep.subr.mxu0 0.0
  %5476 = vmatpush1.msra.mxu0 0.0
  %5477 = vmatprep.subr.mxu0 0.0
  %5478 = vmatpush1.msra.mxu0 0.0
  %5479 = vmatprep.subr.mxu0 0.0
  %5480 = vmatpush1.msra.mxu0 0.0
  %5481 = vmatprep.subr.mxu0 0.0
  %5482 = vmatpush1.msra.mxu0 0.0
  %5483 = vmatprep.subr.mxu0 0.0
  %5484 = vmatpush1.msra.mxu0 0.0
  %5485 = vmatprep.subr.mxu0 0.0
  %5486 = vmatpush1.msra.mxu0 0.0
  %5487 = vmatprep.subr.mxu0 0.0
  %5488 = vmatpush1.msra.mxu0 0.0
  %5489 = vmatprep.subr.mxu0 0.0
  %5490 = vmatpush1.msra.mxu0 0.0
  %5491 = vmatprep.subr.mxu0 0.0
  %5492 = vmatpush1.msra.mxu0 0.0
  %5493 = vmatprep.subr.mxu0 0.0
  %5494 = vmatpush1.msra.mxu0 0.0
  %5495 = vmatprep.subr.mxu0 0.0
  %5496 = vmatpush1.msra.mxu0 0.0
  %5497 = vmatprep.subr.mxu0 0.0
  %5498 = vmatpush1.msra.mxu0 0.0
  %5499 = vmatprep.subr.mxu0 0.0
  %5500 = vmatpush1.msra.mxu0 0.0
  %5501 = vmatprep.subr.mxu0 0.0
  %5502 = vmatpush1.msra.mxu0 0.0
  %5503 = vmatprep.subr.mxu0 0.0
  %5504 = vmatpush1.msra.mxu0 0.0
  %5505 = vmatprep.subr.mxu0 0.0
  %5506 = vmatpush1.msra.mxu0 0.0
  %5507 = vmatprep.subr.mxu0 0.0
  %5508 = vmatpush1.msra.mxu0 0.0
  %5509 = vmatprep.subr.mxu0 0.0
  %5510 = vmatpush1.msra.mxu0 0.0
  %5511 = vmatprep.subr.mxu0 0.0
  %5512 = vmatpush1.msra.mxu0 0.0
  %5513 = vmatprep.subr.mxu0 0.0
  %5514 = vmatpush1.msra.mxu0 0.0
  %5515 = vmatprep.mubr.f32.mxu0 0.0
  %v5516 = vand.u32 %v4865, 4294901760
  %5517 = vmatmul.mubr.f32.gmra.mrb[0].mxu0 %v5516
  %v5518 = vpop.f32.mrb[0].mxu0
  %v5519 = vadd.f32 %v5428, %v5518
  %v5520 = vpop.f32.mrb[0].mxu0
  %5521 = vdwg.mxu0
  %5522 = vmatprep.subr.mxu0 0.0
  %v5523 = vand.u32 %v1860, 4294901760
  %v5524 = vsub.f32 %v1860, %v5523
  %5525 = vmatpush1.msra.mxu0 %v5524
  %5526 = vmatprep.subr.mxu0 0.0
  %v5527 = vand.u32 %v1861, 4294901760
  %v5528 = vsub.f32 %v1861, %v5527
  %5529 = vmatpush1.msra.mxu0 %v5528
  %5530 = vmatprep.subr.mxu0 0.0
  %v5531 = vand.u32 %v1862, 4294901760
  %v5532 = vsub.f32 %v1862, %v5531
  %5533 = vmatpush1.msra.mxu0 %v5532
  %5534 = vmatprep.subr.mxu0 0.0
  %v5535 = vand.u32 %v1863, 4294901760
  %v5536 = vsub.f32 %v1863, %v5535
  %5537 = vmatpush1.msra.mxu0 %v5536
  %5538 = vmatprep.subr.mxu0 0.0
  %5539 = vmatpush1.msra.mxu0 0.0
  %5540 = vmatprep.subr.mxu0 0.0
  %5541 = vmatpush1.msra.mxu0 0.0
  %5542 = vmatprep.subr.mxu0 0.0
  %5543 = vmatpush1.msra.mxu0 0.0
  %5544 = vmatprep.subr.mxu0 0.0
  %5545 = vmatpush1.msra.mxu0 0.0
  %5546 = vmatprep.subr.mxu0 0.0
  %5547 = vmatpush1.msra.mxu0 0.0
  %5548 = vmatprep.subr.mxu0 0.0
  %5549 = vmatpush1.msra.mxu0 0.0
  %5550 = vmatprep.subr.mxu0 0.0
  %5551 = vmatpush1.msra.mxu0 0.0
  %5552 = vmatprep.subr.mxu0 0.0
  %5553 = vmatpush1.msra.mxu0 0.0
  %5554 = vmatprep.subr.mxu0 0.0
  %5555 = vmatpush1.msra.mxu0 0.0
  %5556 = vmatprep.subr.mxu0 0.0
  %5557 = vmatpush1.msra.mxu0 0.0
  %5558 = vmatprep.subr.mxu0 0.0
  %5559 = vmatpush1.msra.mxu0 0.0
  %5560 = vmatprep.subr.mxu0 0.0
  %5561 = vmatpush1.msra.mxu0 0.0
  %5562 = vmatprep.subr.mxu0 0.0
  %5563 = vmatpush1.msra.mxu0 0.0
  %5564 = vmatprep.subr.mxu0 0.0
  %5565 = vmatpush1.msra.mxu0 0.0
  %5566 = vmatprep.subr.mxu0 0.0
  %5567 = vmatpush1.msra.mxu0 0.0
  %5568 = vmatprep.subr.mxu0 0.0
  %5569 = vmatpush1.msra.mxu0 0.0
  %5570 = vmatprep.subr.mxu0 0.0
  %5571 = vmatpush1.msra.mxu0 0.0
  %5572 = vmatprep.subr.mxu0 0.0
  %5573 = vmatpush1.msra.mxu0 0.0
  %5574 = vmatprep.subr.mxu0 0.0
  %5575 = vmatpush1.msra.mxu0 0.0
  %5576 = vmatprep.subr.mxu0 0.0
  %5577 = vmatpush1.msra.mxu0 0.0
  %5578 = vmatprep.subr.mxu0 0.0
  %5579 = vmatpush1.msra.mxu0 0.0
  %5580 = vmatprep.subr.mxu0 0.0
  %5581 = vmatpush1.msra.mxu0 0.0
  %5582 = vmatprep.subr.mxu0 0.0
  %5583 = vmatpush1.msra.mxu0 0.0
  %5584 = vmatprep.subr.mxu0 0.0
  %5585 = vmatpush1.msra.mxu0 0.0
  %5586 = vmatprep.subr.mxu0 0.0
  %5587 = vmatpush1.msra.mxu0 0.0
  %5588 = vmatprep.subr.mxu0 0.0
  %5589 = vmatpush1.msra.mxu0 0.0
  %5590 = vmatprep.subr.mxu0 0.0
  %5591 = vmatpush1.msra.mxu0 0.0
  %5592 = vmatprep.subr.mxu0 0.0
  %5593 = vmatpush1.msra.mxu0 0.0
  %5594 = vmatprep.mubr.f32.mxu0 0.0
  %v5595 = vand.u32 %v4865, 4294901760
  %v5596 = vsub.f32 %v4865, %v5595
  %5597 = vmatmul.mubr.f32.gmra.mrb[0].mxu0 %v5596
  %v5598 = vpop.f32.mrb[0].mxu0
  %v5599 = vadd.f32 %v5519, %v5598
  %v5600 = vpop.f32.mrb[0].mxu0
  %5601 = vdwg.mxu0
  %5602 = vmatprep.subr.mxu0 0.0
  %v5603 = vand.u32 %v1860, 4294901760
  %5604 = vmatpush1.msra.mxu0 %v5603
  %5605 = vmatprep.subr.mxu0 0.0
  %v5606 = vand.u32 %v1861, 4294901760
  %5607 = vmatpush1.msra.mxu0 %v5606
  %5608 = vmatprep.subr.mxu0 0.0
  %v5609 = vand.u32 %v1862, 4294901760
  %5610 = vmatpush1.msra.mxu0 %v5609
  %5611 = vmatprep.subr.mxu0 0.0
  %v5612 = vand.u32 %v1863, 4294901760
  %5613 = vmatpush1.msra.mxu0 %v5612
  %5614 = vmatprep.subr.mxu0 0.0
  %5615 = vmatpush1.msra.mxu0 0.0
  %5616 = vmatprep.subr.mxu0 0.0
  %5617 = vmatpush1.msra.mxu0 0.0
  %5618 = vmatprep.subr.mxu0 0.0
  %5619 = vmatpush1.msra.mxu0 0.0
  %5620 = vmatprep.subr.mxu0 0.0
  %5621 = vmatpush1.msra.mxu0 0.0
  %5622 = vmatprep.subr.mxu0 0.0
  %5623 = vmatpush1.msra.mxu0 0.0
  %5624 = vmatprep.subr.mxu0 0.0
  %5625 = vmatpush1.msra.mxu0 0.0
  %5626 = vmatprep.subr.mxu0 0.0
  %5627 = vmatpush1.msra.mxu0 0.0
  %5628 = vmatprep.subr.mxu0 0.0
  %5629 = vmatpush1.msra.mxu0 0.0
  %5630 = vmatprep.subr.mxu0 0.0
  %5631 = vmatpush1.msra.mxu0 0.0
  %5632 = vmatprep.subr.mxu0 0.0
  %5633 = vmatpush1.msra.mxu0 0.0
  %5634 = vmatprep.subr.mxu0 0.0
  %5635 = vmatpush1.msra.mxu0 0.0
  %5636 = vmatprep.subr.mxu0 0.0
  %5637 = vmatpush1.msra.mxu0 0.0
  %5638 = vmatprep.subr.mxu0 0.0
  %5639 = vmatpush1.msra.mxu0 0.0
  %5640 = vmatprep.subr.mxu0 0.0
  %5641 = vmatpush1.msra.mxu0 0.0
  %5642 = vmatprep.subr.mxu0 0.0
  %5643 = vmatpush1.msra.mxu0 0.0
  %5644 = vmatprep.subr.mxu0 0.0
  %5645 = vmatpush1.msra.mxu0 0.0
  %5646 = vmatprep.subr.mxu0 0.0
  %5647 = vmatpush1.msra.mxu0 0.0
  %5648 = vmatprep.subr.mxu0 0.0
  %5649 = vmatpush1.msra.mxu0 0.0
  %5650 = vmatprep.subr.mxu0 0.0
  %5651 = vmatpush1.msra.mxu0 0.0
  %5652 = vmatprep.subr.mxu0 0.0
  %5653 = vmatpush1.msra.mxu0 0.0
  %5654 = vmatprep.subr.mxu0 0.0
  %5655 = vmatpush1.msra.mxu0 0.0
  %5656 = vmatprep.subr.mxu0 0.0
  %5657 = vmatpush1.msra.mxu0 0.0
  %5658 = vmatprep.subr.mxu0 0.0
  %5659 = vmatpush1.msra.mxu0 0.0
  %5660 = vmatprep.subr.mxu0 0.0
  %5661 = vmatpush1.msra.mxu0 0.0
  %5662 = vmatprep.subr.mxu0 0.0
  %5663 = vmatpush1.msra.mxu0 0.0
  %5664 = vmatprep.subr.mxu0 0.0
  %5665 = vmatpush1.msra.mxu0 0.0
  %5666 = vmatprep.subr.mxu0 0.0
  %5667 = vmatpush1.msra.mxu0 0.0
  %5668 = vmatprep.subr.mxu0 0.0
  %5669 = vmatpush1.msra.mxu0 0.0
  %5670 = vmatprep.mubr.f32.mxu0 0.0
  %v5671 = vand.u32 %v4865, 4294901760
  %v5672 = vsub.f32 %v4865, %v5671
  %v5673 = vand.u32 %v5672, 4294901760
  %5674 = vmatmul.mubr.f32.gmra.mrb[0].mxu0 %v5673
  %v5675 = vpop.f32.mrb[0].mxu0
  %v5676 = vadd.f32 %v5599, %v5675
  %v5677 = vpop.f32.mrb[0].mxu0
  %5678 = vdwg.mxu0
  %5679 = vmatprep.subr.mxu0 0.0
  %v5680 = vand.u32 %v1860, 4294901760
  %v5681 = vsub.f32 %v1860, %v5680
  %v5682 = vand.u32 %v5681, 4294901760
  %5683 = vmatpush1.msra.mxu0 %v5682
  %5684 = vmatprep.subr.mxu0 0.0
  %v5685 = vand.u32 %v1861, 4294901760
  %v5686 = vsub.f32 %v1861, %v5685
  %v5687 = vand.u32 %v5686, 4294901760
  %5688 = vmatpush1.msra.mxu0 %v5687
  %5689 = vmatprep.subr.mxu0 0.0
  %v5690 = vand.u32 %v1862, 4294901760
  %v5691 = vsub.f32 %v1862, %v5690
  %v5692 = vand.u32 %v5691, 4294901760
  %5693 = vmatpush1.msra.mxu0 %v5692
  %5694 = vmatprep.subr.mxu0 0.0
  %v5695 = vand.u32 %v1863, 4294901760
  %v5696 = vsub.f32 %v1863, %v5695
  %v5697 = vand.u32 %v5696, 4294901760
  %5698 = vmatpush1.msra.mxu0 %v5697
  %5699 = vmatprep.subr.mxu0 0.0
  %5700 = vmatpush1.msra.mxu0 0.0
  %5701 = vmatprep.subr.mxu0 0.0
  %5702 = vmatpush1.msra.mxu0 0.0
  %5703 = vmatprep.subr.mxu0 0.0
  %5704 = vmatpush1.msra.mxu0 0.0
  %5705 = vmatprep.subr.mxu0 0.0
  %5706 = vmatpush1.msra.mxu0 0.0
  %5707 = vmatprep.subr.mxu0 0.0
  %5708 = vmatpush1.msra.mxu0 0.0
  %5709 = vmatprep.subr.mxu0 0.0
  %5710 = vmatpush1.msra.mxu0 0.0
  %5711 = vmatprep.subr.mxu0 0.0
  %5712 = vmatpush1.msra.mxu0 0.0
  %5713 = vmatprep.subr.mxu0 0.0
  %5714 = vmatpush1.msra.mxu0 0.0
  %5715 = vmatprep.subr.mxu0 0.0
  %5716 = vmatpush1.msra.mxu0 0.0
  %5717 = vmatprep.subr.mxu0 0.0
  %5718 = vmatpush1.msra.mxu0 0.0
  %5719 = vmatprep.subr.mxu0 0.0
  %5720 = vmatpush1.msra.mxu0 0.0
  %5721 = vmatprep.subr.mxu0 0.0
  %5722 = vmatpush1.msra.mxu0 0.0
  %5723 = vmatprep.subr.mxu0 0.0
  %5724 = vmatpush1.msra.mxu0 0.0
  %5725 = vmatprep.subr.mxu0 0.0
  %5726 = vmatpush1.msra.mxu0 0.0
  %5727 = vmatprep.subr.mxu0 0.0
  %5728 = vmatpush1.msra.mxu0 0.0
  %5729 = vmatprep.subr.mxu0 0.0
  %5730 = vmatpush1.msra.mxu0 0.0
  %5731 = vmatprep.subr.mxu0 0.0
  %5732 = vmatpush1.msra.mxu0 0.0
  %5733 = vmatprep.subr.mxu0 0.0
  %5734 = vmatpush1.msra.mxu0 0.0
  %5735 = vmatprep.subr.mxu0 0.0
  %5736 = vmatpush1.msra.mxu0 0.0
  %5737 = vmatprep.subr.mxu0 0.0
  %5738 = vmatpush1.msra.mxu0 0.0
  %5739 = vmatprep.subr.mxu0 0.0
  %5740 = vmatpush1.msra.mxu0 0.0
  %5741 = vmatprep.subr.mxu0 0.0
  %5742 = vmatpush1.msra.mxu0 0.0
  %5743 = vmatprep.subr.mxu0 0.0
  %5744 = vmatpush1.msra.mxu0 0.0
  %5745 = vmatprep.subr.mxu0 0.0
  %5746 = vmatpush1.msra.mxu0 0.0
  %5747 = vmatprep.subr.mxu0 0.0
  %5748 = vmatpush1.msra.mxu0 0.0
  %5749 = vmatprep.subr.mxu0 0.0
  %5750 = vmatpush1.msra.mxu0 0.0
  %5751 = vmatprep.subr.mxu0 0.0
  %5752 = vmatpush1.msra.mxu0 0.0
  %5753 = vmatprep.subr.mxu0 0.0
  %5754 = vmatpush1.msra.mxu0 0.0
  %5755 = vmatprep.mubr.f32.mxu0 0.0
  %v5756 = vand.u32 %v4865, 4294901760
  %5757 = vmatmul.mubr.f32.gmra.mrb[0].mxu0 %v5756
  %v5758 = vpop.f32.mrb[0].mxu0
  %v5759 = vadd.f32 %v5676, %v5758
  %v5760 = vpop.f32.mrb[0].mxu0
  %5761 = vdwg.mxu0
  %5762 = vmatprep.subr.mxu0 0.0
  %v5763 = vand.u32 %v1860, 4294901760
  %5764 = vmatpush1.msra.mxu0 %v5763
  %5765 = vmatprep.subr.mxu0 0.0
  %v5766 = vand.u32 %v1861, 4294901760
  %5767 = vmatpush1.msra.mxu0 %v5766
  %5768 = vmatprep.subr.mxu0 0.0
  %v5769 = vand.u32 %v1862, 4294901760
  %5770 = vmatpush1.msra.mxu0 %v5769
  %5771 = vmatprep.subr.mxu0 0.0
  %v5772 = vand.u32 %v1863, 4294901760
  %5773 = vmatpush1.msra.mxu0 %v5772
  %5774 = vmatprep.subr.mxu0 0.0
  %5775 = vmatpush1.msra.mxu0 0.0
  %5776 = vmatprep.subr.mxu0 0.0
  %5777 = vmatpush1.msra.mxu0 0.0
  %5778 = vmatprep.subr.mxu0 0.0
  %5779 = vmatpush1.msra.mxu0 0.0
  %5780 = vmatprep.subr.mxu0 0.0
  %5781 = vmatpush1.msra.mxu0 0.0
  %5782 = vmatprep.subr.mxu0 0.0
  %5783 = vmatpush1.msra.mxu0 0.0
  %5784 = vmatprep.subr.mxu0 0.0
  %5785 = vmatpush1.msra.mxu0 0.0
  %5786 = vmatprep.subr.mxu0 0.0
  %5787 = vmatpush1.msra.mxu0 0.0
  %5788 = vmatprep.subr.mxu0 0.0
  %5789 = vmatpush1.msra.mxu0 0.0
  %5790 = vmatprep.subr.mxu0 0.0
  %5791 = vmatpush1.msra.mxu0 0.0
  %5792 = vmatprep.subr.mxu0 0.0
  %5793 = vmatpush1.msra.mxu0 0.0
  %5794 = vmatprep.subr.mxu0 0.0
  %5795 = vmatpush1.msra.mxu0 0.0
  %5796 = vmatprep.subr.mxu0 0.0
  %5797 = vmatpush1.msra.mxu0 0.0
  %5798 = vmatprep.subr.mxu0 0.0
  %5799 = vmatpush1.msra.mxu0 0.0
  %5800 = vmatprep.subr.mxu0 0.0
  %5801 = vmatpush1.msra.mxu0 0.0
  %5802 = vmatprep.subr.mxu0 0.0
  %5803 = vmatpush1.msra.mxu0 0.0
  %5804 = vmatprep.subr.mxu0 0.0
  %5805 = vmatpush1.msra.mxu0 0.0
  %5806 = vmatprep.subr.mxu0 0.0
  %5807 = vmatpush1.msra.mxu0 0.0
  %5808 = vmatprep.subr.mxu0 0.0
  %5809 = vmatpush1.msra.mxu0 0.0
  %5810 = vmatprep.subr.mxu0 0.0
  %5811 = vmatpush1.msra.mxu0 0.0
  %5812 = vmatprep.subr.mxu0 0.0
  %5813 = vmatpush1.msra.mxu0 0.0
  %5814 = vmatprep.subr.mxu0 0.0
  %5815 = vmatpush1.msra.mxu0 0.0
  %5816 = vmatprep.subr.mxu0 0.0
  %5817 = vmatpush1.msra.mxu0 0.0
  %5818 = vmatprep.subr.mxu0 0.0
  %5819 = vmatpush1.msra.mxu0 0.0
  %5820 = vmatprep.subr.mxu0 0.0
  %5821 = vmatpush1.msra.mxu0 0.0
  %5822 = vmatprep.subr.mxu0 0.0
  %5823 = vmatpush1.msra.mxu0 0.0
  %5824 = vmatprep.subr.mxu0 0.0
  %5825 = vmatpush1.msra.mxu0 0.0
  %5826 = vmatprep.subr.mxu0 0.0
  %5827 = vmatpush1.msra.mxu0 0.0
  %5828 = vmatprep.subr.mxu0 0.0
  %5829 = vmatpush1.msra.mxu0 0.0
  %5830 = vmatprep.mubr.f32.mxu0 0.0
  %v5831 = vand.u32 %v4865, 4294901760
  %5832 = vmatmul.mubr.f32.gmra.mrb[0].mxu0 %v5831
  %v5833 = vpop.f32.mrb[0].mxu0
  %v5834 = vadd.f32 %v5759, %v5833
  %v5835 = vpop.f32.mrb[0].mxu0
  %5836 = vdwg.mxu0
  %v5837 = vadd.f32 %v665, %v5349
  %v5838 = vxor.u32 %v5837, 2147483648
  %v5839 = vmul.f32 %v5838, 1.442695
  %v5840 = vpow.pop %v5839
  %v5841 = vadd.f32 %v5840, 1.0
  %v5842 = vrcp.pop %v5841
  %v5843 = vmul.f32 1.0, %v5842
  %5845 = vrot.lane.b32.xlu0 %v5349, 96
  %v5846 = vpop.permute.xlu0 %5845
  %v5848 = vadd.f32 %v1259, %v5846
  %v5849 = vxor.u32 %v5848, 2147483648
  %v5850 = vmul.f32 %v5849, 1.442695
  %v5851 = vpow.pop %v5850
  %v5852 = vadd.f32 %v5851, 1.0
  %v5853 = vrcp.pop %v5852
  %v5854 = vmul.f32 1.0, %v5853
  %v5855 = vmul.f32 %v5843, %v5834
  %v5856 = vadd.f32 %v1853, %v5855
  %v5857 = vtanh.pop %v5856
  %v5858 = vsub.f32 %v4863, %v5857
  %v5859 = vmul.f32 %v5854, %v5858
  %v5860 = vadd.f32 %v5857, %v5859
  %v5861 = vld [vmem:[%s6] sm:$0xff]
  %v5862 = vld [vmem:[%s6 + $0x8] sm:$0xff]
  %v5863 = vld [vmem:[%s6 + $0x10] sm:$0xff]
  %v5864 = vld [vmem:[%s6 + $0x18] sm:$0xff]
  %v5865 = vld [vmem:[%s7] sm:$0x1]
  %v5867 = vlaneseq
  %v5868 = vshrl.u32 %v5867, 7
  %v5869 = vsub.s32 0, %v5868
  %v5870 = vrot.slane %v5865, %v5869
  %5872 = vmatprep.subr.mxu0 0.0
  %v5873 = vand.u32 %v5861, 4294901760
  %5874 = vmatpush1.msra.mxu0 %v5873
  %5875 = vmatprep.subr.mxu0 0.0
  %v5876 = vand.u32 %v5862, 4294901760
  %5877 = vmatpush1.msra.mxu0 %v5876
  %5878 = vmatprep.subr.mxu0 0.0
  %v5879 = vand.u32 %v5863, 4294901760
  %5880 = vmatpush1.msra.mxu0 %v5879
  %5881 = vmatprep.subr.mxu0 0.0
  %v5882 = vand.u32 %v5864, 4294901760
  %5883 = vmatpush1.msra.mxu0 %v5882
  %5884 = vmatprep.subr.mxu0 0.0
  %5885 = vmatpush1.msra.mxu0 0.0
  %5886 = vmatprep.subr.mxu0 0.0
  %5887 = vmatpush1.msra.mxu0 0.0
  %5888 = vmatprep.subr.mxu0 0.0
  %5889 = vmatpush1.msra.mxu0 0.0
  %5890 = vmatprep.subr.mxu0 0.0
  %5891 = vmatpush1.msra.mxu0 0.0
  %5892 = vmatprep.subr.mxu0 0.0
  %5893 = vmatpush1.msra.mxu0 0.0
  %5894 = vmatprep.subr.mxu0 0.0
  %5895 = vmatpush1.msra.mxu0 0.0
  %5896 = vmatprep.subr.mxu0 0.0
  %5897 = vmatpush1.msra.mxu0 0.0
  %5898 = vmatprep.subr.mxu0 0.0
  %5899 = vmatpush1.msra.mxu0 0.0
  %5900 = vmatprep.subr.mxu0 0.0
  %5901 = vmatpush1.msra.mxu0 0.0
  %5902 = vmatprep.subr.mxu0 0.0
  %5903 = vmatpush1.msra.mxu0 0.0
  %5904 = vmatprep.subr.mxu0 0.0
  %5905 = vmatpush1.msra.mxu0 0.0
  %5906 = vmatprep.subr.mxu0 0.0
  %5907 = vmatpush1.msra.mxu0 0.0
  %5908 = vmatprep.subr.mxu0 0.0
  %5909 = vmatpush1.msra.mxu0 0.0
  %5910 = vmatprep.subr.mxu0 0.0
  %5911 = vmatpush1.msra.mxu0 0.0
  %5912 = vmatprep.subr.mxu0 0.0
  %5913 = vmatpush1.msra.mxu0 0.0
  %5914 = vmatprep.subr.mxu0 0.0
  %5915 = vmatpush1.msra.mxu0 0.0
  %5916 = vmatprep.subr.mxu0 0.0
  %5917 = vmatpush1.msra.mxu0 0.0
  %5918 = vmatprep.subr.mxu0 0.0
  %5919 = vmatpush1.msra.mxu0 0.0
  %5920 = vmatprep.subr.mxu0 0.0
  %5921 = vmatpush1.msra.mxu0 0.0
  %5922 = vmatprep.subr.mxu0 0.0
  %5923 = vmatpush1.msra.mxu0 0.0
  %5924 = vmatprep.subr.mxu0 0.0
  %5925 = vmatpush1.msra.mxu0 0.0
  %5926 = vmatprep.subr.mxu0 0.0
  %5927 = vmatpush1.msra.mxu0 0.0
  %5928 = vmatprep.subr.mxu0 0.0
  %5929 = vmatpush1.msra.mxu0 0.0
  %5930 = vmatprep.subr.mxu0 0.0
  %5931 = vmatpush1.msra.mxu0 0.0
  %5932 = vmatprep.subr.mxu0 0.0
  %5933 = vmatpush1.msra.mxu0 0.0
  %5934 = vmatprep.subr.mxu0 0.0
  %5935 = vmatpush1.msra.mxu0 0.0
  %5936 = vmatprep.subr.mxu0 0.0
  %5937 = vmatpush1.msra.mxu0 0.0
  %5938 = vmatprep.subr.mxu0 0.0
  %5939 = vmatpush1.msra.mxu0 0.0
  %5940 = vmatprep.mubr.f32.mxu0 0.0
  %v5941 = vand.u32 %v2871, 4294901760
  %v5942 = vsub.f32 %v2871, %v5941
  %v5943 = vand.u32 %v5942, 4294901760
  %v5944 = vsub.f32 %v5942, %v5943
  %v5945 = vand.u32 %v5944, 4294901760
  %5946 = vmatmul.mubr.f32.gmra.mrb[0].mxu0 %v5945
  %v5947 = vpop.f32.mrb[0].mxu0
  %v5948 = vadd.f32 %v5870, %v5947
  %v5949 = vpop.f32.mrb[0].mxu0
  %5950 = vdwg.mxu0
  %5951 = vmatprep.subr.mxu0 0.0
  %v5952 = vand.u32 %v5861, 4294901760
  %v5953 = vsub.f32 %v5861, %v5952
  %v5954 = vand.u32 %v5953, 4294901760
  %v5955 = vsub.f32 %v5953, %v5954
  %v5956 = vand.u32 %v5955, 4294901760
  %5957 = vmatpush1.msra.mxu0 %v5956
  %5958 = vmatprep.subr.mxu0 0.0
  %v5959 = vand.u32 %v5862, 4294901760
  %v5960 = vsub.f32 %v5862, %v5959
  %v5961 = vand.u32 %v5960, 4294901760
  %v5962 = vsub.f32 %v5960, %v5961
  %v5963 = vand.u32 %v5962, 4294901760
  %5964 = vmatpush1.msra.mxu0 %v5963
  %5965 = vmatprep.subr.mxu0 0.0
  %v5966 = vand.u32 %v5863, 4294901760
  %v5967 = vsub.f32 %v5863, %v5966
  %v5968 = vand.u32 %v5967, 4294901760
  %v5969 = vsub.f32 %v5967, %v5968
  %v5970 = vand.u32 %v5969, 4294901760
  %5971 = vmatpush1.msra.mxu0 %v5970
  %5972 = vmatprep.subr.mxu0 0.0
  %v5973 = vand.u32 %v5864, 4294901760
  %v5974 = vsub.f32 %v5864, %v5973
  %v5975 = vand.u32 %v5974, 4294901760
  %v5976 = vsub.f32 %v5974, %v5975
  %v5977 = vand.u32 %v5976, 4294901760
  %5978 = vmatpush1.msra.mxu0 %v5977
  %5979 = vmatprep.subr.mxu0 0.0
  %5980 = vmatpush1.msra.mxu0 0.0
  %5981 = vmatprep.subr.mxu0 0.0
  %5982 = vmatpush1.msra.mxu0 0.0
  %5983 = vmatprep.subr.mxu0 0.0
  %5984 = vmatpush1.msra.mxu0 0.0
  %5985 = vmatprep.subr.mxu0 0.0
  %5986 = vmatpush1.msra.mxu0 0.0
  %5987 = vmatprep.subr.mxu0 0.0
  %5988 = vmatpush1.msra.mxu0 0.0
  %5989 = vmatprep.subr.mxu0 0.0
  %5990 = vmatpush1.msra.mxu0 0.0
  %5991 = vmatprep.subr.mxu0 0.0
  %5992 = vmatpush1.msra.mxu0 0.0
  %5993 = vmatprep.subr.mxu0 0.0
  %5994 = vmatpush1.msra.mxu0 0.0
  %5995 = vmatprep.subr.mxu0 0.0
  %5996 = vmatpush1.msra.mxu0 0.0
  %5997 = vmatprep.subr.mxu0 0.0
  %5998 = vmatpush1.msra.mxu0 0.0
  %5999 = vmatprep.subr.mxu0 0.0
  %6000 = vmatpush1.msra.mxu0 0.0
  %6001 = vmatprep.subr.mxu0 0.0
  %6002 = vmatpush1.msra.mxu0 0.0
  %6003 = vmatprep.subr.mxu0 0.0
  %6004 = vmatpush1.msra.mxu0 0.0
  %6005 = vmatprep.subr.mxu0 0.0
  %6006 = vmatpush1.msra.mxu0 0.0
  %6007 = vmatprep.subr.mxu0 0.0
  %6008 = vmatpush1.msra.mxu0 0.0
  %6009 = vmatprep.subr.mxu0 0.0
  %6010 = vmatpush1.msra.mxu0 0.0
  %6011 = vmatprep.subr.mxu0 0.0
  %6012 = vmatpush1.msra.mxu0 0.0
  %6013 = vmatprep.subr.mxu0 0.0
  %6014 = vmatpush1.msra.mxu0 0.0
  %6015 = vmatprep.subr.mxu0 0.0
  %6016 = vmatpush1.msra.mxu0 0.0
  %6017 = vmatprep.subr.mxu0 0.0
  %6018 = vmatpush1.msra.mxu0 0.0
  %6019 = vmatprep.subr.mxu0 0.0
  %6020 = vmatpush1.msra.mxu0 0.0
  %6021 = vmatprep.subr.mxu0 0.0
  %6022 = vmatpush1.msra.mxu0 0.0
  %6023 = vmatprep.subr.mxu0 0.0
  %6024 = vmatpush1.msra.mxu0 0.0
  %6025 = vmatprep.subr.mxu0 0.0
  %6026 = vmatpush1.msra.mxu0 0.0
  %6027 = vmatprep.subr.mxu0 0.0
  %6028 = vmatpush1.msra.mxu0 0.0
  %6029 = vmatprep.subr.mxu0 0.0
  %6030 = vmatpush1.msra.mxu0 0.0
  %6031 = vmatprep.subr.mxu0 0.0
  %6032 = vmatpush1.msra.mxu0 0.0
  %6033 = vmatprep.subr.mxu0 0.0
  %6034 = vmatpush1.msra.mxu0 0.0
  %6035 = vmatprep.mubr.f32.mxu0 0.0
  %v6036 = vand.u32 %v2871, 4294901760
  %6037 = vmatmul.mubr.f32.gmra.mrb[0].mxu0 %v6036
  %v6038 = vpop.f32.mrb[0].mxu0
  %v6039 = vadd.f32 %v5948, %v6038
  %v6040 = vpop.f32.mrb[0].mxu0
  %6041 = vdwg.mxu0
  %6042 = vmatprep.subr.mxu0 0.0
  %v6043 = vand.u32 %v5861, 4294901760
  %v6044 = vsub.f32 %v5861, %v6043
  %6045 = vmatpush1.msra.mxu0 %v6044
  %6046 = vmatprep.subr.mxu0 0.0
  %v6047 = vand.u32 %v5862, 4294901760
  %v6048 = vsub.f32 %v5862, %v6047
  %6049 = vmatpush1.msra.mxu0 %v6048
  %6050 = vmatprep.subr.mxu0 0.0
  %v6051 = vand.u32 %v5863, 4294901760
  %v6052 = vsub.f32 %v5863, %v6051
  %6053 = vmatpush1.msra.mxu0 %v6052
  %6054 = vmatprep.subr.mxu0 0.0
  %v6055 = vand.u32 %v5864, 4294901760
  %v6056 = vsub.f32 %v5864, %v6055
  %6057 = vmatpush1.msra.mxu0 %v6056
  %6058 = vmatprep.subr.mxu0 0.0
  %6059 = vmatpush1.msra.mxu0 0.0
  %6060 = vmatprep.subr.mxu0 0.0
  %6061 = vmatpush1.msra.mxu0 0.0
  %6062 = vmatprep.subr.mxu0 0.0
  %6063 = vmatpush1.msra.mxu0 0.0
  %6064 = vmatprep.subr.mxu0 0.0
  %6065 = vmatpush1.msra.mxu0 0.0
  %6066 = vmatprep.subr.mxu0 0.0
  %6067 = vmatpush1.msra.mxu0 0.0
  %6068 = vmatprep.subr.mxu0 0.0
  %6069 = vmatpush1.msra.mxu0 0.0
  %6070 = vmatprep.subr.mxu0 0.0
  %6071 = vmatpush1.msra.mxu0 0.0
  %6072 = vmatprep.subr.mxu0 0.0
  %6073 = vmatpush1.msra.mxu0 0.0
  %6074 = vmatprep.subr.mxu0 0.0
  %6075 = vmatpush1.msra.mxu0 0.0
  %6076 = vmatprep.subr.mxu0 0.0
  %6077 = vmatpush1.msra.mxu0 0.0
  %6078 = vmatprep.subr.mxu0 0.0
  %6079 = vmatpush1.msra.mxu0 0.0
  %6080 = vmatprep.subr.mxu0 0.0
  %6081 = vmatpush1.msra.mxu0 0.0
  %6082 = vmatprep.subr.mxu0 0.0
  %6083 = vmatpush1.msra.mxu0 0.0
  %6084 = vmatprep.subr.mxu0 0.0
  %6085 = vmatpush1.msra.mxu0 0.0
  %6086 = vmatprep.subr.mxu0 0.0
  %6087 = vmatpush1.msra.mxu0 0.0
  %6088 = vmatprep.subr.mxu0 0.0
  %6089 = vmatpush1.msra.mxu0 0.0
  %6090 = vmatprep.subr.mxu0 0.0
  %6091 = vmatpush1.msra.mxu0 0.0
  %6092 = vmatprep.subr.mxu0 0.0
  %6093 = vmatpush1.msra.mxu0 0.0
  %6094 = vmatprep.subr.mxu0 0.0
  %6095 = vmatpush1.msra.mxu0 0.0
  %6096 = vmatprep.subr.mxu0 0.0
  %6097 = vmatpush1.msra.mxu0 0.0
  %6098 = vmatprep.subr.mxu0 0.0
  %6099 = vmatpush1.msra.mxu0 0.0
  %6100 = vmatprep.subr.mxu0 0.0
  %6101 = vmatpush1.msra.mxu0 0.0
  %6102 = vmatprep.subr.mxu0 0.0
  %6103 = vmatpush1.msra.mxu0 0.0
  %6104 = vmatprep.subr.mxu0 0.0
  %6105 = vmatpush1.msra.mxu0 0.0
  %6106 = vmatprep.subr.mxu0 0.0
  %6107 = vmatpush1.msra.mxu0 0.0
  %6108 = vmatprep.subr.mxu0 0.0
  %6109 = vmatpush1.msra.mxu0 0.0
  %6110 = vmatprep.subr.mxu0 0.0
  %6111 = vmatpush1.msra.mxu0 0.0
  %6112 = vmatprep.subr.mxu0 0.0
  %6113 = vmatpush1.msra.mxu0 0.0
  %6114 = vmatprep.mubr.f32.mxu0 0.0
  %v6115 = vand.u32 %v2871, 4294901760
  %v6116 = vsub.f32 %v2871, %v6115
  %6117 = vmatmul.mubr.f32.gmra.mrb[0].mxu0 %v6116
  %v6118 = vpop.f32.mrb[0].mxu0
  %v6119 = vadd.f32 %v6039, %v6118
  %v6120 = vpop.f32.mrb[0].mxu0
  %6121 = vdwg.mxu0
  %6122 = vmatprep.subr.mxu0 0.0
  %v6123 = vand.u32 %v5861, 4294901760
  %6124 = vmatpush1.msra.mxu0 %v6123
  %6125 = vmatprep.subr.mxu0 0.0
  %v6126 = vand.u32 %v5862, 4294901760
  %6127 = vmatpush1.msra.mxu0 %v6126
  %6128 = vmatprep.subr.mxu0 0.0
  %v6129 = vand.u32 %v5863, 4294901760
  %6130 = vmatpush1.msra.mxu0 %v6129
  %6131 = vmatprep.subr.mxu0 0.0
  %v6132 = vand.u32 %v5864, 4294901760
  %6133 = vmatpush1.msra.mxu0 %v6132
  %6134 = vmatprep.subr.mxu0 0.0
  %6135 = vmatpush1.msra.mxu0 0.0
  %6136 = vmatprep.subr.mxu0 0.0
  %6137 = vmatpush1.msra.mxu0 0.0
  %6138 = vmatprep.subr.mxu0 0.0
  %6139 = vmatpush1.msra.mxu0 0.0
  %6140 = vmatprep.subr.mxu0 0.0
  %6141 = vmatpush1.msra.mxu0 0.0
  %6142 = vmatprep.subr.mxu0 0.0
  %6143 = vmatpush1.msra.mxu0 0.0
  %6144 = vmatprep.subr.mxu0 0.0
  %6145 = vmatpush1.msra.mxu0 0.0
  %6146 = vmatprep.subr.mxu0 0.0
  %6147 = vmatpush1.msra.mxu0 0.0
  %6148 = vmatprep.subr.mxu0 0.0
  %6149 = vmatpush1.msra.mxu0 0.0
  %6150 = vmatprep.subr.mxu0 0.0
  %6151 = vmatpush1.msra.mxu0 0.0
  %6152 = vmatprep.subr.mxu0 0.0
  %6153 = vmatpush1.msra.mxu0 0.0
  %6154 = vmatprep.subr.mxu0 0.0
  %6155 = vmatpush1.msra.mxu0 0.0
  %6156 = vmatprep.subr.mxu0 0.0
  %6157 = vmatpush1.msra.mxu0 0.0
  %6158 = vmatprep.subr.mxu0 0.0
  %6159 = vmatpush1.msra.mxu0 0.0
  %6160 = vmatprep.subr.mxu0 0.0
  %6161 = vmatpush1.msra.mxu0 0.0
  %6162 = vmatprep.subr.mxu0 0.0
  %6163 = vmatpush1.msra.mxu0 0.0
  %6164 = vmatprep.subr.mxu0 0.0
  %6165 = vmatpush1.msra.mxu0 0.0
  %6166 = vmatprep.subr.mxu0 0.0
  %6167 = vmatpush1.msra.mxu0 0.0
  %6168 = vmatprep.subr.mxu0 0.0
  %6169 = vmatpush1.msra.mxu0 0.0
  %6170 = vmatprep.subr.mxu0 0.0
  %6171 = vmatpush1.msra.mxu0 0.0
  %6172 = vmatprep.subr.mxu0 0.0
  %6173 = vmatpush1.msra.mxu0 0.0
  %6174 = vmatprep.subr.mxu0 0.0
  %6175 = vmatpush1.msra.mxu0 0.0
  %6176 = vmatprep.subr.mxu0 0.0
  %6177 = vmatpush1.msra.mxu0 0.0
  %6178 = vmatprep.subr.mxu0 0.0
  %6179 = vmatpush1.msra.mxu0 0.0
  %6180 = vmatprep.subr.mxu0 0.0
  %6181 = vmatpush1.msra.mxu0 0.0
  %6182 = vmatprep.subr.mxu0 0.0
  %6183 = vmatpush1.msra.mxu0 0.0
  %6184 = vmatprep.subr.mxu0 0.0
  %6185 = vmatpush1.msra.mxu0 0.0
  %6186 = vmatprep.subr.mxu0 0.0
  %6187 = vmatpush1.msra.mxu0 0.0
  %6188 = vmatprep.subr.mxu0 0.0
  %6189 = vmatpush1.msra.mxu0 0.0
  %6190 = vmatprep.mubr.f32.mxu0 0.0
  %v6191 = vand.u32 %v2871, 4294901760
  %v6192 = vsub.f32 %v2871, %v6191
  %v6193 = vand.u32 %v6192, 4294901760
  %6194 = vmatmul.mubr.f32.gmra.mrb[0].mxu0 %v6193
  %v6195 = vpop.f32.mrb[0].mxu0
  %v6196 = vadd.f32 %v6119, %v6195
  %v6197 = vpop.f32.mrb[0].mxu0
  %6198 = vdwg.mxu0
  %6199 = vmatprep.subr.mxu0 0.0
  %v6200 = vand.u32 %v5861, 4294901760
  %v6201 = vsub.f32 %v5861, %v6200
  %v6202 = vand.u32 %v6201, 4294901760
  %6203 = vmatpush1.msra.mxu0 %v6202
  %6204 = vmatprep.subr.mxu0 0.0
  %v6205 = vand.u32 %v5862, 4294901760
  %v6206 = vsub.f32 %v5862, %v6205
  %v6207 = vand.u32 %v6206, 4294901760
  %6208 = vmatpush1.msra.mxu0 %v6207
  %6209 = vmatprep.subr.mxu0 0.0
  %v6210 = vand.u32 %v5863, 4294901760
  %v6211 = vsub.f32 %v5863, %v6210
  %v6212 = vand.u32 %v6211, 4294901760
  %6213 = vmatpush1.msra.mxu0 %v6212
  %6214 = vmatprep.subr.mxu0 0.0
  %v6215 = vand.u32 %v5864, 4294901760
  %v6216 = vsub.f32 %v5864, %v6215
  %v6217 = vand.u32 %v6216, 4294901760
  %6218 = vmatpush1.msra.mxu0 %v6217
  %6219 = vmatprep.subr.mxu0 0.0
  %6220 = vmatpush1.msra.mxu0 0.0
  %6221 = vmatprep.subr.mxu0 0.0
  %6222 = vmatpush1.msra.mxu0 0.0
  %6223 = vmatprep.subr.mxu0 0.0
  %6224 = vmatpush1.msra.mxu0 0.0
  %6225 = vmatprep.subr.mxu0 0.0
  %6226 = vmatpush1.msra.mxu0 0.0
  %6227 = vmatprep.subr.mxu0 0.0
  %6228 = vmatpush1.msra.mxu0 0.0
  %6229 = vmatprep.subr.mxu0 0.0
  %6230 = vmatpush1.msra.mxu0 0.0
  %6231 = vmatprep.subr.mxu0 0.0
  %6232 = vmatpush1.msra.mxu0 0.0
  %6233 = vmatprep.subr.mxu0 0.0
  %6234 = vmatpush1.msra.mxu0 0.0
  %6235 = vmatprep.subr.mxu0 0.0
  %6236 = vmatpush1.msra.mxu0 0.0
  %6237 = vmatprep.subr.mxu0 0.0
  %6238 = vmatpush1.msra.mxu0 0.0
  %6239 = vmatprep.subr.mxu0 0.0
  %6240 = vmatpush1.msra.mxu0 0.0
  %6241 = vmatprep.subr.mxu0 0.0
  %6242 = vmatpush1.msra.mxu0 0.0
  %6243 = vmatprep.subr.mxu0 0.0
  %6244 = vmatpush1.msra.mxu0 0.0
  %6245 = vmatprep.subr.mxu0 0.0
  %6246 = vmatpush1.msra.mxu0 0.0
  %6247 = vmatprep.subr.mxu0 0.0
  %6248 = vmatpush1.msra.mxu0 0.0
  %6249 = vmatprep.subr.mxu0 0.0
  %6250 = vmatpush1.msra.mxu0 0.0
  %6251 = vmatprep.subr.mxu0 0.0
  %6252 = vmatpush1.msra.mxu0 0.0
  %6253 = vmatprep.subr.mxu0 0.0
  %6254 = vmatpush1.msra.mxu0 0.0
  %6255 = vmatprep.subr.mxu0 0.0
  %6256 = vmatpush1.msra.mxu0 0.0
  %6257 = vmatprep.subr.mxu0 0.0
  %6258 = vmatpush1.msra.mxu0 0.0
  %6259 = vmatprep.subr.mxu0 0.0
  %6260 = vmatpush1.msra.mxu0 0.0
  %6261 = vmatprep.subr.mxu0 0.0
  %6262 = vmatpush1.msra.mxu0 0.0
  %6263 = vmatprep.subr.mxu0 0.0
  %6264 = vmatpush1.msra.mxu0 0.0
  %6265 = vmatprep.subr.mxu0 0.0
  %6266 = vmatpush1.msra.mxu0 0.0
  %6267 = vmatprep.subr.mxu0 0.0
  %6268 = vmatpush1.msra.mxu0 0.0
  %6269 = vmatprep.subr.mxu0 0.0
  %6270 = vmatpush1.msra.mxu0 0.0
  %6271 = vmatprep.subr.mxu0 0.0
  %6272 = vmatpush1.msra.mxu0 0.0
  %6273 = vmatprep.subr.mxu0 0.0
  %6274 = vmatpush1.msra.mxu0 0.0
  %6275 = vmatprep.mubr.f32.mxu0 0.0
  %v6276 = vand.u32 %v2871, 4294901760
  %6277 = vmatmul.mubr.f32.gmra.mrb[0].mxu0 %v6276
  %v6278 = vpop.f32.mrb[0].mxu0
  %v6279 = vadd.f32 %v6196, %v6278
  %v6280 = vpop.f32.mrb[0].mxu0
  %6281 = vdwg.mxu0
  %6282 = vmatprep.subr.mxu0 0.0
  %v6283 = vand.u32 %v5861, 4294901760
  %6284 = vmatpush1.msra.mxu0 %v6283
  %6285 = vmatprep.subr.mxu0 0.0
  %v6286 = vand.u32 %v5862, 4294901760
  %6287 = vmatpush1.msra.mxu0 %v6286
  %6288 = vmatprep.subr.mxu0 0.0
  %v6289 = vand.u32 %v5863, 4294901760
  %6290 = vmatpush1.msra.mxu0 %v6289
  %6291 = vmatprep.subr.mxu0 0.0
  %v6292 = vand.u32 %v5864, 4294901760
  %6293 = vmatpush1.msra.mxu0 %v6292
  %6294 = vmatprep.subr.mxu0 0.0
  %6295 = vmatpush1.msra.mxu0 0.0
  %6296 = vmatprep.subr.mxu0 0.0
  %6297 = vmatpush1.msra.mxu0 0.0
  %6298 = vmatprep.subr.mxu0 0.0
  %6299 = vmatpush1.msra.mxu0 0.0
  %6300 = vmatprep.subr.mxu0 0.0
  %6301 = vmatpush1.msra.mxu0 0.0
  %6302 = vmatprep.subr.mxu0 0.0
  %6303 = vmatpush1.msra.mxu0 0.0
  %6304 = vmatprep.subr.mxu0 0.0
  %6305 = vmatpush1.msra.mxu0 0.0
  %6306 = vmatprep.subr.mxu0 0.0
  %6307 = vmatpush1.msra.mxu0 0.0
  %6308 = vmatprep.subr.mxu0 0.0
  %6309 = vmatpush1.msra.mxu0 0.0
  %6310 = vmatprep.subr.mxu0 0.0
  %6311 = vmatpush1.msra.mxu0 0.0
  %6312 = vmatprep.subr.mxu0 0.0
  %6313 = vmatpush1.msra.mxu0 0.0
  %6314 = vmatprep.subr.mxu0 0.0
  %6315 = vmatpush1.msra.mxu0 0.0
  %6316 = vmatprep.subr.mxu0 0.0
  %6317 = vmatpush1.msra.mxu0 0.0
  %6318 = vmatprep.subr.mxu0 0.0
  %6319 = vmatpush1.msra.mxu0 0.0
  %6320 = vmatprep.subr.mxu0 0.0
  %6321 = vmatpush1.msra.mxu0 0.0
  %6322 = vmatprep.subr.mxu0 0.0
  %6323 = vmatpush1.msra.mxu0 0.0
  %6324 = vmatprep.subr.mxu0 0.0
  %6325 = vmatpush1.msra.mxu0 0.0
  %6326 = vmatprep.subr.mxu0 0.0
  %6327 = vmatpush1.msra.mxu0 0.0
  %6328 = vmatprep.subr.mxu0 0.0
  %6329 = vmatpush1.msra.mxu0 0.0
  %6330 = vmatprep.subr.mxu0 0.0
  %6331 = vmatpush1.msra.mxu0 0.0
  %6332 = vmatprep.subr.mxu0 0.0
  %6333 = vmatpush1.msra.mxu0 0.0
  %6334 = vmatprep.subr.mxu0 0.0
  %6335 = vmatpush1.msra.mxu0 0.0
  %6336 = vmatprep.subr.mxu0 0.0
  %6337 = vmatpush1.msra.mxu0 0.0
  %6338 = vmatprep.subr.mxu0 0.0
  %6339 = vmatpush1.msra.mxu0 0.0
  %6340 = vmatprep.subr.mxu0 0.0
  %6341 = vmatpush1.msra.mxu0 0.0
  %6342 = vmatprep.subr.mxu0 0.0
  %6343 = vmatpush1.msra.mxu0 0.0
  %6344 = vmatprep.subr.mxu0 0.0
  %6345 = vmatpush1.msra.mxu0 0.0
  %6346 = vmatprep.subr.mxu0 0.0
  %6347 = vmatpush1.msra.mxu0 0.0
  %6348 = vmatprep.subr.mxu0 0.0
  %6349 = vmatpush1.msra.mxu0 0.0
  %6350 = vmatprep.mubr.f32.mxu0 0.0
  %v6351 = vand.u32 %v2871, 4294901760
  %6352 = vmatmul.mubr.f32.gmra.mrb[0].mxu0 %v6351
  %v6353 = vpop.f32.mrb[0].mxu0
  %v6354 = vadd.f32 %v6279, %v6353
  %v6355 = vpop.f32.mrb[0].mxu0
  %6356 = vdwg.mxu0
  %6357 = vmax.xlane.f32.xlu0 %v6354
  %v6358 = vpop.xlane.xlu0 %6357
  %v6359 = vsub.f32 %v6354, %v6358
  %v6360 = vmul.f32 %v6359, 1.442695
  %v6361 = vpow.pop %v6360
  %6362 = vadd.xlane.f32.xlu0 %v6361
  %v6363 = vpop.xlane.xlu0 %6362
  %v6364 = vlog2.pop %v6363
  %v6365 = vmul.f32 %v6364, 0.6931472
  %v6366 = vadd.f32 %v6365, %v6358
  %v6367 = vsub.f32 %v6354, %v6366
  %6368 = vst [vmem:[%s8] sm:$0xff] %v6367
  %6369 = vst.msk [vmem:[%s9] sm:$0xff] %vm1866, %v5860
  // Predicated region
  $region34: #{_decoder_forward.1} parent=0 // pred_check
    _
  $region35: #{_decoder_forward.1} parent=0 // pred_check_branch
    %6371 = sbr.rel (0) target = $region37
  $region36: #{_decoder_forward.1} parent=0 // pred_region
    _
  $region37: #{_decoder_forward.1} parent=0 // pred_fallthru
    _
  // Predicated region
  $region38: #{_decoder_forward.1} parent=0 // pred_check
    _
  $region39: #{_decoder_forward.1} parent=0 // pred_check_branch
    %6373 = sbr.rel (0) target = $region41
  $region40: #{_decoder_forward.1} parent=0 // pred_region
    _
  $region41: #{_decoder_forward.1} parent=0 // pred_fallthru
    _
  // Predicated region
  $region42: #{_decoder_forward.1} parent=0 // pred_check
    _
  $region43: #{_decoder_forward.1} parent=0 // pred_check_branch
    %6375 = sbr.rel (0) target = $region45
  $region44: #{_decoder_forward.1} parent=0 // pred_region
    _
  $region45: #{_decoder_forward.1} parent=0 // pred_fallthru
    _
  // Predicated region
  $region46: #{_decoder_forward.1} parent=0 // pred_check
    _
  $region47: #{_decoder_forward.1} parent=0 // pred_check_branch
    %6377 = sbr.rel (0) target = $region49
  $region48: #{_decoder_forward.1} parent=0 // pred_region
    _
  $region49: #{_decoder_forward.1} parent=0 // pred_fallthru
    _

</llo_original>
